<compile_context>
chip_gen: v7x
topology: tpu7x:2x2x1
jax: 0.10.0
libtpu: 0.0.40
codegen_flags: <defaults>
</compile_context>

<pallas_src>
import functools

import jax
import jax.numpy as jnp
from jax.experimental import pallas as pl
from jax.experimental.pallas import tpu as pltpu


_CP = pltpu.CompilerParams(dimension_semantics=("arbitrary",))


def _round_up(x, m):
    return ((x + m - 1) // m) * m


def _full_spec(shape):
    zeros = (0,) * len(shape)
    return pl.BlockSpec(shape, lambda i: zeros)


# --------------------------------------------------------------------------
# Pallas kernels
# --------------------------------------------------------------------------
def _conv_bias_relu_kernel(x_ref, w_ref, b_ref, o_ref):
    """(M,K)@(K,OC) on the MXU; BN scale pre-folded into W; epilogue +bias, ReLU."""
    acc = jnp.dot(x_ref[...], w_ref[...], preferred_element_type=jnp.float32)
    o_ref[...] = jnp.maximum(acc + b_ref[...], 0.0).astype(o_ref.dtype)


def _block_kernel(p1_ref, w1_ref, b1_ref, mask_ref, w2_ref, b2_ref, *rest,
                  offsets, s_rows, has_downsample):
    """Whole ResNet basic block in one kernel.

    conv1 (+ folded BN1 + ReLU) is computed over the padded output grid
    (rows in padded-flat order, ring rows masked to zero) so conv2's 3x3 taps
    are 9 statically shifted row slices of the resident intermediate.
    Epilogue: + bias2 (+ identity residual | + 1x1 downsample matmul), ReLU.
    """
    if has_downsample:
        pd_ref, wd_ref, o_ref = rest
    else:
        r_ref, o_ref = rest

    h = jnp.dot(p1_ref[...], w1_ref[...], preferred_element_type=jnp.float32)
    h = jnp.maximum(h + b1_ref[...], 0.0) * mask_ref[...]          # (Lp, C) f32

    acc = None
    for k, off in enumerate(offsets):                              # 9 static taps
        lhs = h[off:off + s_rows, :].astype(jnp.bfloat16)
        part = jnp.dot(lhs, w2_ref[k], preferred_element_type=jnp.float32)
        acc = part if acc is None else acc + part
    acc = acc + b2_ref[...]

    if has_downsample:
        acc = acc + jnp.dot(pd_ref[...], wd_ref[...],
                            preferred_element_type=jnp.float32)
    else:
        acc = acc + r_ref[...].astype(jnp.float32)

    o_ref[...] = jnp.maximum(acc, 0.0).astype(o_ref.dtype)


def _avgpool_fc_kernel(x_ref, w_ref, b_ref, o_ref, *, inv_hw):
    """Global average pool over the spatial axis fused with the FC layer."""
    pooled = jnp.sum(x_ref[...].astype(jnp.float32), axis=1) * inv_hw   # (Np, C)
    o_ref[...] = jnp.dot(pooled, w_ref[...],
                         preferred_element_type=jnp.float32) + b_ref[...]


# --------------------------------------------------------------------------
# XLA glue + wrappers
# --------------------------------------------------------------------------
def _im2col_nhwk(x, KH, KW, stride, padding):
    """im2col keeping spatial structure: ((N, OH, OW, KH*KW*C), OH, OW)."""
    N, H, W, C = x.shape
    OH = (H + 2 * padding - KH) // stride + 1
    OW = (W + 2 * padding - KW) // stride + 1
    xp = x if padding == 0 else jnp.pad(
        x, ((0, 0), (padding, padding), (padding, padding), (0, 0)))
    cols = []
    for kh in range(KH):
        for kw in range(KW):
            cols.append(xp[:, kh:kh + (OH - 1) * stride + 1:stride,
                              kw:kw + (OW - 1) * stride + 1:stride, :])
    patches = cols[0] if len(cols) == 1 else jnp.concatenate(cols, axis=-1)
    return patches, OH, OW


def stem_conv(x, w, bn):
    """7x7/s2/p3 conv + folded BN + ReLU as one matmul kernel (bf16 output)."""
    N = x.shape[0]
    KH, KW, _, OC = w.shape
    scale, bias = bn
    patches, OH, OW = _im2col_nhwk(x, KH, KW, 2, 3)
    K = patches.shape[-1]
    M = N * OH * OW
    Mp = _round_up(max(M, 8), 8)
    xb = patches.reshape(M, K)
    if Mp != M:
        xb = jnp.pad(xb, ((0, Mp - M), (0, 0)))
    wf = (w.reshape(K, OC) * scale[None, :]).astype(jnp.bfloat16)

    out = pl.pallas_call(
        _conv_bias_relu_kernel,
        out_shape=jax.ShapeDtypeStruct((Mp, OC), jnp.bfloat16),
        grid=(1,),
        in_specs=[_full_spec((Mp, K)), _full_spec((K, OC)), _full_spec((1, OC))],
        out_specs=_full_spec((Mp, OC)),
        compiler_params=_CP,
    )(xb, wf, bias.reshape(1, OC))
    return out[:M].reshape(N, OH, OW, OC)


def maxpool3x3s2p1(x):
    """3x3/s2/p1 max pool in plain XLA (input is post-ReLU, so 0-pad == -inf pad)."""
    N, H, W, C = x.shape
    OH = (H + 2 - 3) // 2 + 1
    OW = (W + 2 - 3) // 2 + 1
    xp = jnp.pad(x, ((0, 0), (1, 1), (1, 1), (0, 0)))
    out = None
    for kh in range(3):
        for kw in range(3):
            v = xp[:, kh:kh + (OH - 1) * 2 + 1:2, kw:kw + (OW - 1) * 2 + 1:2, :]
            out = v if out is None else jnp.maximum(out, v)
    return out


def basic_block(x, p, stride):
    """One ResNet basic block as a single fused Pallas kernel."""
    N, H, W, Cin = x.shape
    w1 = p["conv1_w"]
    s1, b1 = p["bn1"]
    w2 = p["conv2_w"]
    s2, b2 = p["bn2"]
    C = w1.shape[-1]

    patches, OH, OW = _im2col_nhwk(x, 3, 3, stride, 1)   # conv1 patches (N,OH,OW,K1)
    K1 = patches.shape[-1]
    OHp, OWp = OH + 2, OW + 2                            # conv2's padded input grid
    L = N * OHp * OWp                                    # padded-flat row count
    d = 2 * OWp + 2                                      # largest tap offset
    Sp = _round_up(L - d, 8)                             # output rows (>= all valid q)
    Lp = _round_up(Sp + d, 8)                            # conv1 rows incl. slack

    # conv1 patch rows laid out in padded-flat order (ring rows zero + masked).
    p1 = jnp.pad(patches, ((0, 0), (1, 1), (1, 1), (0, 0))).reshape(L, K1)
    p1 = jnp.pad(p1, ((0, Lp - L), (0, 0)))
    mask = jnp.pad(jnp.ones((N, OH, OW, 1), jnp.float32),
                   ((0, 0), (1, 1), (1, 1), (0, 0))).reshape(L, 1)
    mask = jnp.pad(mask, ((0, Lp - L), (0, 0)))

    w1f = (w1.reshape(K1, C) * s1[None, :]).astype(jnp.bfloat16)
    w2f = (w2 * s2[None, None, None, :]).reshape(9, C, C).astype(jnp.bfloat16)
    offsets = tuple(kh * OWp + kw for kh in range(3) for kw in range(3))

    def to_q_rows(t):   # (N, OH, OW, Ct) -> first Sp rows of the padded-flat layout
        tp = jnp.pad(t, ((0, 0), (0, 2), (0, 2), (0, 0)))
        return tp.reshape(L, t.shape[-1])[:Sp]

    if "down_w" in p:
        ds, db = p["down_bn"]
        # 1x1 downsample conv with the BLOCK stride (bug fix): just a subsample.
        xs = x[:, ::stride, ::stride, :][:, :OH, :OW, :]
        pd = to_q_rows(xs)                                            # (Sp, Cin) bf16
        wdf = (p["down_w"].reshape(Cin, C) * ds[None, :]).astype(jnp.bfloat16)
        b2t = (b2 + db).reshape(1, C)
        kern = functools.partial(_block_kernel, offsets=offsets, s_rows=Sp,
                                 has_downsample=True)
        extra_args = (pd, wdf)
        extra_specs = [_full_spec((Sp, Cin)), _full_spec((Cin, C))]
    else:
        b2t = b2.reshape(1, C)
        kern = functools.partial(_block_kernel, offsets=offsets, s_rows=Sp,
                                 has_downsample=False)
        extra_args = (to_q_rows(x),)                                  # identity residual
        extra_specs = [_full_spec((Sp, C))]

    out = pl.pallas_call(
        kern,
        out_shape=jax.ShapeDtypeStruct((Sp, C), jnp.bfloat16),
        grid=(1,),
        in_specs=[_full_spec((Lp, K1)), _full_spec((K1, C)), _full_spec((1, C)),
                  _full_spec((Lp, 1)), _full_spec((9, C, C)), _full_spec((1, C)),
                  *extra_specs],
        out_specs=_full_spec((Sp, C)),
        compiler_params=_CP,
    )(p1, w1f, b1.reshape(1, C), mask, w2f, b2t, *extra_args)

    # padded-flat rows -> compact NHWC (cheap reshape + slice in XLA).
    out = jnp.pad(out, ((0, L - Sp), (0, 0))).reshape(N, OHp, OWp, C)
    return out[:, :OH, :OW, :]


def avgpool_fc(x, fc_w, fc_b):
    N, H, W, C = x.shape
    HW = H * W
    Np = _round_up(max(N, 8), 8)
    xr = x.reshape(N, HW, C)
    if Np != N:
        xr = jnp.pad(xr, ((0, Np - N), (0, 0), (0, 0)))
    NC = fc_w.shape[1]
    out = pl.pallas_call(
        functools.partial(_avgpool_fc_kernel, inv_hw=1.0 / HW),
        out_shape=jax.ShapeDtypeStruct((Np, NC), jnp.float32),
        grid=(1,),
        in_specs=[_full_spec((Np, HW, C)), _full_spec((C, NC)), _full_spec((1, NC))],
        out_specs=_full_spec((Np, NC)),
        compiler_params=_CP,
    )(xr, fc_w, fc_b.reshape(1, NC))
    return out[:N]


# --------------------------------------------------------------------------
# ResNet-18 structure (basic blocks [2,2,2,2]) with scaled-down channels
# --------------------------------------------------------------------------
IN_C = 3
C1, C2, C3, C4 = 8, 16, 32, 64
NUM_CLASSES = 10


def resnet18_forward(params, x_nchw):
    x = jnp.transpose(x_nchw, (0, 2, 3, 1)).astype(jnp.bfloat16)   # NCHW -> NHWC bf16
    x = stem_conv(x, params["conv1_w"], params["bn1"])
    x = maxpool3x3s2p1(x)
    for name, strides in (("layer1", (1, 1)), ("layer2", (2, 1)),
                          ("layer3", (2, 1)), ("layer4", (2, 1))):
        for bp, s in zip(params[name], strides):
            x = basic_block(x, bp, s)
    return avgpool_fc(x, params["fc_w"], params["fc_b"])   # (N, NUM_CLASSES) f32


# --------------------------------------------------------------------------
# Deterministic parameter construction (BN folded into scale/bias)
# --------------------------------------------------------------------------
def init_params(key):
    keys = iter(jax.random.split(key, 256))

    def conv_w(kh, kw, cin, cout):
        fan_in = kh * kw * cin
        return jax.random.normal(next(keys), (kh, kw, cin, cout),
                                 jnp.float32) * (2.0 / fan_in) ** 0.5

    def bn(c):
        eps = 1e-5
        gamma = 1.0 + 0.1 * jax.random.normal(next(keys), (c,), jnp.float32)
        beta = 0.1 * jax.random.normal(next(keys), (c,), jnp.float32)
        mean = 0.1 * jax.random.normal(next(keys), (c,), jnp.float32)
        var = 1.0 + 0.1 * jax.random.uniform(next(keys), (c,), jnp.float32)
        scale = gamma / jnp.sqrt(var + eps)
        bias = beta - mean * scale
        return (scale, bias)

    def block(cin, cout, stride):
        p = {"conv1_w": conv_w(3, 3, cin, cout), "bn1": bn(cout),
             "conv2_w": conv_w(3, 3, cout, cout), "bn2": bn(cout)}
        if stride != 1 or cin != cout:
            p["down_w"] = conv_w(1, 1, cin, cout)
            p["down_bn"] = bn(cout)
        return p

    return {
        "conv1_w": conv_w(7, 7, IN_C, C1),
        "bn1": bn(C1),
        "layer1": [block(C1, C1, 1), block(C1, C1, 1)],
        "layer2": [block(C1, C2, 2), block(C2, C2, 1)],
        "layer3": [block(C2, C3, 2), block(C3, C3, 1)],
        "layer4": [block(C3, C4, 2), block(C4, C4, 1)],
        "fc_w": 0.1 * jax.random.normal(next(keys), (C4, NUM_CLASSES), jnp.float32),
        "fc_b": 0.01 * jax.random.normal(next(keys), (NUM_CLASSES,), jnp.float32),
    }


# --------------------------------------------------------------------------
if __name__ == "__main__":
    key = jax.random.PRNGKey(0)
    pkey, xkey = jax.random.split(key)
    params = init_params(pkey)
    x = jax.random.normal(xkey, (2, IN_C, 32, 32), jnp.float32)  # NCHW like PyTorch

    fwd = jax.jit(resnet18_forward)
    logits = fwd(params, x)
    jax.block_until_ready(logits)

    assert logits.shape == (2, NUM_CLASSES)
    assert bool(jnp.all(jnp.isfinite(logits)))
    print("KERNEL_OK")
</pallas_src>

<mosaic_0001>
module attributes {stable_mosaic.version = 11 : i64} {
  func.func @_conv_bias_relu_kernel(%arg0: i32, %arg1: memref<512x147xbf16, #tpu.memory_space<vmem>>, %arg2: memref<147x8xbf16, #tpu.memory_space<vmem>>, %arg3: memref<1x8xf32, #tpu.memory_space<vmem>>, %arg4: memref<512x8xbf16, #tpu.memory_space<vmem>>) attributes {dimension_semantics = [#tpu.dimension_semantics<arbitrary>], iteration_bounds = array<i64: 1>, scalar_prefetch = 0 : i64, scratch_operands = 0 : i64, tpu.core_type = #tpu.core_type<tc>, window_params = [{pipeline_mode = #tpu.pipeline_mode<synchronous>, transform_indices = @transform_0, window_bounds = array<i64: 512, 147>}, {pipeline_mode = #tpu.pipeline_mode<synchronous>, transform_indices = @transform_1, window_bounds = array<i64: 147, 8>}, {pipeline_mode = #tpu.pipeline_mode<synchronous>, transform_indices = @transform_2, window_bounds = array<i64: 1, 8>}, {pipeline_mode = #tpu.pipeline_mode<synchronous>, transform_indices = @transform_3, window_bounds = array<i64: 512, 8>}]} {
    %c0 = arith.constant 0 : index
    %c0_0 = arith.constant 0 : index
    %0 = vector.load %arg1[%c0, %c0_0] : memref<512x147xbf16, #tpu.memory_space<vmem>>, vector<512x147xbf16>
    %c0_1 = arith.constant 0 : index
    %c0_2 = arith.constant 0 : index
    %1 = vector.load %arg2[%c0_1, %c0_2] : memref<147x8xbf16, #tpu.memory_space<vmem>>, vector<147x8xbf16>
    %cst = arith.constant dense<0.000000e+00> : vector<512x8xf32>
    %2 = tpu.matmul %0, %1, %cst {dimension_numbers = #tpu.dot_dimension_numbers<[1], [0], [0], [1], [0, 0, 1, 1], [], []>} : vector<512x147xbf16>, vector<147x8xbf16>, vector<512x8xf32> -> vector<512x8xf32>
    %c0_3 = arith.constant 0 : index
    %c0_4 = arith.constant 0 : index
    %3 = vector.load %arg3[%c0_3, %c0_4] : memref<1x8xf32, #tpu.memory_space<vmem>>, vector<1x8xf32>
    %4 = vector.broadcast %3 : vector<1x8xf32> to vector<512x8xf32>
    %5 = arith.addf %2, %4 : vector<512x8xf32>
    %cst_5 = arith.constant 0.000000e+00 : f32
    %6 = vector.broadcast %cst_5 : f32 to vector<512x8xf32>
    %7 = arith.maximumf %5, %6 : vector<512x8xf32>
    %8 = arith.truncf %7 : vector<512x8xf32> to vector<512x8xbf16>
    %c0_6 = arith.constant 0 : index
    %c0_7 = arith.constant 0 : index
    %9 = vector.load %arg4[%c0_6, %c0_7] : memref<512x8xbf16, #tpu.memory_space<vmem>>, vector<512x8xbf16>
    tpu.vector_store %arg4[%c0_6, %c0_7], %8 {strides = array<i32>} : memref<512x8xbf16, #tpu.memory_space<vmem>>, vector<512x8xbf16>,
    return
  }
  func.func @transform_0(%arg0: i32) -> (i32, i32) {
    %c0_i32 = arith.constant 0 : i32
    %c0_i32_0 = arith.constant 0 : i32
    %c0_i32_1 = arith.constant 0 : i32
    return %c0_i32, %c0_i32_0 : i32, i32
  }
  func.func @transform_1(%arg0: i32) -> (i32, i32) {
    %c0_i32 = arith.constant 0 : i32
    %c0_i32_0 = arith.constant 0 : i32
    %c0_i32_1 = arith.constant 0 : i32
    return %c0_i32, %c0_i32_0 : i32, i32
  }
  func.func @transform_2(%arg0: i32) -> (i32, i32) {
    %c0_i32 = arith.constant 0 : i32
    %c0_i32_0 = arith.constant 0 : i32
    %c0_i32_1 = arith.constant 0 : i32
    return %c0_i32, %c0_i32_0 : i32, i32
  }
  func.func @transform_3(%arg0: i32) -> (i32, i32) {
    %c0_i32 = arith.constant 0 : i32
    %c0_i32_0 = arith.constant 0 : i32
    %c0_i32_1 = arith.constant 0 : i32
    return %c0_i32, %c0_i32_0 : i32, i32
  }
}

module attributes {stable_mosaic.version = 11 : i64} {
  func.func @_block_kernel(%arg0: i32, %arg1: memref<208x72xbf16, #tpu.memory_space<vmem>>, %arg2: memref<72x8xbf16, #tpu.memory_space<vmem>>, %arg3: memref<1x8xf32, #tpu.memory_space<vmem>>, %arg4: memref<208x1xf32, #tpu.memory_space<vmem>>, %arg5: memref<9x8x8xbf16, #tpu.memory_space<vmem>>, %arg6: memref<1x8xf32, #tpu.memory_space<vmem>>, %arg7: memref<184x8xbf16, #tpu.memory_space<vmem>>, %arg8: memref<184x8xbf16, #tpu.memory_space<vmem>>) attributes {dimension_semantics = [#tpu.dimension_semantics<arbitrary>], iteration_bounds = array<i64: 1>, scalar_prefetch = 0 : i64, scratch_operands = 0 : i64, tpu.core_type = #tpu.core_type<tc>, window_params = [{pipeline_mode = #tpu.pipeline_mode<synchronous>, transform_indices = @transform_0, window_bounds = array<i64: 208, 72>}, {pipeline_mode = #tpu.pipeline_mode<synchronous>, transform_indices = @transform_1, window_bounds = array<i64: 72, 8>}, {pipeline_mode = #tpu.pipeline_mode<synchronous>, transform_indices = @transform_2, window_bounds = array<i64: 1, 8>}, {pipeline_mode = #tpu.pipeline_mode<synchronous>, transform_indices = @transform_3, window_bounds = array<i64: 208, 1>}, {pipeline_mode = #tpu.pipeline_mode<synchronous>, transform_indices = @transform_4, window_bounds = array<i64: 9, 8, 8>}, {pipeline_mode = #tpu.pipeline_mode<synchronous>, transform_indices = @transform_5, window_bounds = array<i64: 1, 8>}, {pipeline_mode = #tpu.pipeline_mode<synchronous>, transform_indices = @transform_6, window_bounds = array<i64: 184, 8>}, {pipeline_mode = #tpu.pipeline_mode<synchronous>, transform_indices = @transform_7, window_bounds = array<i64: 184, 8>}]} {
    %c0 = arith.constant 0 : index
    %c0_0 = arith.constant 0 : index
    %0 = vector.load %arg1[%c0, %c0_0] : memref<208x72xbf16, #tpu.memory_space<vmem>>, vector<208x72xbf16>
    %c0_1 = arith.constant 0 : index
    %c0_2 = arith.constant 0 : index
    %1 = vector.load %arg2[%c0_1, %c0_2] : memref<72x8xbf16, #tpu.memory_space<vmem>>, vector<72x8xbf16>
    %cst = arith.constant dense<0.000000e+00> : vector<208x8xf32>
    %2 = tpu.matmul %0, %1, %cst {dimension_numbers = #tpu.dot_dimension_numbers<[1], [0], [0], [1], [0, 0, 1, 1], [], []>} : vector<208x72xbf16>, vector<72x8xbf16>, vector<208x8xf32> -> vector<208x8xf32>
    %c0_3 = arith.constant 0 : index
    %c0_4 = arith.constant 0 : index
    %3 = vector.load %arg3[%c0_3, %c0_4] : memref<1x8xf32, #tpu.memory_space<vmem>>, vector<1x8xf32>
    %4 = vector.broadcast %3 : vector<1x8xf32> to vector<208x8xf32>
    %5 = arith.addf %2, %4 : vector<208x8xf32>
    %cst_5 = arith.constant 0.000000e+00 : f32
    %6 = vector.broadcast %cst_5 : f32 to vector<208x8xf32>
    %7 = arith.maximumf %5, %6 : vector<208x8xf32>
    %c0_6 = arith.constant 0 : index
    %c0_7 = arith.constant 0 : index
    %8 = vector.load %arg4[%c0_6, %c0_7] : memref<208x1xf32, #tpu.memory_space<vmem>>, vector<208x1xf32>
    %9 = vector.broadcast %8 : vector<208x1xf32> to vector<208x8xf32>
    %10 = arith.mulf %7, %9 : vector<208x8xf32>
    %11 = vector.extract_strided_slice %10 {offsets = [0, 0], sizes = [184, 8], strides = [1, 1]} : vector<208x8xf32> to vector<184x8xf32>
    %12 = arith.truncf %11 : vector<184x8xf32> to vector<184x8xbf16>
    %c0_8 = arith.constant 0 : index
    %c0_9 = arith.constant 0 : index
    %c0_10 = arith.constant 0 : index
    %13 = vector.load %arg5[%c0_8, %c0_9, %c0_10] : memref<9x8x8xbf16, #tpu.memory_space<vmem>>, vector<1x8x8xbf16>
    %14 = vector.shape_cast %13 : vector<1x8x8xbf16> to vector<8x8xbf16>
    %cst_11 = arith.constant dense<0.000000e+00> : vector<184x8xf32>
    %15 = tpu.matmul %12, %14, %cst_11 {dimension_numbers = #tpu.dot_dimension_numbers<[1], [0], [0], [1], [0, 0, 1, 1], [], []>} : vector<184x8xbf16>, vector<8x8xbf16>, vector<184x8xf32> -> vector<184x8xf32>
    %16 = vector.extract_strided_slice %10 {offsets = [1, 0], sizes = [184, 8], strides = [1, 1]} : vector<208x8xf32> to vector<184x8xf32>
    %17 = arith.truncf %16 : vector<184x8xf32> to vector<184x8xbf16>
    %c1 = arith.constant 1 : index
    %c0_12 = arith.constant 0 : index
    %c0_13 = arith.constant 0 : index
    %18 = vector.load %arg5[%c1, %c0_12, %c0_13] : memref<9x8x8xbf16, #tpu.memory_space<vmem>>, vector<1x8x8xbf16>
    %19 = vector.shape_cast %18 : vector<1x8x8xbf16> to vector<8x8xbf16>
    %cst_14 = arith.constant dense<0.000000e+00> : vector<184x8xf32>
    %20 = tpu.matmul %17, %19, %cst_14 {dimension_numbers = #tpu.dot_dimension_numbers<[1], [0], [0], [1], [0, 0, 1, 1], [], []>} : vector<184x8xbf16>, vector<8x8xbf16>, vector<184x8xf32> -> vector<184x8xf32>
    %21 = arith.addf %15, %20 : vector<184x8xf32>
    %22 = vector.extract_strided_slice %10 {offsets = [2, 0], sizes = [184, 8], strides = [1, 1]} : vector<208x8xf32> to vector<184x8xf32>
    %23 = arith.truncf %22 : vector<184x8xf32> to vector<184x8xbf16>
    %c2 = arith.constant 2 : index
    %c0_15 = arith.constant 0 : index
    %c0_16 = arith.constant 0 : index
    %24 = vector.load %arg5[%c2, %c0_15, %c0_16] : memref<9x8x8xbf16, #tpu.memory_space<vmem>>, vector<1x8x8xbf16>
    %25 = vector.shape_cast %24 : vector<1x8x8xbf16> to vector<8x8xbf16>
    %cst_17 = arith.constant dense<0.000000e+00> : vector<184x8xf32>
    %26 = tpu.matmul %23, %25, %cst_17 {dimension_numbers = #tpu.dot_dimension_numbers<[1], [0], [0], [1], [0, 0, 1, 1], [], []>} : vector<184x8xbf16>, vector<8x8xbf16>, vector<184x8xf32> -> vector<184x8xf32>
    %27 = arith.addf %21, %26 : vector<184x8xf32>
    %28 = vector.extract_strided_slice %10 {offsets = [10, 0], sizes = [184, 8], strides = [1, 1]} : vector<208x8xf32> to vector<184x8xf32>
    %29 = arith.truncf %28 : vector<184x8xf32> to vector<184x8xbf16>
    %c3 = arith.constant 3 : index
    %c0_18 = arith.constant 0 : index
    %c0_19 = arith.constant 0 : index
    %30 = vector.load %arg5[%c3, %c0_18, %c0_19] : memref<9x8x8xbf16, #tpu.memory_space<vmem>>, vector<1x8x8xbf16>
    %31 = vector.shape_cast %30 : vector<1x8x8xbf16> to vector<8x8xbf16>
    %cst_20 = arith.constant dense<0.000000e+00> : vector<184x8xf32>
    %32 = tpu.matmul %29, %31, %cst_20 {dimension_numbers = #tpu.dot_dimension_numbers<[1], [0], [0], [1], [0, 0, 1, 1], [], []>} : vector<184x8xbf16>, vector<8x8xbf16>, vector<184x8xf32> -> vector<184x8xf32>
    %33 = arith.addf %27, %32 : vector<184x8xf32>
    %34 = vector.extract_strided_slice %10 {offsets = [11, 0], sizes = [184, 8], strides = [1, 1]} : vector<208x8xf32> to vector<184x8xf32>
    %35 = arith.truncf %34 : vector<184x8xf32> to vector<184x8xbf16>
    %c4 = arith.constant 4 : index
    %c0_21 = arith.constant 0 : index
    %c0_22 = arith.constant 0 : index
    %36 = vector.load %arg5[%c4, %c0_21, %c0_22] : memref<9x8x8xbf16, #tpu.memory_space<vmem>>, vector<1x8x8xbf16>
    %37 = vector.shape_cast %36 : vector<1x8x8xbf16> to vector<8x8xbf16>
    %cst_23 = arith.constant dense<0.000000e+00> : vector<184x8xf32>
    %38 = tpu.matmul %35, %37, %cst_23 {dimension_numbers = #tpu.dot_dimension_numbers<[1], [0], [0], [1], [0, 0, 1, 1], [], []>} : vector<184x8xbf16>, vector<8x8xbf16>, vector<184x8xf32> -> vector<184x8xf32>
    %39 = arith.addf %33, %38 : vector<184x8xf32>
    %40 = vector.extract_strided_slice %10 {offsets = [12, 0], sizes = [184, 8], strides = [1, 1]} : vector<208x8xf32> to vector<184x8xf32>
    %41 = arith.truncf %40 : vector<184x8xf32> to vector<184x8xbf16>
    %c5 = arith.constant 5 : index
    %c0_24 = arith.constant 0 : index
    %c0_25 = arith.constant 0 : index
    %42 = vector.load %arg5[%c5, %c0_24, %c0_25] : memref<9x8x8xbf16, #tpu.memory_space<vmem>>, vector<1x8x8xbf16>
    %43 = vector.shape_cast %42 : vector<1x8x8xbf16> to vector<8x8xbf16>
    %cst_26 = arith.constant dense<0.000000e+00> : vector<184x8xf32>
    %44 = tpu.matmul %41, %43, %cst_26 {dimension_numbers = #tpu.dot_dimension_numbers<[1], [0], [0], [1], [0, 0, 1, 1], [], []>} : vector<184x8xbf16>, vector<8x8xbf16>, vector<184x8xf32> -> vector<184x8xf32>
    %45 = arith.addf %39, %44 : vector<184x8xf32>
    %46 = vector.extract_strided_slice %10 {offsets = [20, 0], sizes = [184, 8], strides = [1, 1]} : vector<208x8xf32> to vector<184x8xf32>
    %47 = arith.truncf %46 : vector<184x8xf32> to vector<184x8xbf16>
    %c6 = arith.constant 6 : index
    %c0_27 = arith.constant 0 : index
    %c0_28 = arith.constant 0 : index
    %48 = vector.load %arg5[%c6, %c0_27, %c0_28] : memref<9x8x8xbf16, #tpu.memory_space<vmem>>, vector<1x8x8xbf16>
    %49 = vector.shape_cast %48 : vector<1x8x8xbf16> to vector<8x8xbf16>
    %cst_29 = arith.constant dense<0.000000e+00> : vector<184x8xf32>
    %50 = tpu.matmul %47, %49, %cst_29 {dimension_numbers = #tpu.dot_dimension_numbers<[1], [0], [0], [1], [0, 0, 1, 1], [], []>} : vector<184x8xbf16>, vector<8x8xbf16>, vector<184x8xf32> -> vector<184x8xf32>
    %51 = arith.addf %45, %50 : vector<184x8xf32>
    %52 = vector.extract_strided_slice %10 {offsets = [21, 0], sizes = [184, 8], strides = [1, 1]} : vector<208x8xf32> to vector<184x8xf32>
    %53 = arith.truncf %52 : vector<184x8xf32> to vector<184x8xbf16>
    %c7 = arith.constant 7 : index
    %c0_30 = arith.constant 0 : index
    %c0_31 = arith.constant 0 : index
    %54 = vector.load %arg5[%c7, %c0_30, %c0_31] : memref<9x8x8xbf16, #tpu.memory_space<vmem>>, vector<1x8x8xbf16>
    %55 = vector.shape_cast %54 : vector<1x8x8xbf16> to vector<8x8xbf16>
    %cst_32 = arith.constant dense<0.000000e+00> : vector<184x8xf32>
    %56 = tpu.matmul %53, %55, %cst_32 {dimension_numbers = #tpu.dot_dimension_numbers<[1], [0], [0], [1], [0, 0, 1, 1], [], []>} : vector<184x8xbf16>, vector<8x8xbf16>, vector<184x8xf32> -> vector<184x8xf32>
    %57 = arith.addf %51, %56 : vector<184x8xf32>
    %58 = vector.extract_strided_slice %10 {offsets = [22, 0], sizes = [184, 8], strides = [1, 1]} : vector<208x8xf32> to vector<184x8xf32>
    %59 = arith.truncf %58 : vector<184x8xf32> to vector<184x8xbf16>
    %c8 = arith.constant 8 : index
    %c0_33 = arith.constant 0 : index
    %c0_34 = arith.constant 0 : index
    %60 = vector.load %arg5[%c8, %c0_33, %c0_34] : memref<9x8x8xbf16, #tpu.memory_space<vmem>>, vector<1x8x8xbf16>
    %61 = vector.shape_cast %60 : vector<1x8x8xbf16> to vector<8x8xbf16>
    %cst_35 = arith.constant dense<0.000000e+00> : vector<184x8xf32>
    %62 = tpu.matmul %59, %61, %cst_35 {dimension_numbers = #tpu.dot_dimension_numbers<[1], [0], [0], [1], [0, 0, 1, 1], [], []>} : vector<184x8xbf16>, vector<8x8xbf16>, vector<184x8xf32> -> vector<184x8xf32>
    %63 = arith.addf %57, %62 : vector<184x8xf32>
    %c0_36 = arith.constant 0 : index
    %c0_37 = arith.constant 0 : index
    %64 = vector.load %arg6[%c0_36, %c0_37] : memref<1x8xf32, #tpu.memory_space<vmem>>, vector<1x8xf32>
    %65 = vector.broadcast %64 : vector<1x8xf32> to vector<184x8xf32>
    %66 = arith.addf %63, %65 : vector<184x8xf32>
    %c0_38 = arith.constant 0 : index
    %c0_39 = arith.constant 0 : index
    %67 = vector.load %arg7[%c0_38, %c0_39] : memref<184x8xbf16, #tpu.memory_space<vmem>>, vector<184x8xbf16>
    %68 = arith.extf %67 : vector<184x8xbf16> to vector<184x8xf32>
    %69 = arith.addf %66, %68 : vector<184x8xf32>
    %cst_40 = arith.constant 0.000000e+00 : f32
    %70 = vector.broadcast %cst_40 : f32 to vector<184x8xf32>
    %71 = arith.maximumf %69, %70 : vector<184x8xf32>
    %72 = arith.truncf %71 : vector<184x8xf32> to vector<184x8xbf16>
    %c0_41 = arith.constant 0 : index
    %c0_42 = arith.constant 0 : index
    %73 = vector.load %arg8[%c0_41, %c0_42] : memref<184x8xbf16, #tpu.memory_space<vmem>>, vector<184x8xbf16>
    tpu.vector_store %arg8[%c0_41, %c0_42], %72 {strides = array<i32>} : memref<184x8xbf16, #tpu.memory_space<vmem>>, vector<184x8xbf16>,
    return
  }
  func.func @transform_0(%arg0: i32) -> (i32, i32) {
    %c0_i32 = arith.constant 0 : i32
    %c0_i32_0 = arith.constant 0 : i32
    %c0_i32_1 = arith.constant 0 : i32
    return %c0_i32, %c0_i32_0 : i32, i32
  }
  func.func @transform_1(%arg0: i32) -> (i32, i32) {
    %c0_i32 = arith.constant 0 : i32
    %c0_i32_0 = arith.constant 0 : i32
    %c0_i32_1 = arith.constant 0 : i32
    return %c0_i32, %c0_i32_0 : i32, i32
  }
  func.func @transform_2(%arg0: i32) -> (i32, i32) {
    %c0_i32 = arith.constant 0 : i32
    %c0_i32_0 = arith.constant 0 : i32
    %c0_i32_1 = arith.constant 0 : i32
    return %c0_i32, %c0_i32_0 : i32, i32
  }
  func.func @transform_3(%arg0: i32) -> (i32, i32) {
    %c0_i32 = arith.constant 0 : i32
    %c0_i32_0 = arith.constant 0 : i32
    %c0_i32_1 = arith.constant 0 : i32
    return %c0_i32, %c0_i32_0 : i32, i32
  }
  func.func @transform_4(%arg0: i32) -> (i32, i32, i32) {
    %c0_i32 = arith.constant 0 : i32
    %c0_i32_0 = arith.constant 0 : i32
    %c0_i32_1 = arith.constant 0 : i32
    %c0_i32_2 = arith.constant 0 : i32
    return %c0_i32, %c0_i32_0, %c0_i32_1 : i32, i32, i32
  }
  func.func @transform_5(%arg0: i32) -> (i32, i32) {
    %c0_i32 = arith.constant 0 : i32
    %c0_i32_0 = arith.constant 0 : i32
    %c0_i32_1 = arith.constant 0 : i32
    return %c0_i32, %c0_i32_0 : i32, i32
  }
  func.func @transform_6(%arg0: i32) -> (i32, i32) {
    %c0_i32 = arith.constant 0 : i32
    %c0_i32_0 = arith.constant 0 : i32
    %c0_i32_1 = arith.constant 0 : i32
    return %c0_i32, %c0_i32_0 : i32, i32
  }
  func.func @transform_7(%arg0: i32) -> (i32, i32) {
    %c0_i32 = arith.constant 0 : i32
    %c0_i32_0 = arith.constant 0 : i32
    %c0_i32_1 = arith.constant 0 : i32
    return %c0_i32, %c0_i32_0 : i32, i32
  }
}

module attributes {stable_mosaic.version = 11 : i64} {
  func.func @_block_kernel(%arg0: i32, %arg1: memref<80x72xbf16, #tpu.memory_space<vmem>>, %arg2: memref<72x16xbf16, #tpu.memory_space<vmem>>, %arg3: memref<1x16xf32, #tpu.memory_space<vmem>>, %arg4: memref<80x1xf32, #tpu.memory_space<vmem>>, %arg5: memref<9x16x16xbf16, #tpu.memory_space<vmem>>, %arg6: memref<1x16xf32, #tpu.memory_space<vmem>>, %arg7: memref<64x8xbf16, #tpu.memory_space<vmem>>, %arg8: memref<8x16xbf16, #tpu.memory_space<vmem>>, %arg9: memref<64x16xbf16, #tpu.memory_space<vmem>>) attributes {dimension_semantics = [#tpu.dimension_semantics<arbitrary>], iteration_bounds = array<i64: 1>, scalar_prefetch = 0 : i64, scratch_operands = 0 : i64, tpu.core_type = #tpu.core_type<tc>, window_params = [{pipeline_mode = #tpu.pipeline_mode<synchronous>, transform_indices = @transform_0, window_bounds = array<i64: 80, 72>}, {pipeline_mode = #tpu.pipeline_mode<synchronous>, transform_indices = @transform_1, window_bounds = array<i64: 72, 16>}, {pipeline_mode = #tpu.pipeline_mode<synchronous>, transform_indices = @transform_2, window_bounds = array<i64: 1, 16>}, {pipeline_mode = #tpu.pipeline_mode<synchronous>, transform_indices = @transform_3, window_bounds = array<i64: 80, 1>}, {pipeline_mode = #tpu.pipeline_mode<synchronous>, transform_indices = @transform_4, window_bounds = array<i64: 9, 16, 16>}, {pipeline_mode = #tpu.pipeline_mode<synchronous>, transform_indices = @transform_5, window_bounds = array<i64: 1, 16>}, {pipeline_mode = #tpu.pipeline_mode<synchronous>, transform_indices = @transform_6, window_bounds = array<i64: 64, 8>}, {pipeline_mode = #tpu.pipeline_mode<synchronous>, transform_indices = @transform_7, window_bounds = array<i64: 8, 16>}, {pipeline_mode = #tpu.pipeline_mode<synchronous>, transform_indices = @transform_8, window_bounds = array<i64: 64, 16>}]} {
    %c0 = arith.constant 0 : index
    %c0_0 = arith.constant 0 : index
    %0 = vector.load %arg1[%c0, %c0_0] : memref<80x72xbf16, #tpu.memory_space<vmem>>, vector<80x72xbf16>
    %c0_1 = arith.constant 0 : index
    %c0_2 = arith.constant 0 : index
    %1 = vector.load %arg2[%c0_1, %c0_2] : memref<72x16xbf16, #tpu.memory_space<vmem>>, vector<72x16xbf16>
    %cst = arith.constant dense<0.000000e+00> : vector<80x16xf32>
    %2 = tpu.matmul %0, %1, %cst {dimension_numbers = #tpu.dot_dimension_numbers<[1], [0], [0], [1], [0, 0, 1, 1], [], []>} : vector<80x72xbf16>, vector<72x16xbf16>, vector<80x16xf32> -> vector<80x16xf32>
    %c0_3 = arith.constant 0 : index
    %c0_4 = arith.constant 0 : index
    %3 = vector.load %arg3[%c0_3, %c0_4] : memref<1x16xf32, #tpu.memory_space<vmem>>, vector<1x16xf32>
    %4 = vector.broadcast %3 : vector<1x16xf32> to vector<80x16xf32>
    %5 = arith.addf %2, %4 : vector<80x16xf32>
    %cst_5 = arith.constant 0.000000e+00 : f32
    %6 = vector.broadcast %cst_5 : f32 to vector<80x16xf32>
    %7 = arith.maximumf %5, %6 : vector<80x16xf32>
    %c0_6 = arith.constant 0 : index
    %c0_7 = arith.constant 0 : index
    %8 = vector.load %arg4[%c0_6, %c0_7] : memref<80x1xf32, #tpu.memory_space<vmem>>, vector<80x1xf32>
    %9 = vector.broadcast %8 : vector<80x1xf32> to vector<80x16xf32>
    %10 = arith.mulf %7, %9 : vector<80x16xf32>
    %11 = vector.extract_strided_slice %10 {offsets = [0, 0], sizes = [64, 16], strides = [1, 1]} : vector<80x16xf32> to vector<64x16xf32>
    %12 = arith.truncf %11 : vector<64x16xf32> to vector<64x16xbf16>
    %c0_8 = arith.constant 0 : index
    %c0_9 = arith.constant 0 : index
    %c0_10 = arith.constant 0 : index
    %13 = vector.load %arg5[%c0_8, %c0_9, %c0_10] : memref<9x16x16xbf16, #tpu.memory_space<vmem>>, vector<1x16x16xbf16>
    %14 = vector.shape_cast %13 : vector<1x16x16xbf16> to vector<16x16xbf16>
    %cst_11 = arith.constant dense<0.000000e+00> : vector<64x16xf32>
    %15 = tpu.matmul %12, %14, %cst_11 {dimension_numbers = #tpu.dot_dimension_numbers<[1], [0], [0], [1], [0, 0, 1, 1], [], []>} : vector<64x16xbf16>, vector<16x16xbf16>, vector<64x16xf32> -> vector<64x16xf32>
    %16 = vector.extract_strided_slice %10 {offsets = [1, 0], sizes = [64, 16], strides = [1, 1]} : vector<80x16xf32> to vector<64x16xf32>
    %17 = arith.truncf %16 : vector<64x16xf32> to vector<64x16xbf16>
    %c1 = arith.constant 1 : index
    %c0_12 = arith.constant 0 : index
    %c0_13 = arith.constant 0 : index
    %18 = vector.load %arg5[%c1, %c0_12, %c0_13] : memref<9x16x16xbf16, #tpu.memory_space<vmem>>, vector<1x16x16xbf16>
    %19 = vector.shape_cast %18 : vector<1x16x16xbf16> to vector<16x16xbf16>
    %cst_14 = arith.constant dense<0.000000e+00> : vector<64x16xf32>
    %20 = tpu.matmul %17, %19, %cst_14 {dimension_numbers = #tpu.dot_dimension_numbers<[1], [0], [0], [1], [0, 0, 1, 1], [], []>} : vector<64x16xbf16>, vector<16x16xbf16>, vector<64x16xf32> -> vector<64x16xf32>
    %21 = arith.addf %15, %20 : vector<64x16xf32>
    %22 = vector.extract_strided_slice %10 {offsets = [2, 0], sizes = [64, 16], strides = [1, 1]} : vector<80x16xf32> to vector<64x16xf32>
    %23 = arith.truncf %22 : vector<64x16xf32> to vector<64x16xbf16>
    %c2 = arith.constant 2 : index
    %c0_15 = arith.constant 0 : index
    %c0_16 = arith.constant 0 : index
    %24 = vector.load %arg5[%c2, %c0_15, %c0_16] : memref<9x16x16xbf16, #tpu.memory_space<vmem>>, vector<1x16x16xbf16>
    %25 = vector.shape_cast %24 : vector<1x16x16xbf16> to vector<16x16xbf16>
    %cst_17 = arith.constant dense<0.000000e+00> : vector<64x16xf32>
    %26 = tpu.matmul %23, %25, %cst_17 {dimension_numbers = #tpu.dot_dimension_numbers<[1], [0], [0], [1], [0, 0, 1, 1], [], []>} : vector<64x16xbf16>, vector<16x16xbf16>, vector<64x16xf32> -> vector<64x16xf32>
    %27 = arith.addf %21, %26 : vector<64x16xf32>
    %28 = vector.extract_strided_slice %10 {offsets = [6, 0], sizes = [64, 16], strides = [1, 1]} : vector<80x16xf32> to vector<64x16xf32>
    %29 = arith.truncf %28 : vector<64x16xf32> to vector<64x16xbf16>
    %c3 = arith.constant 3 : index
    %c0_18 = arith.constant 0 : index
    %c0_19 = arith.constant 0 : index
    %30 = vector.load %arg5[%c3, %c0_18, %c0_19] : memref<9x16x16xbf16, #tpu.memory_space<vmem>>, vector<1x16x16xbf16>
    %31 = vector.shape_cast %30 : vector<1x16x16xbf16> to vector<16x16xbf16>
    %cst_20 = arith.constant dense<0.000000e+00> : vector<64x16xf32>
    %32 = tpu.matmul %29, %31, %cst_20 {dimension_numbers = #tpu.dot_dimension_numbers<[1], [0], [0], [1], [0, 0, 1, 1], [], []>} : vector<64x16xbf16>, vector<16x16xbf16>, vector<64x16xf32> -> vector<64x16xf32>
    %33 = arith.addf %27, %32 : vector<64x16xf32>
    %34 = vector.extract_strided_slice %10 {offsets = [7, 0], sizes = [64, 16], strides = [1, 1]} : vector<80x16xf32> to vector<64x16xf32>
    %35 = arith.truncf %34 : vector<64x16xf32> to vector<64x16xbf16>
    %c4 = arith.constant 4 : index
    %c0_21 = arith.constant 0 : index
    %c0_22 = arith.constant 0 : index
    %36 = vector.load %arg5[%c4, %c0_21, %c0_22] : memref<9x16x16xbf16, #tpu.memory_space<vmem>>, vector<1x16x16xbf16>
    %37 = vector.shape_cast %36 : vector<1x16x16xbf16> to vector<16x16xbf16>
    %cst_23 = arith.constant dense<0.000000e+00> : vector<64x16xf32>
    %38 = tpu.matmul %35, %37, %cst_23 {dimension_numbers = #tpu.dot_dimension_numbers<[1], [0], [0], [1], [0, 0, 1, 1], [], []>} : vector<64x16xbf16>, vector<16x16xbf16>, vector<64x16xf32> -> vector<64x16xf32>
    %39 = arith.addf %33, %38 : vector<64x16xf32>
    %40 = vector.extract_strided_slice %10 {offsets = [8, 0], sizes = [64, 16], strides = [1, 1]} : vector<80x16xf32> to vector<64x16xf32>
    %41 = arith.truncf %40 : vector<64x16xf32> to vector<64x16xbf16>
    %c5 = arith.constant 5 : index
    %c0_24 = arith.constant 0 : index
    %c0_25 = arith.constant 0 : index
    %42 = vector.load %arg5[%c5, %c0_24, %c0_25] : memref<9x16x16xbf16, #tpu.memory_space<vmem>>, vector<1x16x16xbf16>
    %43 = vector.shape_cast %42 : vector<1x16x16xbf16> to vector<16x16xbf16>
    %cst_26 = arith.constant dense<0.000000e+00> : vector<64x16xf32>
    %44 = tpu.matmul %41, %43, %cst_26 {dimension_numbers = #tpu.dot_dimension_numbers<[1], [0], [0], [1], [0, 0, 1, 1], [], []>} : vector<64x16xbf16>, vector<16x16xbf16>, vector<64x16xf32> -> vector<64x16xf32>
    %45 = arith.addf %39, %44 : vector<64x16xf32>
    %46 = vector.extract_strided_slice %10 {offsets = [12, 0], sizes = [64, 16], strides = [1, 1]} : vector<80x16xf32> to vector<64x16xf32>
    %47 = arith.truncf %46 : vector<64x16xf32> to vector<64x16xbf16>
    %c6 = arith.constant 6 : index
    %c0_27 = arith.constant 0 : index
    %c0_28 = arith.constant 0 : index
    %48 = vector.load %arg5[%c6, %c0_27, %c0_28] : memref<9x16x16xbf16, #tpu.memory_space<vmem>>, vector<1x16x16xbf16>
    %49 = vector.shape_cast %48 : vector<1x16x16xbf16> to vector<16x16xbf16>
    %cst_29 = arith.constant dense<0.000000e+00> : vector<64x16xf32>
    %50 = tpu.matmul %47, %49, %cst_29 {dimension_numbers = #tpu.dot_dimension_numbers<[1], [0], [0], [1], [0, 0, 1, 1], [], []>} : vector<64x16xbf16>, vector<16x16xbf16>, vector<64x16xf32> -> vector<64x16xf32>
    %51 = arith.addf %45, %50 : vector<64x16xf32>
    %52 = vector.extract_strided_slice %10 {offsets = [13, 0], sizes = [64, 16], strides = [1, 1]} : vector<80x16xf32> to vector<64x16xf32>
    %53 = arith.truncf %52 : vector<64x16xf32> to vector<64x16xbf16>
    %c7 = arith.constant 7 : index
    %c0_30 = arith.constant 0 : index
    %c0_31 = arith.constant 0 : index
    %54 = vector.load %arg5[%c7, %c0_30, %c0_31] : memref<9x16x16xbf16, #tpu.memory_space<vmem>>, vector<1x16x16xbf16>
    %55 = vector.shape_cast %54 : vector<1x16x16xbf16> to vector<16x16xbf16>
    %cst_32 = arith.constant dense<0.000000e+00> : vector<64x16xf32>
    %56 = tpu.matmul %53, %55, %cst_32 {dimension_numbers = #tpu.dot_dimension_numbers<[1], [0], [0], [1], [0, 0, 1, 1], [], []>} : vector<64x16xbf16>, vector<16x16xbf16>, vector<64x16xf32> -> vector<64x16xf32>
    %57 = arith.addf %51, %56 : vector<64x16xf32>
    %58 = vector.extract_strided_slice %10 {offsets = [14, 0], sizes = [64, 16], strides = [1, 1]} : vector<80x16xf32> to vector<64x16xf32>
    %59 = arith.truncf %58 : vector<64x16xf32> to vector<64x16xbf16>
    %c8 = arith.constant 8 : index
    %c0_33 = arith.constant 0 : index
    %c0_34 = arith.constant 0 : index
    %60 = vector.load %arg5[%c8, %c0_33, %c0_34] : memref<9x16x16xbf16, #tpu.memory_space<vmem>>, vector<1x16x16xbf16>
    %61 = vector.shape_cast %60 : vector<1x16x16xbf16> to vector<16x16xbf16>
    %cst_35 = arith.constant dense<0.000000e+00> : vector<64x16xf32>
    %62 = tpu.matmul %59, %61, %cst_35 {dimension_numbers = #tpu.dot_dimension_numbers<[1], [0], [0], [1], [0, 0, 1, 1], [], []>} : vector<64x16xbf16>, vector<16x16xbf16>, vector<64x16xf32> -> vector<64x16xf32>
    %63 = arith.addf %57, %62 : vector<64x16xf32>
    %c0_36 = arith.constant 0 : index
    %c0_37 = arith.constant 0 : index
    %64 = vector.load %arg6[%c0_36, %c0_37] : memref<1x16xf32, #tpu.memory_space<vmem>>, vector<1x16xf32>
    %65 = vector.broadcast %64 : vector<1x16xf32> to vector<64x16xf32>
    %66 = arith.addf %63, %65 : vector<64x16xf32>
    %c0_38 = arith.constant 0 : index
    %c0_39 = arith.constant 0 : index
    %67 = vector.load %arg7[%c0_38, %c0_39] : memref<64x8xbf16, #tpu.memory_space<vmem>>, vector<64x8xbf16>
    %c0_40 = arith.constant 0 : index
    %c0_41 = arith.constant 0 : index
    %68 = vector.load %arg8[%c0_40, %c0_41] : memref<8x16xbf16, #tpu.memory_space<vmem>>, vector<8x16xbf16>
    %cst_42 = arith.constant dense<0.000000e+00> : vector<64x16xf32>
    %69 = tpu.matmul %67, %68, %cst_42 {dimension_numbers = #tpu.dot_dimension_numbers<[1], [0], [0], [1], [0, 0, 1, 1], [], []>} : vector<64x8xbf16>, vector<8x16xbf16>, vector<64x16xf32> -> vector<64x16xf32>
    %70 = arith.addf %66, %69 : vector<64x16xf32>
    %cst_43 = arith.constant 0.000000e+00 : f32
    %71 = vector.broadcast %cst_43 : f32 to vector<64x16xf32>
    %72 = arith.maximumf %70, %71 : vector<64x16xf32>
    %73 = arith.truncf %72 : vector<64x16xf32> to vector<64x16xbf16>
    %c0_44 = arith.constant 0 : index
    %c0_45 = arith.constant 0 : index
    %74 = vector.load %arg9[%c0_44, %c0_45] : memref<64x16xbf16, #tpu.memory_space<vmem>>, vector<64x16xbf16>
    tpu.vector_store %arg9[%c0_44, %c0_45], %73 {strides = array<i32>} : memref<64x16xbf16, #tpu.memory_space<vmem>>, vector<64x16xbf16>,
    return
  }
  func.func @transform_0(%arg0: i32) -> (i32, i32) {
    %c0_i32 = arith.constant 0 : i32
    %c0_i32_0 = arith.constant 0 : i32
    %c0_i32_1 = arith.constant 0 : i32
    return %c0_i32, %c0_i32_0 : i32, i32
  }
  func.func @transform_1(%arg0: i32) -> (i32, i32) {
    %c0_i32 = arith.constant 0 : i32
    %c0_i32_0 = arith.constant 0 : i32
    %c0_i32_1 = arith.constant 0 : i32
    return %c0_i32, %c0_i32_0 : i32, i32
  }
  func.func @transform_2(%arg0: i32) -> (i32, i32) {
    %c0_i32 = arith.constant 0 : i32
    %c0_i32_0 = arith.constant 0 : i32
    %c0_i32_1 = arith.constant 0 : i32
    return %c0_i32, %c0_i32_0 : i32, i32
  }
  func.func @transform_3(%arg0: i32) -> (i32, i32) {
    %c0_i32 = arith.constant 0 : i32
    %c0_i32_0 = arith.constant 0 : i32
    %c0_i32_1 = arith.constant 0 : i32
    return %c0_i32, %c0_i32_0 : i32, i32
  }
  func.func @transform_4(%arg0: i32) -> (i32, i32, i32) {
    %c0_i32 = arith.constant 0 : i32
    %c0_i32_0 = arith.constant 0 : i32
    %c0_i32_1 = arith.constant 0 : i32
    %c0_i32_2 = arith.constant 0 : i32
    return %c0_i32, %c0_i32_0, %c0_i32_1 : i32, i32, i32
  }
  func.func @transform_5(%arg0: i32) -> (i32, i32) {
    %c0_i32 = arith.constant 0 : i32
    %c0_i32_0 = arith.constant 0 : i32
    %c0_i32_1 = arith.constant 0 : i32
    return %c0_i32, %c0_i32_0 : i32, i32
  }
  func.func @transform_6(%arg0: i32) -> (i32, i32) {
    %c0_i32 = arith.constant 0 : i32
    %c0_i32_0 = arith.constant 0 : i32
    %c0_i32_1 = arith.constant 0 : i32
    return %c0_i32, %c0_i32_0 : i32, i32
  }
  func.func @transform_7(%arg0: i32) -> (i32, i32) {
    %c0_i32 = arith.constant 0 : i32
    %c0_i32_0 = arith.constant 0 : i32
    %c0_i32_1 = arith.constant 0 : i32
    return %c0_i32, %c0_i32_0 : i32, i32
  }
  func.func @transform_8(%arg0: i32) -> (i32, i32) {
    %c0_i32 = arith.constant 0 : i32
    %c0_i32_0 = arith.constant 0 : i32
    %c0_i32_1 = arith.constant 0 : i32
    return %c0_i32, %c0_i32_0 : i32, i32
  }
}

module attributes {stable_mosaic.version = 11 : i64} {
  func.func @_block_kernel(%arg0: i32, %arg1: memref<80x144xbf16, #tpu.memory_space<vmem>>, %arg2: memref<144x16xbf16, #tpu.memory_space<vmem>>, %arg3: memref<1x16xf32, #tpu.memory_space<vmem>>, %arg4: memref<80x1xf32, #tpu.memory_space<vmem>>, %arg5: memref<9x16x16xbf16, #tpu.memory_space<vmem>>, %arg6: memref<1x16xf32, #tpu.memory_space<vmem>>, %arg7: memref<64x16xbf16, #tpu.memory_space<vmem>>, %arg8: memref<64x16xbf16, #tpu.memory_space<vmem>>) attributes {dimension_semantics = [#tpu.dimension_semantics<arbitrary>], iteration_bounds = array<i64: 1>, scalar_prefetch = 0 : i64, scratch_operands = 0 : i64, tpu.core_type = #tpu.core_type<tc>, window_params = [{pipeline_mode = #tpu.pipeline_mode<synchronous>, transform_indices = @transform_0, window_bounds = array<i64: 80, 144>}, {pipeline_mode = #tpu.pipeline_mode<synchronous>, transform_indices = @transform_1, window_bounds = array<i64: 144, 16>}, {pipeline_mode = #tpu.pipeline_mode<synchronous>, transform_indices = @transform_2, window_bounds = array<i64: 1, 16>}, {pipeline_mode = #tpu.pipeline_mode<synchronous>, transform_indices = @transform_3, window_bounds = array<i64: 80, 1>}, {pipeline_mode = #tpu.pipeline_mode<synchronous>, transform_indices = @transform_4, window_bounds = array<i64: 9, 16, 16>}, {pipeline_mode = #tpu.pipeline_mode<synchronous>, transform_indices = @transform_5, window_bounds = array<i64: 1, 16>}, {pipeline_mode = #tpu.pipeline_mode<synchronous>, transform_indices = @transform_6, window_bounds = array<i64: 64, 16>}, {pipeline_mode = #tpu.pipeline_mode<synchronous>, transform_indices = @transform_7, window_bounds = array<i64: 64, 16>}]} {
    %c0 = arith.constant 0 : index
    %c0_0 = arith.constant 0 : index
    %0 = vector.load %arg1[%c0, %c0_0] : memref<80x144xbf16, #tpu.memory_space<vmem>>, vector<80x144xbf16>
    %c0_1 = arith.constant 0 : index
    %c0_2 = arith.constant 0 : index
    %1 = vector.load %arg2[%c0_1, %c0_2] : memref<144x16xbf16, #tpu.memory_space<vmem>>, vector<144x16xbf16>
    %cst = arith.constant dense<0.000000e+00> : vector<80x16xf32>
    %2 = tpu.matmul %0, %1, %cst {dimension_numbers = #tpu.dot_dimension_numbers<[1], [0], [0], [1], [0, 0, 1, 1], [], []>} : vector<80x144xbf16>, vector<144x16xbf16>, vector<80x16xf32> -> vector<80x16xf32>
    %c0_3 = arith.constant 0 : index
    %c0_4 = arith.constant 0 : index
    %3 = vector.load %arg3[%c0_3, %c0_4] : memref<1x16xf32, #tpu.memory_space<vmem>>, vector<1x16xf32>
    %4 = vector.broadcast %3 : vector<1x16xf32> to vector<80x16xf32>
    %5 = arith.addf %2, %4 : vector<80x16xf32>
    %cst_5 = arith.constant 0.000000e+00 : f32
    %6 = vector.broadcast %cst_5 : f32 to vector<80x16xf32>
    %7 = arith.maximumf %5, %6 : vector<80x16xf32>
    %c0_6 = arith.constant 0 : index
    %c0_7 = arith.constant 0 : index
    %8 = vector.load %arg4[%c0_6, %c0_7] : memref<80x1xf32, #tpu.memory_space<vmem>>, vector<80x1xf32>
    %9 = vector.broadcast %8 : vector<80x1xf32> to vector<80x16xf32>
    %10 = arith.mulf %7, %9 : vector<80x16xf32>
    %11 = vector.extract_strided_slice %10 {offsets = [0, 0], sizes = [64, 16], strides = [1, 1]} : vector<80x16xf32> to vector<64x16xf32>
    %12 = arith.truncf %11 : vector<64x16xf32> to vector<64x16xbf16>
    %c0_8 = arith.constant 0 : index
    %c0_9 = arith.constant 0 : index
    %c0_10 = arith.constant 0 : index
    %13 = vector.load %arg5[%c0_8, %c0_9, %c0_10] : memref<9x16x16xbf16, #tpu.memory_space<vmem>>, vector<1x16x16xbf16>
    %14 = vector.shape_cast %13 : vector<1x16x16xbf16> to vector<16x16xbf16>
    %cst_11 = arith.constant dense<0.000000e+00> : vector<64x16xf32>
    %15 = tpu.matmul %12, %14, %cst_11 {dimension_numbers = #tpu.dot_dimension_numbers<[1], [0], [0], [1], [0, 0, 1, 1], [], []>} : vector<64x16xbf16>, vector<16x16xbf16>, vector<64x16xf32> -> vector<64x16xf32>
    %16 = vector.extract_strided_slice %10 {offsets = [1, 0], sizes = [64, 16], strides = [1, 1]} : vector<80x16xf32> to vector<64x16xf32>
    %17 = arith.truncf %16 : vector<64x16xf32> to vector<64x16xbf16>
    %c1 = arith.constant 1 : index
    %c0_12 = arith.constant 0 : index
    %c0_13 = arith.constant 0 : index
    %18 = vector.load %arg5[%c1, %c0_12, %c0_13] : memref<9x16x16xbf16, #tpu.memory_space<vmem>>, vector<1x16x16xbf16>
    %19 = vector.shape_cast %18 : vector<1x16x16xbf16> to vector<16x16xbf16>
    %cst_14 = arith.constant dense<0.000000e+00> : vector<64x16xf32>
    %20 = tpu.matmul %17, %19, %cst_14 {dimension_numbers = #tpu.dot_dimension_numbers<[1], [0], [0], [1], [0, 0, 1, 1], [], []>} : vector<64x16xbf16>, vector<16x16xbf16>, vector<64x16xf32> -> vector<64x16xf32>
    %21 = arith.addf %15, %20 : vector<64x16xf32>
    %22 = vector.extract_strided_slice %10 {offsets = [2, 0], sizes = [64, 16], strides = [1, 1]} : vector<80x16xf32> to vector<64x16xf32>
    %23 = arith.truncf %22 : vector<64x16xf32> to vector<64x16xbf16>
    %c2 = arith.constant 2 : index
    %c0_15 = arith.constant 0 : index
    %c0_16 = arith.constant 0 : index
    %24 = vector.load %arg5[%c2, %c0_15, %c0_16] : memref<9x16x16xbf16, #tpu.memory_space<vmem>>, vector<1x16x16xbf16>
    %25 = vector.shape_cast %24 : vector<1x16x16xbf16> to vector<16x16xbf16>
    %cst_17 = arith.constant dense<0.000000e+00> : vector<64x16xf32>
    %26 = tpu.matmul %23, %25, %cst_17 {dimension_numbers = #tpu.dot_dimension_numbers<[1], [0], [0], [1], [0, 0, 1, 1], [], []>} : vector<64x16xbf16>, vector<16x16xbf16>, vector<64x16xf32> -> vector<64x16xf32>
    %27 = arith.addf %21, %26 : vector<64x16xf32>
    %28 = vector.extract_strided_slice %10 {offsets = [6, 0], sizes = [64, 16], strides = [1, 1]} : vector<80x16xf32> to vector<64x16xf32>
    %29 = arith.truncf %28 : vector<64x16xf32> to vector<64x16xbf16>
    %c3 = arith.constant 3 : index
    %c0_18 = arith.constant 0 : index
    %c0_19 = arith.constant 0 : index
    %30 = vector.load %arg5[%c3, %c0_18, %c0_19] : memref<9x16x16xbf16, #tpu.memory_space<vmem>>, vector<1x16x16xbf16>
    %31 = vector.shape_cast %30 : vector<1x16x16xbf16> to vector<16x16xbf16>
    %cst_20 = arith.constant dense<0.000000e+00> : vector<64x16xf32>
    %32 = tpu.matmul %29, %31, %cst_20 {dimension_numbers = #tpu.dot_dimension_numbers<[1], [0], [0], [1], [0, 0, 1, 1], [], []>} : vector<64x16xbf16>, vector<16x16xbf16>, vector<64x16xf32> -> vector<64x16xf32>
    %33 = arith.addf %27, %32 : vector<64x16xf32>
    %34 = vector.extract_strided_slice %10 {offsets = [7, 0], sizes = [64, 16], strides = [1, 1]} : vector<80x16xf32> to vector<64x16xf32>
    %35 = arith.truncf %34 : vector<64x16xf32> to vector<64x16xbf16>
    %c4 = arith.constant 4 : index
    %c0_21 = arith.constant 0 : index
    %c0_22 = arith.constant 0 : index
    %36 = vector.load %arg5[%c4, %c0_21, %c0_22] : memref<9x16x16xbf16, #tpu.memory_space<vmem>>, vector<1x16x16xbf16>
    %37 = vector.shape_cast %36 : vector<1x16x16xbf16> to vector<16x16xbf16>
    %cst_23 = arith.constant dense<0.000000e+00> : vector<64x16xf32>
    %38 = tpu.matmul %35, %37, %cst_23 {dimension_numbers = #tpu.dot_dimension_numbers<[1], [0], [0], [1], [0, 0, 1, 1], [], []>} : vector<64x16xbf16>, vector<16x16xbf16>, vector<64x16xf32> -> vector<64x16xf32>
    %39 = arith.addf %33, %38 : vector<64x16xf32>
    %40 = vector.extract_strided_slice %10 {offsets = [8, 0], sizes = [64, 16], strides = [1, 1]} : vector<80x16xf32> to vector<64x16xf32>
    %41 = arith.truncf %40 : vector<64x16xf32> to vector<64x16xbf16>
    %c5 = arith.constant 5 : index
    %c0_24 = arith.constant 0 : index
    %c0_25 = arith.constant 0 : index
    %42 = vector.load %arg5[%c5, %c0_24, %c0_25] : memref<9x16x16xbf16, #tpu.memory_space<vmem>>, vector<1x16x16xbf16>
    %43 = vector.shape_cast %42 : vector<1x16x16xbf16> to vector<16x16xbf16>
    %cst_26 = arith.constant dense<0.000000e+00> : vector<64x16xf32>
    %44 = tpu.matmul %41, %43, %cst_26 {dimension_numbers = #tpu.dot_dimension_numbers<[1], [0], [0], [1], [0, 0, 1, 1], [], []>} : vector<64x16xbf16>, vector<16x16xbf16>, vector<64x16xf32> -> vector<64x16xf32>
    %45 = arith.addf %39, %44 : vector<64x16xf32>
    %46 = vector.extract_strided_slice %10 {offsets = [12, 0], sizes = [64, 16], strides = [1, 1]} : vector<80x16xf32> to vector<64x16xf32>
    %47 = arith.truncf %46 : vector<64x16xf32> to vector<64x16xbf16>
    %c6 = arith.constant 6 : index
    %c0_27 = arith.constant 0 : index
    %c0_28 = arith.constant 0 : index
    %48 = vector.load %arg5[%c6, %c0_27, %c0_28] : memref<9x16x16xbf16, #tpu.memory_space<vmem>>, vector<1x16x16xbf16>
    %49 = vector.shape_cast %48 : vector<1x16x16xbf16> to vector<16x16xbf16>
    %cst_29 = arith.constant dense<0.000000e+00> : vector<64x16xf32>
    %50 = tpu.matmul %47, %49, %cst_29 {dimension_numbers = #tpu.dot_dimension_numbers<[1], [0], [0], [1], [0, 0, 1, 1], [], []>} : vector<64x16xbf16>, vector<16x16xbf16>, vector<64x16xf32> -> vector<64x16xf32>
    %51 = arith.addf %45, %50 : vector<64x16xf32>
    %52 = vector.extract_strided_slice %10 {offsets = [13, 0], sizes = [64, 16], strides = [1, 1]} : vector<80x16xf32> to vector<64x16xf32>
    %53 = arith.truncf %52 : vector<64x16xf32> to vector<64x16xbf16>
    %c7 = arith.constant 7 : index
    %c0_30 = arith.constant 0 : index
    %c0_31 = arith.constant 0 : index
    %54 = vector.load %arg5[%c7, %c0_30, %c0_31] : memref<9x16x16xbf16, #tpu.memory_space<vmem>>, vector<1x16x16xbf16>
    %55 = vector.shape_cast %54 : vector<1x16x16xbf16> to vector<16x16xbf16>
    %cst_32 = arith.constant dense<0.000000e+00> : vector<64x16xf32>
    %56 = tpu.matmul %53, %55, %cst_32 {dimension_numbers = #tpu.dot_dimension_numbers<[1], [0], [0], [1], [0, 0, 1, 1], [], []>} : vector<64x16xbf16>, vector<16x16xbf16>, vector<64x16xf32> -> vector<64x16xf32>
    %57 = arith.addf %51, %56 : vector<64x16xf32>
    %58 = vector.extract_strided_slice %10 {offsets = [14, 0], sizes = [64, 16], strides = [1, 1]} : vector<80x16xf32> to vector<64x16xf32>
    %59 = arith.truncf %58 : vector<64x16xf32> to vector<64x16xbf16>
    %c8 = arith.constant 8 : index
    %c0_33 = arith.constant 0 : index
    %c0_34 = arith.constant 0 : index
    %60 = vector.load %arg5[%c8, %c0_33, %c0_34] : memref<9x16x16xbf16, #tpu.memory_space<vmem>>, vector<1x16x16xbf16>
    %61 = vector.shape_cast %60 : vector<1x16x16xbf16> to vector<16x16xbf16>
    %cst_35 = arith.constant dense<0.000000e+00> : vector<64x16xf32>
    %62 = tpu.matmul %59, %61, %cst_35 {dimension_numbers = #tpu.dot_dimension_numbers<[1], [0], [0], [1], [0, 0, 1, 1], [], []>} : vector<64x16xbf16>, vector<16x16xbf16>, vector<64x16xf32> -> vector<64x16xf32>
    %63 = arith.addf %57, %62 : vector<64x16xf32>
    %c0_36 = arith.constant 0 : index
    %c0_37 = arith.constant 0 : index
    %64 = vector.load %arg6[%c0_36, %c0_37] : memref<1x16xf32, #tpu.memory_space<vmem>>, vector<1x16xf32>
    %65 = vector.broadcast %64 : vector<1x16xf32> to vector<64x16xf32>
    %66 = arith.addf %63, %65 : vector<64x16xf32>
    %c0_38 = arith.constant 0 : index
    %c0_39 = arith.constant 0 : index
    %67 = vector.load %arg7[%c0_38, %c0_39] : memref<64x16xbf16, #tpu.memory_space<vmem>>, vector<64x16xbf16>
    %68 = arith.extf %67 : vector<64x16xbf16> to vector<64x16xf32>
    %69 = arith.addf %66, %68 : vector<64x16xf32>
    %cst_40 = arith.constant 0.000000e+00 : f32
    %70 = vector.broadcast %cst_40 : f32 to vector<64x16xf32>
    %71 = arith.maximumf %69, %70 : vector<64x16xf32>
    %72 = arith.truncf %71 : vector<64x16xf32> to vector<64x16xbf16>
    %c0_41 = arith.constant 0 : index
    %c0_42 = arith.constant 0 : index
    %73 = vector.load %arg8[%c0_41, %c0_42] : memref<64x16xbf16, #tpu.memory_space<vmem>>, vector<64x16xbf16>
    tpu.vector_store %arg8[%c0_41, %c0_42], %72 {strides = array<i32>} : memref<64x16xbf16, #tpu.memory_space<vmem>>, vector<64x16xbf16>,
    return
  }
  func.func @transform_0(%arg0: i32) -> (i32, i32) {
    %c0_i32 = arith.constant 0 : i32
    %c0_i32_0 = arith.constant 0 : i32
    %c0_i32_1 = arith.constant 0 : i32
    return %c0_i32, %c0_i32_0 : i32, i32
  }
  func.func @transform_1(%arg0: i32) -> (i32, i32) {
    %c0_i32 = arith.constant 0 : i32
    %c0_i32_0 = arith.constant 0 : i32
    %c0_i32_1 = arith.constant 0 : i32
    return %c0_i32, %c0_i32_0 : i32, i32
  }
  func.func @transform_2(%arg0: i32) -> (i32, i32) {
    %c0_i32 = arith.constant 0 : i32
    %c0_i32_0 = arith.constant 0 : i32
    %c0_i32_1 = arith.constant 0 : i32
    return %c0_i32, %c0_i32_0 : i32, i32
  }
  func.func @transform_3(%arg0: i32) -> (i32, i32) {
    %c0_i32 = arith.constant 0 : i32
    %c0_i32_0 = arith.constant 0 : i32
    %c0_i32_1 = arith.constant 0 : i32
    return %c0_i32, %c0_i32_0 : i32, i32
  }
  func.func @transform_4(%arg0: i32) -> (i32, i32, i32) {
    %c0_i32 = arith.constant 0 : i32
    %c0_i32_0 = arith.constant 0 : i32
    %c0_i32_1 = arith.constant 0 : i32
    %c0_i32_2 = arith.constant 0 : i32
    return %c0_i32, %c0_i32_0, %c0_i32_1 : i32, i32, i32
  }
  func.func @transform_5(%arg0: i32) -> (i32, i32) {
    %c0_i32 = arith.constant 0 : i32
    %c0_i32_0 = arith.constant 0 : i32
    %c0_i32_1 = arith.constant 0 : i32
    return %c0_i32, %c0_i32_0 : i32, i32
  }
  func.func @transform_6(%arg0: i32) -> (i32, i32) {
    %c0_i32 = arith.constant 0 : i32
    %c0_i32_0 = arith.constant 0 : i32
    %c0_i32_1 = arith.constant 0 : i32
    return %c0_i32, %c0_i32_0 : i32, i32
  }
  func.func @transform_7(%arg0: i32) -> (i32, i32) {
    %c0_i32 = arith.constant 0 : i32
    %c0_i32_0 = arith.constant 0 : i32
    %c0_i32_1 = arith.constant 0 : i32
    return %c0_i32, %c0_i32_0 : i32, i32
  }
}

module attributes {stable_mosaic.version = 11 : i64} {
  func.func @_block_kernel(%arg0: i32, %arg1: memref<40x144xbf16, #tpu.memory_space<vmem>>, %arg2: memref<144x32xbf16, #tpu.memory_space<vmem>>, %arg3: memref<1x32xf32, #tpu.memory_space<vmem>>, %arg4: memref<40x1xf32, #tpu.memory_space<vmem>>, %arg5: memref<9x32x32xbf16, #tpu.memory_space<vmem>>, %arg6: memref<1x32xf32, #tpu.memory_space<vmem>>, %arg7: memref<24x16xbf16, #tpu.memory_space<vmem>>, %arg8: memref<16x32xbf16, #tpu.memory_space<vmem>>, %arg9: memref<24x32xbf16, #tpu.memory_space<vmem>>) attributes {dimension_semantics = [#tpu.dimension_semantics<arbitrary>], iteration_bounds = array<i64: 1>, scalar_prefetch = 0 : i64, scratch_operands = 0 : i64, tpu.core_type = #tpu.core_type<tc>, window_params = [{pipeline_mode = #tpu.pipeline_mode<synchronous>, transform_indices = @transform_0, window_bounds = array<i64: 40, 144>}, {pipeline_mode = #tpu.pipeline_mode<synchronous>, transform_indices = @transform_1, window_bounds = array<i64: 144, 32>}, {pipeline_mode = #tpu.pipeline_mode<synchronous>, transform_indices = @transform_2, window_bounds = array<i64: 1, 32>}, {pipeline_mode = #tpu.pipeline_mode<synchronous>, transform_indices = @transform_3, window_bounds = array<i64: 40, 1>}, {pipeline_mode = #tpu.pipeline_mode<synchronous>, transform_indices = @transform_4, window_bounds = array<i64: 9, 32, 32>}, {pipeline_mode = #tpu.pipeline_mode<synchronous>, transform_indices = @transform_5, window_bounds = array<i64: 1, 32>}, {pipeline_mode = #tpu.pipeline_mode<synchronous>, transform_indices = @transform_6, window_bounds = array<i64: 24, 16>}, {pipeline_mode = #tpu.pipeline_mode<synchronous>, transform_indices = @transform_7, window_bounds = array<i64: 16, 32>}, {pipeline_mode = #tpu.pipeline_mode<synchronous>, transform_indices = @transform_8, window_bounds = array<i64: 24, 32>}]} {
    %c0 = arith.constant 0 : index
    %c0_0 = arith.constant 0 : index
    %0 = vector.load %arg1[%c0, %c0_0] : memref<40x144xbf16, #tpu.memory_space<vmem>>, vector<40x144xbf16>
    %c0_1 = arith.constant 0 : index
    %c0_2 = arith.constant 0 : index
    %1 = vector.load %arg2[%c0_1, %c0_2] : memref<144x32xbf16, #tpu.memory_space<vmem>>, vector<144x32xbf16>
    %cst = arith.constant dense<0.000000e+00> : vector<40x32xf32>
    %2 = tpu.matmul %0, %1, %cst {dimension_numbers = #tpu.dot_dimension_numbers<[1], [0], [0], [1], [0, 0, 1, 1], [], []>} : vector<40x144xbf16>, vector<144x32xbf16>, vector<40x32xf32> -> vector<40x32xf32>
    %c0_3 = arith.constant 0 : index
    %c0_4 = arith.constant 0 : index
    %3 = vector.load %arg3[%c0_3, %c0_4] : memref<1x32xf32, #tpu.memory_space<vmem>>, vector<1x32xf32>
    %4 = vector.broadcast %3 : vector<1x32xf32> to vector<40x32xf32>
    %5 = arith.addf %2, %4 : vector<40x32xf32>
    %cst_5 = arith.constant 0.000000e+00 : f32
    %6 = vector.broadcast %cst_5 : f32 to vector<40x32xf32>
    %7 = arith.maximumf %5, %6 : vector<40x32xf32>
    %c0_6 = arith.constant 0 : index
    %c0_7 = arith.constant 0 : index
    %8 = vector.load %arg4[%c0_6, %c0_7] : memref<40x1xf32, #tpu.memory_space<vmem>>, vector<40x1xf32>
    %9 = vector.broadcast %8 : vector<40x1xf32> to vector<40x32xf32>
    %10 = arith.mulf %7, %9 : vector<40x32xf32>
    %11 = vector.extract_strided_slice %10 {offsets = [0, 0], sizes = [24, 32], strides = [1, 1]} : vector<40x32xf32> to vector<24x32xf32>
    %12 = arith.truncf %11 : vector<24x32xf32> to vector<24x32xbf16>
    %c0_8 = arith.constant 0 : index
    %c0_9 = arith.constant 0 : index
    %c0_10 = arith.constant 0 : index
    %13 = vector.load %arg5[%c0_8, %c0_9, %c0_10] : memref<9x32x32xbf16, #tpu.memory_space<vmem>>, vector<1x32x32xbf16>
    %14 = vector.shape_cast %13 : vector<1x32x32xbf16> to vector<32x32xbf16>
    %cst_11 = arith.constant dense<0.000000e+00> : vector<24x32xf32>
    %15 = tpu.matmul %12, %14, %cst_11 {dimension_numbers = #tpu.dot_dimension_numbers<[1], [0], [0], [1], [0, 0, 1, 1], [], []>} : vector<24x32xbf16>, vector<32x32xbf16>, vector<24x32xf32> -> vector<24x32xf32>
    %16 = vector.extract_strided_slice %10 {offsets = [1, 0], sizes = [24, 32], strides = [1, 1]} : vector<40x32xf32> to vector<24x32xf32>
    %17 = arith.truncf %16 : vector<24x32xf32> to vector<24x32xbf16>
    %c1 = arith.constant 1 : index
    %c0_12 = arith.constant 0 : index
    %c0_13 = arith.constant 0 : index
    %18 = vector.load %arg5[%c1, %c0_12, %c0_13] : memref<9x32x32xbf16, #tpu.memory_space<vmem>>, vector<1x32x32xbf16>
    %19 = vector.shape_cast %18 : vector<1x32x32xbf16> to vector<32x32xbf16>
    %cst_14 = arith.constant dense<0.000000e+00> : vector<24x32xf32>
    %20 = tpu.matmul %17, %19, %cst_14 {dimension_numbers = #tpu.dot_dimension_numbers<[1], [0], [0], [1], [0, 0, 1, 1], [], []>} : vector<24x32xbf16>, vector<32x32xbf16>, vector<24x32xf32> -> vector<24x32xf32>
    %21 = arith.addf %15, %20 : vector<24x32xf32>
    %22 = vector.extract_strided_slice %10 {offsets = [2, 0], sizes = [24, 32], strides = [1, 1]} : vector<40x32xf32> to vector<24x32xf32>
    %23 = arith.truncf %22 : vector<24x32xf32> to vector<24x32xbf16>
    %c2 = arith.constant 2 : index
    %c0_15 = arith.constant 0 : index
    %c0_16 = arith.constant 0 : index
    %24 = vector.load %arg5[%c2, %c0_15, %c0_16] : memref<9x32x32xbf16, #tpu.memory_space<vmem>>, vector<1x32x32xbf16>
    %25 = vector.shape_cast %24 : vector<1x32x32xbf16> to vector<32x32xbf16>
    %cst_17 = arith.constant dense<0.000000e+00> : vector<24x32xf32>
    %26 = tpu.matmul %23, %25, %cst_17 {dimension_numbers = #tpu.dot_dimension_numbers<[1], [0], [0], [1], [0, 0, 1, 1], [], []>} : vector<24x32xbf16>, vector<32x32xbf16>, vector<24x32xf32> -> vector<24x32xf32>
    %27 = arith.addf %21, %26 : vector<24x32xf32>
    %28 = vector.extract_strided_slice %10 {offsets = [4, 0], sizes = [24, 32], strides = [1, 1]} : vector<40x32xf32> to vector<24x32xf32>
    %29 = arith.truncf %28 : vector<24x32xf32> to vector<24x32xbf16>
    %c3 = arith.constant 3 : index
    %c0_18 = arith.constant 0 : index
    %c0_19 = arith.constant 0 : index
    %30 = vector.load %arg5[%c3, %c0_18, %c0_19] : memref<9x32x32xbf16, #tpu.memory_space<vmem>>, vector<1x32x32xbf16>
    %31 = vector.shape_cast %30 : vector<1x32x32xbf16> to vector<32x32xbf16>
    %cst_20 = arith.constant dense<0.000000e+00> : vector<24x32xf32>
    %32 = tpu.matmul %29, %31, %cst_20 {dimension_numbers = #tpu.dot_dimension_numbers<[1], [0], [0], [1], [0, 0, 1, 1], [], []>} : vector<24x32xbf16>, vector<32x32xbf16>, vector<24x32xf32> -> vector<24x32xf32>
    %33 = arith.addf %27, %32 : vector<24x32xf32>
    %34 = vector.extract_strided_slice %10 {offsets = [5, 0], sizes = [24, 32], strides = [1, 1]} : vector<40x32xf32> to vector<24x32xf32>
    %35 = arith.truncf %34 : vector<24x32xf32> to vector<24x32xbf16>
    %c4 = arith.constant 4 : index
    %c0_21 = arith.constant 0 : index
    %c0_22 = arith.constant 0 : index
    %36 = vector.load %arg5[%c4, %c0_21, %c0_22] : memref<9x32x32xbf16, #tpu.memory_space<vmem>>, vector<1x32x32xbf16>
    %37 = vector.shape_cast %36 : vector<1x32x32xbf16> to vector<32x32xbf16>
    %cst_23 = arith.constant dense<0.000000e+00> : vector<24x32xf32>
    %38 = tpu.matmul %35, %37, %cst_23 {dimension_numbers = #tpu.dot_dimension_numbers<[1], [0], [0], [1], [0, 0, 1, 1], [], []>} : vector<24x32xbf16>, vector<32x32xbf16>, vector<24x32xf32> -> vector<24x32xf32>
    %39 = arith.addf %33, %38 : vector<24x32xf32>
    %40 = vector.extract_strided_slice %10 {offsets = [6, 0], sizes = [24, 32], strides = [1, 1]} : vector<40x32xf32> to vector<24x32xf32>
    %41 = arith.truncf %40 : vector<24x32xf32> to vector<24x32xbf16>
    %c5 = arith.constant 5 : index
    %c0_24 = arith.constant 0 : index
    %c0_25 = arith.constant 0 : index
    %42 = vector.load %arg5[%c5, %c0_24, %c0_25] : memref<9x32x32xbf16, #tpu.memory_space<vmem>>, vector<1x32x32xbf16>
    %43 = vector.shape_cast %42 : vector<1x32x32xbf16> to vector<32x32xbf16>
    %cst_26 = arith.constant dense<0.000000e+00> : vector<24x32xf32>
    %44 = tpu.matmul %41, %43, %cst_26 {dimension_numbers = #tpu.dot_dimension_numbers<[1], [0], [0], [1], [0, 0, 1, 1], [], []>} : vector<24x32xbf16>, vector<32x32xbf16>, vector<24x32xf32> -> vector<24x32xf32>
    %45 = arith.addf %39, %44 : vector<24x32xf32>
    %46 = vector.extract_strided_slice %10 {offsets = [8, 0], sizes = [24, 32], strides = [1, 1]} : vector<40x32xf32> to vector<24x32xf32>
    %47 = arith.truncf %46 : vector<24x32xf32> to vector<24x32xbf16>
    %c6 = arith.constant 6 : index
    %c0_27 = arith.constant 0 : index
    %c0_28 = arith.constant 0 : index
    %48 = vector.load %arg5[%c6, %c0_27, %c0_28] : memref<9x32x32xbf16, #tpu.memory_space<vmem>>, vector<1x32x32xbf16>
    %49 = vector.shape_cast %48 : vector<1x32x32xbf16> to vector<32x32xbf16>
    %cst_29 = arith.constant dense<0.000000e+00> : vector<24x32xf32>
    %50 = tpu.matmul %47, %49, %cst_29 {dimension_numbers = #tpu.dot_dimension_numbers<[1], [0], [0], [1], [0, 0, 1, 1], [], []>} : vector<24x32xbf16>, vector<32x32xbf16>, vector<24x32xf32> -> vector<24x32xf32>
    %51 = arith.addf %45, %50 : vector<24x32xf32>
    %52 = vector.extract_strided_slice %10 {offsets = [9, 0], sizes = [24, 32], strides = [1, 1]} : vector<40x32xf32> to vector<24x32xf32>
    %53 = arith.truncf %52 : vector<24x32xf32> to vector<24x32xbf16>
    %c7 = arith.constant 7 : index
    %c0_30 = arith.constant 0 : index
    %c0_31 = arith.constant 0 : index
    %54 = vector.load %arg5[%c7, %c0_30, %c0_31] : memref<9x32x32xbf16, #tpu.memory_space<vmem>>, vector<1x32x32xbf16>
    %55 = vector.shape_cast %54 : vector<1x32x32xbf16> to vector<32x32xbf16>
    %cst_32 = arith.constant dense<0.000000e+00> : vector<24x32xf32>
    %56 = tpu.matmul %53, %55, %cst_32 {dimension_numbers = #tpu.dot_dimension_numbers<[1], [0], [0], [1], [0, 0, 1, 1], [], []>} : vector<24x32xbf16>, vector<32x32xbf16>, vector<24x32xf32> -> vector<24x32xf32>
    %57 = arith.addf %51, %56 : vector<24x32xf32>
    %58 = vector.extract_strided_slice %10 {offsets = [10, 0], sizes = [24, 32], strides = [1, 1]} : vector<40x32xf32> to vector<24x32xf32>
    %59 = arith.truncf %58 : vector<24x32xf32> to vector<24x32xbf16>
    %c8 = arith.constant 8 : index
    %c0_33 = arith.constant 0 : index
    %c0_34 = arith.constant 0 : index
    %60 = vector.load %arg5[%c8, %c0_33, %c0_34] : memref<9x32x32xbf16, #tpu.memory_space<vmem>>, vector<1x32x32xbf16>
    %61 = vector.shape_cast %60 : vector<1x32x32xbf16> to vector<32x32xbf16>
    %cst_35 = arith.constant dense<0.000000e+00> : vector<24x32xf32>
    %62 = tpu.matmul %59, %61, %cst_35 {dimension_numbers = #tpu.dot_dimension_numbers<[1], [0], [0], [1], [0, 0, 1, 1], [], []>} : vector<24x32xbf16>, vector<32x32xbf16>, vector<24x32xf32> -> vector<24x32xf32>
    %63 = arith.addf %57, %62 : vector<24x32xf32>
    %c0_36 = arith.constant 0 : index
    %c0_37 = arith.constant 0 : index
    %64 = vector.load %arg6[%c0_36, %c0_37] : memref<1x32xf32, #tpu.memory_space<vmem>>, vector<1x32xf32>
    %65 = vector.broadcast %64 : vector<1x32xf32> to vector<24x32xf32>
    %66 = arith.addf %63, %65 : vector<24x32xf32>
    %c0_38 = arith.constant 0 : index
    %c0_39 = arith.constant 0 : index
    %67 = vector.load %arg7[%c0_38, %c0_39] : memref<24x16xbf16, #tpu.memory_space<vmem>>, vector<24x16xbf16>
    %c0_40 = arith.constant 0 : index
    %c0_41 = arith.constant 0 : index
    %68 = vector.load %arg8[%c0_40, %c0_41] : memref<16x32xbf16, #tpu.memory_space<vmem>>, vector<16x32xbf16>
    %cst_42 = arith.constant dense<0.000000e+00> : vector<24x32xf32>
    %69 = tpu.matmul %67, %68, %cst_42 {dimension_numbers = #tpu.dot_dimension_numbers<[1], [0], [0], [1], [0, 0, 1, 1], [], []>} : vector<24x16xbf16>, vector<16x32xbf16>, vector<24x32xf32> -> vector<24x32xf32>
    %70 = arith.addf %66, %69 : vector<24x32xf32>
    %cst_43 = arith.constant 0.000000e+00 : f32
    %71 = vector.broadcast %cst_43 : f32 to vector<24x32xf32>
    %72 = arith.maximumf %70, %71 : vector<24x32xf32>
    %73 = arith.truncf %72 : vector<24x32xf32> to vector<24x32xbf16>
    %c0_44 = arith.constant 0 : index
    %c0_45 = arith.constant 0 : index
    %74 = vector.load %arg9[%c0_44, %c0_45] : memref<24x32xbf16, #tpu.memory_space<vmem>>, vector<24x32xbf16>
    tpu.vector_store %arg9[%c0_44, %c0_45], %73 {strides = array<i32>} : memref<24x32xbf16, #tpu.memory_space<vmem>>, vector<24x32xbf16>,
    return
  }
  func.func @transform_0(%arg0: i32) -> (i32, i32) {
    %c0_i32 = arith.constant 0 : i32
    %c0_i32_0 = arith.constant 0 : i32
    %c0_i32_1 = arith.constant 0 : i32
    return %c0_i32, %c0_i32_0 : i32, i32
  }
  func.func @transform_1(%arg0: i32) -> (i32, i32) {
    %c0_i32 = arith.constant 0 : i32
    %c0_i32_0 = arith.constant 0 : i32
    %c0_i32_1 = arith.constant 0 : i32
    return %c0_i32, %c0_i32_0 : i32, i32
  }
  func.func @transform_2(%arg0: i32) -> (i32, i32) {
    %c0_i32 = arith.constant 0 : i32
    %c0_i32_0 = arith.constant 0 : i32
    %c0_i32_1 = arith.constant 0 : i32
    return %c0_i32, %c0_i32_0 : i32, i32
  }
  func.func @transform_3(%arg0: i32) -> (i32, i32) {
    %c0_i32 = arith.constant 0 : i32
    %c0_i32_0 = arith.constant 0 : i32
    %c0_i32_1 = arith.constant 0 : i32
    return %c0_i32, %c0_i32_0 : i32, i32
  }
  func.func @transform_4(%arg0: i32) -> (i32, i32, i32) {
    %c0_i32 = arith.constant 0 : i32
    %c0_i32_0 = arith.constant 0 : i32
    %c0_i32_1 = arith.constant 0 : i32
    %c0_i32_2 = arith.constant 0 : i32
    return %c0_i32, %c0_i32_0, %c0_i32_1 : i32, i32, i32
  }
  func.func @transform_5(%arg0: i32) -> (i32, i32) {
    %c0_i32 = arith.constant 0 : i32
    %c0_i32_0 = arith.constant 0 : i32
    %c0_i32_1 = arith.constant 0 : i32
    return %c0_i32, %c0_i32_0 : i32, i32
  }
  func.func @transform_6(%arg0: i32) -> (i32, i32) {
    %c0_i32 = arith.constant 0 : i32
    %c0_i32_0 = arith.constant 0 : i32
    %c0_i32_1 = arith.constant 0 : i32
    return %c0_i32, %c0_i32_0 : i32, i32
  }
  func.func @transform_7(%arg0: i32) -> (i32, i32) {
    %c0_i32 = arith.constant 0 : i32
    %c0_i32_0 = arith.constant 0 : i32
    %c0_i32_1 = arith.constant 0 : i32
    return %c0_i32, %c0_i32_0 : i32, i32
  }
  func.func @transform_8(%arg0: i32) -> (i32, i32) {
    %c0_i32 = arith.constant 0 : i32
    %c0_i32_0 = arith.constant 0 : i32
    %c0_i32_1 = arith.constant 0 : i32
    return %c0_i32, %c0_i32_0 : i32, i32
  }
}

module attributes {stable_mosaic.version = 11 : i64} {
  func.func @_block_kernel(%arg0: i32, %arg1: memref<40x288xbf16, #tpu.memory_space<vmem>>, %arg2: memref<288x32xbf16, #tpu.memory_space<vmem>>, %arg3: memref<1x32xf32, #tpu.memory_space<vmem>>, %arg4: memref<40x1xf32, #tpu.memory_space<vmem>>, %arg5: memref<9x32x32xbf16, #tpu.memory_space<vmem>>, %arg6: memref<1x32xf32, #tpu.memory_space<vmem>>, %arg7: memref<24x32xbf16, #tpu.memory_space<vmem>>, %arg8: memref<24x32xbf16, #tpu.memory_space<vmem>>) attributes {dimension_semantics = [#tpu.dimension_semantics<arbitrary>], iteration_bounds = array<i64: 1>, scalar_prefetch = 0 : i64, scratch_operands = 0 : i64, tpu.core_type = #tpu.core_type<tc>, window_params = [{pipeline_mode = #tpu.pipeline_mode<synchronous>, transform_indices = @transform_0, window_bounds = array<i64: 40, 288>}, {pipeline_mode = #tpu.pipeline_mode<synchronous>, transform_indices = @transform_1, window_bounds = array<i64: 288, 32>}, {pipeline_mode = #tpu.pipeline_mode<synchronous>, transform_indices = @transform_2, window_bounds = array<i64: 1, 32>}, {pipeline_mode = #tpu.pipeline_mode<synchronous>, transform_indices = @transform_3, window_bounds = array<i64: 40, 1>}, {pipeline_mode = #tpu.pipeline_mode<synchronous>, transform_indices = @transform_4, window_bounds = array<i64: 9, 32, 32>}, {pipeline_mode = #tpu.pipeline_mode<synchronous>, transform_indices = @transform_5, window_bounds = array<i64: 1, 32>}, {pipeline_mode = #tpu.pipeline_mode<synchronous>, transform_indices = @transform_6, window_bounds = array<i64: 24, 32>}, {pipeline_mode = #tpu.pipeline_mode<synchronous>, transform_indices = @transform_7, window_bounds = array<i64: 24, 32>}]} {
    %c0 = arith.constant 0 : index
    %c0_0 = arith.constant 0 : index
    %0 = vector.load %arg1[%c0, %c0_0] : memref<40x288xbf16, #tpu.memory_space<vmem>>, vector<40x288xbf16>
    %c0_1 = arith.constant 0 : index
    %c0_2 = arith.constant 0 : index
    %1 = vector.load %arg2[%c0_1, %c0_2] : memref<288x32xbf16, #tpu.memory_space<vmem>>, vector<288x32xbf16>
    %cst = arith.constant dense<0.000000e+00> : vector<40x32xf32>
    %2 = tpu.matmul %0, %1, %cst {dimension_numbers = #tpu.dot_dimension_numbers<[1], [0], [0], [1], [0, 0, 1, 1], [], []>} : vector<40x288xbf16>, vector<288x32xbf16>, vector<40x32xf32> -> vector<40x32xf32>
    %c0_3 = arith.constant 0 : index
    %c0_4 = arith.constant 0 : index
    %3 = vector.load %arg3[%c0_3, %c0_4] : memref<1x32xf32, #tpu.memory_space<vmem>>, vector<1x32xf32>
    %4 = vector.broadcast %3 : vector<1x32xf32> to vector<40x32xf32>
    %5 = arith.addf %2, %4 : vector<40x32xf32>
    %cst_5 = arith.constant 0.000000e+00 : f32
    %6 = vector.broadcast %cst_5 : f32 to vector<40x32xf32>
    %7 = arith.maximumf %5, %6 : vector<40x32xf32>
    %c0_6 = arith.constant 0 : index
    %c0_7 = arith.constant 0 : index
    %8 = vector.load %arg4[%c0_6, %c0_7] : memref<40x1xf32, #tpu.memory_space<vmem>>, vector<40x1xf32>
    %9 = vector.broadcast %8 : vector<40x1xf32> to vector<40x32xf32>
    %10 = arith.mulf %7, %9 : vector<40x32xf32>
    %11 = vector.extract_strided_slice %10 {offsets = [0, 0], sizes = [24, 32], strides = [1, 1]} : vector<40x32xf32> to vector<24x32xf32>
    %12 = arith.truncf %11 : vector<24x32xf32> to vector<24x32xbf16>
    %c0_8 = arith.constant 0 : index
    %c0_9 = arith.constant 0 : index
    %c0_10 = arith.constant 0 : index
    %13 = vector.load %arg5[%c0_8, %c0_9, %c0_10] : memref<9x32x32xbf16, #tpu.memory_space<vmem>>, vector<1x32x32xbf16>
    %14 = vector.shape_cast %13 : vector<1x32x32xbf16> to vector<32x32xbf16>
    %cst_11 = arith.constant dense<0.000000e+00> : vector<24x32xf32>
    %15 = tpu.matmul %12, %14, %cst_11 {dimension_numbers = #tpu.dot_dimension_numbers<[1], [0], [0], [1], [0, 0, 1, 1], [], []>} : vector<24x32xbf16>, vector<32x32xbf16>, vector<24x32xf32> -> vector<24x32xf32>
    %16 = vector.extract_strided_slice %10 {offsets = [1, 0], sizes = [24, 32], strides = [1, 1]} : vector<40x32xf32> to vector<24x32xf32>
    %17 = arith.truncf %16 : vector<24x32xf32> to vector<24x32xbf16>
    %c1 = arith.constant 1 : index
    %c0_12 = arith.constant 0 : index
    %c0_13 = arith.constant 0 : index
    %18 = vector.load %arg5[%c1, %c0_12, %c0_13] : memref<9x32x32xbf16, #tpu.memory_space<vmem>>, vector<1x32x32xbf16>
    %19 = vector.shape_cast %18 : vector<1x32x32xbf16> to vector<32x32xbf16>
    %cst_14 = arith.constant dense<0.000000e+00> : vector<24x32xf32>
    %20 = tpu.matmul %17, %19, %cst_14 {dimension_numbers = #tpu.dot_dimension_numbers<[1], [0], [0], [1], [0, 0, 1, 1], [], []>} : vector<24x32xbf16>, vector<32x32xbf16>, vector<24x32xf32> -> vector<24x32xf32>
    %21 = arith.addf %15, %20 : vector<24x32xf32>
    %22 = vector.extract_strided_slice %10 {offsets = [2, 0], sizes = [24, 32], strides = [1, 1]} : vector<40x32xf32> to vector<24x32xf32>
    %23 = arith.truncf %22 : vector<24x32xf32> to vector<24x32xbf16>
    %c2 = arith.constant 2 : index
    %c0_15 = arith.constant 0 : index
    %c0_16 = arith.constant 0 : index
    %24 = vector.load %arg5[%c2, %c0_15, %c0_16] : memref<9x32x32xbf16, #tpu.memory_space<vmem>>, vector<1x32x32xbf16>
    %25 = vector.shape_cast %24 : vector<1x32x32xbf16> to vector<32x32xbf16>
    %cst_17 = arith.constant dense<0.000000e+00> : vector<24x32xf32>
    %26 = tpu.matmul %23, %25, %cst_17 {dimension_numbers = #tpu.dot_dimension_numbers<[1], [0], [0], [1], [0, 0, 1, 1], [], []>} : vector<24x32xbf16>, vector<32x32xbf16>, vector<24x32xf32> -> vector<24x32xf32>
    %27 = arith.addf %21, %26 : vector<24x32xf32>
    %28 = vector.extract_strided_slice %10 {offsets = [4, 0], sizes = [24, 32], strides = [1, 1]} : vector<40x32xf32> to vector<24x32xf32>
    %29 = arith.truncf %28 : vector<24x32xf32> to vector<24x32xbf16>
    %c3 = arith.constant 3 : index
    %c0_18 = arith.constant 0 : index
    %c0_19 = arith.constant 0 : index
    %30 = vector.load %arg5[%c3, %c0_18, %c0_19] : memref<9x32x32xbf16, #tpu.memory_space<vmem>>, vector<1x32x32xbf16>
    %31 = vector.shape_cast %30 : vector<1x32x32xbf16> to vector<32x32xbf16>
    %cst_20 = arith.constant dense<0.000000e+00> : vector<24x32xf32>
    %32 = tpu.matmul %29, %31, %cst_20 {dimension_numbers = #tpu.dot_dimension_numbers<[1], [0], [0], [1], [0, 0, 1, 1], [], []>} : vector<24x32xbf16>, vector<32x32xbf16>, vector<24x32xf32> -> vector<24x32xf32>
    %33 = arith.addf %27, %32 : vector<24x32xf32>
    %34 = vector.extract_strided_slice %10 {offsets = [5, 0], sizes = [24, 32], strides = [1, 1]} : vector<40x32xf32> to vector<24x32xf32>
    %35 = arith.truncf %34 : vector<24x32xf32> to vector<24x32xbf16>
    %c4 = arith.constant 4 : index
    %c0_21 = arith.constant 0 : index
    %c0_22 = arith.constant 0 : index
    %36 = vector.load %arg5[%c4, %c0_21, %c0_22] : memref<9x32x32xbf16, #tpu.memory_space<vmem>>, vector<1x32x32xbf16>
    %37 = vector.shape_cast %36 : vector<1x32x32xbf16> to vector<32x32xbf16>
    %cst_23 = arith.constant dense<0.000000e+00> : vector<24x32xf32>
    %38 = tpu.matmul %35, %37, %cst_23 {dimension_numbers = #tpu.dot_dimension_numbers<[1], [0], [0], [1], [0, 0, 1, 1], [], []>} : vector<24x32xbf16>, vector<32x32xbf16>, vector<24x32xf32> -> vector<24x32xf32>
    %39 = arith.addf %33, %38 : vector<24x32xf32>
    %40 = vector.extract_strided_slice %10 {offsets = [6, 0], sizes = [24, 32], strides = [1, 1]} : vector<40x32xf32> to vector<24x32xf32>
    %41 = arith.truncf %40 : vector<24x32xf32> to vector<24x32xbf16>
    %c5 = arith.constant 5 : index
    %c0_24 = arith.constant 0 : index
    %c0_25 = arith.constant 0 : index
    %42 = vector.load %arg5[%c5, %c0_24, %c0_25] : memref<9x32x32xbf16, #tpu.memory_space<vmem>>, vector<1x32x32xbf16>
    %43 = vector.shape_cast %42 : vector<1x32x32xbf16> to vector<32x32xbf16>
    %cst_26 = arith.constant dense<0.000000e+00> : vector<24x32xf32>
    %44 = tpu.matmul %41, %43, %cst_26 {dimension_numbers = #tpu.dot_dimension_numbers<[1], [0], [0], [1], [0, 0, 1, 1], [], []>} : vector<24x32xbf16>, vector<32x32xbf16>, vector<24x32xf32> -> vector<24x32xf32>
    %45 = arith.addf %39, %44 : vector<24x32xf32>
    %46 = vector.extract_strided_slice %10 {offsets = [8, 0], sizes = [24, 32], strides = [1, 1]} : vector<40x32xf32> to vector<24x32xf32>
    %47 = arith.truncf %46 : vector<24x32xf32> to vector<24x32xbf16>
    %c6 = arith.constant 6 : index
    %c0_27 = arith.constant 0 : index
    %c0_28 = arith.constant 0 : index
    %48 = vector.load %arg5[%c6, %c0_27, %c0_28] : memref<9x32x32xbf16, #tpu.memory_space<vmem>>, vector<1x32x32xbf16>
    %49 = vector.shape_cast %48 : vector<1x32x32xbf16> to vector<32x32xbf16>
    %cst_29 = arith.constant dense<0.000000e+00> : vector<24x32xf32>
    %50 = tpu.matmul %47, %49, %cst_29 {dimension_numbers = #tpu.dot_dimension_numbers<[1], [0], [0], [1], [0, 0, 1, 1], [], []>} : vector<24x32xbf16>, vector<32x32xbf16>, vector<24x32xf32> -> vector<24x32xf32>
    %51 = arith.addf %45, %50 : vector<24x32xf32>
    %52 = vector.extract_strided_slice %10 {offsets = [9, 0], sizes = [24, 32], strides = [1, 1]} : vector<40x32xf32> to vector<24x32xf32>
    %53 = arith.truncf %52 : vector<24x32xf32> to vector<24x32xbf16>
    %c7 = arith.constant 7 : index
    %c0_30 = arith.constant 0 : index
    %c0_31 = arith.constant 0 : index
    %54 = vector.load %arg5[%c7, %c0_30, %c0_31] : memref<9x32x32xbf16, #tpu.memory_space<vmem>>, vector<1x32x32xbf16>
    %55 = vector.shape_cast %54 : vector<1x32x32xbf16> to vector<32x32xbf16>
    %cst_32 = arith.constant dense<0.000000e+00> : vector<24x32xf32>
    %56 = tpu.matmul %53, %55, %cst_32 {dimension_numbers = #tpu.dot_dimension_numbers<[1], [0], [0], [1], [0, 0, 1, 1], [], []>} : vector<24x32xbf16>, vector<32x32xbf16>, vector<24x32xf32> -> vector<24x32xf32>
    %57 = arith.addf %51, %56 : vector<24x32xf32>
    %58 = vector.extract_strided_slice %10 {offsets = [10, 0], sizes = [24, 32], strides = [1, 1]} : vector<40x32xf32> to vector<24x32xf32>
    %59 = arith.truncf %58 : vector<24x32xf32> to vector<24x32xbf16>
    %c8 = arith.constant 8 : index
    %c0_33 = arith.constant 0 : index
    %c0_34 = arith.constant 0 : index
    %60 = vector.load %arg5[%c8, %c0_33, %c0_34] : memref<9x32x32xbf16, #tpu.memory_space<vmem>>, vector<1x32x32xbf16>
    %61 = vector.shape_cast %60 : vector<1x32x32xbf16> to vector<32x32xbf16>
    %cst_35 = arith.constant dense<0.000000e+00> : vector<24x32xf32>
    %62 = tpu.matmul %59, %61, %cst_35 {dimension_numbers = #tpu.dot_dimension_numbers<[1], [0], [0], [1], [0, 0, 1, 1], [], []>} : vector<24x32xbf16>, vector<32x32xbf16>, vector<24x32xf32> -> vector<24x32xf32>
    %63 = arith.addf %57, %62 : vector<24x32xf32>
    %c0_36 = arith.constant 0 : index
    %c0_37 = arith.constant 0 : index
    %64 = vector.load %arg6[%c0_36, %c0_37] : memref<1x32xf32, #tpu.memory_space<vmem>>, vector<1x32xf32>
    %65 = vector.broadcast %64 : vector<1x32xf32> to vector<24x32xf32>
    %66 = arith.addf %63, %65 : vector<24x32xf32>
    %c0_38 = arith.constant 0 : index
    %c0_39 = arith.constant 0 : index
    %67 = vector.load %arg7[%c0_38, %c0_39] : memref<24x32xbf16, #tpu.memory_space<vmem>>, vector<24x32xbf16>
    %68 = arith.extf %67 : vector<24x32xbf16> to vector<24x32xf32>
    %69 = arith.addf %66, %68 : vector<24x32xf32>
    %cst_40 = arith.constant 0.000000e+00 : f32
    %70 = vector.broadcast %cst_40 : f32 to vector<24x32xf32>
    %71 = arith.maximumf %69, %70 : vector<24x32xf32>
    %72 = arith.truncf %71 : vector<24x32xf32> to vector<24x32xbf16>
    %c0_41 = arith.constant 0 : index
    %c0_42 = arith.constant 0 : index
    %73 = vector.load %arg8[%c0_41, %c0_42] : memref<24x32xbf16, #tpu.memory_space<vmem>>, vector<24x32xbf16>
    tpu.vector_store %arg8[%c0_41, %c0_42], %72 {strides = array<i32>} : memref<24x32xbf16, #tpu.memory_space<vmem>>, vector<24x32xbf16>,
    return
  }
  func.func @transform_0(%arg0: i32) -> (i32, i32) {
    %c0_i32 = arith.constant 0 : i32
    %c0_i32_0 = arith.constant 0 : i32
    %c0_i32_1 = arith.constant 0 : i32
    return %c0_i32, %c0_i32_0 : i32, i32
  }
  func.func @transform_1(%arg0: i32) -> (i32, i32) {
    %c0_i32 = arith.constant 0 : i32
    %c0_i32_0 = arith.constant 0 : i32
    %c0_i32_1 = arith.constant 0 : i32
    return %c0_i32, %c0_i32_0 : i32, i32
  }
  func.func @transform_2(%arg0: i32) -> (i32, i32) {
    %c0_i32 = arith.constant 0 : i32
    %c0_i32_0 = arith.constant 0 : i32
    %c0_i32_1 = arith.constant 0 : i32
    return %c0_i32, %c0_i32_0 : i32, i32
  }
  func.func @transform_3(%arg0: i32) -> (i32, i32) {
    %c0_i32 = arith.constant 0 : i32
    %c0_i32_0 = arith.constant 0 : i32
    %c0_i32_1 = arith.constant 0 : i32
    return %c0_i32, %c0_i32_0 : i32, i32
  }
  func.func @transform_4(%arg0: i32) -> (i32, i32, i32) {
    %c0_i32 = arith.constant 0 : i32
    %c0_i32_0 = arith.constant 0 : i32
    %c0_i32_1 = arith.constant 0 : i32
    %c0_i32_2 = arith.constant 0 : i32
    return %c0_i32, %c0_i32_0, %c0_i32_1 : i32, i32, i32
  }
  func.func @transform_5(%arg0: i32) -> (i32, i32) {
    %c0_i32 = arith.constant 0 : i32
    %c0_i32_0 = arith.constant 0 : i32
    %c0_i32_1 = arith.constant 0 : i32
    return %c0_i32, %c0_i32_0 : i32, i32
  }
  func.func @transform_6(%arg0: i32) -> (i32, i32) {
    %c0_i32 = arith.constant 0 : i32
    %c0_i32_0 = arith.constant 0 : i32
    %c0_i32_1 = arith.constant 0 : i32
    return %c0_i32, %c0_i32_0 : i32, i32
  }
  func.func @transform_7(%arg0: i32) -> (i32, i32) {
    %c0_i32 = arith.constant 0 : i32
    %c0_i32_0 = arith.constant 0 : i32
    %c0_i32_1 = arith.constant 0 : i32
    return %c0_i32, %c0_i32_0 : i32, i32
  }
}

module attributes {stable_mosaic.version = 11 : i64} {
  func.func @_block_kernel(%arg0: i32, %arg1: memref<24x288xbf16, #tpu.memory_space<vmem>>, %arg2: memref<288x64xbf16, #tpu.memory_space<vmem>>, %arg3: memref<1x64xf32, #tpu.memory_space<vmem>>, %arg4: memref<24x1xf32, #tpu.memory_space<vmem>>, %arg5: memref<9x64x64xbf16, #tpu.memory_space<vmem>>, %arg6: memref<1x64xf32, #tpu.memory_space<vmem>>, %arg7: memref<16x32xbf16, #tpu.memory_space<vmem>>, %arg8: memref<32x64xbf16, #tpu.memory_space<vmem>>, %arg9: memref<16x64xbf16, #tpu.memory_space<vmem>>) attributes {dimension_semantics = [#tpu.dimension_semantics<arbitrary>], iteration_bounds = array<i64: 1>, scalar_prefetch = 0 : i64, scratch_operands = 0 : i64, tpu.core_type = #tpu.core_type<tc>, window_params = [{pipeline_mode = #tpu.pipeline_mode<synchronous>, transform_indices = @transform_0, window_bounds = array<i64: 24, 288>}, {pipeline_mode = #tpu.pipeline_mode<synchronous>, transform_indices = @transform_1, window_bounds = array<i64: 288, 64>}, {pipeline_mode = #tpu.pipeline_mode<synchronous>, transform_indices = @transform_2, window_bounds = array<i64: 1, 64>}, {pipeline_mode = #tpu.pipeline_mode<synchronous>, transform_indices = @transform_3, window_bounds = array<i64: 24, 1>}, {pipeline_mode = #tpu.pipeline_mode<synchronous>, transform_indices = @transform_4, window_bounds = array<i64: 9, 64, 64>}, {pipeline_mode = #tpu.pipeline_mode<synchronous>, transform_indices = @transform_5, window_bounds = array<i64: 1, 64>}, {pipeline_mode = #tpu.pipeline_mode<synchronous>, transform_indices = @transform_6, window_bounds = array<i64: 16, 32>}, {pipeline_mode = #tpu.pipeline_mode<synchronous>, transform_indices = @transform_7, window_bounds = array<i64: 32, 64>}, {pipeline_mode = #tpu.pipeline_mode<synchronous>, transform_indices = @transform_8, window_bounds = array<i64: 16, 64>}]} {
    %c0 = arith.constant 0 : index
    %c0_0 = arith.constant 0 : index
    %0 = vector.load %arg1[%c0, %c0_0] : memref<24x288xbf16, #tpu.memory_space<vmem>>, vector<24x288xbf16>
    %c0_1 = arith.constant 0 : index
    %c0_2 = arith.constant 0 : index
    %1 = vector.load %arg2[%c0_1, %c0_2] : memref<288x64xbf16, #tpu.memory_space<vmem>>, vector<288x64xbf16>
    %cst = arith.constant dense<0.000000e+00> : vector<24x64xf32>
    %2 = tpu.matmul %0, %1, %cst {dimension_numbers = #tpu.dot_dimension_numbers<[1], [0], [0], [1], [0, 0, 1, 1], [], []>} : vector<24x288xbf16>, vector<288x64xbf16>, vector<24x64xf32> -> vector<24x64xf32>
    %c0_3 = arith.constant 0 : index
    %c0_4 = arith.constant 0 : index
    %3 = vector.load %arg3[%c0_3, %c0_4] : memref<1x64xf32, #tpu.memory_space<vmem>>, vector<1x64xf32>
    %4 = vector.broadcast %3 : vector<1x64xf32> to vector<24x64xf32>
    %5 = arith.addf %2, %4 : vector<24x64xf32>
    %cst_5 = arith.constant 0.000000e+00 : f32
    %6 = vector.broadcast %cst_5 : f32 to vector<24x64xf32>
    %7 = arith.maximumf %5, %6 : vector<24x64xf32>
    %c0_6 = arith.constant 0 : index
    %c0_7 = arith.constant 0 : index
    %8 = vector.load %arg4[%c0_6, %c0_7] : memref<24x1xf32, #tpu.memory_space<vmem>>, vector<24x1xf32>
    %9 = vector.broadcast %8 : vector<24x1xf32> to vector<24x64xf32>
    %10 = arith.mulf %7, %9 : vector<24x64xf32>
    %11 = vector.extract_strided_slice %10 {offsets = [0, 0], sizes = [16, 64], strides = [1, 1]} : vector<24x64xf32> to vector<16x64xf32>
    %12 = arith.truncf %11 : vector<16x64xf32> to vector<16x64xbf16>
    %c0_8 = arith.constant 0 : index
    %c0_9 = arith.constant 0 : index
    %c0_10 = arith.constant 0 : index
    %13 = vector.load %arg5[%c0_8, %c0_9, %c0_10] : memref<9x64x64xbf16, #tpu.memory_space<vmem>>, vector<1x64x64xbf16>
    %14 = vector.shape_cast %13 : vector<1x64x64xbf16> to vector<64x64xbf16>
    %cst_11 = arith.constant dense<0.000000e+00> : vector<16x64xf32>
    %15 = tpu.matmul %12, %14, %cst_11 {dimension_numbers = #tpu.dot_dimension_numbers<[1], [0], [0], [1], [0, 0, 1, 1], [], []>} : vector<16x64xbf16>, vector<64x64xbf16>, vector<16x64xf32> -> vector<16x64xf32>
    %16 = vector.extract_strided_slice %10 {offsets = [1, 0], sizes = [16, 64], strides = [1, 1]} : vector<24x64xf32> to vector<16x64xf32>
    %17 = arith.truncf %16 : vector<16x64xf32> to vector<16x64xbf16>
    %c1 = arith.constant 1 : index
    %c0_12 = arith.constant 0 : index
    %c0_13 = arith.constant 0 : index
    %18 = vector.load %arg5[%c1, %c0_12, %c0_13] : memref<9x64x64xbf16, #tpu.memory_space<vmem>>, vector<1x64x64xbf16>
    %19 = vector.shape_cast %18 : vector<1x64x64xbf16> to vector<64x64xbf16>
    %cst_14 = arith.constant dense<0.000000e+00> : vector<16x64xf32>
    %20 = tpu.matmul %17, %19, %cst_14 {dimension_numbers = #tpu.dot_dimension_numbers<[1], [0], [0], [1], [0, 0, 1, 1], [], []>} : vector<16x64xbf16>, vector<64x64xbf16>, vector<16x64xf32> -> vector<16x64xf32>
    %21 = arith.addf %15, %20 : vector<16x64xf32>
    %22 = vector.extract_strided_slice %10 {offsets = [2, 0], sizes = [16, 64], strides = [1, 1]} : vector<24x64xf32> to vector<16x64xf32>
    %23 = arith.truncf %22 : vector<16x64xf32> to vector<16x64xbf16>
    %c2 = arith.constant 2 : index
    %c0_15 = arith.constant 0 : index
    %c0_16 = arith.constant 0 : index
    %24 = vector.load %arg5[%c2, %c0_15, %c0_16] : memref<9x64x64xbf16, #tpu.memory_space<vmem>>, vector<1x64x64xbf16>
    %25 = vector.shape_cast %24 : vector<1x64x64xbf16> to vector<64x64xbf16>
    %cst_17 = arith.constant dense<0.000000e+00> : vector<16x64xf32>
    %26 = tpu.matmul %23, %25, %cst_17 {dimension_numbers = #tpu.dot_dimension_numbers<[1], [0], [0], [1], [0, 0, 1, 1], [], []>} : vector<16x64xbf16>, vector<64x64xbf16>, vector<16x64xf32> -> vector<16x64xf32>
    %27 = arith.addf %21, %26 : vector<16x64xf32>
    %28 = vector.extract_strided_slice %10 {offsets = [3, 0], sizes = [16, 64], strides = [1, 1]} : vector<24x64xf32> to vector<16x64xf32>
    %29 = arith.truncf %28 : vector<16x64xf32> to vector<16x64xbf16>
    %c3 = arith.constant 3 : index
    %c0_18 = arith.constant 0 : index
    %c0_19 = arith.constant 0 : index
    %30 = vector.load %arg5[%c3, %c0_18, %c0_19] : memref<9x64x64xbf16, #tpu.memory_space<vmem>>, vector<1x64x64xbf16>
    %31 = vector.shape_cast %30 : vector<1x64x64xbf16> to vector<64x64xbf16>
    %cst_20 = arith.constant dense<0.000000e+00> : vector<16x64xf32>
    %32 = tpu.matmul %29, %31, %cst_20 {dimension_numbers = #tpu.dot_dimension_numbers<[1], [0], [0], [1], [0, 0, 1, 1], [], []>} : vector<16x64xbf16>, vector<64x64xbf16>, vector<16x64xf32> -> vector<16x64xf32>
    %33 = arith.addf %27, %32 : vector<16x64xf32>
    %34 = vector.extract_strided_slice %10 {offsets = [4, 0], sizes = [16, 64], strides = [1, 1]} : vector<24x64xf32> to vector<16x64xf32>
    %35 = arith.truncf %34 : vector<16x64xf32> to vector<16x64xbf16>
    %c4 = arith.constant 4 : index
    %c0_21 = arith.constant 0 : index
    %c0_22 = arith.constant 0 : index
    %36 = vector.load %arg5[%c4, %c0_21, %c0_22] : memref<9x64x64xbf16, #tpu.memory_space<vmem>>, vector<1x64x64xbf16>
    %37 = vector.shape_cast %36 : vector<1x64x64xbf16> to vector<64x64xbf16>
    %cst_23 = arith.constant dense<0.000000e+00> : vector<16x64xf32>
    %38 = tpu.matmul %35, %37, %cst_23 {dimension_numbers = #tpu.dot_dimension_numbers<[1], [0], [0], [1], [0, 0, 1, 1], [], []>} : vector<16x64xbf16>, vector<64x64xbf16>, vector<16x64xf32> -> vector<16x64xf32>
    %39 = arith.addf %33, %38 : vector<16x64xf32>
    %40 = vector.extract_strided_slice %10 {offsets = [5, 0], sizes = [16, 64], strides = [1, 1]} : vector<24x64xf32> to vector<16x64xf32>
    %41 = arith.truncf %40 : vector<16x64xf32> to vector<16x64xbf16>
    %c5 = arith.constant 5 : index
    %c0_24 = arith.constant 0 : index
    %c0_25 = arith.constant 0 : index
    %42 = vector.load %arg5[%c5, %c0_24, %c0_25] : memref<9x64x64xbf16, #tpu.memory_space<vmem>>, vector<1x64x64xbf16>
    %43 = vector.shape_cast %42 : vector<1x64x64xbf16> to vector<64x64xbf16>
    %cst_26 = arith.constant dense<0.000000e+00> : vector<16x64xf32>
    %44 = tpu.matmul %41, %43, %cst_26 {dimension_numbers = #tpu.dot_dimension_numbers<[1], [0], [0], [1], [0, 0, 1, 1], [], []>} : vector<16x64xbf16>, vector<64x64xbf16>, vector<16x64xf32> -> vector<16x64xf32>
    %45 = arith.addf %39, %44 : vector<16x64xf32>
    %46 = vector.extract_strided_slice %10 {offsets = [6, 0], sizes = [16, 64], strides = [1, 1]} : vector<24x64xf32> to vector<16x64xf32>
    %47 = arith.truncf %46 : vector<16x64xf32> to vector<16x64xbf16>
    %c6 = arith.constant 6 : index
    %c0_27 = arith.constant 0 : index
    %c0_28 = arith.constant 0 : index
    %48 = vector.load %arg5[%c6, %c0_27, %c0_28] : memref<9x64x64xbf16, #tpu.memory_space<vmem>>, vector<1x64x64xbf16>
    %49 = vector.shape_cast %48 : vector<1x64x64xbf16> to vector<64x64xbf16>
    %cst_29 = arith.constant dense<0.000000e+00> : vector<16x64xf32>
    %50 = tpu.matmul %47, %49, %cst_29 {dimension_numbers = #tpu.dot_dimension_numbers<[1], [0], [0], [1], [0, 0, 1, 1], [], []>} : vector<16x64xbf16>, vector<64x64xbf16>, vector<16x64xf32> -> vector<16x64xf32>
    %51 = arith.addf %45, %50 : vector<16x64xf32>
    %52 = vector.extract_strided_slice %10 {offsets = [7, 0], sizes = [16, 64], strides = [1, 1]} : vector<24x64xf32> to vector<16x64xf32>
    %53 = arith.truncf %52 : vector<16x64xf32> to vector<16x64xbf16>
    %c7 = arith.constant 7 : index
    %c0_30 = arith.constant 0 : index
    %c0_31 = arith.constant 0 : index
    %54 = vector.load %arg5[%c7, %c0_30, %c0_31] : memref<9x64x64xbf16, #tpu.memory_space<vmem>>, vector<1x64x64xbf16>
    %55 = vector.shape_cast %54 : vector<1x64x64xbf16> to vector<64x64xbf16>
    %cst_32 = arith.constant dense<0.000000e+00> : vector<16x64xf32>
    %56 = tpu.matmul %53, %55, %cst_32 {dimension_numbers = #tpu.dot_dimension_numbers<[1], [0], [0], [1], [0, 0, 1, 1], [], []>} : vector<16x64xbf16>, vector<64x64xbf16>, vector<16x64xf32> -> vector<16x64xf32>
    %57 = arith.addf %51, %56 : vector<16x64xf32>
    %58 = vector.extract_strided_slice %10 {offsets = [8, 0], sizes = [16, 64], strides = [1, 1]} : vector<24x64xf32> to vector<16x64xf32>
    %59 = arith.truncf %58 : vector<16x64xf32> to vector<16x64xbf16>
    %c8 = arith.constant 8 : index
    %c0_33 = arith.constant 0 : index
    %c0_34 = arith.constant 0 : index
    %60 = vector.load %arg5[%c8, %c0_33, %c0_34] : memref<9x64x64xbf16, #tpu.memory_space<vmem>>, vector<1x64x64xbf16>
    %61 = vector.shape_cast %60 : vector<1x64x64xbf16> to vector<64x64xbf16>
    %cst_35 = arith.constant dense<0.000000e+00> : vector<16x64xf32>
    %62 = tpu.matmul %59, %61, %cst_35 {dimension_numbers = #tpu.dot_dimension_numbers<[1], [0], [0], [1], [0, 0, 1, 1], [], []>} : vector<16x64xbf16>, vector<64x64xbf16>, vector<16x64xf32> -> vector<16x64xf32>
    %63 = arith.addf %57, %62 : vector<16x64xf32>
    %c0_36 = arith.constant 0 : index
    %c0_37 = arith.constant 0 : index
    %64 = vector.load %arg6[%c0_36, %c0_37] : memref<1x64xf32, #tpu.memory_space<vmem>>, vector<1x64xf32>
    %65 = vector.broadcast %64 : vector<1x64xf32> to vector<16x64xf32>
    %66 = arith.addf %63, %65 : vector<16x64xf32>
    %c0_38 = arith.constant 0 : index
    %c0_39 = arith.constant 0 : index
    %67 = vector.load %arg7[%c0_38, %c0_39] : memref<16x32xbf16, #tpu.memory_space<vmem>>, vector<16x32xbf16>
    %c0_40 = arith.constant 0 : index
    %c0_41 = arith.constant 0 : index
    %68 = vector.load %arg8[%c0_40, %c0_41] : memref<32x64xbf16, #tpu.memory_space<vmem>>, vector<32x64xbf16>
    %cst_42 = arith.constant dense<0.000000e+00> : vector<16x64xf32>
    %69 = tpu.matmul %67, %68, %cst_42 {dimension_numbers = #tpu.dot_dimension_numbers<[1], [0], [0], [1], [0, 0, 1, 1], [], []>} : vector<16x32xbf16>, vector<32x64xbf16>, vector<16x64xf32> -> vector<16x64xf32>
    %70 = arith.addf %66, %69 : vector<16x64xf32>
    %cst_43 = arith.constant 0.000000e+00 : f32
    %71 = vector.broadcast %cst_43 : f32 to vector<16x64xf32>
    %72 = arith.maximumf %70, %71 : vector<16x64xf32>
    %73 = arith.truncf %72 : vector<16x64xf32> to vector<16x64xbf16>
    %c0_44 = arith.constant 0 : index
    %c0_45 = arith.constant 0 : index
    %74 = vector.load %arg9[%c0_44, %c0_45] : memref<16x64xbf16, #tpu.memory_space<vmem>>, vector<16x64xbf16>
    tpu.vector_store %arg9[%c0_44, %c0_45], %73 {strides = array<i32>} : memref<16x64xbf16, #tpu.memory_space<vmem>>, vector<16x64xbf16>,
    return
  }
  func.func @transform_0(%arg0: i32) -> (i32, i32) {
    %c0_i32 = arith.constant 0 : i32
    %c0_i32_0 = arith.constant 0 : i32
    %c0_i32_1 = arith.constant 0 : i32
    return %c0_i32, %c0_i32_0 : i32, i32
  }
  func.func @transform_1(%arg0: i32) -> (i32, i32) {
    %c0_i32 = arith.constant 0 : i32
    %c0_i32_0 = arith.constant 0 : i32
    %c0_i32_1 = arith.constant 0 : i32
    return %c0_i32, %c0_i32_0 : i32, i32
  }
  func.func @transform_2(%arg0: i32) -> (i32, i32) {
    %c0_i32 = arith.constant 0 : i32
    %c0_i32_0 = arith.constant 0 : i32
    %c0_i32_1 = arith.constant 0 : i32
    return %c0_i32, %c0_i32_0 : i32, i32
  }
  func.func @transform_3(%arg0: i32) -> (i32, i32) {
    %c0_i32 = arith.constant 0 : i32
    %c0_i32_0 = arith.constant 0 : i32
    %c0_i32_1 = arith.constant 0 : i32
    return %c0_i32, %c0_i32_0 : i32, i32
  }
  func.func @transform_4(%arg0: i32) -> (i32, i32, i32) {
    %c0_i32 = arith.constant 0 : i32
    %c0_i32_0 = arith.constant 0 : i32
    %c0_i32_1 = arith.constant 0 : i32
    %c0_i32_2 = arith.constant 0 : i32
    return %c0_i32, %c0_i32_0, %c0_i32_1 : i32, i32, i32
  }
  func.func @transform_5(%arg0: i32) -> (i32, i32) {
    %c0_i32 = arith.constant 0 : i32
    %c0_i32_0 = arith.constant 0 : i32
    %c0_i32_1 = arith.constant 0 : i32
    return %c0_i32, %c0_i32_0 : i32, i32
  }
  func.func @transform_6(%arg0: i32) -> (i32, i32) {
    %c0_i32 = arith.constant 0 : i32
    %c0_i32_0 = arith.constant 0 : i32
    %c0_i32_1 = arith.constant 0 : i32
    return %c0_i32, %c0_i32_0 : i32, i32
  }
  func.func @transform_7(%arg0: i32) -> (i32, i32) {
    %c0_i32 = arith.constant 0 : i32
    %c0_i32_0 = arith.constant 0 : i32
    %c0_i32_1 = arith.constant 0 : i32
    return %c0_i32, %c0_i32_0 : i32, i32
  }
  func.func @transform_8(%arg0: i32) -> (i32, i32) {
    %c0_i32 = arith.constant 0 : i32
    %c0_i32_0 = arith.constant 0 : i32
    %c0_i32_1 = arith.constant 0 : i32
    return %c0_i32, %c0_i32_0 : i32, i32
  }
}

module attributes {stable_mosaic.version = 11 : i64} {
  func.func @_block_kernel(%arg0: i32, %arg1: memref<24x576xbf16, #tpu.memory_space<vmem>>, %arg2: memref<576x64xbf16, #tpu.memory_space<vmem>>, %arg3: memref<1x64xf32, #tpu.memory_space<vmem>>, %arg4: memref<24x1xf32, #tpu.memory_space<vmem>>, %arg5: memref<9x64x64xbf16, #tpu.memory_space<vmem>>, %arg6: memref<1x64xf32, #tpu.memory_space<vmem>>, %arg7: memref<16x64xbf16, #tpu.memory_space<vmem>>, %arg8: memref<16x64xbf16, #tpu.memory_space<vmem>>) attributes {dimension_semantics = [#tpu.dimension_semantics<arbitrary>], iteration_bounds = array<i64: 1>, scalar_prefetch = 0 : i64, scratch_operands = 0 : i64, tpu.core_type = #tpu.core_type<tc>, window_params = [{pipeline_mode = #tpu.pipeline_mode<synchronous>, transform_indices = @transform_0, window_bounds = array<i64: 24, 576>}, {pipeline_mode = #tpu.pipeline_mode<synchronous>, transform_indices = @transform_1, window_bounds = array<i64: 576, 64>}, {pipeline_mode = #tpu.pipeline_mode<synchronous>, transform_indices = @transform_2, window_bounds = array<i64: 1, 64>}, {pipeline_mode = #tpu.pipeline_mode<synchronous>, transform_indices = @transform_3, window_bounds = array<i64: 24, 1>}, {pipeline_mode = #tpu.pipeline_mode<synchronous>, transform_indices = @transform_4, window_bounds = array<i64: 9, 64, 64>}, {pipeline_mode = #tpu.pipeline_mode<synchronous>, transform_indices = @transform_5, window_bounds = array<i64: 1, 64>}, {pipeline_mode = #tpu.pipeline_mode<synchronous>, transform_indices = @transform_6, window_bounds = array<i64: 16, 64>}, {pipeline_mode = #tpu.pipeline_mode<synchronous>, transform_indices = @transform_7, window_bounds = array<i64: 16, 64>}]} {
    %c0 = arith.constant 0 : index
    %c0_0 = arith.constant 0 : index
    %0 = vector.load %arg1[%c0, %c0_0] : memref<24x576xbf16, #tpu.memory_space<vmem>>, vector<24x576xbf16>
    %c0_1 = arith.constant 0 : index
    %c0_2 = arith.constant 0 : index
    %1 = vector.load %arg2[%c0_1, %c0_2] : memref<576x64xbf16, #tpu.memory_space<vmem>>, vector<576x64xbf16>
    %cst = arith.constant dense<0.000000e+00> : vector<24x64xf32>
    %2 = tpu.matmul %0, %1, %cst {dimension_numbers = #tpu.dot_dimension_numbers<[1], [0], [0], [1], [0, 0, 1, 1], [], []>} : vector<24x576xbf16>, vector<576x64xbf16>, vector<24x64xf32> -> vector<24x64xf32>
    %c0_3 = arith.constant 0 : index
    %c0_4 = arith.constant 0 : index
    %3 = vector.load %arg3[%c0_3, %c0_4] : memref<1x64xf32, #tpu.memory_space<vmem>>, vector<1x64xf32>
    %4 = vector.broadcast %3 : vector<1x64xf32> to vector<24x64xf32>
    %5 = arith.addf %2, %4 : vector<24x64xf32>
    %cst_5 = arith.constant 0.000000e+00 : f32
    %6 = vector.broadcast %cst_5 : f32 to vector<24x64xf32>
    %7 = arith.maximumf %5, %6 : vector<24x64xf32>
    %c0_6 = arith.constant 0 : index
    %c0_7 = arith.constant 0 : index
    %8 = vector.load %arg4[%c0_6, %c0_7] : memref<24x1xf32, #tpu.memory_space<vmem>>, vector<24x1xf32>
    %9 = vector.broadcast %8 : vector<24x1xf32> to vector<24x64xf32>
    %10 = arith.mulf %7, %9 : vector<24x64xf32>
    %11 = vector.extract_strided_slice %10 {offsets = [0, 0], sizes = [16, 64], strides = [1, 1]} : vector<24x64xf32> to vector<16x64xf32>
    %12 = arith.truncf %11 : vector<16x64xf32> to vector<16x64xbf16>
    %c0_8 = arith.constant 0 : index
    %c0_9 = arith.constant 0 : index
    %c0_10 = arith.constant 0 : index
    %13 = vector.load %arg5[%c0_8, %c0_9, %c0_10] : memref<9x64x64xbf16, #tpu.memory_space<vmem>>, vector<1x64x64xbf16>
    %14 = vector.shape_cast %13 : vector<1x64x64xbf16> to vector<64x64xbf16>
    %cst_11 = arith.constant dense<0.000000e+00> : vector<16x64xf32>
    %15 = tpu.matmul %12, %14, %cst_11 {dimension_numbers = #tpu.dot_dimension_numbers<[1], [0], [0], [1], [0, 0, 1, 1], [], []>} : vector<16x64xbf16>, vector<64x64xbf16>, vector<16x64xf32> -> vector<16x64xf32>
    %16 = vector.extract_strided_slice %10 {offsets = [1, 0], sizes = [16, 64], strides = [1, 1]} : vector<24x64xf32> to vector<16x64xf32>
    %17 = arith.truncf %16 : vector<16x64xf32> to vector<16x64xbf16>
    %c1 = arith.constant 1 : index
    %c0_12 = arith.constant 0 : index
    %c0_13 = arith.constant 0 : index
    %18 = vector.load %arg5[%c1, %c0_12, %c0_13] : memref<9x64x64xbf16, #tpu.memory_space<vmem>>, vector<1x64x64xbf16>
    %19 = vector.shape_cast %18 : vector<1x64x64xbf16> to vector<64x64xbf16>
    %cst_14 = arith.constant dense<0.000000e+00> : vector<16x64xf32>
    %20 = tpu.matmul %17, %19, %cst_14 {dimension_numbers = #tpu.dot_dimension_numbers<[1], [0], [0], [1], [0, 0, 1, 1], [], []>} : vector<16x64xbf16>, vector<64x64xbf16>, vector<16x64xf32> -> vector<16x64xf32>
    %21 = arith.addf %15, %20 : vector<16x64xf32>
    %22 = vector.extract_strided_slice %10 {offsets = [2, 0], sizes = [16, 64], strides = [1, 1]} : vector<24x64xf32> to vector<16x64xf32>
    %23 = arith.truncf %22 : vector<16x64xf32> to vector<16x64xbf16>
    %c2 = arith.constant 2 : index
    %c0_15 = arith.constant 0 : index
    %c0_16 = arith.constant 0 : index
    %24 = vector.load %arg5[%c2, %c0_15, %c0_16] : memref<9x64x64xbf16, #tpu.memory_space<vmem>>, vector<1x64x64xbf16>
    %25 = vector.shape_cast %24 : vector<1x64x64xbf16> to vector<64x64xbf16>
    %cst_17 = arith.constant dense<0.000000e+00> : vector<16x64xf32>
    %26 = tpu.matmul %23, %25, %cst_17 {dimension_numbers = #tpu.dot_dimension_numbers<[1], [0], [0], [1], [0, 0, 1, 1], [], []>} : vector<16x64xbf16>, vector<64x64xbf16>, vector<16x64xf32> -> vector<16x64xf32>
    %27 = arith.addf %21, %26 : vector<16x64xf32>
    %28 = vector.extract_strided_slice %10 {offsets = [3, 0], sizes = [16, 64], strides = [1, 1]} : vector<24x64xf32> to vector<16x64xf32>
    %29 = arith.truncf %28 : vector<16x64xf32> to vector<16x64xbf16>
    %c3 = arith.constant 3 : index
    %c0_18 = arith.constant 0 : index
    %c0_19 = arith.constant 0 : index
    %30 = vector.load %arg5[%c3, %c0_18, %c0_19] : memref<9x64x64xbf16, #tpu.memory_space<vmem>>, vector<1x64x64xbf16>
    %31 = vector.shape_cast %30 : vector<1x64x64xbf16> to vector<64x64xbf16>
    %cst_20 = arith.constant dense<0.000000e+00> : vector<16x64xf32>
    %32 = tpu.matmul %29, %31, %cst_20 {dimension_numbers = #tpu.dot_dimension_numbers<[1], [0], [0], [1], [0, 0, 1, 1], [], []>} : vector<16x64xbf16>, vector<64x64xbf16>, vector<16x64xf32> -> vector<16x64xf32>
    %33 = arith.addf %27, %32 : vector<16x64xf32>
    %34 = vector.extract_strided_slice %10 {offsets = [4, 0], sizes = [16, 64], strides = [1, 1]} : vector<24x64xf32> to vector<16x64xf32>
    %35 = arith.truncf %34 : vector<16x64xf32> to vector<16x64xbf16>
    %c4 = arith.constant 4 : index
    %c0_21 = arith.constant 0 : index
    %c0_22 = arith.constant 0 : index
    %36 = vector.load %arg5[%c4, %c0_21, %c0_22] : memref<9x64x64xbf16, #tpu.memory_space<vmem>>, vector<1x64x64xbf16>
    %37 = vector.shape_cast %36 : vector<1x64x64xbf16> to vector<64x64xbf16>
    %cst_23 = arith.constant dense<0.000000e+00> : vector<16x64xf32>
    %38 = tpu.matmul %35, %37, %cst_23 {dimension_numbers = #tpu.dot_dimension_numbers<[1], [0], [0], [1], [0, 0, 1, 1], [], []>} : vector<16x64xbf16>, vector<64x64xbf16>, vector<16x64xf32> -> vector<16x64xf32>
    %39 = arith.addf %33, %38 : vector<16x64xf32>
    %40 = vector.extract_strided_slice %10 {offsets = [5, 0], sizes = [16, 64], strides = [1, 1]} : vector<24x64xf32> to vector<16x64xf32>
    %41 = arith.truncf %40 : vector<16x64xf32> to vector<16x64xbf16>
    %c5 = arith.constant 5 : index
    %c0_24 = arith.constant 0 : index
    %c0_25 = arith.constant 0 : index
    %42 = vector.load %arg5[%c5, %c0_24, %c0_25] : memref<9x64x64xbf16, #tpu.memory_space<vmem>>, vector<1x64x64xbf16>
    %43 = vector.shape_cast %42 : vector<1x64x64xbf16> to vector<64x64xbf16>
    %cst_26 = arith.constant dense<0.000000e+00> : vector<16x64xf32>
    %44 = tpu.matmul %41, %43, %cst_26 {dimension_numbers = #tpu.dot_dimension_numbers<[1], [0], [0], [1], [0, 0, 1, 1], [], []>} : vector<16x64xbf16>, vector<64x64xbf16>, vector<16x64xf32> -> vector<16x64xf32>
    %45 = arith.addf %39, %44 : vector<16x64xf32>
    %46 = vector.extract_strided_slice %10 {offsets = [6, 0], sizes = [16, 64], strides = [1, 1]} : vector<24x64xf32> to vector<16x64xf32>
    %47 = arith.truncf %46 : vector<16x64xf32> to vector<16x64xbf16>
    %c6 = arith.constant 6 : index
    %c0_27 = arith.constant 0 : index
    %c0_28 = arith.constant 0 : index
    %48 = vector.load %arg5[%c6, %c0_27, %c0_28] : memref<9x64x64xbf16, #tpu.memory_space<vmem>>, vector<1x64x64xbf16>
    %49 = vector.shape_cast %48 : vector<1x64x64xbf16> to vector<64x64xbf16>
    %cst_29 = arith.constant dense<0.000000e+00> : vector<16x64xf32>
    %50 = tpu.matmul %47, %49, %cst_29 {dimension_numbers = #tpu.dot_dimension_numbers<[1], [0], [0], [1], [0, 0, 1, 1], [], []>} : vector<16x64xbf16>, vector<64x64xbf16>, vector<16x64xf32> -> vector<16x64xf32>
    %51 = arith.addf %45, %50 : vector<16x64xf32>
    %52 = vector.extract_strided_slice %10 {offsets = [7, 0], sizes = [16, 64], strides = [1, 1]} : vector<24x64xf32> to vector<16x64xf32>
    %53 = arith.truncf %52 : vector<16x64xf32> to vector<16x64xbf16>
    %c7 = arith.constant 7 : index
    %c0_30 = arith.constant 0 : index
    %c0_31 = arith.constant 0 : index
    %54 = vector.load %arg5[%c7, %c0_30, %c0_31] : memref<9x64x64xbf16, #tpu.memory_space<vmem>>, vector<1x64x64xbf16>
    %55 = vector.shape_cast %54 : vector<1x64x64xbf16> to vector<64x64xbf16>
    %cst_32 = arith.constant dense<0.000000e+00> : vector<16x64xf32>
    %56 = tpu.matmul %53, %55, %cst_32 {dimension_numbers = #tpu.dot_dimension_numbers<[1], [0], [0], [1], [0, 0, 1, 1], [], []>} : vector<16x64xbf16>, vector<64x64xbf16>, vector<16x64xf32> -> vector<16x64xf32>
    %57 = arith.addf %51, %56 : vector<16x64xf32>
    %58 = vector.extract_strided_slice %10 {offsets = [8, 0], sizes = [16, 64], strides = [1, 1]} : vector<24x64xf32> to vector<16x64xf32>
    %59 = arith.truncf %58 : vector<16x64xf32> to vector<16x64xbf16>
    %c8 = arith.constant 8 : index
    %c0_33 = arith.constant 0 : index
    %c0_34 = arith.constant 0 : index
    %60 = vector.load %arg5[%c8, %c0_33, %c0_34] : memref<9x64x64xbf16, #tpu.memory_space<vmem>>, vector<1x64x64xbf16>
    %61 = vector.shape_cast %60 : vector<1x64x64xbf16> to vector<64x64xbf16>
    %cst_35 = arith.constant dense<0.000000e+00> : vector<16x64xf32>
    %62 = tpu.matmul %59, %61, %cst_35 {dimension_numbers = #tpu.dot_dimension_numbers<[1], [0], [0], [1], [0, 0, 1, 1], [], []>} : vector<16x64xbf16>, vector<64x64xbf16>, vector<16x64xf32> -> vector<16x64xf32>
    %63 = arith.addf %57, %62 : vector<16x64xf32>
    %c0_36 = arith.constant 0 : index
    %c0_37 = arith.constant 0 : index
    %64 = vector.load %arg6[%c0_36, %c0_37] : memref<1x64xf32, #tpu.memory_space<vmem>>, vector<1x64xf32>
    %65 = vector.broadcast %64 : vector<1x64xf32> to vector<16x64xf32>
    %66 = arith.addf %63, %65 : vector<16x64xf32>
    %c0_38 = arith.constant 0 : index
    %c0_39 = arith.constant 0 : index
    %67 = vector.load %arg7[%c0_38, %c0_39] : memref<16x64xbf16, #tpu.memory_space<vmem>>, vector<16x64xbf16>
    %68 = arith.extf %67 : vector<16x64xbf16> to vector<16x64xf32>
    %69 = arith.addf %66, %68 : vector<16x64xf32>
    %cst_40 = arith.constant 0.000000e+00 : f32
    %70 = vector.broadcast %cst_40 : f32 to vector<16x64xf32>
    %71 = arith.maximumf %69, %70 : vector<16x64xf32>
    %72 = arith.truncf %71 : vector<16x64xf32> to vector<16x64xbf16>
    %c0_41 = arith.constant 0 : index
    %c0_42 = arith.constant 0 : index
    %73 = vector.load %arg8[%c0_41, %c0_42] : memref<16x64xbf16, #tpu.memory_space<vmem>>, vector<16x64xbf16>
    tpu.vector_store %arg8[%c0_41, %c0_42], %72 {strides = array<i32>} : memref<16x64xbf16, #tpu.memory_space<vmem>>, vector<16x64xbf16>,
    return
  }
  func.func @transform_0(%arg0: i32) -> (i32, i32) {
    %c0_i32 = arith.constant 0 : i32
    %c0_i32_0 = arith.constant 0 : i32
    %c0_i32_1 = arith.constant 0 : i32
    return %c0_i32, %c0_i32_0 : i32, i32
  }
  func.func @transform_1(%arg0: i32) -> (i32, i32) {
    %c0_i32 = arith.constant 0 : i32
    %c0_i32_0 = arith.constant 0 : i32
    %c0_i32_1 = arith.constant 0 : i32
    return %c0_i32, %c0_i32_0 : i32, i32
  }
  func.func @transform_2(%arg0: i32) -> (i32, i32) {
    %c0_i32 = arith.constant 0 : i32
    %c0_i32_0 = arith.constant 0 : i32
    %c0_i32_1 = arith.constant 0 : i32
    return %c0_i32, %c0_i32_0 : i32, i32
  }
  func.func @transform_3(%arg0: i32) -> (i32, i32) {
    %c0_i32 = arith.constant 0 : i32
    %c0_i32_0 = arith.constant 0 : i32
    %c0_i32_1 = arith.constant 0 : i32
    return %c0_i32, %c0_i32_0 : i32, i32
  }
  func.func @transform_4(%arg0: i32) -> (i32, i32, i32) {
    %c0_i32 = arith.constant 0 : i32
    %c0_i32_0 = arith.constant 0 : i32
    %c0_i32_1 = arith.constant 0 : i32
    %c0_i32_2 = arith.constant 0 : i32
    return %c0_i32, %c0_i32_0, %c0_i32_1 : i32, i32, i32
  }
  func.func @transform_5(%arg0: i32) -> (i32, i32) {
    %c0_i32 = arith.constant 0 : i32
    %c0_i32_0 = arith.constant 0 : i32
    %c0_i32_1 = arith.constant 0 : i32
    return %c0_i32, %c0_i32_0 : i32, i32
  }
  func.func @transform_6(%arg0: i32) -> (i32, i32) {
    %c0_i32 = arith.constant 0 : i32
    %c0_i32_0 = arith.constant 0 : i32
    %c0_i32_1 = arith.constant 0 : i32
    return %c0_i32, %c0_i32_0 : i32, i32
  }
  func.func @transform_7(%arg0: i32) -> (i32, i32) {
    %c0_i32 = arith.constant 0 : i32
    %c0_i32_0 = arith.constant 0 : i32
    %c0_i32_1 = arith.constant 0 : i32
    return %c0_i32, %c0_i32_0 : i32, i32
  }
}

module attributes {stable_mosaic.version = 11 : i64} {
  func.func @_avgpool_fc_kernel(%arg0: i32, %arg1: memref<8x1x64xbf16, #tpu.memory_space<vmem>>, %arg2: memref<64x10xf32, #tpu.memory_space<vmem>>, %arg3: memref<1x10xf32, #tpu.memory_space<vmem>>, %arg4: memref<8x10xf32, #tpu.memory_space<vmem>>) attributes {dimension_semantics = [#tpu.dimension_semantics<arbitrary>], iteration_bounds = array<i64: 1>, scalar_prefetch = 0 : i64, scratch_operands = 0 : i64, tpu.core_type = #tpu.core_type<tc>, window_params = [{pipeline_mode = #tpu.pipeline_mode<synchronous>, transform_indices = @transform_0, window_bounds = array<i64: 8, 1, 64>}, {pipeline_mode = #tpu.pipeline_mode<synchronous>, transform_indices = @transform_1, window_bounds = array<i64: 64, 10>}, {pipeline_mode = #tpu.pipeline_mode<synchronous>, transform_indices = @transform_2, window_bounds = array<i64: 1, 10>}, {pipeline_mode = #tpu.pipeline_mode<synchronous>, transform_indices = @transform_3, window_bounds = array<i64: 8, 10>}]} {
    %c0 = arith.constant 0 : index
    %c0_0 = arith.constant 0 : index
    %c0_1 = arith.constant 0 : index
    %0 = vector.load %arg1[%c0, %c0_0, %c0_1] : memref<8x1x64xbf16, #tpu.memory_space<vmem>>, vector<8x1x64xbf16>
    %1 = arith.extf %0 : vector<8x1x64xbf16> to vector<8x1x64xf32>
    %cst = arith.constant dense<0.000000e+00> : vector<8x64xf32>
    %2 = vector.multi_reduction <add>, %1, %cst [1] : vector<8x1x64xf32> to vector<8x64xf32>
    %cst_2 = arith.constant 1.000000e+00 : f32
    %3 = vector.broadcast %cst_2 : f32 to vector<8x64xf32>
    %4 = arith.mulf %2, %3 : vector<8x64xf32>
    %c0_3 = arith.constant 0 : index
    %c0_4 = arith.constant 0 : index
    %5 = vector.load %arg2[%c0_3, %c0_4] : memref<64x10xf32, #tpu.memory_space<vmem>>, vector<64x10xf32>
    %cst_5 = arith.constant dense<0.000000e+00> : vector<8x10xf32>
    %6 = tpu.matmul %4, %5, %cst_5 {dimension_numbers = #tpu.dot_dimension_numbers<[1], [0], [0], [1], [0, 0, 1, 1], [], []>} : vector<8x64xf32>, vector<64x10xf32>, vector<8x10xf32> -> vector<8x10xf32>
    %c0_6 = arith.constant 0 : index
    %c0_7 = arith.constant 0 : index
    %7 = vector.load %arg3[%c0_6, %c0_7] : memref<1x10xf32, #tpu.memory_space<vmem>>, vector<1x10xf32>
    %8 = vector.broadcast %7 : vector<1x10xf32> to vector<8x10xf32>
    %9 = arith.addf %6, %8 : vector<8x10xf32>
    %c0_8 = arith.constant 0 : index
    %c0_9 = arith.constant 0 : index
    %10 = vector.load %arg4[%c0_8, %c0_9] : memref<8x10xf32, #tpu.memory_space<vmem>>, vector<8x10xf32>
    tpu.vector_store %arg4[%c0_8, %c0_9], %9 {strides = array<i32>} : memref<8x10xf32, #tpu.memory_space<vmem>>, vector<8x10xf32>,
    return
  }
  func.func @transform_0(%arg0: i32) -> (i32, i32, i32) {
    %c0_i32 = arith.constant 0 : i32
    %c0_i32_0 = arith.constant 0 : i32
    %c0_i32_1 = arith.constant 0 : i32
    %c0_i32_2 = arith.constant 0 : i32
    return %c0_i32, %c0_i32_0, %c0_i32_1 : i32, i32, i32
  }
  func.func @transform_1(%arg0: i32) -> (i32, i32) {
    %c0_i32 = arith.constant 0 : i32
    %c0_i32_0 = arith.constant 0 : i32
    %c0_i32_1 = arith.constant 0 : i32
    return %c0_i32, %c0_i32_0 : i32, i32
  }
  func.func @transform_2(%arg0: i32) -> (i32, i32) {
    %c0_i32 = arith.constant 0 : i32
    %c0_i32_0 = arith.constant 0 : i32
    %c0_i32_1 = arith.constant 0 : i32
    return %c0_i32, %c0_i32_0 : i32, i32
  }
  func.func @transform_3(%arg0: i32) -> (i32, i32) {
    %c0_i32 = arith.constant 0 : i32
    %c0_i32_0 = arith.constant 0 : i32
    %c0_i32_1 = arith.constant 0 : i32
    return %c0_i32, %c0_i32_0 : i32, i32
  }
}

</mosaic_0001>

<llo_original>
// kernel: resnet18_forward.10
$region0: #{resnet18_forward.10}
  #allocation0 [shape = 'u32[]', space=smem, size = 0x4, offset = 0x4, fixed_abs, tag = 'smem constant byte address 0x4 - core index']
  #allocation1 [shape = 'u32[144,128]{1,0:T(1,128)}', space=vmem, size = 0x12000, scoped, tag = 'internal scratch']
  %s0 = inlined_call_operand.vmem [shape: bf16[512,147], index: 0, kind: input, shape index: {}]
  %s1 = inlined_call_operand.vmem [shape: bf16[147,8], index: 1, kind: input, shape index: {}]
  %s2 = inlined_call_operand.vmem [shape: f32[1,8], index: 2, kind: input, shape index: {}]
  %s3 = inlined_call_operand.vmem [shape: bf16[512,8], index: 3, kind: output, shape index: {}]
  %s4 = sld [smem:[#allocation0]]
  $region22: #{resnet18_forward.10} parent=0
    _
  %s6 = ssub.s32 1, %s4
  %s7 = scalar_select 0, %s6, %s4
  // Predicated region
  $region2: #{resnet18_forward.10} parent=0 // pred_check
    _
  $region3: #{resnet18_forward.10} parent=0 // pred_check_branch
    %9 = sbr.rel (0) target = $region5
  $region4: #{resnet18_forward.10} parent=0 // pred_region
    _
  $region5: #{resnet18_forward.10} parent=0 // pred_fallthru
    _
  // Predicated region
  $region6: #{resnet18_forward.10} parent=0 // pred_check
    _
  $region7: #{resnet18_forward.10} parent=0 // pred_check_branch
    %11 = sbr.rel (0) target = $region9
  $region8: #{resnet18_forward.10} parent=0 // pred_region
    _
  $region9: #{resnet18_forward.10} parent=0 // pred_fallthru
    _
  // Predicated region
  $region10: #{resnet18_forward.10} parent=0 // pred_check
    _
  $region11: #{resnet18_forward.10} parent=0 // pred_check_branch
    %13 = sbr.rel (0) target = $region13
  $region12: #{resnet18_forward.10} parent=0 // pred_region
    _
  $region13: #{resnet18_forward.10} parent=0 // pred_fallthru
    _
  %v15 = vld [vmem:[%s0] sm:$0xff]
  %v16 = vld [vmem:[%s0 + $0x8] sm:$0xff]
  %v17 = vld [vmem:[%s0 + $0x10] sm:$0xff]
  %v18 = vld [vmem:[%s0 + $0x18] sm:$0xff]
  %v19 = vld [vmem:[%s0 + $0x20] sm:$0xff]
  %v20 = vld [vmem:[%s0 + $0x28] sm:$0xff]
  %v21 = vld [vmem:[%s0 + $0x30] sm:$0xff]
  %v22 = vld [vmem:[%s0 + $0x38] sm:$0xff]
  %v23 = vld [vmem:[%s0 + $0x40] sm:$0xff]
  %v24 = vld [vmem:[%s0 + $0x48] sm:$0xff]
  %v25 = vld [vmem:[%s0 + $0x50] sm:$0xff]
  %v26 = vld [vmem:[%s0 + $0x58] sm:$0xff]
  %v27 = vld [vmem:[%s0 + $0x60] sm:$0xff]
  %v28 = vld [vmem:[%s0 + $0x68] sm:$0xff]
  %v29 = vld [vmem:[%s0 + $0x70] sm:$0xff]
  %v30 = vld [vmem:[%s0 + $0x78] sm:$0xff]
  %v31 = vld [vmem:[%s0 + $0x80] sm:$0xff]
  %v32 = vld [vmem:[%s0 + $0x88] sm:$0xff]
  %v33 = vld [vmem:[%s0 + $0x90] sm:$0xff]
  %v34 = vld [vmem:[%s0 + $0x98] sm:$0xff]
  %v35 = vld [vmem:[%s0 + $0xa0] sm:$0xff]
  %v36 = vld [vmem:[%s0 + $0xa8] sm:$0xff]
  %v37 = vld [vmem:[%s0 + $0xb0] sm:$0xff]
  %v38 = vld [vmem:[%s0 + $0xb8] sm:$0xff]
  %v39 = vld [vmem:[%s0 + $0xc0] sm:$0xff]
  %v40 = vld [vmem:[%s0 + $0xc8] sm:$0xff]
  %v41 = vld [vmem:[%s0 + $0xd0] sm:$0xff]
  %v42 = vld [vmem:[%s0 + $0xd8] sm:$0xff]
  %v43 = vld [vmem:[%s0 + $0xe0] sm:$0xff]
  %v44 = vld [vmem:[%s0 + $0xe8] sm:$0xff]
  %v45 = vld [vmem:[%s0 + $0xf0] sm:$0xff]
  %v46 = vld [vmem:[%s0 + $0xf8] sm:$0xff]
  %v47 = vld [vmem:[%s0 + $0x100] sm:$0xff]
  %v48 = vld [vmem:[%s0 + $0x108] sm:$0xff]
  %v49 = vld [vmem:[%s0 + $0x110] sm:$0xff]
  %v50 = vld [vmem:[%s0 + $0x118] sm:$0xff]
  %v51 = vld [vmem:[%s0 + $0x120] sm:$0xff]
  %v52 = vld [vmem:[%s0 + $0x128] sm:$0xff]
  %v53 = vld [vmem:[%s0 + $0x130] sm:$0xff]
  %v54 = vld [vmem:[%s0 + $0x138] sm:$0xff]
  %v55 = vld [vmem:[%s0 + $0x140] sm:$0xff]
  %v56 = vld [vmem:[%s0 + $0x148] sm:$0xff]
  %v57 = vld [vmem:[%s0 + $0x150] sm:$0xff]
  %v58 = vld [vmem:[%s0 + $0x158] sm:$0xff]
  %v59 = vld [vmem:[%s0 + $0x160] sm:$0xff]
  %v60 = vld [vmem:[%s0 + $0x168] sm:$0xff]
  %v61 = vld [vmem:[%s0 + $0x170] sm:$0xff]
  %v62 = vld [vmem:[%s0 + $0x178] sm:$0xff]
  %v63 = vld [vmem:[%s0 + $0x180] sm:$0xff]
  %v64 = vld [vmem:[%s0 + $0x188] sm:$0xff]
  %v65 = vld [vmem:[%s0 + $0x190] sm:$0xff]
  %v66 = vld [vmem:[%s0 + $0x198] sm:$0xff]
  %v67 = vld [vmem:[%s0 + $0x1a0] sm:$0xff]
  %v68 = vld [vmem:[%s0 + $0x1a8] sm:$0xff]
  %v69 = vld [vmem:[%s0 + $0x1b0] sm:$0xff]
  %v70 = vld [vmem:[%s0 + $0x1b8] sm:$0xff]
  %v71 = vld [vmem:[%s0 + $0x1c0] sm:$0xff]
  %v72 = vld [vmem:[%s0 + $0x1c8] sm:$0xff]
  %v73 = vld [vmem:[%s0 + $0x1d0] sm:$0xff]
  %v74 = vld [vmem:[%s0 + $0x1d8] sm:$0xff]
  %v75 = vld [vmem:[%s0 + $0x1e0] sm:$0xff]
  %v76 = vld [vmem:[%s0 + $0x1e8] sm:$0xff]
  %v77 = vld [vmem:[%s0 + $0x1f0] sm:$0xff]
  %v78 = vld [vmem:[%s0 + $0x1f8] sm:$0xff]
  %v79 = vld [vmem:[%s1] sm:$0xf]
  %v80 = vld [vmem:[%s1 + $0x4] sm:$0xf]
  %v81 = vld [vmem:[%s1 + $0x8] sm:$0xf]
  %v82 = vld [vmem:[%s1 + $0xc] sm:$0xf]
  %v83 = vld [vmem:[%s1 + $0x10] sm:$0xf]
  %v84 = vld [vmem:[%s1 + $0x14] sm:$0xf]
  %v85 = vld [vmem:[%s1 + $0x18] sm:$0xf]
  %v86 = vld [vmem:[%s1 + $0x1c] sm:$0xf]
  %v87 = vld [vmem:[%s1 + $0x20] sm:$0xf]
  %v88 = vld [vmem:[%s1 + $0x24] sm:$0xf]
  %v89 = vld [vmem:[%s1 + $0x28] sm:$0xf]
  %v90 = vld [vmem:[%s1 + $0x2c] sm:$0xf]
  %v91 = vld [vmem:[%s1 + $0x30] sm:$0xf]
  %v92 = vld [vmem:[%s1 + $0x34] sm:$0xf]
  %v93 = vld [vmem:[%s1 + $0x38] sm:$0xf]
  %v94 = vld [vmem:[%s1 + $0x3c] sm:$0xf]
  %v95 = vld [vmem:[%s1 + $0x40] sm:$0xf]
  %v96 = vld [vmem:[%s1 + $0x44] sm:$0xf]
  %v97 = vld [vmem:[%s1 + $0x48] sm:$0x3]
  %v98 = vld [vmem:[%s2] sm:$0x1]
  %v100 = vlaneseq
  %v101 = vshrl.u32 %v100, 7
  %v102 = vsub.s32 0, %v101
  %v103 = vrot.slane %v98, %v102
  %v169 = vunpack.c.l.b16 %v15
  %v170 = vunpack.c.h.b16 %v15
  %v171 = vunpack.c.l.b16 %v16
  %v172 = vunpack.c.h.b16 %v16
  %v173 = vunpack.c.l.b16 %v17
  %v174 = vunpack.c.h.b16 %v17
  %v175 = vunpack.c.l.b16 %v18
  %v176 = vunpack.c.h.b16 %v18
  %v177 = vunpack.c.l.b16 %v19
  %v178 = vunpack.c.h.b16 %v19
  %v179 = vunpack.c.l.b16 %v20
  %v180 = vunpack.c.h.b16 %v20
  %v181 = vunpack.c.l.b16 %v21
  %v182 = vunpack.c.h.b16 %v21
  %v183 = vunpack.c.l.b16 %v22
  %v184 = vunpack.c.h.b16 %v22
  %v185 = vunpack.c.l.b16 %v23
  %v186 = vunpack.c.h.b16 %v23
  %v187 = vunpack.c.l.b16 %v24
  %v188 = vunpack.c.h.b16 %v24
  %v189 = vunpack.c.l.b16 %v25
  %v190 = vunpack.c.h.b16 %v25
  %v191 = vunpack.c.l.b16 %v26
  %v192 = vunpack.c.h.b16 %v26
  %v193 = vunpack.c.l.b16 %v27
  %v194 = vunpack.c.h.b16 %v27
  %v195 = vunpack.c.l.b16 %v28
  %v196 = vunpack.c.h.b16 %v28
  %v197 = vunpack.c.l.b16 %v29
  %v198 = vunpack.c.h.b16 %v29
  %v199 = vunpack.c.l.b16 %v30
  %v200 = vunpack.c.h.b16 %v30
  %v201 = vunpack.c.l.b16 %v31
  %v202 = vunpack.c.h.b16 %v31
  %v203 = vunpack.c.l.b16 %v32
  %v204 = vunpack.c.h.b16 %v32
  %v205 = vunpack.c.l.b16 %v33
  %v206 = vunpack.c.h.b16 %v33
  %v207 = vunpack.c.l.b16 %v34
  %v208 = vunpack.c.h.b16 %v34
  %v209 = vunpack.c.l.b16 %v35
  %v210 = vunpack.c.h.b16 %v35
  %v211 = vunpack.c.l.b16 %v36
  %v212 = vunpack.c.h.b16 %v36
  %v213 = vunpack.c.l.b16 %v37
  %v214 = vunpack.c.h.b16 %v37
  %v215 = vunpack.c.l.b16 %v38
  %v216 = vunpack.c.h.b16 %v38
  %v217 = vunpack.c.l.b16 %v39
  %v218 = vunpack.c.h.b16 %v39
  %v219 = vunpack.c.l.b16 %v40
  %v220 = vunpack.c.h.b16 %v40
  %v221 = vunpack.c.l.b16 %v41
  %v222 = vunpack.c.h.b16 %v41
  %v223 = vunpack.c.l.b16 %v42
  %v224 = vunpack.c.h.b16 %v42
  %v225 = vunpack.c.l.b16 %v43
  %v226 = vunpack.c.h.b16 %v43
  %v227 = vunpack.c.l.b16 %v44
  %v228 = vunpack.c.h.b16 %v44
  %v229 = vunpack.c.l.b16 %v45
  %v230 = vunpack.c.h.b16 %v45
  %v231 = vunpack.c.l.b16 %v46
  %v232 = vunpack.c.h.b16 %v46
  %v233 = vunpack.c.l.b16 %v47
  %v234 = vunpack.c.h.b16 %v47
  %v235 = vunpack.c.l.b16 %v48
  %v236 = vunpack.c.h.b16 %v48
  %v237 = vunpack.c.l.b16 %v49
  %v238 = vunpack.c.h.b16 %v49
  %v239 = vunpack.c.l.b16 %v50
  %v240 = vunpack.c.h.b16 %v50
  %v241 = vunpack.c.l.b16 %v51
  %v242 = vunpack.c.h.b16 %v51
  %v243 = vunpack.c.l.b16 %v52
  %v244 = vunpack.c.h.b16 %v52
  %v245 = vunpack.c.l.b16 %v53
  %v246 = vunpack.c.h.b16 %v53
  %v247 = vunpack.c.l.b16 %v54
  %v248 = vunpack.c.h.b16 %v54
  %v249 = vunpack.c.l.b16 %v55
  %v250 = vunpack.c.h.b16 %v55
  %v251 = vunpack.c.l.b16 %v56
  %v252 = vunpack.c.h.b16 %v56
  %v253 = vunpack.c.l.b16 %v57
  %v254 = vunpack.c.h.b16 %v57
  %v255 = vunpack.c.l.b16 %v58
  %v256 = vunpack.c.h.b16 %v58
  %v257 = vunpack.c.l.b16 %v59
  %v258 = vunpack.c.h.b16 %v59
  %v259 = vunpack.c.l.b16 %v60
  %v260 = vunpack.c.h.b16 %v60
  %v261 = vunpack.c.l.b16 %v61
  %v262 = vunpack.c.h.b16 %v61
  %v263 = vunpack.c.l.b16 %v62
  %v264 = vunpack.c.h.b16 %v62
  %v265 = vunpack.c.l.b16 %v63
  %v266 = vunpack.c.h.b16 %v63
  %v267 = vunpack.c.l.b16 %v64
  %v268 = vunpack.c.h.b16 %v64
  %v269 = vunpack.c.l.b16 %v65
  %v270 = vunpack.c.h.b16 %v65
  %v271 = vunpack.c.l.b16 %v66
  %v272 = vunpack.c.h.b16 %v66
  %v273 = vunpack.c.l.b16 %v67
  %v274 = vunpack.c.h.b16 %v67
  %v275 = vunpack.c.l.b16 %v68
  %v276 = vunpack.c.h.b16 %v68
  %v277 = vunpack.c.l.b16 %v69
  %v278 = vunpack.c.h.b16 %v69
  %v279 = vunpack.c.l.b16 %v70
  %v280 = vunpack.c.h.b16 %v70
  %v281 = vunpack.c.l.b16 %v71
  %v282 = vunpack.c.h.b16 %v71
  %v283 = vunpack.c.l.b16 %v72
  %v284 = vunpack.c.h.b16 %v72
  %v285 = vunpack.c.l.b16 %v73
  %v286 = vunpack.c.h.b16 %v73
  %v287 = vunpack.c.l.b16 %v74
  %v288 = vunpack.c.h.b16 %v74
  %v289 = vunpack.c.l.b16 %v75
  %v290 = vunpack.c.h.b16 %v75
  %v291 = vunpack.c.l.b16 %v76
  %v292 = vunpack.c.h.b16 %v76
  %v293 = vunpack.c.l.b16 %v77
  %v294 = vunpack.c.h.b16 %v77
  %v295 = vunpack.c.l.b16 %v78
  %v296 = vunpack.c.h.b16 %v78
  %v297 = vpack.c.b16 %v171, %v169
  %v298 = vpack.c.b16 %v172, %v170
  %v299 = vpack.c.b16 %v175, %v173
  %v300 = vpack.c.b16 %v176, %v174
  %v301 = vpack.c.b16 %v179, %v177
  %v302 = vpack.c.b16 %v180, %v178
  %v303 = vpack.c.b16 %v183, %v181
  %v304 = vpack.c.b16 %v184, %v182
  %v305 = vpack.c.b16 %v187, %v185
  %v306 = vpack.c.b16 %v188, %v186
  %v307 = vpack.c.b16 %v191, %v189
  %v308 = vpack.c.b16 %v192, %v190
  %v309 = vpack.c.b16 %v195, %v193
  %v310 = vpack.c.b16 %v196, %v194
  %v311 = vpack.c.b16 %v199, %v197
  %v312 = vpack.c.b16 %v200, %v198
  %v313 = vpack.c.b16 %v203, %v201
  %v314 = vpack.c.b16 %v204, %v202
  %v315 = vpack.c.b16 %v207, %v205
  %v316 = vpack.c.b16 %v208, %v206
  %v317 = vpack.c.b16 %v211, %v209
  %v318 = vpack.c.b16 %v212, %v210
  %v319 = vpack.c.b16 %v215, %v213
  %v320 = vpack.c.b16 %v216, %v214
  %v321 = vpack.c.b16 %v219, %v217
  %v322 = vpack.c.b16 %v220, %v218
  %v323 = vpack.c.b16 %v223, %v221
  %v324 = vpack.c.b16 %v224, %v222
  %v325 = vpack.c.b16 %v227, %v225
  %v326 = vpack.c.b16 %v228, %v226
  %v327 = vpack.c.b16 %v231, %v229
  %v328 = vpack.c.b16 %v232, %v230
  %v329 = vpack.c.b16 %v235, %v233
  %v330 = vpack.c.b16 %v236, %v234
  %v331 = vpack.c.b16 %v239, %v237
  %v332 = vpack.c.b16 %v240, %v238
  %v333 = vpack.c.b16 %v243, %v241
  %v334 = vpack.c.b16 %v244, %v242
  %v335 = vpack.c.b16 %v247, %v245
  %v336 = vpack.c.b16 %v248, %v246
  %v337 = vpack.c.b16 %v251, %v249
  %v338 = vpack.c.b16 %v252, %v250
  %v339 = vpack.c.b16 %v255, %v253
  %v340 = vpack.c.b16 %v256, %v254
  %v341 = vpack.c.b16 %v259, %v257
  %v342 = vpack.c.b16 %v260, %v258
  %v343 = vpack.c.b16 %v263, %v261
  %v344 = vpack.c.b16 %v264, %v262
  %v345 = vpack.c.b16 %v267, %v265
  %v346 = vpack.c.b16 %v268, %v266
  %v347 = vpack.c.b16 %v271, %v269
  %v348 = vpack.c.b16 %v272, %v270
  %v349 = vpack.c.b16 %v275, %v273
  %v350 = vpack.c.b16 %v276, %v274
  %v351 = vpack.c.b16 %v279, %v277
  %v352 = vpack.c.b16 %v280, %v278
  %v353 = vpack.c.b16 %v283, %v281
  %v354 = vpack.c.b16 %v284, %v282
  %v355 = vpack.c.b16 %v287, %v285
  %v356 = vpack.c.b16 %v288, %v286
  %v357 = vpack.c.b16 %v291, %v289
  %v358 = vpack.c.b16 %v292, %v290
  %v359 = vpack.c.b16 %v295, %v293
  %v360 = vpack.c.b16 %v296, %v294
  %v412 = vunpack.c.l.b16 %v79
  %v413 = vunpack.c.l.b16 %v80
  %v414 = vunpack.c.l.b16 %v81
  %v415 = vunpack.c.l.b16 %v82
  %v416 = vunpack.c.l.b16 %v83
  %v417 = vunpack.c.l.b16 %v84
  %v418 = vunpack.c.l.b16 %v85
  %v419 = vunpack.c.l.b16 %v86
  %v420 = vunpack.c.l.b16 %v87
  %v421 = vunpack.c.l.b16 %v88
  %v422 = vunpack.c.l.b16 %v89
  %v423 = vunpack.c.l.b16 %v90
  %v424 = vunpack.c.l.b16 %v91
  %v425 = vunpack.c.l.b16 %v92
  %v426 = vunpack.c.l.b16 %v93
  %v427 = vunpack.c.l.b16 %v94
  %v428 = vunpack.c.l.b16 %v95
  %v429 = vunpack.c.l.b16 %v96
  %v430 = vunpack.c.l.b16 %v97
  %v431 = vpack.c.b16 %v413, %v412
  %v432 = vpack.c.b16 %v415, %v414
  %v433 = vpack.c.b16 %v417, %v416
  %v434 = vpack.c.b16 %v419, %v418
  %v435 = vpack.c.b16 %v421, %v420
  %v436 = vpack.c.b16 %v423, %v422
  %v437 = vpack.c.b16 %v425, %v424
  %v438 = vpack.c.b16 %v427, %v426
  %v439 = vpack.c.b16 %v429, %v428
  %v440 = vpack.c.b16 %v430, %v430
  %vm450 = vcmask 154624
  %v452 = vsel %vm450, %v298, 0
  %v455 = vsel %vm450, %v300, 0
  %v458 = vsel %vm450, %v302, 0
  %v461 = vsel %vm450, %v304, 0
  %v464 = vsel %vm450, %v306, 0
  %v467 = vsel %vm450, %v308, 0
  %v470 = vsel %vm450, %v310, 0
  %v473 = vsel %vm450, %v312, 0
  %v476 = vsel %vm450, %v314, 0
  %v479 = vsel %vm450, %v316, 0
  %v482 = vsel %vm450, %v318, 0
  %v485 = vsel %vm450, %v320, 0
  %v488 = vsel %vm450, %v322, 0
  %v491 = vsel %vm450, %v324, 0
  %v494 = vsel %vm450, %v326, 0
  %v497 = vsel %vm450, %v328, 0
  %v500 = vsel %vm450, %v330, 0
  %v503 = vsel %vm450, %v332, 0
  %v506 = vsel %vm450, %v334, 0
  %v509 = vsel %vm450, %v336, 0
  %v512 = vsel %vm450, %v338, 0
  %v515 = vsel %vm450, %v340, 0
  %v518 = vsel %vm450, %v342, 0
  %v521 = vsel %vm450, %v344, 0
  %v524 = vsel %vm450, %v346, 0
  %v527 = vsel %vm450, %v348, 0
  %v530 = vsel %vm450, %v350, 0
  %v533 = vsel %vm450, %v352, 0
  %v536 = vsel %vm450, %v354, 0
  %v539 = vsel %vm450, %v356, 0
  %v542 = vsel %vm450, %v358, 0
  %v545 = vsel %vm450, %v360, 0
  %vm547 = vcmask 1040384
  %vm548 = vcmask 1041408
  %v549 = vsel %vm547, 4294967295, 65535
  %v550 = vsel %vm548, %v549, 0
  %v552 = vand.u32 %v440, %v550
  %554 = vmatprep.subr.bf16.mxu0 0
  %555 = vmatpush1.bf16.msra.mxu0 %v431
  %556 = vmatprep.subr.bf16.mxu0 0
  %557 = vmatpush1.bf16.msra.mxu0 %v432
  %558 = vmatprep.subr.bf16.mxu0 0
  %559 = vmatpush1.bf16.msra.mxu0 %v433
  %560 = vmatprep.subr.bf16.mxu0 0
  %561 = vmatpush1.bf16.msra.mxu0 %v434
  %562 = vmatprep.subr.bf16.mxu0 0
  %563 = vmatpush1.bf16.msra.mxu0 %v435
  %564 = vmatprep.subr.bf16.mxu0 0
  %565 = vmatpush1.bf16.msra.mxu0 %v436
  %566 = vmatprep.subr.bf16.mxu0 0
  %567 = vmatpush1.bf16.msra.mxu0 %v437
  %568 = vmatprep.subr.bf16.mxu0 0
  %569 = vmatpush1.bf16.msra.mxu0 %v438
  %570 = vmatprep.subr.bf16.mxu0 0
  %571 = vmatpush1.bf16.msra.mxu0 %v439
  %572 = vmatprep.subr.bf16.mxu0 0
  %573 = vmatpush1.bf16.msra.mxu0 %v552
  %574 = vmatprep.subr.bf16.mxu0 0
  %575 = vmatpush1.bf16.msra.mxu0 0
  %576 = vmatprep.subr.bf16.mxu0 0
  %577 = vmatpush1.bf16.msra.mxu0 0
  %578 = vmatprep.subr.bf16.mxu0 0
  %579 = vmatpush1.bf16.msra.mxu0 0
  %580 = vmatprep.subr.bf16.mxu0 0
  %581 = vmatpush1.bf16.msra.mxu0 0
  %582 = vmatprep.subr.bf16.mxu0 0
  %583 = vmatpush1.bf16.msra.mxu0 0
  %584 = vmatprep.subr.bf16.mxu0 0
  %585 = vmatpush1.bf16.msra.mxu0 0
  %586 = vmatprep.mubr.bf16.mxu0 %v452
  %587 = vmatmul.mubr.bf16.gmra.mrb[0].mxu0 %v297
  %v588 = vpop.f32.mrb[0].mxu0
  %v589 = vadd.f32 %v103, %v588
  %v590 = vpop.f32.mrb[0].mxu0
  %v591 = vpop.f32.mrb[0].mxu0
  %v592 = vadd.f32 %v103, %v591
  %v593 = vpop.f32.mrb[0].mxu0
  %594 = vmatprep.mubr.bf16.mxu0 %v455
  %595 = vmatmul.mubr.bf16.gmra.mrb[0].mxu0 %v299
  %v596 = vpop.f32.mrb[0].mxu0
  %v597 = vadd.f32 %v103, %v596
  %v598 = vpop.f32.mrb[0].mxu0
  %v599 = vpop.f32.mrb[0].mxu0
  %v600 = vadd.f32 %v103, %v599
  %v601 = vpop.f32.mrb[0].mxu0
  %602 = vmatprep.mubr.bf16.mxu0 %v458
  %603 = vmatmul.mubr.bf16.gmra.mrb[0].mxu0 %v301
  %v604 = vpop.f32.mrb[0].mxu0
  %v605 = vadd.f32 %v103, %v604
  %v606 = vpop.f32.mrb[0].mxu0
  %v607 = vpop.f32.mrb[0].mxu0
  %v608 = vadd.f32 %v103, %v607
  %v609 = vpop.f32.mrb[0].mxu0
  %610 = vmatprep.mubr.bf16.mxu0 %v461
  %611 = vmatmul.mubr.bf16.gmra.mrb[0].mxu0 %v303
  %v612 = vpop.f32.mrb[0].mxu0
  %v613 = vadd.f32 %v103, %v612
  %v614 = vpop.f32.mrb[0].mxu0
  %v615 = vpop.f32.mrb[0].mxu0
  %v616 = vadd.f32 %v103, %v615
  %v617 = vpop.f32.mrb[0].mxu0
  %618 = vmatprep.mubr.bf16.mxu0 %v464
  %619 = vmatmul.mubr.bf16.gmra.mrb[0].mxu0 %v305
  %v620 = vpop.f32.mrb[0].mxu0
  %v621 = vadd.f32 %v103, %v620
  %v622 = vpop.f32.mrb[0].mxu0
  %v623 = vpop.f32.mrb[0].mxu0
  %v624 = vadd.f32 %v103, %v623
  %v625 = vpop.f32.mrb[0].mxu0
  %626 = vmatprep.mubr.bf16.mxu0 %v467
  %627 = vmatmul.mubr.bf16.gmra.mrb[0].mxu0 %v307
  %v628 = vpop.f32.mrb[0].mxu0
  %v629 = vadd.f32 %v103, %v628
  %v630 = vpop.f32.mrb[0].mxu0
  %v631 = vpop.f32.mrb[0].mxu0
  %v632 = vadd.f32 %v103, %v631
  %v633 = vpop.f32.mrb[0].mxu0
  %634 = vmatprep.mubr.bf16.mxu0 %v470
  %635 = vmatmul.mubr.bf16.gmra.mrb[0].mxu0 %v309
  %v636 = vpop.f32.mrb[0].mxu0
  %v637 = vadd.f32 %v103, %v636
  %v638 = vpop.f32.mrb[0].mxu0
  %v639 = vpop.f32.mrb[0].mxu0
  %v640 = vadd.f32 %v103, %v639
  %v641 = vpop.f32.mrb[0].mxu0
  %642 = vmatprep.mubr.bf16.mxu0 %v473
  %643 = vmatmul.mubr.bf16.gmra.mrb[0].mxu0 %v311
  %v644 = vpop.f32.mrb[0].mxu0
  %v645 = vadd.f32 %v103, %v644
  %v646 = vpop.f32.mrb[0].mxu0
  %v647 = vpop.f32.mrb[0].mxu0
  %v648 = vadd.f32 %v103, %v647
  %v649 = vpop.f32.mrb[0].mxu0
  %650 = vmatprep.mubr.bf16.mxu0 %v476
  %651 = vmatmul.mubr.bf16.gmra.mrb[0].mxu0 %v313
  %v652 = vpop.f32.mrb[0].mxu0
  %v653 = vadd.f32 %v103, %v652
  %v654 = vpop.f32.mrb[0].mxu0
  %v655 = vpop.f32.mrb[0].mxu0
  %v656 = vadd.f32 %v103, %v655
  %v657 = vpop.f32.mrb[0].mxu0
  %658 = vmatprep.mubr.bf16.mxu0 %v479
  %659 = vmatmul.mubr.bf16.gmra.mrb[0].mxu0 %v315
  %v660 = vpop.f32.mrb[0].mxu0
  %v661 = vadd.f32 %v103, %v660
  %v662 = vpop.f32.mrb[0].mxu0
  %v663 = vpop.f32.mrb[0].mxu0
  %v664 = vadd.f32 %v103, %v663
  %v665 = vpop.f32.mrb[0].mxu0
  %666 = vmatprep.mubr.bf16.mxu0 %v482
  %667 = vmatmul.mubr.bf16.gmra.mrb[0].mxu0 %v317
  %v668 = vpop.f32.mrb[0].mxu0
  %v669 = vadd.f32 %v103, %v668
  %v670 = vpop.f32.mrb[0].mxu0
  %v671 = vpop.f32.mrb[0].mxu0
  %v672 = vadd.f32 %v103, %v671
  %v673 = vpop.f32.mrb[0].mxu0
  %674 = vmatprep.mubr.bf16.mxu0 %v485
  %675 = vmatmul.mubr.bf16.gmra.mrb[0].mxu0 %v319
  %v676 = vpop.f32.mrb[0].mxu0
  %v677 = vadd.f32 %v103, %v676
  %v678 = vpop.f32.mrb[0].mxu0
  %v679 = vpop.f32.mrb[0].mxu0
  %v680 = vadd.f32 %v103, %v679
  %v681 = vpop.f32.mrb[0].mxu0
  %682 = vmatprep.mubr.bf16.mxu0 %v488
  %683 = vmatmul.mubr.bf16.gmra.mrb[0].mxu0 %v321
  %v684 = vpop.f32.mrb[0].mxu0
  %v685 = vadd.f32 %v103, %v684
  %v686 = vpop.f32.mrb[0].mxu0
  %v687 = vpop.f32.mrb[0].mxu0
  %v688 = vadd.f32 %v103, %v687
  %v689 = vpop.f32.mrb[0].mxu0
  %690 = vmatprep.mubr.bf16.mxu0 %v491
  %691 = vmatmul.mubr.bf16.gmra.mrb[0].mxu0 %v323
  %v692 = vpop.f32.mrb[0].mxu0
  %v693 = vadd.f32 %v103, %v692
  %v694 = vpop.f32.mrb[0].mxu0
  %v695 = vpop.f32.mrb[0].mxu0
  %v696 = vadd.f32 %v103, %v695
  %v697 = vpop.f32.mrb[0].mxu0
  %698 = vmatprep.mubr.bf16.mxu0 %v494
  %699 = vmatmul.mubr.bf16.gmra.mrb[0].mxu0 %v325
  %v700 = vpop.f32.mrb[0].mxu0
  %v701 = vadd.f32 %v103, %v700
  %v702 = vpop.f32.mrb[0].mxu0
  %v703 = vpop.f32.mrb[0].mxu0
  %v704 = vadd.f32 %v103, %v703
  %v705 = vpop.f32.mrb[0].mxu0
  %706 = vmatprep.mubr.bf16.mxu0 %v497
  %707 = vmatmul.mubr.bf16.gmra.mrb[0].mxu0 %v327
  %v708 = vpop.f32.mrb[0].mxu0
  %v709 = vadd.f32 %v103, %v708
  %v710 = vpop.f32.mrb[0].mxu0
  %v711 = vpop.f32.mrb[0].mxu0
  %v712 = vadd.f32 %v103, %v711
  %v713 = vpop.f32.mrb[0].mxu0
  %714 = vmatprep.mubr.bf16.mxu0 %v500
  %715 = vmatmul.mubr.bf16.gmra.mrb[0].mxu0 %v329
  %v716 = vpop.f32.mrb[0].mxu0
  %v717 = vadd.f32 %v103, %v716
  %v718 = vpop.f32.mrb[0].mxu0
  %v719 = vpop.f32.mrb[0].mxu0
  %v720 = vadd.f32 %v103, %v719
  %v721 = vpop.f32.mrb[0].mxu0
  %722 = vmatprep.mubr.bf16.mxu0 %v503
  %723 = vmatmul.mubr.bf16.gmra.mrb[0].mxu0 %v331
  %v724 = vpop.f32.mrb[0].mxu0
  %v725 = vadd.f32 %v103, %v724
  %v726 = vpop.f32.mrb[0].mxu0
  %v727 = vpop.f32.mrb[0].mxu0
  %v728 = vadd.f32 %v103, %v727
  %v729 = vpop.f32.mrb[0].mxu0
  %730 = vmatprep.mubr.bf16.mxu0 %v506
  %731 = vmatmul.mubr.bf16.gmra.mrb[0].mxu0 %v333
  %v732 = vpop.f32.mrb[0].mxu0
  %v733 = vadd.f32 %v103, %v732
  %v734 = vpop.f32.mrb[0].mxu0
  %v735 = vpop.f32.mrb[0].mxu0
  %v736 = vadd.f32 %v103, %v735
  %v737 = vpop.f32.mrb[0].mxu0
  %738 = vmatprep.mubr.bf16.mxu0 %v509
  %739 = vmatmul.mubr.bf16.gmra.mrb[0].mxu0 %v335
  %v740 = vpop.f32.mrb[0].mxu0
  %v741 = vadd.f32 %v103, %v740
  %v742 = vpop.f32.mrb[0].mxu0
  %v743 = vpop.f32.mrb[0].mxu0
  %v744 = vadd.f32 %v103, %v743
  %v745 = vpop.f32.mrb[0].mxu0
  %746 = vmatprep.mubr.bf16.mxu0 %v512
  %747 = vmatmul.mubr.bf16.gmra.mrb[0].mxu0 %v337
  %v748 = vpop.f32.mrb[0].mxu0
  %v749 = vadd.f32 %v103, %v748
  %v750 = vpop.f32.mrb[0].mxu0
  %v751 = vpop.f32.mrb[0].mxu0
  %v752 = vadd.f32 %v103, %v751
  %v753 = vpop.f32.mrb[0].mxu0
  %754 = vmatprep.mubr.bf16.mxu0 %v515
  %755 = vmatmul.mubr.bf16.gmra.mrb[0].mxu0 %v339
  %v756 = vpop.f32.mrb[0].mxu0
  %v757 = vadd.f32 %v103, %v756
  %v758 = vpop.f32.mrb[0].mxu0
  %v759 = vpop.f32.mrb[0].mxu0
  %v760 = vadd.f32 %v103, %v759
  %v761 = vpop.f32.mrb[0].mxu0
  %762 = vmatprep.mubr.bf16.mxu0 %v518
  %763 = vmatmul.mubr.bf16.gmra.mrb[0].mxu0 %v341
  %v764 = vpop.f32.mrb[0].mxu0
  %v765 = vadd.f32 %v103, %v764
  %v766 = vpop.f32.mrb[0].mxu0
  %v767 = vpop.f32.mrb[0].mxu0
  %v768 = vadd.f32 %v103, %v767
  %v769 = vpop.f32.mrb[0].mxu0
  %770 = vmatprep.mubr.bf16.mxu0 %v521
  %771 = vmatmul.mubr.bf16.gmra.mrb[0].mxu0 %v343
  %v772 = vpop.f32.mrb[0].mxu0
  %v773 = vadd.f32 %v103, %v772
  %v774 = vpop.f32.mrb[0].mxu0
  %v775 = vpop.f32.mrb[0].mxu0
  %v776 = vadd.f32 %v103, %v775
  %v777 = vpop.f32.mrb[0].mxu0
  %778 = vmatprep.mubr.bf16.mxu0 %v524
  %779 = vmatmul.mubr.bf16.gmra.mrb[0].mxu0 %v345
  %v780 = vpop.f32.mrb[0].mxu0
  %v781 = vadd.f32 %v103, %v780
  %v782 = vpop.f32.mrb[0].mxu0
  %v783 = vpop.f32.mrb[0].mxu0
  %v784 = vadd.f32 %v103, %v783
  %v785 = vpop.f32.mrb[0].mxu0
  %786 = vmatprep.mubr.bf16.mxu0 %v527
  %787 = vmatmul.mubr.bf16.gmra.mrb[0].mxu0 %v347
  %v788 = vpop.f32.mrb[0].mxu0
  %v789 = vadd.f32 %v103, %v788
  %v790 = vpop.f32.mrb[0].mxu0
  %v791 = vpop.f32.mrb[0].mxu0
  %v792 = vadd.f32 %v103, %v791
  %v793 = vpop.f32.mrb[0].mxu0
  %794 = vmatprep.mubr.bf16.mxu0 %v530
  %795 = vmatmul.mubr.bf16.gmra.mrb[0].mxu0 %v349
  %v796 = vpop.f32.mrb[0].mxu0
  %v797 = vadd.f32 %v103, %v796
  %v798 = vpop.f32.mrb[0].mxu0
  %v799 = vpop.f32.mrb[0].mxu0
  %v800 = vadd.f32 %v103, %v799
  %v801 = vpop.f32.mrb[0].mxu0
  %802 = vmatprep.mubr.bf16.mxu0 %v533
  %803 = vmatmul.mubr.bf16.gmra.mrb[0].mxu0 %v351
  %v804 = vpop.f32.mrb[0].mxu0
  %v805 = vadd.f32 %v103, %v804
  %v806 = vpop.f32.mrb[0].mxu0
  %v807 = vpop.f32.mrb[0].mxu0
  %v808 = vadd.f32 %v103, %v807
  %v809 = vpop.f32.mrb[0].mxu0
  %810 = vmatprep.mubr.bf16.mxu0 %v536
  %811 = vmatmul.mubr.bf16.gmra.mrb[0].mxu0 %v353
  %v812 = vpop.f32.mrb[0].mxu0
  %v813 = vadd.f32 %v103, %v812
  %v814 = vpop.f32.mrb[0].mxu0
  %v815 = vpop.f32.mrb[0].mxu0
  %v816 = vadd.f32 %v103, %v815
  %v817 = vpop.f32.mrb[0].mxu0
  %818 = vmatprep.mubr.bf16.mxu0 %v539
  %819 = vmatmul.mubr.bf16.gmra.mrb[0].mxu0 %v355
  %v820 = vpop.f32.mrb[0].mxu0
  %v821 = vadd.f32 %v103, %v820
  %v822 = vpop.f32.mrb[0].mxu0
  %v823 = vpop.f32.mrb[0].mxu0
  %v824 = vadd.f32 %v103, %v823
  %v825 = vpop.f32.mrb[0].mxu0
  %826 = vmatprep.mubr.bf16.mxu0 %v542
  %827 = vmatmul.mubr.bf16.gmra.mrb[0].mxu0 %v357
  %v828 = vpop.f32.mrb[0].mxu0
  %v829 = vadd.f32 %v103, %v828
  %v830 = vpop.f32.mrb[0].mxu0
  %v831 = vpop.f32.mrb[0].mxu0
  %v832 = vadd.f32 %v103, %v831
  %v833 = vpop.f32.mrb[0].mxu0
  %834 = vmatprep.mubr.bf16.mxu0 %v545
  %835 = vmatmul.mubr.bf16.gmra.mrb[0].mxu0 %v359
  %v836 = vpop.f32.mrb[0].mxu0
  %v837 = vadd.f32 %v103, %v836
  %v838 = vpop.f32.mrb[0].mxu0
  %v839 = vpop.f32.mrb[0].mxu0
  %v840 = vadd.f32 %v103, %v839
  %v841 = vpop.f32.mrb[0].mxu0
  %842 = vdwg.mxu0
  %v843 = vmax.f32 %v589, 0.0
  %v844 = vmax.f32 %v592, 0.0
  %v845 = vmax.f32 %v597, 0.0
  %v846 = vmax.f32 %v600, 0.0
  %v847 = vmax.f32 %v605, 0.0
  %v848 = vmax.f32 %v608, 0.0
  %v849 = vmax.f32 %v613, 0.0
  %v850 = vmax.f32 %v616, 0.0
  %v851 = vmax.f32 %v621, 0.0
  %v852 = vmax.f32 %v624, 0.0
  %v853 = vmax.f32 %v629, 0.0
  %v854 = vmax.f32 %v632, 0.0
  %v855 = vmax.f32 %v637, 0.0
  %v856 = vmax.f32 %v640, 0.0
  %v857 = vmax.f32 %v645, 0.0
  %v858 = vmax.f32 %v648, 0.0
  %v859 = vmax.f32 %v653, 0.0
  %v860 = vmax.f32 %v656, 0.0
  %v861 = vmax.f32 %v661, 0.0
  %v862 = vmax.f32 %v664, 0.0
  %v863 = vmax.f32 %v669, 0.0
  %v864 = vmax.f32 %v672, 0.0
  %v865 = vmax.f32 %v677, 0.0
  %v866 = vmax.f32 %v680, 0.0
  %v867 = vmax.f32 %v685, 0.0
  %v868 = vmax.f32 %v688, 0.0
  %v869 = vmax.f32 %v693, 0.0
  %v870 = vmax.f32 %v696, 0.0
  %v871 = vmax.f32 %v701, 0.0
  %v872 = vmax.f32 %v704, 0.0
  %v873 = vmax.f32 %v709, 0.0
  %v874 = vmax.f32 %v712, 0.0
  %v875 = vmax.f32 %v717, 0.0
  %v876 = vmax.f32 %v720, 0.0
  %v877 = vmax.f32 %v725, 0.0
  %v878 = vmax.f32 %v728, 0.0
  %v879 = vmax.f32 %v733, 0.0
  %v880 = vmax.f32 %v736, 0.0
  %v881 = vmax.f32 %v741, 0.0
  %v882 = vmax.f32 %v744, 0.0
  %v883 = vmax.f32 %v749, 0.0
  %v884 = vmax.f32 %v752, 0.0
  %v885 = vmax.f32 %v757, 0.0
  %v886 = vmax.f32 %v760, 0.0
  %v887 = vmax.f32 %v765, 0.0
  %v888 = vmax.f32 %v768, 0.0
  %v889 = vmax.f32 %v773, 0.0
  %v890 = vmax.f32 %v776, 0.0
  %v891 = vmax.f32 %v781, 0.0
  %v892 = vmax.f32 %v784, 0.0
  %v893 = vmax.f32 %v789, 0.0
  %v894 = vmax.f32 %v792, 0.0
  %v895 = vmax.f32 %v797, 0.0
  %v896 = vmax.f32 %v800, 0.0
  %v897 = vmax.f32 %v805, 0.0
  %v898 = vmax.f32 %v808, 0.0
  %v899 = vmax.f32 %v813, 0.0
  %v900 = vmax.f32 %v816, 0.0
  %v901 = vmax.f32 %v821, 0.0
  %v902 = vmax.f32 %v824, 0.0
  %v903 = vmax.f32 %v829, 0.0
  %v904 = vmax.f32 %v832, 0.0
  %v905 = vmax.f32 %v837, 0.0
  %v906 = vmax.f32 %v840, 0.0
  %v907 = vpack.c.bf16 %v844, %v843
  %v908 = vpack.c.bf16 %v846, %v845
  %v909 = vpack.c.bf16 %v848, %v847
  %v910 = vpack.c.bf16 %v850, %v849
  %v911 = vpack.c.bf16 %v852, %v851
  %v912 = vpack.c.bf16 %v854, %v853
  %v913 = vpack.c.bf16 %v856, %v855
  %v914 = vpack.c.bf16 %v858, %v857
  %v915 = vpack.c.bf16 %v860, %v859
  %v916 = vpack.c.bf16 %v862, %v861
  %v917 = vpack.c.bf16 %v864, %v863
  %v918 = vpack.c.bf16 %v866, %v865
  %v919 = vpack.c.bf16 %v868, %v867
  %v920 = vpack.c.bf16 %v870, %v869
  %v921 = vpack.c.bf16 %v872, %v871
  %v922 = vpack.c.bf16 %v874, %v873
  %v923 = vpack.c.bf16 %v876, %v875
  %v924 = vpack.c.bf16 %v878, %v877
  %v925 = vpack.c.bf16 %v880, %v879
  %v926 = vpack.c.bf16 %v882, %v881
  %v927 = vpack.c.bf16 %v884, %v883
  %v928 = vpack.c.bf16 %v886, %v885
  %v929 = vpack.c.bf16 %v888, %v887
  %v930 = vpack.c.bf16 %v890, %v889
  %v931 = vpack.c.bf16 %v892, %v891
  %v932 = vpack.c.bf16 %v894, %v893
  %v933 = vpack.c.bf16 %v896, %v895
  %v934 = vpack.c.bf16 %v898, %v897
  %v935 = vpack.c.bf16 %v900, %v899
  %v936 = vpack.c.bf16 %v902, %v901
  %v937 = vpack.c.bf16 %v904, %v903
  %v938 = vpack.c.bf16 %v906, %v905
  %v971 = vunpack.c.l.b16 %v907
  %v972 = vunpack.c.h.b16 %v907
  %v973 = vunpack.c.l.b16 %v908
  %v974 = vunpack.c.h.b16 %v908
  %v975 = vunpack.c.l.b16 %v909
  %v976 = vunpack.c.h.b16 %v909
  %v977 = vunpack.c.l.b16 %v910
  %v978 = vunpack.c.h.b16 %v910
  %v979 = vunpack.c.l.b16 %v911
  %v980 = vunpack.c.h.b16 %v911
  %v981 = vunpack.c.l.b16 %v912
  %v982 = vunpack.c.h.b16 %v912
  %v983 = vunpack.c.l.b16 %v913
  %v984 = vunpack.c.h.b16 %v913
  %v985 = vunpack.c.l.b16 %v914
  %v986 = vunpack.c.h.b16 %v914
  %v987 = vunpack.c.l.b16 %v915
  %v988 = vunpack.c.h.b16 %v915
  %v989 = vunpack.c.l.b16 %v916
  %v990 = vunpack.c.h.b16 %v916
  %v991 = vunpack.c.l.b16 %v917
  %v992 = vunpack.c.h.b16 %v917
  %v993 = vunpack.c.l.b16 %v918
  %v994 = vunpack.c.h.b16 %v918
  %v995 = vunpack.c.l.b16 %v919
  %v996 = vunpack.c.h.b16 %v919
  %v997 = vunpack.c.l.b16 %v920
  %v998 = vunpack.c.h.b16 %v920
  %v999 = vunpack.c.l.b16 %v921
  %v1000 = vunpack.c.h.b16 %v921
  %v1001 = vunpack.c.l.b16 %v922
  %v1002 = vunpack.c.h.b16 %v922
  %v1003 = vunpack.c.l.b16 %v923
  %v1004 = vunpack.c.h.b16 %v923
  %v1005 = vunpack.c.l.b16 %v924
  %v1006 = vunpack.c.h.b16 %v924
  %v1007 = vunpack.c.l.b16 %v925
  %v1008 = vunpack.c.h.b16 %v925
  %v1009 = vunpack.c.l.b16 %v926
  %v1010 = vunpack.c.h.b16 %v926
  %v1011 = vunpack.c.l.b16 %v927
  %v1012 = vunpack.c.h.b16 %v927
  %v1013 = vunpack.c.l.b16 %v928
  %v1014 = vunpack.c.h.b16 %v928
  %v1015 = vunpack.c.l.b16 %v929
  %v1016 = vunpack.c.h.b16 %v929
  %v1017 = vunpack.c.l.b16 %v930
  %v1018 = vunpack.c.h.b16 %v930
  %v1019 = vunpack.c.l.b16 %v931
  %v1020 = vunpack.c.h.b16 %v931
  %v1021 = vunpack.c.l.b16 %v932
  %v1022 = vunpack.c.h.b16 %v932
  %v1023 = vunpack.c.l.b16 %v933
  %v1024 = vunpack.c.h.b16 %v933
  %v1025 = vunpack.c.l.b16 %v934
  %v1026 = vunpack.c.h.b16 %v934
  %v1027 = vunpack.c.l.b16 %v935
  %v1028 = vunpack.c.h.b16 %v935
  %v1029 = vunpack.c.l.b16 %v936
  %v1030 = vunpack.c.h.b16 %v936
  %v1031 = vunpack.c.l.b16 %v937
  %v1032 = vunpack.c.h.b16 %v937
  %v1033 = vunpack.c.l.b16 %v938
  %v1034 = vunpack.c.h.b16 %v938
  %v1035 = vpack.c.b16 %v971, %v971
  %v1036 = vpack.c.b16 %v972, %v972
  %v1037 = vpack.c.b16 %v973, %v973
  %v1038 = vpack.c.b16 %v974, %v974
  %v1039 = vpack.c.b16 %v975, %v975
  %v1040 = vpack.c.b16 %v976, %v976
  %v1041 = vpack.c.b16 %v977, %v977
  %v1042 = vpack.c.b16 %v978, %v978
  %v1043 = vpack.c.b16 %v979, %v979
  %v1044 = vpack.c.b16 %v980, %v980
  %v1045 = vpack.c.b16 %v981, %v981
  %v1046 = vpack.c.b16 %v982, %v982
  %v1047 = vpack.c.b16 %v983, %v983
  %v1048 = vpack.c.b16 %v984, %v984
  %v1049 = vpack.c.b16 %v985, %v985
  %v1050 = vpack.c.b16 %v986, %v986
  %v1051 = vpack.c.b16 %v987, %v987
  %v1052 = vpack.c.b16 %v988, %v988
  %v1053 = vpack.c.b16 %v989, %v989
  %v1054 = vpack.c.b16 %v990, %v990
  %v1055 = vpack.c.b16 %v991, %v991
  %v1056 = vpack.c.b16 %v992, %v992
  %v1057 = vpack.c.b16 %v993, %v993
  %v1058 = vpack.c.b16 %v994, %v994
  %v1059 = vpack.c.b16 %v995, %v995
  %v1060 = vpack.c.b16 %v996, %v996
  %v1061 = vpack.c.b16 %v997, %v997
  %v1062 = vpack.c.b16 %v998, %v998
  %v1063 = vpack.c.b16 %v999, %v999
  %v1064 = vpack.c.b16 %v1000, %v1000
  %v1065 = vpack.c.b16 %v1001, %v1001
  %v1066 = vpack.c.b16 %v1002, %v1002
  %v1067 = vpack.c.b16 %v1003, %v1003
  %v1068 = vpack.c.b16 %v1004, %v1004
  %v1069 = vpack.c.b16 %v1005, %v1005
  %v1070 = vpack.c.b16 %v1006, %v1006
  %v1071 = vpack.c.b16 %v1007, %v1007
  %v1072 = vpack.c.b16 %v1008, %v1008
  %v1073 = vpack.c.b16 %v1009, %v1009
  %v1074 = vpack.c.b16 %v1010, %v1010
  %v1075 = vpack.c.b16 %v1011, %v1011
  %v1076 = vpack.c.b16 %v1012, %v1012
  %v1077 = vpack.c.b16 %v1013, %v1013
  %v1078 = vpack.c.b16 %v1014, %v1014
  %v1079 = vpack.c.b16 %v1015, %v1015
  %v1080 = vpack.c.b16 %v1016, %v1016
  %v1081 = vpack.c.b16 %v1017, %v1017
  %v1082 = vpack.c.b16 %v1018, %v1018
  %v1083 = vpack.c.b16 %v1019, %v1019
  %v1084 = vpack.c.b16 %v1020, %v1020
  %v1085 = vpack.c.b16 %v1021, %v1021
  %v1086 = vpack.c.b16 %v1022, %v1022
  %v1087 = vpack.c.b16 %v1023, %v1023
  %v1088 = vpack.c.b16 %v1024, %v1024
  %v1089 = vpack.c.b16 %v1025, %v1025
  %v1090 = vpack.c.b16 %v1026, %v1026
  %v1091 = vpack.c.b16 %v1027, %v1027
  %v1092 = vpack.c.b16 %v1028, %v1028
  %v1093 = vpack.c.b16 %v1029, %v1029
  %v1094 = vpack.c.b16 %v1030, %v1030
  %v1095 = vpack.c.b16 %v1031, %v1031
  %v1096 = vpack.c.b16 %v1032, %v1032
  %v1097 = vpack.c.b16 %v1033, %v1033
  %v1098 = vpack.c.b16 %v1034, %v1034
  %vm1163 = vcmask 60416
  %1164 = vst.msk [vmem:[%s3] sm:$0xf] %vm1163, %v1035
  %1165 = vst.msk [vmem:[%s3 + $0x4] sm:$0xf] %vm1163, %v1036
  %1166 = vst.msk [vmem:[%s3 + $0x8] sm:$0xf] %vm1163, %v1037
  %1167 = vst.msk [vmem:[%s3 + $0xc] sm:$0xf] %vm1163, %v1038
  %1168 = vst.msk [vmem:[%s3 + $0x10] sm:$0xf] %vm1163, %v1039
  %1169 = vst.msk [vmem:[%s3 + $0x14] sm:$0xf] %vm1163, %v1040
  %1170 = vst.msk [vmem:[%s3 + $0x18] sm:$0xf] %vm1163, %v1041
  %1171 = vst.msk [vmem:[%s3 + $0x1c] sm:$0xf] %vm1163, %v1042
  %1172 = vst.msk [vmem:[%s3 + $0x20] sm:$0xf] %vm1163, %v1043
  %1173 = vst.msk [vmem:[%s3 + $0x24] sm:$0xf] %vm1163, %v1044
  %1174 = vst.msk [vmem:[%s3 + $0x28] sm:$0xf] %vm1163, %v1045
  %1175 = vst.msk [vmem:[%s3 + $0x2c] sm:$0xf] %vm1163, %v1046
  %1176 = vst.msk [vmem:[%s3 + $0x30] sm:$0xf] %vm1163, %v1047
  %1177 = vst.msk [vmem:[%s3 + $0x34] sm:$0xf] %vm1163, %v1048
  %1178 = vst.msk [vmem:[%s3 + $0x38] sm:$0xf] %vm1163, %v1049
  %1179 = vst.msk [vmem:[%s3 + $0x3c] sm:$0xf] %vm1163, %v1050
  %1180 = vst.msk [vmem:[%s3 + $0x40] sm:$0xf] %vm1163, %v1051
  %1181 = vst.msk [vmem:[%s3 + $0x44] sm:$0xf] %vm1163, %v1052
  %1182 = vst.msk [vmem:[%s3 + $0x48] sm:$0xf] %vm1163, %v1053
  %1183 = vst.msk [vmem:[%s3 + $0x4c] sm:$0xf] %vm1163, %v1054
  %1184 = vst.msk [vmem:[%s3 + $0x50] sm:$0xf] %vm1163, %v1055
  %1185 = vst.msk [vmem:[%s3 + $0x54] sm:$0xf] %vm1163, %v1056
  %1186 = vst.msk [vmem:[%s3 + $0x58] sm:$0xf] %vm1163, %v1057
  %1187 = vst.msk [vmem:[%s3 + $0x5c] sm:$0xf] %vm1163, %v1058
  %1188 = vst.msk [vmem:[%s3 + $0x60] sm:$0xf] %vm1163, %v1059
  %1189 = vst.msk [vmem:[%s3 + $0x64] sm:$0xf] %vm1163, %v1060
  %1190 = vst.msk [vmem:[%s3 + $0x68] sm:$0xf] %vm1163, %v1061
  %1191 = vst.msk [vmem:[%s3 + $0x6c] sm:$0xf] %vm1163, %v1062
  %1192 = vst.msk [vmem:[%s3 + $0x70] sm:$0xf] %vm1163, %v1063
  %1193 = vst.msk [vmem:[%s3 + $0x74] sm:$0xf] %vm1163, %v1064
  %1194 = vst.msk [vmem:[%s3 + $0x78] sm:$0xf] %vm1163, %v1065
  %1195 = vst.msk [vmem:[%s3 + $0x7c] sm:$0xf] %vm1163, %v1066
  %1196 = vst.msk [vmem:[%s3 + $0x80] sm:$0xf] %vm1163, %v1067
  %1197 = vst.msk [vmem:[%s3 + $0x84] sm:$0xf] %vm1163, %v1068
  %1198 = vst.msk [vmem:[%s3 + $0x88] sm:$0xf] %vm1163, %v1069
  %1199 = vst.msk [vmem:[%s3 + $0x8c] sm:$0xf] %vm1163, %v1070
  %1200 = vst.msk [vmem:[%s3 + $0x90] sm:$0xf] %vm1163, %v1071
  %1201 = vst.msk [vmem:[%s3 + $0x94] sm:$0xf] %vm1163, %v1072
  %1202 = vst.msk [vmem:[%s3 + $0x98] sm:$0xf] %vm1163, %v1073
  %1203 = vst.msk [vmem:[%s3 + $0x9c] sm:$0xf] %vm1163, %v1074
  %1204 = vst.msk [vmem:[%s3 + $0xa0] sm:$0xf] %vm1163, %v1075
  %1205 = vst.msk [vmem:[%s3 + $0xa4] sm:$0xf] %vm1163, %v1076
  %1206 = vst.msk [vmem:[%s3 + $0xa8] sm:$0xf] %vm1163, %v1077
  %1207 = vst.msk [vmem:[%s3 + $0xac] sm:$0xf] %vm1163, %v1078
  %1208 = vst.msk [vmem:[%s3 + $0xb0] sm:$0xf] %vm1163, %v1079
  %1209 = vst.msk [vmem:[%s3 + $0xb4] sm:$0xf] %vm1163, %v1080
  %1210 = vst.msk [vmem:[%s3 + $0xb8] sm:$0xf] %vm1163, %v1081
  %1211 = vst.msk [vmem:[%s3 + $0xbc] sm:$0xf] %vm1163, %v1082
  %1212 = vst.msk [vmem:[%s3 + $0xc0] sm:$0xf] %vm1163, %v1083
  %1213 = vst.msk [vmem:[%s3 + $0xc4] sm:$0xf] %vm1163, %v1084
  %1214 = vst.msk [vmem:[%s3 + $0xc8] sm:$0xf] %vm1163, %v1085
  %1215 = vst.msk [vmem:[%s3 + $0xcc] sm:$0xf] %vm1163, %v1086
  %1216 = vst.msk [vmem:[%s3 + $0xd0] sm:$0xf] %vm1163, %v1087
  %1217 = vst.msk [vmem:[%s3 + $0xd4] sm:$0xf] %vm1163, %v1088
  %1218 = vst.msk [vmem:[%s3 + $0xd8] sm:$0xf] %vm1163, %v1089
  %1219 = vst.msk [vmem:[%s3 + $0xdc] sm:$0xf] %vm1163, %v1090
  %1220 = vst.msk [vmem:[%s3 + $0xe0] sm:$0xf] %vm1163, %v1091
  %1221 = vst.msk [vmem:[%s3 + $0xe4] sm:$0xf] %vm1163, %v1092
  %1222 = vst.msk [vmem:[%s3 + $0xe8] sm:$0xf] %vm1163, %v1093
  %1223 = vst.msk [vmem:[%s3 + $0xec] sm:$0xf] %vm1163, %v1094
  %1224 = vst.msk [vmem:[%s3 + $0xf0] sm:$0xf] %vm1163, %v1095
  %1225 = vst.msk [vmem:[%s3 + $0xf4] sm:$0xf] %vm1163, %v1096
  %1226 = vst.msk [vmem:[%s3 + $0xf8] sm:$0xf] %vm1163, %v1097
  %1227 = vst.msk [vmem:[%s3 + $0xfc] sm:$0xf] %vm1163, %v1098
  // Predicated region
  $region14: #{resnet18_forward.10} parent=0 // pred_check
    _
  $region15: #{resnet18_forward.10} parent=0 // pred_check_branch
    %1229 = sbr.rel (0) target = $region17
  $region16: #{resnet18_forward.10} parent=0 // pred_region
    _
  $region17: #{resnet18_forward.10} parent=0 // pred_fallthru
    _
  // Predicated region
  $region18: #{resnet18_forward.10} parent=0 // pred_check
    _
  $region19: #{resnet18_forward.10} parent=0 // pred_check_branch
    %1231 = sbr.rel (0) target = $region21
  $region20: #{resnet18_forward.10} parent=0 // pred_region
    _
  $region21: #{resnet18_forward.10} parent=0 // pred_fallthru
    _

// kernel: resnet18_forward.11
$region0: #{resnet18_forward.11}
  #allocation0 [shape = 'u32[]', space=smem, size = 0x4, offset = 0x4, fixed_abs, tag = 'smem constant byte address 0x4 - core index']
  #allocation1 [shape = 'u32[144,128]{1,0:T(1,128)}', space=vmem, size = 0x12000, scoped, tag = 'internal scratch']
  %s0 = inlined_call_operand.vmem [shape: bf16[208,72], index: 0, kind: input, shape index: {}]
  %s1 = inlined_call_operand.vmem [shape: bf16[72,8], index: 1, kind: input, shape index: {}]
  %s2 = inlined_call_operand.vmem [shape: f32[1,8], index: 2, kind: input, shape index: {}]
  %s3 = inlined_call_operand.vmem [shape: f32[208,1], index: 3, kind: input, shape index: {}]
  %s4 = inlined_call_operand.vmem [shape: bf16[9,8,8], index: 4, kind: input, shape index: {}]
  %s5 = inlined_call_operand.vmem [shape: f32[1,8], index: 5, kind: input, shape index: {}]
  %s6 = inlined_call_operand.vmem [shape: bf16[184,8], index: 6, kind: input, shape index: {}]
  %s7 = inlined_call_operand.vmem [shape: bf16[184,8], index: 7, kind: output, shape index: {}]
  %s8 = sld [smem:[#allocation0]]
  $region38: #{resnet18_forward.11} parent=0
    _
  %s10 = ssub.s32 1, %s8
  %s11 = scalar_select 0, %s10, %s8
  // Predicated region
  $region2: #{resnet18_forward.11} parent=0 // pred_check
    _
  $region3: #{resnet18_forward.11} parent=0 // pred_check_branch
    %13 = sbr.rel (0) target = $region5
  $region4: #{resnet18_forward.11} parent=0 // pred_region
    _
  $region5: #{resnet18_forward.11} parent=0 // pred_fallthru
    _
  // Predicated region
  $region6: #{resnet18_forward.11} parent=0 // pred_check
    _
  $region7: #{resnet18_forward.11} parent=0 // pred_check_branch
    %15 = sbr.rel (0) target = $region9
  $region8: #{resnet18_forward.11} parent=0 // pred_region
    _
  $region9: #{resnet18_forward.11} parent=0 // pred_fallthru
    _
  // Predicated region
  $region10: #{resnet18_forward.11} parent=0 // pred_check
    _
  $region11: #{resnet18_forward.11} parent=0 // pred_check_branch
    %17 = sbr.rel (0) target = $region13
  $region12: #{resnet18_forward.11} parent=0 // pred_region
    _
  $region13: #{resnet18_forward.11} parent=0 // pred_fallthru
    _
  // Predicated region
  $region14: #{resnet18_forward.11} parent=0 // pred_check
    _
  $region15: #{resnet18_forward.11} parent=0 // pred_check_branch
    %19 = sbr.rel (0) target = $region17
  $region16: #{resnet18_forward.11} parent=0 // pred_region
    _
  $region17: #{resnet18_forward.11} parent=0 // pred_fallthru
    _
  // Predicated region
  $region18: #{resnet18_forward.11} parent=0 // pred_check
    _
  $region19: #{resnet18_forward.11} parent=0 // pred_check_branch
    %21 = sbr.rel (0) target = $region21
  $region20: #{resnet18_forward.11} parent=0 // pred_region
    _
  $region21: #{resnet18_forward.11} parent=0 // pred_fallthru
    _
  // Predicated region
  $region22: #{resnet18_forward.11} parent=0 // pred_check
    _
  $region23: #{resnet18_forward.11} parent=0 // pred_check_branch
    %23 = sbr.rel (0) target = $region25
  $region24: #{resnet18_forward.11} parent=0 // pred_region
    _
  $region25: #{resnet18_forward.11} parent=0 // pred_fallthru
    _
  // Predicated region
  $region26: #{resnet18_forward.11} parent=0 // pred_check
    _
  $region27: #{resnet18_forward.11} parent=0 // pred_check_branch
    %25 = sbr.rel (0) target = $region29
  $region28: #{resnet18_forward.11} parent=0 // pred_region
    _
  $region29: #{resnet18_forward.11} parent=0 // pred_fallthru
    _
  %v27 = vld [vmem:[%s0] sm:$0xf]
  %v28 = vld [vmem:[%s0 + $0x4] sm:$0xf]
  %v29 = vld [vmem:[%s0 + $0x8] sm:$0xf]
  %v30 = vld [vmem:[%s0 + $0xc] sm:$0xf]
  %v31 = vld [vmem:[%s0 + $0x10] sm:$0xf]
  %v32 = vld [vmem:[%s0 + $0x14] sm:$0xf]
  %v33 = vld [vmem:[%s0 + $0x18] sm:$0xf]
  %v34 = vld [vmem:[%s0 + $0x1c] sm:$0xf]
  %v35 = vld [vmem:[%s0 + $0x20] sm:$0xf]
  %v36 = vld [vmem:[%s0 + $0x24] sm:$0xf]
  %v37 = vld [vmem:[%s0 + $0x28] sm:$0xf]
  %v38 = vld [vmem:[%s0 + $0x2c] sm:$0xf]
  %v39 = vld [vmem:[%s0 + $0x30] sm:$0xf]
  %v40 = vld [vmem:[%s0 + $0x34] sm:$0xf]
  %v41 = vld [vmem:[%s0 + $0x38] sm:$0xf]
  %v42 = vld [vmem:[%s0 + $0x3c] sm:$0xf]
  %v43 = vld [vmem:[%s0 + $0x40] sm:$0xf]
  %v44 = vld [vmem:[%s0 + $0x44] sm:$0xf]
  %v45 = vld [vmem:[%s0 + $0x48] sm:$0xf]
  %v46 = vld [vmem:[%s0 + $0x4c] sm:$0xf]
  %v47 = vld [vmem:[%s0 + $0x50] sm:$0xf]
  %v48 = vld [vmem:[%s0 + $0x54] sm:$0xf]
  %v49 = vld [vmem:[%s0 + $0x58] sm:$0xf]
  %v50 = vld [vmem:[%s0 + $0x5c] sm:$0xf]
  %v51 = vld [vmem:[%s0 + $0x60] sm:$0xf]
  %v52 = vld [vmem:[%s0 + $0x64] sm:$0xf]
  %v53 = vld [vmem:[%s1] sm:$0xf]
  %v54 = vld [vmem:[%s1 + $0x4] sm:$0xf]
  %v55 = vld [vmem:[%s1 + $0x8] sm:$0xf]
  %v56 = vld [vmem:[%s1 + $0xc] sm:$0xf]
  %v57 = vld [vmem:[%s1 + $0x10] sm:$0xf]
  %v58 = vld [vmem:[%s1 + $0x14] sm:$0xf]
  %v59 = vld [vmem:[%s1 + $0x18] sm:$0xf]
  %v60 = vld [vmem:[%s1 + $0x1c] sm:$0xf]
  %v61 = vld [vmem:[%s1 + $0x20] sm:$0xf]
  %v62 = vld [vmem:[%s2] sm:$0x1]
  %v64 = vlaneseq
  %v65 = vshrl.u32 %v64, 7
  %v66 = vsub.s32 0, %v65
  %v67 = vrot.slane %v62, %v66
  %v95 = vunpack.c.l.b16 %v27
  %v96 = vunpack.c.l.b16 %v28
  %v97 = vunpack.c.l.b16 %v29
  %v98 = vunpack.c.l.b16 %v30
  %v99 = vunpack.c.l.b16 %v31
  %v100 = vunpack.c.l.b16 %v32
  %v101 = vunpack.c.l.b16 %v33
  %v102 = vunpack.c.l.b16 %v34
  %v103 = vunpack.c.l.b16 %v35
  %v104 = vunpack.c.l.b16 %v36
  %v105 = vunpack.c.l.b16 %v37
  %v106 = vunpack.c.l.b16 %v38
  %v107 = vunpack.c.l.b16 %v39
  %v108 = vunpack.c.l.b16 %v40
  %v109 = vunpack.c.l.b16 %v41
  %v110 = vunpack.c.l.b16 %v42
  %v111 = vunpack.c.l.b16 %v43
  %v112 = vunpack.c.l.b16 %v44
  %v113 = vunpack.c.l.b16 %v45
  %v114 = vunpack.c.l.b16 %v46
  %v115 = vunpack.c.l.b16 %v47
  %v116 = vunpack.c.l.b16 %v48
  %v117 = vunpack.c.l.b16 %v49
  %v118 = vunpack.c.l.b16 %v50
  %v119 = vunpack.c.l.b16 %v51
  %v120 = vunpack.c.l.b16 %v52
  %v121 = vpack.c.b16 %v96, %v95
  %v122 = vpack.c.b16 %v98, %v97
  %v123 = vpack.c.b16 %v100, %v99
  %v124 = vpack.c.b16 %v102, %v101
  %v125 = vpack.c.b16 %v104, %v103
  %v126 = vpack.c.b16 %v106, %v105
  %v127 = vpack.c.b16 %v108, %v107
  %v128 = vpack.c.b16 %v110, %v109
  %v129 = vpack.c.b16 %v112, %v111
  %v130 = vpack.c.b16 %v114, %v113
  %v131 = vpack.c.b16 %v116, %v115
  %v132 = vpack.c.b16 %v118, %v117
  %v133 = vpack.c.b16 %v120, %v119
  %v143 = vunpack.c.l.b16 %v53
  %v144 = vunpack.c.l.b16 %v54
  %v145 = vunpack.c.l.b16 %v55
  %v146 = vunpack.c.l.b16 %v56
  %v147 = vunpack.c.l.b16 %v57
  %v148 = vunpack.c.l.b16 %v58
  %v149 = vunpack.c.l.b16 %v59
  %v150 = vunpack.c.l.b16 %v60
  %v151 = vunpack.c.l.b16 %v61
  %v152 = vpack.c.b16 %v144, %v143
  %v153 = vpack.c.b16 %v146, %v145
  %v154 = vpack.c.b16 %v148, %v147
  %v155 = vpack.c.b16 %v150, %v149
  %v156 = vpack.c.b16 %v151, %v151
  %vm161 = vcmask 588800
  %v163 = vsel %vm161, %v121, 0
  %v166 = vsel %vm161, %v122, 0
  %v169 = vsel %vm161, %v123, 0
  %v172 = vsel %vm161, %v124, 0
  %v175 = vsel %vm161, %v125, 0
  %v178 = vsel %vm161, %v126, 0
  %v181 = vsel %vm161, %v127, 0
  %v184 = vsel %vm161, %v128, 0
  %v187 = vsel %vm161, %v129, 0
  %v190 = vsel %vm161, %v130, 0
  %v193 = vsel %vm161, %v131, 0
  %v196 = vsel %vm161, %v132, 0
  %v199 = vsel %vm161, %v133, 0
  %vm201 = vcmask 1043456
  %v203 = vsel %vm201, %v156, 0
  %205 = vmatprep.subr.bf16.mxu0 0
  %206 = vmatpush1.bf16.msra.mxu0 %v152
  %207 = vmatprep.subr.bf16.mxu0 0
  %208 = vmatpush1.bf16.msra.mxu0 %v153
  %209 = vmatprep.subr.bf16.mxu0 0
  %210 = vmatpush1.bf16.msra.mxu0 %v154
  %211 = vmatprep.subr.bf16.mxu0 0
  %212 = vmatpush1.bf16.msra.mxu0 %v155
  %213 = vmatprep.subr.bf16.mxu0 0
  %214 = vmatpush1.bf16.msra.mxu0 %v203
  %215 = vmatprep.subr.bf16.mxu0 0
  %216 = vmatpush1.bf16.msra.mxu0 0
  %217 = vmatprep.subr.bf16.mxu0 0
  %218 = vmatpush1.bf16.msra.mxu0 0
  %219 = vmatprep.subr.bf16.mxu0 0
  %220 = vmatpush1.bf16.msra.mxu0 0
  %221 = vmatprep.subr.bf16.mxu0 0
  %222 = vmatpush1.bf16.msra.mxu0 0
  %223 = vmatprep.subr.bf16.mxu0 0
  %224 = vmatpush1.bf16.msra.mxu0 0
  %225 = vmatprep.subr.bf16.mxu0 0
  %226 = vmatpush1.bf16.msra.mxu0 0
  %227 = vmatprep.subr.bf16.mxu0 0
  %228 = vmatpush1.bf16.msra.mxu0 0
  %229 = vmatprep.subr.bf16.mxu0 0
  %230 = vmatpush1.bf16.msra.mxu0 0
  %231 = vmatprep.subr.bf16.mxu0 0
  %232 = vmatpush1.bf16.msra.mxu0 0
  %233 = vmatprep.subr.bf16.mxu0 0
  %234 = vmatpush1.bf16.msra.mxu0 0
  %235 = vmatprep.subr.bf16.mxu0 0
  %236 = vmatpush1.bf16.msra.mxu0 0
  %237 = vmatprep.mubr.bf16.mxu0 0
  %238 = vmatmul.mubr.bf16.gmra.mrb[0].mxu0 %v163
  %v239 = vpop.f32.mrb[0].mxu0
  %v240 = vadd.f32 %v67, %v239
  %v241 = vpop.f32.mrb[0].mxu0
  %v242 = vpop.f32.mrb[0].mxu0
  %v243 = vadd.f32 %v67, %v242
  %v244 = vpop.f32.mrb[0].mxu0
  %245 = vmatprep.mubr.bf16.mxu0 0
  %246 = vmatmul.mubr.bf16.gmra.mrb[0].mxu0 %v166
  %v247 = vpop.f32.mrb[0].mxu0
  %v248 = vadd.f32 %v67, %v247
  %v249 = vpop.f32.mrb[0].mxu0
  %v250 = vpop.f32.mrb[0].mxu0
  %v251 = vadd.f32 %v67, %v250
  %v252 = vpop.f32.mrb[0].mxu0
  %253 = vmatprep.mubr.bf16.mxu0 0
  %254 = vmatmul.mubr.bf16.gmra.mrb[0].mxu0 %v169
  %v255 = vpop.f32.mrb[0].mxu0
  %v256 = vadd.f32 %v67, %v255
  %v257 = vpop.f32.mrb[0].mxu0
  %v258 = vpop.f32.mrb[0].mxu0
  %v259 = vadd.f32 %v67, %v258
  %v260 = vpop.f32.mrb[0].mxu0
  %261 = vmatprep.mubr.bf16.mxu0 0
  %262 = vmatmul.mubr.bf16.gmra.mrb[0].mxu0 %v172
  %v263 = vpop.f32.mrb[0].mxu0
  %v264 = vadd.f32 %v67, %v263
  %v265 = vpop.f32.mrb[0].mxu0
  %v266 = vpop.f32.mrb[0].mxu0
  %v267 = vadd.f32 %v67, %v266
  %v268 = vpop.f32.mrb[0].mxu0
  %269 = vmatprep.mubr.bf16.mxu0 0
  %270 = vmatmul.mubr.bf16.gmra.mrb[0].mxu0 %v175
  %v271 = vpop.f32.mrb[0].mxu0
  %v272 = vadd.f32 %v67, %v271
  %v273 = vpop.f32.mrb[0].mxu0
  %v274 = vpop.f32.mrb[0].mxu0
  %v275 = vadd.f32 %v67, %v274
  %v276 = vpop.f32.mrb[0].mxu0
  %277 = vmatprep.mubr.bf16.mxu0 0
  %278 = vmatmul.mubr.bf16.gmra.mrb[0].mxu0 %v178
  %v279 = vpop.f32.mrb[0].mxu0
  %v280 = vadd.f32 %v67, %v279
  %v281 = vpop.f32.mrb[0].mxu0
  %v282 = vpop.f32.mrb[0].mxu0
  %v283 = vadd.f32 %v67, %v282
  %v284 = vpop.f32.mrb[0].mxu0
  %285 = vmatprep.mubr.bf16.mxu0 0
  %286 = vmatmul.mubr.bf16.gmra.mrb[0].mxu0 %v181
  %v287 = vpop.f32.mrb[0].mxu0
  %v288 = vadd.f32 %v67, %v287
  %v289 = vpop.f32.mrb[0].mxu0
  %v290 = vpop.f32.mrb[0].mxu0
  %v291 = vadd.f32 %v67, %v290
  %v292 = vpop.f32.mrb[0].mxu0
  %293 = vmatprep.mubr.bf16.mxu0 0
  %294 = vmatmul.mubr.bf16.gmra.mrb[0].mxu0 %v184
  %v295 = vpop.f32.mrb[0].mxu0
  %v296 = vadd.f32 %v67, %v295
  %v297 = vpop.f32.mrb[0].mxu0
  %v298 = vpop.f32.mrb[0].mxu0
  %v299 = vadd.f32 %v67, %v298
  %v300 = vpop.f32.mrb[0].mxu0
  %301 = vmatprep.mubr.bf16.mxu0 0
  %302 = vmatmul.mubr.bf16.gmra.mrb[0].mxu0 %v187
  %v303 = vpop.f32.mrb[0].mxu0
  %v304 = vadd.f32 %v67, %v303
  %v305 = vpop.f32.mrb[0].mxu0
  %v306 = vpop.f32.mrb[0].mxu0
  %v307 = vadd.f32 %v67, %v306
  %v308 = vpop.f32.mrb[0].mxu0
  %309 = vmatprep.mubr.bf16.mxu0 0
  %310 = vmatmul.mubr.bf16.gmra.mrb[0].mxu0 %v190
  %v311 = vpop.f32.mrb[0].mxu0
  %v312 = vadd.f32 %v67, %v311
  %v313 = vpop.f32.mrb[0].mxu0
  %v314 = vpop.f32.mrb[0].mxu0
  %v315 = vadd.f32 %v67, %v314
  %v316 = vpop.f32.mrb[0].mxu0
  %317 = vmatprep.mubr.bf16.mxu0 0
  %318 = vmatmul.mubr.bf16.gmra.mrb[0].mxu0 %v193
  %v319 = vpop.f32.mrb[0].mxu0
  %v320 = vadd.f32 %v67, %v319
  %v321 = vpop.f32.mrb[0].mxu0
  %v322 = vpop.f32.mrb[0].mxu0
  %v323 = vadd.f32 %v67, %v322
  %v324 = vpop.f32.mrb[0].mxu0
  %325 = vmatprep.mubr.bf16.mxu0 0
  %326 = vmatmul.mubr.bf16.gmra.mrb[0].mxu0 %v196
  %v327 = vpop.f32.mrb[0].mxu0
  %v328 = vadd.f32 %v67, %v327
  %v329 = vpop.f32.mrb[0].mxu0
  %v330 = vpop.f32.mrb[0].mxu0
  %v331 = vadd.f32 %v67, %v330
  %v332 = vpop.f32.mrb[0].mxu0
  %333 = vmatprep.mubr.bf16.mxu0 0
  %334 = vmatmul.mubr.bf16.gmra.mrb[0].mxu0 %v199
  %v335 = vpop.f32.mrb[0].mxu0
  %v336 = vadd.f32 %v67, %v335
  %v337 = vpop.f32.mrb[0].mxu0
  %v338 = vpop.f32.mrb[0].mxu0
  %v339 = vadd.f32 %v67, %v338
  %v340 = vpop.f32.mrb[0].mxu0
  %341 = vdwg.mxu0
  %v342 = vmax.f32 %v240, 0.0
  %v343 = vmax.f32 %v243, 0.0
  %v344 = vmax.f32 %v248, 0.0
  %v345 = vmax.f32 %v251, 0.0
  %v346 = vmax.f32 %v256, 0.0
  %v347 = vmax.f32 %v259, 0.0
  %v348 = vmax.f32 %v264, 0.0
  %v349 = vmax.f32 %v267, 0.0
  %v350 = vmax.f32 %v272, 0.0
  %v351 = vmax.f32 %v275, 0.0
  %v352 = vmax.f32 %v280, 0.0
  %v353 = vmax.f32 %v283, 0.0
  %v354 = vmax.f32 %v288, 0.0
  %v355 = vmax.f32 %v291, 0.0
  %v356 = vmax.f32 %v296, 0.0
  %v357 = vmax.f32 %v299, 0.0
  %v358 = vmax.f32 %v304, 0.0
  %v359 = vmax.f32 %v307, 0.0
  %v360 = vmax.f32 %v312, 0.0
  %v361 = vmax.f32 %v315, 0.0
  %v362 = vmax.f32 %v320, 0.0
  %v363 = vmax.f32 %v323, 0.0
  %v364 = vmax.f32 %v328, 0.0
  %v365 = vmax.f32 %v331, 0.0
  %v366 = vmax.f32 %v336, 0.0
  %v367 = vmax.f32 %v339, 0.0
  %v368 = vld [vmem:[%s3] sm:$0xff]
  %v369 = vld [vmem:[%s3 + $0x8] sm:$0xff]
  %v370 = vld [vmem:[%s3 + $0x10] sm:$0xff]
  %v371 = vld [vmem:[%s3 + $0x18] sm:$0xff]
  %v372 = vld [vmem:[%s3 + $0x20] sm:$0xff]
  %v373 = vld [vmem:[%s3 + $0x28] sm:$0xff]
  %v374 = vld [vmem:[%s3 + $0x30] sm:$0xff]
  %v375 = vld [vmem:[%s3 + $0x38] sm:$0xff]
  %v376 = vld [vmem:[%s3 + $0x40] sm:$0xff]
  %v377 = vld [vmem:[%s3 + $0x48] sm:$0xff]
  %v378 = vld [vmem:[%s3 + $0x50] sm:$0xff]
  %v379 = vld [vmem:[%s3 + $0x58] sm:$0xff]
  %v380 = vld [vmem:[%s3 + $0x60] sm:$0xff]
  %v381 = vld [vmem:[%s3 + $0x68] sm:$0xff]
  %v382 = vld [vmem:[%s3 + $0x70] sm:$0xff]
  %v383 = vld [vmem:[%s3 + $0x78] sm:$0xff]
  %v384 = vld [vmem:[%s3 + $0x80] sm:$0xff]
  %v385 = vld [vmem:[%s3 + $0x88] sm:$0xff]
  %v386 = vld [vmem:[%s3 + $0x90] sm:$0xff]
  %v387 = vld [vmem:[%s3 + $0x98] sm:$0xff]
  %v388 = vld [vmem:[%s3 + $0xa0] sm:$0xff]
  %v389 = vld [vmem:[%s3 + $0xa8] sm:$0xff]
  %v390 = vld [vmem:[%s3 + $0xb0] sm:$0xff]
  %v391 = vld [vmem:[%s3 + $0xb8] sm:$0xff]
  %v392 = vld [vmem:[%s3 + $0xc0] sm:$0xff]
  %v393 = vld [vmem:[%s3 + $0xc8] sm:$0xff]
  %395 = vset.pattern.permute.xlu0 0
  %396 = vperm.xlu0 %395, %v368
  %v397 = vpop.permute.xlu0 %396
  %400 = vset.pattern.permute.xlu0 0
  %401 = vperm.xlu0 %400, %v369
  %v402 = vpop.permute.xlu0 %401
  %405 = vset.pattern.permute.xlu0 0
  %406 = vperm.xlu0 %405, %v370
  %v407 = vpop.permute.xlu0 %406
  %410 = vset.pattern.permute.xlu0 0
  %411 = vperm.xlu0 %410, %v371
  %v412 = vpop.permute.xlu0 %411
  %415 = vset.pattern.permute.xlu0 0
  %416 = vperm.xlu0 %415, %v372
  %v417 = vpop.permute.xlu0 %416
  %420 = vset.pattern.permute.xlu0 0
  %421 = vperm.xlu0 %420, %v373
  %v422 = vpop.permute.xlu0 %421
  %425 = vset.pattern.permute.xlu0 0
  %426 = vperm.xlu0 %425, %v374
  %v427 = vpop.permute.xlu0 %426
  %430 = vset.pattern.permute.xlu0 0
  %431 = vperm.xlu0 %430, %v375
  %v432 = vpop.permute.xlu0 %431
  %435 = vset.pattern.permute.xlu0 0
  %436 = vperm.xlu0 %435, %v376
  %v437 = vpop.permute.xlu0 %436
  %440 = vset.pattern.permute.xlu0 0
  %441 = vperm.xlu0 %440, %v377
  %v442 = vpop.permute.xlu0 %441
  %445 = vset.pattern.permute.xlu0 0
  %446 = vperm.xlu0 %445, %v378
  %v447 = vpop.permute.xlu0 %446
  %450 = vset.pattern.permute.xlu0 0
  %451 = vperm.xlu0 %450, %v379
  %v452 = vpop.permute.xlu0 %451
  %455 = vset.pattern.permute.xlu0 0
  %456 = vperm.xlu0 %455, %v380
  %v457 = vpop.permute.xlu0 %456
  %460 = vset.pattern.permute.xlu0 0
  %461 = vperm.xlu0 %460, %v381
  %v462 = vpop.permute.xlu0 %461
  %465 = vset.pattern.permute.xlu0 0
  %466 = vperm.xlu0 %465, %v382
  %v467 = vpop.permute.xlu0 %466
  %470 = vset.pattern.permute.xlu0 0
  %471 = vperm.xlu0 %470, %v383
  %v472 = vpop.permute.xlu0 %471
  %475 = vset.pattern.permute.xlu0 0
  %476 = vperm.xlu0 %475, %v384
  %v477 = vpop.permute.xlu0 %476
  %480 = vset.pattern.permute.xlu0 0
  %481 = vperm.xlu0 %480, %v385
  %v482 = vpop.permute.xlu0 %481
  %485 = vset.pattern.permute.xlu0 0
  %486 = vperm.xlu0 %485, %v386
  %v487 = vpop.permute.xlu0 %486
  %490 = vset.pattern.permute.xlu0 0
  %491 = vperm.xlu0 %490, %v387
  %v492 = vpop.permute.xlu0 %491
  %495 = vset.pattern.permute.xlu0 0
  %496 = vperm.xlu0 %495, %v388
  %v497 = vpop.permute.xlu0 %496
  %500 = vset.pattern.permute.xlu0 0
  %501 = vperm.xlu0 %500, %v389
  %v502 = vpop.permute.xlu0 %501
  %505 = vset.pattern.permute.xlu0 0
  %506 = vperm.xlu0 %505, %v390
  %v507 = vpop.permute.xlu0 %506
  %510 = vset.pattern.permute.xlu0 0
  %511 = vperm.xlu0 %510, %v391
  %v512 = vpop.permute.xlu0 %511
  %515 = vset.pattern.permute.xlu0 0
  %516 = vperm.xlu0 %515, %v392
  %v517 = vpop.permute.xlu0 %516
  %520 = vset.pattern.permute.xlu0 0
  %521 = vperm.xlu0 %520, %v393
  %v522 = vpop.permute.xlu0 %521
  %v524 = vmul.f32 %v342, %v397
  %v525 = vmul.f32 %v343, %v402
  %v526 = vmul.f32 %v344, %v407
  %v527 = vmul.f32 %v345, %v412
  %v528 = vmul.f32 %v346, %v417
  %v529 = vmul.f32 %v347, %v422
  %v530 = vmul.f32 %v348, %v427
  %v531 = vmul.f32 %v349, %v432
  %v532 = vmul.f32 %v350, %v437
  %v533 = vmul.f32 %v351, %v442
  %v534 = vmul.f32 %v352, %v447
  %v535 = vmul.f32 %v353, %v452
  %v536 = vmul.f32 %v354, %v457
  %v537 = vmul.f32 %v355, %v462
  %v538 = vmul.f32 %v356, %v467
  %v539 = vmul.f32 %v357, %v472
  %v540 = vmul.f32 %v358, %v477
  %v541 = vmul.f32 %v359, %v482
  %v542 = vmul.f32 %v360, %v487
  %v543 = vmul.f32 %v361, %v492
  %v544 = vmul.f32 %v362, %v497
  %v545 = vmul.f32 %v363, %v502
  %v546 = vmul.f32 %v364, %v507
  %v547 = vmul.f32 %v365, %v512
  %v548 = vmul.f32 %v366, %v517
  %v549 = vmul.f32 %v367, %v522
  %v550 = vpack.c.bf16 %v525, %v524
  %v551 = vpack.c.bf16 %v527, %v526
  %v552 = vpack.c.bf16 %v529, %v528
  %v553 = vpack.c.bf16 %v531, %v530
  %v554 = vpack.c.bf16 %v533, %v532
  %v555 = vpack.c.bf16 %v535, %v534
  %v556 = vpack.c.bf16 %v537, %v536
  %v557 = vpack.c.bf16 %v539, %v538
  %v558 = vpack.c.bf16 %v541, %v540
  %v559 = vpack.c.bf16 %v543, %v542
  %v560 = vpack.c.bf16 %v545, %v544
  %v561 = vpack.c.bf16 %v546, %v546
  %v562 = vld [vmem:[%s4] sm:$0xf]
  %v563 = vpack.c.bf16 %v547, %v546
  %s564 = scalar_lea.vmem %s4, 4
  %v565 = vld [vmem:[%s564] sm:$0xf]
  %vm566 = vsmask.f32 7424
  %v568 = vshrl.u32 %v550, 16
  %v570 = vshll.u32 %v550, 16
  %v572 = vrot.slane %v570, 1
  %v573 = vor.u32 %v568, %v572
  %v575 = vshll.u32 %v551, 16
  %v577 = vrot.slane %v575, 1
  %v578 = vsel %vm566, %v573, %v577
  %v579 = vshrl.u32 %v551, 16
  %v581 = vor.u32 %v579, %v577
  %v583 = vshll.u32 %v552, 16
  %v585 = vrot.slane %v583, 1
  %v586 = vsel %vm566, %v581, %v585
  %v587 = vshrl.u32 %v552, 16
  %v589 = vor.u32 %v587, %v585
  %v591 = vshll.u32 %v553, 16
  %v593 = vrot.slane %v591, 1
  %v594 = vsel %vm566, %v589, %v593
  %v595 = vshrl.u32 %v553, 16
  %v597 = vor.u32 %v595, %v593
  %v599 = vshll.u32 %v554, 16
  %v601 = vrot.slane %v599, 1
  %v602 = vsel %vm566, %v597, %v601
  %v603 = vshrl.u32 %v554, 16
  %v605 = vor.u32 %v603, %v601
  %v607 = vshll.u32 %v555, 16
  %v609 = vrot.slane %v607, 1
  %v610 = vsel %vm566, %v605, %v609
  %v611 = vshrl.u32 %v555, 16
  %v613 = vor.u32 %v611, %v609
  %v615 = vshll.u32 %v556, 16
  %v617 = vrot.slane %v615, 1
  %v618 = vsel %vm566, %v613, %v617
  %v619 = vshrl.u32 %v556, 16
  %v621 = vor.u32 %v619, %v617
  %v623 = vshll.u32 %v557, 16
  %v625 = vrot.slane %v623, 1
  %v626 = vsel %vm566, %v621, %v625
  %v627 = vshrl.u32 %v557, 16
  %v629 = vor.u32 %v627, %v625
  %v631 = vshll.u32 %v558, 16
  %v633 = vrot.slane %v631, 1
  %v634 = vsel %vm566, %v629, %v633
  %v635 = vshrl.u32 %v558, 16
  %v637 = vor.u32 %v635, %v633
  %v639 = vshll.u32 %v559, 16
  %v641 = vrot.slane %v639, 1
  %v642 = vsel %vm566, %v637, %v641
  %v643 = vshrl.u32 %v559, 16
  %v645 = vor.u32 %v643, %v641
  %v647 = vshll.u32 %v560, 16
  %v649 = vrot.slane %v647, 1
  %v650 = vsel %vm566, %v645, %v649
  %v651 = vshrl.u32 %v560, 16
  %v653 = vor.u32 %v651, %v649
  %v655 = vshll.u32 %v563, 16
  %v657 = vrot.slane %v655, 1
  %v658 = vsel %vm566, %v653, %v657
  %v659 = vshrl.u32 %v563, 16
  %v661 = vor.u32 %v659, %v657
  %vm662 = vcmask 64512
  %v664 = vsel %vm662, %v578, 0
  %v667 = vsel %vm662, %v586, 0
  %v670 = vsel %vm662, %v594, 0
  %v673 = vsel %vm662, %v602, 0
  %v676 = vsel %vm662, %v610, 0
  %v679 = vsel %vm662, %v618, 0
  %v682 = vsel %vm662, %v626, 0
  %v685 = vsel %vm662, %v634, 0
  %v688 = vsel %vm662, %v642, 0
  %v691 = vsel %vm662, %v650, 0
  %v694 = vsel %vm662, %v658, 0
  %v697 = vsel %vm662, %v661, 0
  %v700 = vsel %vm201, %v565, 0
  %702 = vmatprep.subr.bf16.mxu0 0
  %703 = vmatpush1.bf16.msra.mxu0 %v700
  %704 = vmatprep.subr.bf16.mxu0 0
  %705 = vmatpush1.bf16.msra.mxu0 0
  %706 = vmatprep.subr.bf16.mxu0 0
  %707 = vmatpush1.bf16.msra.mxu0 0
  %708 = vmatprep.subr.bf16.mxu0 0
  %709 = vmatpush1.bf16.msra.mxu0 0
  %710 = vmatprep.subr.bf16.mxu0 0
  %711 = vmatpush1.bf16.msra.mxu0 0
  %712 = vmatprep.subr.bf16.mxu0 0
  %713 = vmatpush1.bf16.msra.mxu0 0
  %714 = vmatprep.subr.bf16.mxu0 0
  %715 = vmatpush1.bf16.msra.mxu0 0
  %716 = vmatprep.subr.bf16.mxu0 0
  %717 = vmatpush1.bf16.msra.mxu0 0
  %718 = vmatprep.subr.bf16.mxu0 0
  %719 = vmatpush1.bf16.msra.mxu0 0
  %720 = vmatprep.subr.bf16.mxu0 0
  %721 = vmatpush1.bf16.msra.mxu0 0
  %722 = vmatprep.subr.bf16.mxu0 0
  %723 = vmatpush1.bf16.msra.mxu0 0
  %724 = vmatprep.subr.bf16.mxu0 0
  %725 = vmatpush1.bf16.msra.mxu0 0
  %726 = vmatprep.subr.bf16.mxu0 0
  %727 = vmatpush1.bf16.msra.mxu0 0
  %728 = vmatprep.subr.bf16.mxu0 0
  %729 = vmatpush1.bf16.msra.mxu0 0
  %730 = vmatprep.subr.bf16.mxu0 0
  %731 = vmatpush1.bf16.msra.mxu0 0
  %732 = vmatprep.subr.bf16.mxu0 0
  %733 = vmatpush1.bf16.msra.mxu0 0
  %734 = vmatprep.mubr.bf16.mxu0 0
  %735 = vmatmul.mubr.bf16.gmra.mrb[0].mxu0 %v664
  %v736 = vpop.f32.mrb[0].mxu0
  %v737 = vadd.f32 0.0, %v736
  %v738 = vpop.f32.mrb[0].mxu0
  %v739 = vpop.f32.mrb[0].mxu0
  %v740 = vadd.f32 0.0, %v739
  %v741 = vpop.f32.mrb[0].mxu0
  %742 = vmatprep.mubr.bf16.mxu0 0
  %743 = vmatmul.mubr.bf16.gmra.mrb[0].mxu0 %v667
  %v744 = vpop.f32.mrb[0].mxu0
  %v745 = vadd.f32 0.0, %v744
  %v746 = vpop.f32.mrb[0].mxu0
  %v747 = vpop.f32.mrb[0].mxu0
  %v748 = vadd.f32 0.0, %v747
  %v749 = vpop.f32.mrb[0].mxu0
  %750 = vmatprep.mubr.bf16.mxu0 0
  %751 = vmatmul.mubr.bf16.gmra.mrb[0].mxu0 %v670
  %v752 = vpop.f32.mrb[0].mxu0
  %v753 = vadd.f32 0.0, %v752
  %v754 = vpop.f32.mrb[0].mxu0
  %v755 = vpop.f32.mrb[0].mxu0
  %v756 = vadd.f32 0.0, %v755
  %v757 = vpop.f32.mrb[0].mxu0
  %758 = vmatprep.mubr.bf16.mxu0 0
  %759 = vmatmul.mubr.bf16.gmra.mrb[0].mxu0 %v673
  %v760 = vpop.f32.mrb[0].mxu0
  %v761 = vadd.f32 0.0, %v760
  %v762 = vpop.f32.mrb[0].mxu0
  %v763 = vpop.f32.mrb[0].mxu0
  %v764 = vadd.f32 0.0, %v763
  %v765 = vpop.f32.mrb[0].mxu0
  %766 = vmatprep.mubr.bf16.mxu0 0
  %767 = vmatmul.mubr.bf16.gmra.mrb[0].mxu0 %v676
  %v768 = vpop.f32.mrb[0].mxu0
  %v769 = vadd.f32 0.0, %v768
  %v770 = vpop.f32.mrb[0].mxu0
  %v771 = vpop.f32.mrb[0].mxu0
  %v772 = vadd.f32 0.0, %v771
  %v773 = vpop.f32.mrb[0].mxu0
  %774 = vmatprep.mubr.bf16.mxu0 0
  %775 = vmatmul.mubr.bf16.gmra.mrb[0].mxu0 %v679
  %v776 = vpop.f32.mrb[0].mxu0
  %v777 = vadd.f32 0.0, %v776
  %v778 = vpop.f32.mrb[0].mxu0
  %v779 = vpop.f32.mrb[0].mxu0
  %v780 = vadd.f32 0.0, %v779
  %v781 = vpop.f32.mrb[0].mxu0
  %782 = vmatprep.mubr.bf16.mxu0 0
  %783 = vmatmul.mubr.bf16.gmra.mrb[0].mxu0 %v682
  %v784 = vpop.f32.mrb[0].mxu0
  %v785 = vadd.f32 0.0, %v784
  %v786 = vpop.f32.mrb[0].mxu0
  %v787 = vpop.f32.mrb[0].mxu0
  %v788 = vadd.f32 0.0, %v787
  %v789 = vpop.f32.mrb[0].mxu0
  %790 = vmatprep.mubr.bf16.mxu0 0
  %791 = vmatmul.mubr.bf16.gmra.mrb[0].mxu0 %v685
  %v792 = vpop.f32.mrb[0].mxu0
  %v793 = vadd.f32 0.0, %v792
  %v794 = vpop.f32.mrb[0].mxu0
  %v795 = vpop.f32.mrb[0].mxu0
  %v796 = vadd.f32 0.0, %v795
  %v797 = vpop.f32.mrb[0].mxu0
  %798 = vmatprep.mubr.bf16.mxu0 0
  %799 = vmatmul.mubr.bf16.gmra.mrb[0].mxu0 %v688
  %v800 = vpop.f32.mrb[0].mxu0
  %v801 = vadd.f32 0.0, %v800
  %v802 = vpop.f32.mrb[0].mxu0
  %v803 = vpop.f32.mrb[0].mxu0
  %v804 = vadd.f32 0.0, %v803
  %v805 = vpop.f32.mrb[0].mxu0
  %806 = vmatprep.mubr.bf16.mxu0 0
  %807 = vmatmul.mubr.bf16.gmra.mrb[0].mxu0 %v691
  %v808 = vpop.f32.mrb[0].mxu0
  %v809 = vadd.f32 0.0, %v808
  %v810 = vpop.f32.mrb[0].mxu0
  %v811 = vpop.f32.mrb[0].mxu0
  %v812 = vadd.f32 0.0, %v811
  %v813 = vpop.f32.mrb[0].mxu0
  %814 = vmatprep.mubr.bf16.mxu0 0
  %815 = vmatmul.mubr.bf16.gmra.mrb[0].mxu0 %v694
  %v816 = vpop.f32.mrb[0].mxu0
  %v817 = vadd.f32 0.0, %v816
  %v818 = vpop.f32.mrb[0].mxu0
  %v819 = vpop.f32.mrb[0].mxu0
  %v820 = vadd.f32 0.0, %v819
  %v821 = vpop.f32.mrb[0].mxu0
  %822 = vmatprep.mubr.bf16.mxu0 0
  %823 = vmatmul.mubr.bf16.gmra.mrb[0].mxu0 %v697
  %v824 = vpop.f32.mrb[0].mxu0
  %v825 = vadd.f32 0.0, %v824
  %v826 = vpop.f32.mrb[0].mxu0
  %v827 = vpop.f32.mrb[0].mxu0
  %v828 = vpop.f32.mrb[0].mxu0
  %829 = vdwg.mxu0
  %v830 = vsel %vm662, %v550, 0
  %v832 = vsel %vm662, %v551, 0
  %v834 = vsel %vm662, %v552, 0
  %v836 = vsel %vm662, %v553, 0
  %v838 = vsel %vm662, %v554, 0
  %v840 = vsel %vm662, %v555, 0
  %v842 = vsel %vm662, %v556, 0
  %v844 = vsel %vm662, %v557, 0
  %v846 = vsel %vm662, %v558, 0
  %v848 = vsel %vm662, %v559, 0
  %v850 = vsel %vm662, %v560, 0
  %v853 = vsel %vm662, %v561, 0
  %v856 = vsel %vm201, %v562, 0
  %858 = vmatprep.subr.bf16.mxu0 0
  %859 = vmatpush1.bf16.msra.mxu0 %v856
  %860 = vmatprep.subr.bf16.mxu0 0
  %861 = vmatpush1.bf16.msra.mxu0 0
  %862 = vmatprep.subr.bf16.mxu0 0
  %863 = vmatpush1.bf16.msra.mxu0 0
  %864 = vmatprep.subr.bf16.mxu0 0
  %865 = vmatpush1.bf16.msra.mxu0 0
  %866 = vmatprep.subr.bf16.mxu0 0
  %867 = vmatpush1.bf16.msra.mxu0 0
  %868 = vmatprep.subr.bf16.mxu0 0
  %869 = vmatpush1.bf16.msra.mxu0 0
  %870 = vmatprep.subr.bf16.mxu0 0
  %871 = vmatpush1.bf16.msra.mxu0 0
  %872 = vmatprep.subr.bf16.mxu0 0
  %873 = vmatpush1.bf16.msra.mxu0 0
  %874 = vmatprep.subr.bf16.mxu0 0
  %875 = vmatpush1.bf16.msra.mxu0 0
  %876 = vmatprep.subr.bf16.mxu0 0
  %877 = vmatpush1.bf16.msra.mxu0 0
  %878 = vmatprep.subr.bf16.mxu0 0
  %879 = vmatpush1.bf16.msra.mxu0 0
  %880 = vmatprep.subr.bf16.mxu0 0
  %881 = vmatpush1.bf16.msra.mxu0 0
  %882 = vmatprep.subr.bf16.mxu0 0
  %883 = vmatpush1.bf16.msra.mxu0 0
  %884 = vmatprep.subr.bf16.mxu0 0
  %885 = vmatpush1.bf16.msra.mxu0 0
  %886 = vmatprep.subr.bf16.mxu0 0
  %887 = vmatpush1.bf16.msra.mxu0 0
  %888 = vmatprep.subr.bf16.mxu0 0
  %889 = vmatpush1.bf16.msra.mxu0 0
  %890 = vmatprep.mubr.bf16.mxu0 0
  %891 = vmatmul.mubr.bf16.gmra.mrb[0].mxu0 %v830
  %v892 = vpop.f32.mrb[0].mxu0
  %v893 = vadd.f32 %v737, %v892
  %v894 = vpop.f32.mrb[0].mxu0
  %v895 = vpop.f32.mrb[0].mxu0
  %v896 = vadd.f32 %v740, %v895
  %v897 = vpop.f32.mrb[0].mxu0
  %898 = vmatprep.mubr.bf16.mxu0 0
  %899 = vmatmul.mubr.bf16.gmra.mrb[0].mxu0 %v832
  %v900 = vpop.f32.mrb[0].mxu0
  %v901 = vadd.f32 %v745, %v900
  %v902 = vpop.f32.mrb[0].mxu0
  %v903 = vpop.f32.mrb[0].mxu0
  %v904 = vadd.f32 %v748, %v903
  %v905 = vpop.f32.mrb[0].mxu0
  %906 = vmatprep.mubr.bf16.mxu0 0
  %907 = vmatmul.mubr.bf16.gmra.mrb[0].mxu0 %v834
  %v908 = vpop.f32.mrb[0].mxu0
  %v909 = vadd.f32 %v753, %v908
  %v910 = vpop.f32.mrb[0].mxu0
  %v911 = vpop.f32.mrb[0].mxu0
  %v912 = vadd.f32 %v756, %v911
  %v913 = vpop.f32.mrb[0].mxu0
  %914 = vmatprep.mubr.bf16.mxu0 0
  %915 = vmatmul.mubr.bf16.gmra.mrb[0].mxu0 %v836
  %v916 = vpop.f32.mrb[0].mxu0
  %v917 = vadd.f32 %v761, %v916
  %v918 = vpop.f32.mrb[0].mxu0
  %v919 = vpop.f32.mrb[0].mxu0
  %v920 = vadd.f32 %v764, %v919
  %v921 = vpop.f32.mrb[0].mxu0
  %922 = vmatprep.mubr.bf16.mxu0 0
  %923 = vmatmul.mubr.bf16.gmra.mrb[0].mxu0 %v838
  %v924 = vpop.f32.mrb[0].mxu0
  %v925 = vadd.f32 %v769, %v924
  %v926 = vpop.f32.mrb[0].mxu0
  %v927 = vpop.f32.mrb[0].mxu0
  %v928 = vadd.f32 %v772, %v927
  %v929 = vpop.f32.mrb[0].mxu0
  %930 = vmatprep.mubr.bf16.mxu0 0
  %931 = vmatmul.mubr.bf16.gmra.mrb[0].mxu0 %v840
  %v932 = vpop.f32.mrb[0].mxu0
  %v933 = vadd.f32 %v777, %v932
  %v934 = vpop.f32.mrb[0].mxu0
  %v935 = vpop.f32.mrb[0].mxu0
  %v936 = vadd.f32 %v780, %v935
  %v937 = vpop.f32.mrb[0].mxu0
  %938 = vmatprep.mubr.bf16.mxu0 0
  %939 = vmatmul.mubr.bf16.gmra.mrb[0].mxu0 %v842
  %v940 = vpop.f32.mrb[0].mxu0
  %v941 = vadd.f32 %v785, %v940
  %v942 = vpop.f32.mrb[0].mxu0
  %v943 = vpop.f32.mrb[0].mxu0
  %v944 = vadd.f32 %v788, %v943
  %v945 = vpop.f32.mrb[0].mxu0
  %946 = vmatprep.mubr.bf16.mxu0 0
  %947 = vmatmul.mubr.bf16.gmra.mrb[0].mxu0 %v844
  %v948 = vpop.f32.mrb[0].mxu0
  %v949 = vadd.f32 %v793, %v948
  %v950 = vpop.f32.mrb[0].mxu0
  %v951 = vpop.f32.mrb[0].mxu0
  %v952 = vadd.f32 %v796, %v951
  %v953 = vpop.f32.mrb[0].mxu0
  %954 = vmatprep.mubr.bf16.mxu0 0
  %955 = vmatmul.mubr.bf16.gmra.mrb[0].mxu0 %v846
  %v956 = vpop.f32.mrb[0].mxu0
  %v957 = vadd.f32 %v801, %v956
  %v958 = vpop.f32.mrb[0].mxu0
  %v959 = vpop.f32.mrb[0].mxu0
  %v960 = vadd.f32 %v804, %v959
  %v961 = vpop.f32.mrb[0].mxu0
  %962 = vmatprep.mubr.bf16.mxu0 0
  %963 = vmatmul.mubr.bf16.gmra.mrb[0].mxu0 %v848
  %v964 = vpop.f32.mrb[0].mxu0
  %v965 = vadd.f32 %v809, %v964
  %v966 = vpop.f32.mrb[0].mxu0
  %v967 = vpop.f32.mrb[0].mxu0
  %v968 = vadd.f32 %v812, %v967
  %v969 = vpop.f32.mrb[0].mxu0
  %970 = vmatprep.mubr.bf16.mxu0 0
  %971 = vmatmul.mubr.bf16.gmra.mrb[0].mxu0 %v850
  %v972 = vpop.f32.mrb[0].mxu0
  %v973 = vadd.f32 %v817, %v972
  %v974 = vpop.f32.mrb[0].mxu0
  %v975 = vpop.f32.mrb[0].mxu0
  %v976 = vadd.f32 %v820, %v975
  %v977 = vpop.f32.mrb[0].mxu0
  %978 = vmatprep.mubr.bf16.mxu0 0
  %979 = vmatmul.mubr.bf16.gmra.mrb[0].mxu0 %v853
  %v980 = vpop.f32.mrb[0].mxu0
  %v981 = vadd.f32 %v825, %v980
  %v982 = vpop.f32.mrb[0].mxu0
  %v983 = vpop.f32.mrb[0].mxu0
  %v984 = vpop.f32.mrb[0].mxu0
  %985 = vdwg.mxu0
  %s986 = scalar_lea.vmem %s4, 8
  %v987 = vld [vmem:[%s986] sm:$0xf]
  %vm1000 = vcmask 1046528
  %v1001 = vrot.slane %v550, 1
  %v1002 = vrot.slane %v551, 1
  %v1003 = vsel %vm1000, %v1001, %v1002
  %v1004 = vrot.slane %v552, 1
  %v1005 = vsel %vm1000, %v1002, %v1004
  %v1006 = vrot.slane %v553, 1
  %v1007 = vsel %vm1000, %v1004, %v1006
  %v1008 = vrot.slane %v554, 1
  %v1009 = vsel %vm1000, %v1006, %v1008
  %v1010 = vrot.slane %v555, 1
  %v1011 = vsel %vm1000, %v1008, %v1010
  %v1012 = vrot.slane %v556, 1
  %v1013 = vsel %vm1000, %v1010, %v1012
  %v1014 = vrot.slane %v557, 1
  %v1015 = vsel %vm1000, %v1012, %v1014
  %v1016 = vrot.slane %v558, 1
  %v1017 = vsel %vm1000, %v1014, %v1016
  %v1018 = vrot.slane %v559, 1
  %v1019 = vsel %vm1000, %v1016, %v1018
  %v1020 = vrot.slane %v560, 1
  %v1021 = vsel %vm1000, %v1018, %v1020
  %v1022 = vrot.slane %v563, 1
  %v1023 = vsel %vm1000, %v1020, %v1022
  %v1025 = vsel %vm662, %v1003, 0
  %v1028 = vsel %vm662, %v1005, 0
  %v1031 = vsel %vm662, %v1007, 0
  %v1034 = vsel %vm662, %v1009, 0
  %v1037 = vsel %vm662, %v1011, 0
  %v1040 = vsel %vm662, %v1013, 0
  %v1043 = vsel %vm662, %v1015, 0
  %v1046 = vsel %vm662, %v1017, 0
  %v1049 = vsel %vm662, %v1019, 0
  %v1052 = vsel %vm662, %v1021, 0
  %v1055 = vsel %vm662, %v1023, 0
  %v1058 = vsel %vm662, %v1022, 0
  %v1061 = vsel %vm201, %v987, 0
  %1063 = vmatprep.subr.bf16.mxu0 0
  %1064 = vmatpush1.bf16.msra.mxu0 %v1061
  %1065 = vmatprep.subr.bf16.mxu0 0
  %1066 = vmatpush1.bf16.msra.mxu0 0
  %1067 = vmatprep.subr.bf16.mxu0 0
  %1068 = vmatpush1.bf16.msra.mxu0 0
  %1069 = vmatprep.subr.bf16.mxu0 0
  %1070 = vmatpush1.bf16.msra.mxu0 0
  %1071 = vmatprep.subr.bf16.mxu0 0
  %1072 = vmatpush1.bf16.msra.mxu0 0
  %1073 = vmatprep.subr.bf16.mxu0 0
  %1074 = vmatpush1.bf16.msra.mxu0 0
  %1075 = vmatprep.subr.bf16.mxu0 0
  %1076 = vmatpush1.bf16.msra.mxu0 0
  %1077 = vmatprep.subr.bf16.mxu0 0
  %1078 = vmatpush1.bf16.msra.mxu0 0
  %1079 = vmatprep.subr.bf16.mxu0 0
  %1080 = vmatpush1.bf16.msra.mxu0 0
  %1081 = vmatprep.subr.bf16.mxu0 0
  %1082 = vmatpush1.bf16.msra.mxu0 0
  %1083 = vmatprep.subr.bf16.mxu0 0
  %1084 = vmatpush1.bf16.msra.mxu0 0
  %1085 = vmatprep.subr.bf16.mxu0 0
  %1086 = vmatpush1.bf16.msra.mxu0 0
  %1087 = vmatprep.subr.bf16.mxu0 0
  %1088 = vmatpush1.bf16.msra.mxu0 0
  %1089 = vmatprep.subr.bf16.mxu0 0
  %1090 = vmatpush1.bf16.msra.mxu0 0
  %1091 = vmatprep.subr.bf16.mxu0 0
  %1092 = vmatpush1.bf16.msra.mxu0 0
  %1093 = vmatprep.subr.bf16.mxu0 0
  %1094 = vmatpush1.bf16.msra.mxu0 0
  %1095 = vmatprep.mubr.bf16.mxu0 0
  %1096 = vmatmul.mubr.bf16.gmra.mrb[0].mxu0 %v1025
  %v1097 = vpop.f32.mrb[0].mxu0
  %v1098 = vadd.f32 0.0, %v1097
  %v1099 = vpop.f32.mrb[0].mxu0
  %v1100 = vpop.f32.mrb[0].mxu0
  %v1101 = vadd.f32 0.0, %v1100
  %v1102 = vpop.f32.mrb[0].mxu0
  %1103 = vmatprep.mubr.bf16.mxu0 0
  %1104 = vmatmul.mubr.bf16.gmra.mrb[0].mxu0 %v1028
  %v1105 = vpop.f32.mrb[0].mxu0
  %v1106 = vadd.f32 0.0, %v1105
  %v1107 = vpop.f32.mrb[0].mxu0
  %v1108 = vpop.f32.mrb[0].mxu0
  %v1109 = vadd.f32 0.0, %v1108
  %v1110 = vpop.f32.mrb[0].mxu0
  %1111 = vmatprep.mubr.bf16.mxu0 0
  %1112 = vmatmul.mubr.bf16.gmra.mrb[0].mxu0 %v1031
  %v1113 = vpop.f32.mrb[0].mxu0
  %v1114 = vadd.f32 0.0, %v1113
  %v1115 = vpop.f32.mrb[0].mxu0
  %v1116 = vpop.f32.mrb[0].mxu0
  %v1117 = vadd.f32 0.0, %v1116
  %v1118 = vpop.f32.mrb[0].mxu0
  %1119 = vmatprep.mubr.bf16.mxu0 0
  %1120 = vmatmul.mubr.bf16.gmra.mrb[0].mxu0 %v1034
  %v1121 = vpop.f32.mrb[0].mxu0
  %v1122 = vadd.f32 0.0, %v1121
  %v1123 = vpop.f32.mrb[0].mxu0
  %v1124 = vpop.f32.mrb[0].mxu0
  %v1125 = vadd.f32 0.0, %v1124
  %v1126 = vpop.f32.mrb[0].mxu0
  %1127 = vmatprep.mubr.bf16.mxu0 0
  %1128 = vmatmul.mubr.bf16.gmra.mrb[0].mxu0 %v1037
  %v1129 = vpop.f32.mrb[0].mxu0
  %v1130 = vadd.f32 0.0, %v1129
  %v1131 = vpop.f32.mrb[0].mxu0
  %v1132 = vpop.f32.mrb[0].mxu0
  %v1133 = vadd.f32 0.0, %v1132
  %v1134 = vpop.f32.mrb[0].mxu0
  %1135 = vmatprep.mubr.bf16.mxu0 0
  %1136 = vmatmul.mubr.bf16.gmra.mrb[0].mxu0 %v1040
  %v1137 = vpop.f32.mrb[0].mxu0
  %v1138 = vadd.f32 0.0, %v1137
  %v1139 = vpop.f32.mrb[0].mxu0
  %v1140 = vpop.f32.mrb[0].mxu0
  %v1141 = vadd.f32 0.0, %v1140
  %v1142 = vpop.f32.mrb[0].mxu0
  %1143 = vmatprep.mubr.bf16.mxu0 0
  %1144 = vmatmul.mubr.bf16.gmra.mrb[0].mxu0 %v1043
  %v1145 = vpop.f32.mrb[0].mxu0
  %v1146 = vadd.f32 0.0, %v1145
  %v1147 = vpop.f32.mrb[0].mxu0
  %v1148 = vpop.f32.mrb[0].mxu0
  %v1149 = vadd.f32 0.0, %v1148
  %v1150 = vpop.f32.mrb[0].mxu0
  %1151 = vmatprep.mubr.bf16.mxu0 0
  %1152 = vmatmul.mubr.bf16.gmra.mrb[0].mxu0 %v1046
  %v1153 = vpop.f32.mrb[0].mxu0
  %v1154 = vadd.f32 0.0, %v1153
  %v1155 = vpop.f32.mrb[0].mxu0
  %v1156 = vpop.f32.mrb[0].mxu0
  %v1157 = vadd.f32 0.0, %v1156
  %v1158 = vpop.f32.mrb[0].mxu0
  %1159 = vmatprep.mubr.bf16.mxu0 0
  %1160 = vmatmul.mubr.bf16.gmra.mrb[0].mxu0 %v1049
  %v1161 = vpop.f32.mrb[0].mxu0
  %v1162 = vadd.f32 0.0, %v1161
  %v1163 = vpop.f32.mrb[0].mxu0
  %v1164 = vpop.f32.mrb[0].mxu0
  %v1165 = vadd.f32 0.0, %v1164
  %v1166 = vpop.f32.mrb[0].mxu0
  %1167 = vmatprep.mubr.bf16.mxu0 0
  %1168 = vmatmul.mubr.bf16.gmra.mrb[0].mxu0 %v1052
  %v1169 = vpop.f32.mrb[0].mxu0
  %v1170 = vadd.f32 0.0, %v1169
  %v1171 = vpop.f32.mrb[0].mxu0
  %v1172 = vpop.f32.mrb[0].mxu0
  %v1173 = vadd.f32 0.0, %v1172
  %v1174 = vpop.f32.mrb[0].mxu0
  %1175 = vmatprep.mubr.bf16.mxu0 0
  %1176 = vmatmul.mubr.bf16.gmra.mrb[0].mxu0 %v1055
  %v1177 = vpop.f32.mrb[0].mxu0
  %v1178 = vadd.f32 0.0, %v1177
  %v1179 = vpop.f32.mrb[0].mxu0
  %v1180 = vpop.f32.mrb[0].mxu0
  %v1181 = vadd.f32 0.0, %v1180
  %v1182 = vpop.f32.mrb[0].mxu0
  %1183 = vmatprep.mubr.bf16.mxu0 0
  %1184 = vmatmul.mubr.bf16.gmra.mrb[0].mxu0 %v1058
  %v1185 = vpop.f32.mrb[0].mxu0
  %v1186 = vadd.f32 0.0, %v1185
  %v1187 = vpop.f32.mrb[0].mxu0
  %v1188 = vpop.f32.mrb[0].mxu0
  %v1189 = vpop.f32.mrb[0].mxu0
  %1190 = vdwg.mxu0
  %v1191 = vadd.f32 %v893, %v1098
  %v1192 = vadd.f32 %v896, %v1101
  %v1193 = vadd.f32 %v901, %v1106
  %v1194 = vadd.f32 %v904, %v1109
  %v1195 = vadd.f32 %v909, %v1114
  %v1196 = vadd.f32 %v912, %v1117
  %v1197 = vadd.f32 %v917, %v1122
  %v1198 = vadd.f32 %v920, %v1125
  %v1199 = vadd.f32 %v925, %v1130
  %v1200 = vadd.f32 %v928, %v1133
  %v1201 = vadd.f32 %v933, %v1138
  %v1202 = vadd.f32 %v936, %v1141
  %v1203 = vadd.f32 %v941, %v1146
  %v1204 = vadd.f32 %v944, %v1149
  %v1205 = vadd.f32 %v949, %v1154
  %v1206 = vadd.f32 %v952, %v1157
  %v1207 = vadd.f32 %v957, %v1162
  %v1208 = vadd.f32 %v960, %v1165
  %v1209 = vadd.f32 %v965, %v1170
  %v1210 = vadd.f32 %v968, %v1173
  %v1211 = vadd.f32 %v973, %v1178
  %v1212 = vadd.f32 %v976, %v1181
  %v1213 = vadd.f32 %v981, %v1186
  %v1214 = vpack.c.bf16 %v526, %v525
  %v1215 = vpack.c.bf16 %v528, %v527
  %v1216 = vpack.c.bf16 %v530, %v529
  %v1217 = vpack.c.bf16 %v532, %v531
  %v1218 = vpack.c.bf16 %v534, %v533
  %v1219 = vpack.c.bf16 %v536, %v535
  %v1220 = vpack.c.bf16 %v538, %v537
  %v1221 = vpack.c.bf16 %v540, %v539
  %v1222 = vpack.c.bf16 %v542, %v541
  %v1223 = vpack.c.bf16 %v544, %v543
  %v1224 = vpack.c.bf16 %v546, %v545
  %v1225 = vpack.c.bf16 %v548, %v547
  %s1226 = scalar_lea.vmem %s4, 12
  %v1227 = vld [vmem:[%s1226] sm:$0xf]
  %v1240 = vrot.slane %v1214, 1
  %v1241 = vrot.slane %v1215, 1
  %v1242 = vsel %vm1000, %v1240, %v1241
  %v1243 = vrot.slane %v1216, 1
  %v1244 = vsel %vm1000, %v1241, %v1243
  %v1245 = vrot.slane %v1217, 1
  %v1246 = vsel %vm1000, %v1243, %v1245
  %v1247 = vrot.slane %v1218, 1
  %v1248 = vsel %vm1000, %v1245, %v1247
  %v1249 = vrot.slane %v1219, 1
  %v1250 = vsel %vm1000, %v1247, %v1249
  %v1251 = vrot.slane %v1220, 1
  %v1252 = vsel %vm1000, %v1249, %v1251
  %v1253 = vrot.slane %v1221, 1
  %v1254 = vsel %vm1000, %v1251, %v1253
  %v1255 = vrot.slane %v1222, 1
  %v1256 = vsel %vm1000, %v1253, %v1255
  %v1257 = vrot.slane %v1223, 1
  %v1258 = vsel %vm1000, %v1255, %v1257
  %v1259 = vrot.slane %v1224, 1
  %v1260 = vsel %vm1000, %v1257, %v1259
  %v1261 = vrot.slane %v1225, 1
  %v1262 = vsel %vm1000, %v1259, %v1261
  %v1264 = vsel %vm662, %v1242, 0
  %v1267 = vsel %vm662, %v1244, 0
  %v1270 = vsel %vm662, %v1246, 0
  %v1273 = vsel %vm662, %v1248, 0
  %v1276 = vsel %vm662, %v1250, 0
  %v1279 = vsel %vm662, %v1252, 0
  %v1282 = vsel %vm662, %v1254, 0
  %v1285 = vsel %vm662, %v1256, 0
  %v1288 = vsel %vm662, %v1258, 0
  %v1291 = vsel %vm662, %v1260, 0
  %v1294 = vsel %vm662, %v1262, 0
  %v1297 = vsel %vm662, %v1261, 0
  %v1300 = vsel %vm201, %v1227, 0
  %1302 = vmatprep.subr.bf16.mxu0 0
  %1303 = vmatpush1.bf16.msra.mxu0 %v1300
  %1304 = vmatprep.subr.bf16.mxu0 0
  %1305 = vmatpush1.bf16.msra.mxu0 0
  %1306 = vmatprep.subr.bf16.mxu0 0
  %1307 = vmatpush1.bf16.msra.mxu0 0
  %1308 = vmatprep.subr.bf16.mxu0 0
  %1309 = vmatpush1.bf16.msra.mxu0 0
  %1310 = vmatprep.subr.bf16.mxu0 0
  %1311 = vmatpush1.bf16.msra.mxu0 0
  %1312 = vmatprep.subr.bf16.mxu0 0
  %1313 = vmatpush1.bf16.msra.mxu0 0
  %1314 = vmatprep.subr.bf16.mxu0 0
  %1315 = vmatpush1.bf16.msra.mxu0 0
  %1316 = vmatprep.subr.bf16.mxu0 0
  %1317 = vmatpush1.bf16.msra.mxu0 0
  %1318 = vmatprep.subr.bf16.mxu0 0
  %1319 = vmatpush1.bf16.msra.mxu0 0
  %1320 = vmatprep.subr.bf16.mxu0 0
  %1321 = vmatpush1.bf16.msra.mxu0 0
  %1322 = vmatprep.subr.bf16.mxu0 0
  %1323 = vmatpush1.bf16.msra.mxu0 0
  %1324 = vmatprep.subr.bf16.mxu0 0
  %1325 = vmatpush1.bf16.msra.mxu0 0
  %1326 = vmatprep.subr.bf16.mxu0 0
  %1327 = vmatpush1.bf16.msra.mxu0 0
  %1328 = vmatprep.subr.bf16.mxu0 0
  %1329 = vmatpush1.bf16.msra.mxu0 0
  %1330 = vmatprep.subr.bf16.mxu0 0
  %1331 = vmatpush1.bf16.msra.mxu0 0
  %1332 = vmatprep.subr.bf16.mxu0 0
  %1333 = vmatpush1.bf16.msra.mxu0 0
  %1334 = vmatprep.mubr.bf16.mxu0 0
  %1335 = vmatmul.mubr.bf16.gmra.mrb[0].mxu0 %v1264
  %v1336 = vpop.f32.mrb[0].mxu0
  %v1337 = vadd.f32 0.0, %v1336
  %v1338 = vpop.f32.mrb[0].mxu0
  %v1339 = vpop.f32.mrb[0].mxu0
  %v1340 = vadd.f32 0.0, %v1339
  %v1341 = vpop.f32.mrb[0].mxu0
  %1342 = vmatprep.mubr.bf16.mxu0 0
  %1343 = vmatmul.mubr.bf16.gmra.mrb[0].mxu0 %v1267
  %v1344 = vpop.f32.mrb[0].mxu0
  %v1345 = vadd.f32 0.0, %v1344
  %v1346 = vpop.f32.mrb[0].mxu0
  %v1347 = vpop.f32.mrb[0].mxu0
  %v1348 = vadd.f32 0.0, %v1347
  %v1349 = vpop.f32.mrb[0].mxu0
  %1350 = vmatprep.mubr.bf16.mxu0 0
  %1351 = vmatmul.mubr.bf16.gmra.mrb[0].mxu0 %v1270
  %v1352 = vpop.f32.mrb[0].mxu0
  %v1353 = vadd.f32 0.0, %v1352
  %v1354 = vpop.f32.mrb[0].mxu0
  %v1355 = vpop.f32.mrb[0].mxu0
  %v1356 = vadd.f32 0.0, %v1355
  %v1357 = vpop.f32.mrb[0].mxu0
  %1358 = vmatprep.mubr.bf16.mxu0 0
  %1359 = vmatmul.mubr.bf16.gmra.mrb[0].mxu0 %v1273
  %v1360 = vpop.f32.mrb[0].mxu0
  %v1361 = vadd.f32 0.0, %v1360
  %v1362 = vpop.f32.mrb[0].mxu0
  %v1363 = vpop.f32.mrb[0].mxu0
  %v1364 = vadd.f32 0.0, %v1363
  %v1365 = vpop.f32.mrb[0].mxu0
  %1366 = vmatprep.mubr.bf16.mxu0 0
  %1367 = vmatmul.mubr.bf16.gmra.mrb[0].mxu0 %v1276
  %v1368 = vpop.f32.mrb[0].mxu0
  %v1369 = vadd.f32 0.0, %v1368
  %v1370 = vpop.f32.mrb[0].mxu0
  %v1371 = vpop.f32.mrb[0].mxu0
  %v1372 = vadd.f32 0.0, %v1371
  %v1373 = vpop.f32.mrb[0].mxu0
  %1374 = vmatprep.mubr.bf16.mxu0 0
  %1375 = vmatmul.mubr.bf16.gmra.mrb[0].mxu0 %v1279
  %v1376 = vpop.f32.mrb[0].mxu0
  %v1377 = vadd.f32 0.0, %v1376
  %v1378 = vpop.f32.mrb[0].mxu0
  %v1379 = vpop.f32.mrb[0].mxu0
  %v1380 = vadd.f32 0.0, %v1379
  %v1381 = vpop.f32.mrb[0].mxu0
  %1382 = vmatprep.mubr.bf16.mxu0 0
  %1383 = vmatmul.mubr.bf16.gmra.mrb[0].mxu0 %v1282
  %v1384 = vpop.f32.mrb[0].mxu0
  %v1385 = vadd.f32 0.0, %v1384
  %v1386 = vpop.f32.mrb[0].mxu0
  %v1387 = vpop.f32.mrb[0].mxu0
  %v1388 = vadd.f32 0.0, %v1387
  %v1389 = vpop.f32.mrb[0].mxu0
  %1390 = vmatprep.mubr.bf16.mxu0 0
  %1391 = vmatmul.mubr.bf16.gmra.mrb[0].mxu0 %v1285
  %v1392 = vpop.f32.mrb[0].mxu0
  %v1393 = vadd.f32 0.0, %v1392
  %v1394 = vpop.f32.mrb[0].mxu0
  %v1395 = vpop.f32.mrb[0].mxu0
  %v1396 = vadd.f32 0.0, %v1395
  %v1397 = vpop.f32.mrb[0].mxu0
  %1398 = vmatprep.mubr.bf16.mxu0 0
  %1399 = vmatmul.mubr.bf16.gmra.mrb[0].mxu0 %v1288
  %v1400 = vpop.f32.mrb[0].mxu0
  %v1401 = vadd.f32 0.0, %v1400
  %v1402 = vpop.f32.mrb[0].mxu0
  %v1403 = vpop.f32.mrb[0].mxu0
  %v1404 = vadd.f32 0.0, %v1403
  %v1405 = vpop.f32.mrb[0].mxu0
  %1406 = vmatprep.mubr.bf16.mxu0 0
  %1407 = vmatmul.mubr.bf16.gmra.mrb[0].mxu0 %v1291
  %v1408 = vpop.f32.mrb[0].mxu0
  %v1409 = vadd.f32 0.0, %v1408
  %v1410 = vpop.f32.mrb[0].mxu0
  %v1411 = vpop.f32.mrb[0].mxu0
  %v1412 = vadd.f32 0.0, %v1411
  %v1413 = vpop.f32.mrb[0].mxu0
  %1414 = vmatprep.mubr.bf16.mxu0 0
  %1415 = vmatmul.mubr.bf16.gmra.mrb[0].mxu0 %v1294
  %v1416 = vpop.f32.mrb[0].mxu0
  %v1417 = vadd.f32 0.0, %v1416
  %v1418 = vpop.f32.mrb[0].mxu0
  %v1419 = vpop.f32.mrb[0].mxu0
  %v1420 = vadd.f32 0.0, %v1419
  %v1421 = vpop.f32.mrb[0].mxu0
  %1422 = vmatprep.mubr.bf16.mxu0 0
  %1423 = vmatmul.mubr.bf16.gmra.mrb[0].mxu0 %v1297
  %v1424 = vpop.f32.mrb[0].mxu0
  %v1425 = vadd.f32 0.0, %v1424
  %v1426 = vpop.f32.mrb[0].mxu0
  %v1427 = vpop.f32.mrb[0].mxu0
  %v1428 = vpop.f32.mrb[0].mxu0
  %1429 = vdwg.mxu0
  %v1430 = vadd.f32 %v1191, %v1337
  %v1431 = vadd.f32 %v1192, %v1340
  %v1432 = vadd.f32 %v1193, %v1345
  %v1433 = vadd.f32 %v1194, %v1348
  %v1434 = vadd.f32 %v1195, %v1353
  %v1435 = vadd.f32 %v1196, %v1356
  %v1436 = vadd.f32 %v1197, %v1361
  %v1437 = vadd.f32 %v1198, %v1364
  %v1438 = vadd.f32 %v1199, %v1369
  %v1439 = vadd.f32 %v1200, %v1372
  %v1440 = vadd.f32 %v1201, %v1377
  %v1441 = vadd.f32 %v1202, %v1380
  %v1442 = vadd.f32 %v1203, %v1385
  %v1443 = vadd.f32 %v1204, %v1388
  %v1444 = vadd.f32 %v1205, %v1393
  %v1445 = vadd.f32 %v1206, %v1396
  %v1446 = vadd.f32 %v1207, %v1401
  %v1447 = vadd.f32 %v1208, %v1404
  %v1448 = vadd.f32 %v1209, %v1409
  %v1449 = vadd.f32 %v1210, %v1412
  %v1450 = vadd.f32 %v1211, %v1417
  %v1451 = vadd.f32 %v1212, %v1420
  %v1452 = vadd.f32 %v1213, %v1425
  %s1453 = scalar_lea.vmem %s4, 16
  %v1454 = vld [vmem:[%s1453] sm:$0xf]
  %vm1455 = vsmask.f32 6400
  %v1457 = vshrl.u32 %v1214, 16
  %v1459 = vrot.slane %v1457, 1
  %v1460 = vshll.u32 %v1214, 16
  %v1462 = vrot.slane %v1460, 2
  %v1463 = vor.u32 %v1459, %v1462
  %v1465 = vshrl.u32 %v1215, 16
  %v1467 = vrot.slane %v1465, 1
  %v1468 = vshll.u32 %v1215, 16
  %v1470 = vrot.slane %v1468, 2
  %v1471 = vor.u32 %v1467, %v1470
  %v1472 = vsel %vm1455, %v1463, %v1471
  %v1474 = vshrl.u32 %v1216, 16
  %v1476 = vrot.slane %v1474, 1
  %v1477 = vshll.u32 %v1216, 16
  %v1479 = vrot.slane %v1477, 2
  %v1480 = vor.u32 %v1476, %v1479
  %v1481 = vsel %vm1455, %v1471, %v1480
  %v1483 = vshrl.u32 %v1217, 16
  %v1485 = vrot.slane %v1483, 1
  %v1486 = vshll.u32 %v1217, 16
  %v1488 = vrot.slane %v1486, 2
  %v1489 = vor.u32 %v1485, %v1488
  %v1490 = vsel %vm1455, %v1480, %v1489
  %v1492 = vshrl.u32 %v1218, 16
  %v1494 = vrot.slane %v1492, 1
  %v1495 = vshll.u32 %v1218, 16
  %v1497 = vrot.slane %v1495, 2
  %v1498 = vor.u32 %v1494, %v1497
  %v1499 = vsel %vm1455, %v1489, %v1498
  %v1501 = vshrl.u32 %v1219, 16
  %v1503 = vrot.slane %v1501, 1
  %v1504 = vshll.u32 %v1219, 16
  %v1506 = vrot.slane %v1504, 2
  %v1507 = vor.u32 %v1503, %v1506
  %v1508 = vsel %vm1455, %v1498, %v1507
  %v1510 = vshrl.u32 %v1220, 16
  %v1512 = vrot.slane %v1510, 1
  %v1513 = vshll.u32 %v1220, 16
  %v1515 = vrot.slane %v1513, 2
  %v1516 = vor.u32 %v1512, %v1515
  %v1517 = vsel %vm1455, %v1507, %v1516
  %v1519 = vshrl.u32 %v1221, 16
  %v1521 = vrot.slane %v1519, 1
  %v1522 = vshll.u32 %v1221, 16
  %v1524 = vrot.slane %v1522, 2
  %v1525 = vor.u32 %v1521, %v1524
  %v1526 = vsel %vm1455, %v1516, %v1525
  %v1528 = vshrl.u32 %v1222, 16
  %v1530 = vrot.slane %v1528, 1
  %v1531 = vshll.u32 %v1222, 16
  %v1533 = vrot.slane %v1531, 2
  %v1534 = vor.u32 %v1530, %v1533
  %v1535 = vsel %vm1455, %v1525, %v1534
  %v1537 = vshrl.u32 %v1223, 16
  %v1539 = vrot.slane %v1537, 1
  %v1540 = vshll.u32 %v1223, 16
  %v1542 = vrot.slane %v1540, 2
  %v1543 = vor.u32 %v1539, %v1542
  %v1544 = vsel %vm1455, %v1534, %v1543
  %v1546 = vshrl.u32 %v1224, 16
  %v1548 = vrot.slane %v1546, 1
  %v1549 = vshll.u32 %v1224, 16
  %v1551 = vrot.slane %v1549, 2
  %v1552 = vor.u32 %v1548, %v1551
  %v1553 = vsel %vm1455, %v1543, %v1552
  %v1555 = vshrl.u32 %v1225, 16
  %v1557 = vrot.slane %v1555, 1
  %v1558 = vshll.u32 %v1225, 16
  %v1560 = vrot.slane %v1558, 2
  %v1561 = vor.u32 %v1557, %v1560
  %v1562 = vsel %vm1455, %v1552, %v1561
  %v1564 = vsel %vm662, %v1472, 0
  %v1567 = vsel %vm662, %v1481, 0
  %v1570 = vsel %vm662, %v1490, 0
  %v1573 = vsel %vm662, %v1499, 0
  %v1576 = vsel %vm662, %v1508, 0
  %v1579 = vsel %vm662, %v1517, 0
  %v1582 = vsel %vm662, %v1526, 0
  %v1585 = vsel %vm662, %v1535, 0
  %v1588 = vsel %vm662, %v1544, 0
  %v1591 = vsel %vm662, %v1553, 0
  %v1594 = vsel %vm662, %v1562, 0
  %v1597 = vsel %vm662, %v1561, 0
  %v1600 = vsel %vm201, %v1454, 0
  %1602 = vmatprep.subr.bf16.mxu0 0
  %1603 = vmatpush1.bf16.msra.mxu0 %v1600
  %1604 = vmatprep.subr.bf16.mxu0 0
  %1605 = vmatpush1.bf16.msra.mxu0 0
  %1606 = vmatprep.subr.bf16.mxu0 0
  %1607 = vmatpush1.bf16.msra.mxu0 0
  %1608 = vmatprep.subr.bf16.mxu0 0
  %1609 = vmatpush1.bf16.msra.mxu0 0
  %1610 = vmatprep.subr.bf16.mxu0 0
  %1611 = vmatpush1.bf16.msra.mxu0 0
  %1612 = vmatprep.subr.bf16.mxu0 0
  %1613 = vmatpush1.bf16.msra.mxu0 0
  %1614 = vmatprep.subr.bf16.mxu0 0
  %1615 = vmatpush1.bf16.msra.mxu0 0
  %1616 = vmatprep.subr.bf16.mxu0 0
  %1617 = vmatpush1.bf16.msra.mxu0 0
  %1618 = vmatprep.subr.bf16.mxu0 0
  %1619 = vmatpush1.bf16.msra.mxu0 0
  %1620 = vmatprep.subr.bf16.mxu0 0
  %1621 = vmatpush1.bf16.msra.mxu0 0
  %1622 = vmatprep.subr.bf16.mxu0 0
  %1623 = vmatpush1.bf16.msra.mxu0 0
  %1624 = vmatprep.subr.bf16.mxu0 0
  %1625 = vmatpush1.bf16.msra.mxu0 0
  %1626 = vmatprep.subr.bf16.mxu0 0
  %1627 = vmatpush1.bf16.msra.mxu0 0
  %1628 = vmatprep.subr.bf16.mxu0 0
  %1629 = vmatpush1.bf16.msra.mxu0 0
  %1630 = vmatprep.subr.bf16.mxu0 0
  %1631 = vmatpush1.bf16.msra.mxu0 0
  %1632 = vmatprep.subr.bf16.mxu0 0
  %1633 = vmatpush1.bf16.msra.mxu0 0
  %1634 = vmatprep.mubr.bf16.mxu0 0
  %1635 = vmatmul.mubr.bf16.gmra.mrb[0].mxu0 %v1564
  %v1636 = vpop.f32.mrb[0].mxu0
  %v1637 = vadd.f32 0.0, %v1636
  %v1638 = vpop.f32.mrb[0].mxu0
  %v1639 = vpop.f32.mrb[0].mxu0
  %v1640 = vadd.f32 0.0, %v1639
  %v1641 = vpop.f32.mrb[0].mxu0
  %1642 = vmatprep.mubr.bf16.mxu0 0
  %1643 = vmatmul.mubr.bf16.gmra.mrb[0].mxu0 %v1567
  %v1644 = vpop.f32.mrb[0].mxu0
  %v1645 = vadd.f32 0.0, %v1644
  %v1646 = vpop.f32.mrb[0].mxu0
  %v1647 = vpop.f32.mrb[0].mxu0
  %v1648 = vadd.f32 0.0, %v1647
  %v1649 = vpop.f32.mrb[0].mxu0
  %1650 = vmatprep.mubr.bf16.mxu0 0
  %1651 = vmatmul.mubr.bf16.gmra.mrb[0].mxu0 %v1570
  %v1652 = vpop.f32.mrb[0].mxu0
  %v1653 = vadd.f32 0.0, %v1652
  %v1654 = vpop.f32.mrb[0].mxu0
  %v1655 = vpop.f32.mrb[0].mxu0
  %v1656 = vadd.f32 0.0, %v1655
  %v1657 = vpop.f32.mrb[0].mxu0
  %1658 = vmatprep.mubr.bf16.mxu0 0
  %1659 = vmatmul.mubr.bf16.gmra.mrb[0].mxu0 %v1573
  %v1660 = vpop.f32.mrb[0].mxu0
  %v1661 = vadd.f32 0.0, %v1660
  %v1662 = vpop.f32.mrb[0].mxu0
  %v1663 = vpop.f32.mrb[0].mxu0
  %v1664 = vadd.f32 0.0, %v1663
  %v1665 = vpop.f32.mrb[0].mxu0
  %1666 = vmatprep.mubr.bf16.mxu0 0
  %1667 = vmatmul.mubr.bf16.gmra.mrb[0].mxu0 %v1576
  %v1668 = vpop.f32.mrb[0].mxu0
  %v1669 = vadd.f32 0.0, %v1668
  %v1670 = vpop.f32.mrb[0].mxu0
  %v1671 = vpop.f32.mrb[0].mxu0
  %v1672 = vadd.f32 0.0, %v1671
  %v1673 = vpop.f32.mrb[0].mxu0
  %1674 = vmatprep.mubr.bf16.mxu0 0
  %1675 = vmatmul.mubr.bf16.gmra.mrb[0].mxu0 %v1579
  %v1676 = vpop.f32.mrb[0].mxu0
  %v1677 = vadd.f32 0.0, %v1676
  %v1678 = vpop.f32.mrb[0].mxu0
  %v1679 = vpop.f32.mrb[0].mxu0
  %v1680 = vadd.f32 0.0, %v1679
  %v1681 = vpop.f32.mrb[0].mxu0
  %1682 = vmatprep.mubr.bf16.mxu0 0
  %1683 = vmatmul.mubr.bf16.gmra.mrb[0].mxu0 %v1582
  %v1684 = vpop.f32.mrb[0].mxu0
  %v1685 = vadd.f32 0.0, %v1684
  %v1686 = vpop.f32.mrb[0].mxu0
  %v1687 = vpop.f32.mrb[0].mxu0
  %v1688 = vadd.f32 0.0, %v1687
  %v1689 = vpop.f32.mrb[0].mxu0
  %1690 = vmatprep.mubr.bf16.mxu0 0
  %1691 = vmatmul.mubr.bf16.gmra.mrb[0].mxu0 %v1585
  %v1692 = vpop.f32.mrb[0].mxu0
  %v1693 = vadd.f32 0.0, %v1692
  %v1694 = vpop.f32.mrb[0].mxu0
  %v1695 = vpop.f32.mrb[0].mxu0
  %v1696 = vadd.f32 0.0, %v1695
  %v1697 = vpop.f32.mrb[0].mxu0
  %1698 = vmatprep.mubr.bf16.mxu0 0
  %1699 = vmatmul.mubr.bf16.gmra.mrb[0].mxu0 %v1588
  %v1700 = vpop.f32.mrb[0].mxu0
  %v1701 = vadd.f32 0.0, %v1700
  %v1702 = vpop.f32.mrb[0].mxu0
  %v1703 = vpop.f32.mrb[0].mxu0
  %v1704 = vadd.f32 0.0, %v1703
  %v1705 = vpop.f32.mrb[0].mxu0
  %1706 = vmatprep.mubr.bf16.mxu0 0
  %1707 = vmatmul.mubr.bf16.gmra.mrb[0].mxu0 %v1591
  %v1708 = vpop.f32.mrb[0].mxu0
  %v1709 = vadd.f32 0.0, %v1708
  %v1710 = vpop.f32.mrb[0].mxu0
  %v1711 = vpop.f32.mrb[0].mxu0
  %v1712 = vadd.f32 0.0, %v1711
  %v1713 = vpop.f32.mrb[0].mxu0
  %1714 = vmatprep.mubr.bf16.mxu0 0
  %1715 = vmatmul.mubr.bf16.gmra.mrb[0].mxu0 %v1594
  %v1716 = vpop.f32.mrb[0].mxu0
  %v1717 = vadd.f32 0.0, %v1716
  %v1718 = vpop.f32.mrb[0].mxu0
  %v1719 = vpop.f32.mrb[0].mxu0
  %v1720 = vadd.f32 0.0, %v1719
  %v1721 = vpop.f32.mrb[0].mxu0
  %1722 = vmatprep.mubr.bf16.mxu0 0
  %1723 = vmatmul.mubr.bf16.gmra.mrb[0].mxu0 %v1597
  %v1724 = vpop.f32.mrb[0].mxu0
  %v1725 = vadd.f32 0.0, %v1724
  %v1726 = vpop.f32.mrb[0].mxu0
  %v1727 = vpop.f32.mrb[0].mxu0
  %v1728 = vpop.f32.mrb[0].mxu0
  %1729 = vdwg.mxu0
  %v1730 = vadd.f32 %v1430, %v1637
  %v1731 = vadd.f32 %v1431, %v1640
  %v1732 = vadd.f32 %v1432, %v1645
  %v1733 = vadd.f32 %v1433, %v1648
  %v1734 = vadd.f32 %v1434, %v1653
  %v1735 = vadd.f32 %v1435, %v1656
  %v1736 = vadd.f32 %v1436, %v1661
  %v1737 = vadd.f32 %v1437, %v1664
  %v1738 = vadd.f32 %v1438, %v1669
  %v1739 = vadd.f32 %v1439, %v1672
  %v1740 = vadd.f32 %v1440, %v1677
  %v1741 = vadd.f32 %v1441, %v1680
  %v1742 = vadd.f32 %v1442, %v1685
  %v1743 = vadd.f32 %v1443, %v1688
  %v1744 = vadd.f32 %v1444, %v1693
  %v1745 = vadd.f32 %v1445, %v1696
  %v1746 = vadd.f32 %v1446, %v1701
  %v1747 = vadd.f32 %v1447, %v1704
  %v1748 = vadd.f32 %v1448, %v1709
  %v1749 = vadd.f32 %v1449, %v1712
  %v1750 = vadd.f32 %v1450, %v1717
  %v1751 = vadd.f32 %v1451, %v1720
  %v1752 = vadd.f32 %v1452, %v1725
  %s1753 = scalar_lea.vmem %s4, 20
  %v1754 = vld [vmem:[%s1753] sm:$0xf]
  %vm1755 = vcmask 1045504
  %v1756 = vrot.slane %v1214, 2
  %v1757 = vrot.slane %v1215, 2
  %v1758 = vsel %vm1755, %v1756, %v1757
  %v1759 = vrot.slane %v1216, 2
  %v1760 = vsel %vm1755, %v1757, %v1759
  %v1761 = vrot.slane %v1217, 2
  %v1762 = vsel %vm1755, %v1759, %v1761
  %v1763 = vrot.slane %v1218, 2
  %v1764 = vsel %vm1755, %v1761, %v1763
  %v1765 = vrot.slane %v1219, 2
  %v1766 = vsel %vm1755, %v1763, %v1765
  %v1767 = vrot.slane %v1220, 2
  %v1768 = vsel %vm1755, %v1765, %v1767
  %v1769 = vrot.slane %v1221, 2
  %v1770 = vsel %vm1755, %v1767, %v1769
  %v1771 = vrot.slane %v1222, 2
  %v1772 = vsel %vm1755, %v1769, %v1771
  %v1773 = vrot.slane %v1223, 2
  %v1774 = vsel %vm1755, %v1771, %v1773
  %v1775 = vrot.slane %v1224, 2
  %v1776 = vsel %vm1755, %v1773, %v1775
  %v1777 = vrot.slane %v1225, 2
  %v1778 = vsel %vm1755, %v1775, %v1777
  %v1780 = vsel %vm662, %v1758, 0
  %v1783 = vsel %vm662, %v1760, 0
  %v1786 = vsel %vm662, %v1762, 0
  %v1789 = vsel %vm662, %v1764, 0
  %v1792 = vsel %vm662, %v1766, 0
  %v1795 = vsel %vm662, %v1768, 0
  %v1798 = vsel %vm662, %v1770, 0
  %v1801 = vsel %vm662, %v1772, 0
  %v1804 = vsel %vm662, %v1774, 0
  %v1807 = vsel %vm662, %v1776, 0
  %v1810 = vsel %vm662, %v1778, 0
  %v1813 = vsel %vm662, %v1777, 0
  %v1816 = vsel %vm201, %v1754, 0
  %1818 = vmatprep.subr.bf16.mxu0 0
  %1819 = vmatpush1.bf16.msra.mxu0 %v1816
  %1820 = vmatprep.subr.bf16.mxu0 0
  %1821 = vmatpush1.bf16.msra.mxu0 0
  %1822 = vmatprep.subr.bf16.mxu0 0
  %1823 = vmatpush1.bf16.msra.mxu0 0
  %1824 = vmatprep.subr.bf16.mxu0 0
  %1825 = vmatpush1.bf16.msra.mxu0 0
  %1826 = vmatprep.subr.bf16.mxu0 0
  %1827 = vmatpush1.bf16.msra.mxu0 0
  %1828 = vmatprep.subr.bf16.mxu0 0
  %1829 = vmatpush1.bf16.msra.mxu0 0
  %1830 = vmatprep.subr.bf16.mxu0 0
  %1831 = vmatpush1.bf16.msra.mxu0 0
  %1832 = vmatprep.subr.bf16.mxu0 0
  %1833 = vmatpush1.bf16.msra.mxu0 0
  %1834 = vmatprep.subr.bf16.mxu0 0
  %1835 = vmatpush1.bf16.msra.mxu0 0
  %1836 = vmatprep.subr.bf16.mxu0 0
  %1837 = vmatpush1.bf16.msra.mxu0 0
  %1838 = vmatprep.subr.bf16.mxu0 0
  %1839 = vmatpush1.bf16.msra.mxu0 0
  %1840 = vmatprep.subr.bf16.mxu0 0
  %1841 = vmatpush1.bf16.msra.mxu0 0
  %1842 = vmatprep.subr.bf16.mxu0 0
  %1843 = vmatpush1.bf16.msra.mxu0 0
  %1844 = vmatprep.subr.bf16.mxu0 0
  %1845 = vmatpush1.bf16.msra.mxu0 0
  %1846 = vmatprep.subr.bf16.mxu0 0
  %1847 = vmatpush1.bf16.msra.mxu0 0
  %1848 = vmatprep.subr.bf16.mxu0 0
  %1849 = vmatpush1.bf16.msra.mxu0 0
  %1850 = vmatprep.mubr.bf16.mxu0 0
  %1851 = vmatmul.mubr.bf16.gmra.mrb[0].mxu0 %v1780
  %v1852 = vpop.f32.mrb[0].mxu0
  %v1853 = vadd.f32 0.0, %v1852
  %v1854 = vpop.f32.mrb[0].mxu0
  %v1855 = vpop.f32.mrb[0].mxu0
  %v1856 = vadd.f32 0.0, %v1855
  %v1857 = vpop.f32.mrb[0].mxu0
  %1858 = vmatprep.mubr.bf16.mxu0 0
  %1859 = vmatmul.mubr.bf16.gmra.mrb[0].mxu0 %v1783
  %v1860 = vpop.f32.mrb[0].mxu0
  %v1861 = vadd.f32 0.0, %v1860
  %v1862 = vpop.f32.mrb[0].mxu0
  %v1863 = vpop.f32.mrb[0].mxu0
  %v1864 = vadd.f32 0.0, %v1863
  %v1865 = vpop.f32.mrb[0].mxu0
  %1866 = vmatprep.mubr.bf16.mxu0 0
  %1867 = vmatmul.mubr.bf16.gmra.mrb[0].mxu0 %v1786
  %v1868 = vpop.f32.mrb[0].mxu0
  %v1869 = vadd.f32 0.0, %v1868
  %v1870 = vpop.f32.mrb[0].mxu0
  %v1871 = vpop.f32.mrb[0].mxu0
  %v1872 = vadd.f32 0.0, %v1871
  %v1873 = vpop.f32.mrb[0].mxu0
  %1874 = vmatprep.mubr.bf16.mxu0 0
  %1875 = vmatmul.mubr.bf16.gmra.mrb[0].mxu0 %v1789
  %v1876 = vpop.f32.mrb[0].mxu0
  %v1877 = vadd.f32 0.0, %v1876
  %v1878 = vpop.f32.mrb[0].mxu0
  %v1879 = vpop.f32.mrb[0].mxu0
  %v1880 = vadd.f32 0.0, %v1879
  %v1881 = vpop.f32.mrb[0].mxu0
  %1882 = vmatprep.mubr.bf16.mxu0 0
  %1883 = vmatmul.mubr.bf16.gmra.mrb[0].mxu0 %v1792
  %v1884 = vpop.f32.mrb[0].mxu0
  %v1885 = vadd.f32 0.0, %v1884
  %v1886 = vpop.f32.mrb[0].mxu0
  %v1887 = vpop.f32.mrb[0].mxu0
  %v1888 = vadd.f32 0.0, %v1887
  %v1889 = vpop.f32.mrb[0].mxu0
  %1890 = vmatprep.mubr.bf16.mxu0 0
  %1891 = vmatmul.mubr.bf16.gmra.mrb[0].mxu0 %v1795
  %v1892 = vpop.f32.mrb[0].mxu0
  %v1893 = vadd.f32 0.0, %v1892
  %v1894 = vpop.f32.mrb[0].mxu0
  %v1895 = vpop.f32.mrb[0].mxu0
  %v1896 = vadd.f32 0.0, %v1895
  %v1897 = vpop.f32.mrb[0].mxu0
  %1898 = vmatprep.mubr.bf16.mxu0 0
  %1899 = vmatmul.mubr.bf16.gmra.mrb[0].mxu0 %v1798
  %v1900 = vpop.f32.mrb[0].mxu0
  %v1901 = vadd.f32 0.0, %v1900
  %v1902 = vpop.f32.mrb[0].mxu0
  %v1903 = vpop.f32.mrb[0].mxu0
  %v1904 = vadd.f32 0.0, %v1903
  %v1905 = vpop.f32.mrb[0].mxu0
  %1906 = vmatprep.mubr.bf16.mxu0 0
  %1907 = vmatmul.mubr.bf16.gmra.mrb[0].mxu0 %v1801
  %v1908 = vpop.f32.mrb[0].mxu0
  %v1909 = vadd.f32 0.0, %v1908
  %v1910 = vpop.f32.mrb[0].mxu0
  %v1911 = vpop.f32.mrb[0].mxu0
  %v1912 = vadd.f32 0.0, %v1911
  %v1913 = vpop.f32.mrb[0].mxu0
  %1914 = vmatprep.mubr.bf16.mxu0 0
  %1915 = vmatmul.mubr.bf16.gmra.mrb[0].mxu0 %v1804
  %v1916 = vpop.f32.mrb[0].mxu0
  %v1917 = vadd.f32 0.0, %v1916
  %v1918 = vpop.f32.mrb[0].mxu0
  %v1919 = vpop.f32.mrb[0].mxu0
  %v1920 = vadd.f32 0.0, %v1919
  %v1921 = vpop.f32.mrb[0].mxu0
  %1922 = vmatprep.mubr.bf16.mxu0 0
  %1923 = vmatmul.mubr.bf16.gmra.mrb[0].mxu0 %v1807
  %v1924 = vpop.f32.mrb[0].mxu0
  %v1925 = vadd.f32 0.0, %v1924
  %v1926 = vpop.f32.mrb[0].mxu0
  %v1927 = vpop.f32.mrb[0].mxu0
  %v1928 = vadd.f32 0.0, %v1927
  %v1929 = vpop.f32.mrb[0].mxu0
  %1930 = vmatprep.mubr.bf16.mxu0 0
  %1931 = vmatmul.mubr.bf16.gmra.mrb[0].mxu0 %v1810
  %v1932 = vpop.f32.mrb[0].mxu0
  %v1933 = vadd.f32 0.0, %v1932
  %v1934 = vpop.f32.mrb[0].mxu0
  %v1935 = vpop.f32.mrb[0].mxu0
  %v1936 = vadd.f32 0.0, %v1935
  %v1937 = vpop.f32.mrb[0].mxu0
  %1938 = vmatprep.mubr.bf16.mxu0 0
  %1939 = vmatmul.mubr.bf16.gmra.mrb[0].mxu0 %v1813
  %v1940 = vpop.f32.mrb[0].mxu0
  %v1941 = vadd.f32 0.0, %v1940
  %v1942 = vpop.f32.mrb[0].mxu0
  %v1943 = vpop.f32.mrb[0].mxu0
  %v1944 = vpop.f32.mrb[0].mxu0
  %1945 = vdwg.mxu0
  %v1946 = vadd.f32 %v1730, %v1853
  %v1947 = vadd.f32 %v1731, %v1856
  %v1948 = vadd.f32 %v1732, %v1861
  %v1949 = vadd.f32 %v1733, %v1864
  %v1950 = vadd.f32 %v1734, %v1869
  %v1951 = vadd.f32 %v1735, %v1872
  %v1952 = vadd.f32 %v1736, %v1877
  %v1953 = vadd.f32 %v1737, %v1880
  %v1954 = vadd.f32 %v1738, %v1885
  %v1955 = vadd.f32 %v1739, %v1888
  %v1956 = vadd.f32 %v1740, %v1893
  %v1957 = vadd.f32 %v1741, %v1896
  %v1958 = vadd.f32 %v1742, %v1901
  %v1959 = vadd.f32 %v1743, %v1904
  %v1960 = vadd.f32 %v1744, %v1909
  %v1961 = vadd.f32 %v1745, %v1912
  %v1962 = vadd.f32 %v1746, %v1917
  %v1963 = vadd.f32 %v1747, %v1920
  %v1964 = vadd.f32 %v1748, %v1925
  %v1965 = vadd.f32 %v1749, %v1928
  %v1966 = vadd.f32 %v1750, %v1933
  %v1967 = vadd.f32 %v1751, %v1936
  %v1968 = vadd.f32 %v1752, %v1941
  %v1969 = vpack.c.bf16 %v549, %v548
  %s1970 = scalar_lea.vmem %s4, 24
  %v1971 = vld [vmem:[%s1970] sm:$0xf]
  %v1973 = vrot.slane %v551, 2
  %v1974 = vrot.slane %v552, 2
  %v1975 = vsel %vm1755, %v1973, %v1974
  %v1976 = vrot.slane %v553, 2
  %v1977 = vsel %vm1755, %v1974, %v1976
  %v1978 = vrot.slane %v554, 2
  %v1979 = vsel %vm1755, %v1976, %v1978
  %v1980 = vrot.slane %v555, 2
  %v1981 = vsel %vm1755, %v1978, %v1980
  %v1982 = vrot.slane %v556, 2
  %v1983 = vsel %vm1755, %v1980, %v1982
  %v1984 = vrot.slane %v557, 2
  %v1985 = vsel %vm1755, %v1982, %v1984
  %v1986 = vrot.slane %v558, 2
  %v1987 = vsel %vm1755, %v1984, %v1986
  %v1988 = vrot.slane %v559, 2
  %v1989 = vsel %vm1755, %v1986, %v1988
  %v1990 = vrot.slane %v560, 2
  %v1991 = vsel %vm1755, %v1988, %v1990
  %v1992 = vrot.slane %v563, 2
  %v1993 = vsel %vm1755, %v1990, %v1992
  %v1994 = vrot.slane %v1969, 2
  %v1995 = vsel %vm1755, %v1992, %v1994
  %v1997 = vsel %vm662, %v1975, 0
  %v2000 = vsel %vm662, %v1977, 0
  %v2003 = vsel %vm662, %v1979, 0
  %v2006 = vsel %vm662, %v1981, 0
  %v2009 = vsel %vm662, %v1983, 0
  %v2012 = vsel %vm662, %v1985, 0
  %v2015 = vsel %vm662, %v1987, 0
  %v2018 = vsel %vm662, %v1989, 0
  %v2021 = vsel %vm662, %v1991, 0
  %v2024 = vsel %vm662, %v1993, 0
  %v2027 = vsel %vm662, %v1995, 0
  %v2030 = vsel %vm662, %v1994, 0
  %v2033 = vsel %vm201, %v1971, 0
  %2035 = vmatprep.subr.bf16.mxu0 0
  %2036 = vmatpush1.bf16.msra.mxu0 %v2033
  %2037 = vmatprep.subr.bf16.mxu0 0
  %2038 = vmatpush1.bf16.msra.mxu0 0
  %2039 = vmatprep.subr.bf16.mxu0 0
  %2040 = vmatpush1.bf16.msra.mxu0 0
  %2041 = vmatprep.subr.bf16.mxu0 0
  %2042 = vmatpush1.bf16.msra.mxu0 0
  %2043 = vmatprep.subr.bf16.mxu0 0
  %2044 = vmatpush1.bf16.msra.mxu0 0
  %2045 = vmatprep.subr.bf16.mxu0 0
  %2046 = vmatpush1.bf16.msra.mxu0 0
  %2047 = vmatprep.subr.bf16.mxu0 0
  %2048 = vmatpush1.bf16.msra.mxu0 0
  %2049 = vmatprep.subr.bf16.mxu0 0
  %2050 = vmatpush1.bf16.msra.mxu0 0
  %2051 = vmatprep.subr.bf16.mxu0 0
  %2052 = vmatpush1.bf16.msra.mxu0 0
  %2053 = vmatprep.subr.bf16.mxu0 0
  %2054 = vmatpush1.bf16.msra.mxu0 0
  %2055 = vmatprep.subr.bf16.mxu0 0
  %2056 = vmatpush1.bf16.msra.mxu0 0
  %2057 = vmatprep.subr.bf16.mxu0 0
  %2058 = vmatpush1.bf16.msra.mxu0 0
  %2059 = vmatprep.subr.bf16.mxu0 0
  %2060 = vmatpush1.bf16.msra.mxu0 0
  %2061 = vmatprep.subr.bf16.mxu0 0
  %2062 = vmatpush1.bf16.msra.mxu0 0
  %2063 = vmatprep.subr.bf16.mxu0 0
  %2064 = vmatpush1.bf16.msra.mxu0 0
  %2065 = vmatprep.subr.bf16.mxu0 0
  %2066 = vmatpush1.bf16.msra.mxu0 0
  %2067 = vmatprep.mubr.bf16.mxu0 0
  %2068 = vmatmul.mubr.bf16.gmra.mrb[0].mxu0 %v1997
  %v2069 = vpop.f32.mrb[0].mxu0
  %v2070 = vadd.f32 0.0, %v2069
  %v2071 = vpop.f32.mrb[0].mxu0
  %v2072 = vpop.f32.mrb[0].mxu0
  %v2073 = vadd.f32 0.0, %v2072
  %v2074 = vpop.f32.mrb[0].mxu0
  %2075 = vmatprep.mubr.bf16.mxu0 0
  %2076 = vmatmul.mubr.bf16.gmra.mrb[0].mxu0 %v2000
  %v2077 = vpop.f32.mrb[0].mxu0
  %v2078 = vadd.f32 0.0, %v2077
  %v2079 = vpop.f32.mrb[0].mxu0
  %v2080 = vpop.f32.mrb[0].mxu0
  %v2081 = vadd.f32 0.0, %v2080
  %v2082 = vpop.f32.mrb[0].mxu0
  %2083 = vmatprep.mubr.bf16.mxu0 0
  %2084 = vmatmul.mubr.bf16.gmra.mrb[0].mxu0 %v2003
  %v2085 = vpop.f32.mrb[0].mxu0
  %v2086 = vadd.f32 0.0, %v2085
  %v2087 = vpop.f32.mrb[0].mxu0
  %v2088 = vpop.f32.mrb[0].mxu0
  %v2089 = vadd.f32 0.0, %v2088
  %v2090 = vpop.f32.mrb[0].mxu0
  %2091 = vmatprep.mubr.bf16.mxu0 0
  %2092 = vmatmul.mubr.bf16.gmra.mrb[0].mxu0 %v2006
  %v2093 = vpop.f32.mrb[0].mxu0
  %v2094 = vadd.f32 0.0, %v2093
  %v2095 = vpop.f32.mrb[0].mxu0
  %v2096 = vpop.f32.mrb[0].mxu0
  %v2097 = vadd.f32 0.0, %v2096
  %v2098 = vpop.f32.mrb[0].mxu0
  %2099 = vmatprep.mubr.bf16.mxu0 0
  %2100 = vmatmul.mubr.bf16.gmra.mrb[0].mxu0 %v2009
  %v2101 = vpop.f32.mrb[0].mxu0
  %v2102 = vadd.f32 0.0, %v2101
  %v2103 = vpop.f32.mrb[0].mxu0
  %v2104 = vpop.f32.mrb[0].mxu0
  %v2105 = vadd.f32 0.0, %v2104
  %v2106 = vpop.f32.mrb[0].mxu0
  %2107 = vmatprep.mubr.bf16.mxu0 0
  %2108 = vmatmul.mubr.bf16.gmra.mrb[0].mxu0 %v2012
  %v2109 = vpop.f32.mrb[0].mxu0
  %v2110 = vadd.f32 0.0, %v2109
  %v2111 = vpop.f32.mrb[0].mxu0
  %v2112 = vpop.f32.mrb[0].mxu0
  %v2113 = vadd.f32 0.0, %v2112
  %v2114 = vpop.f32.mrb[0].mxu0
  %2115 = vmatprep.mubr.bf16.mxu0 0
  %2116 = vmatmul.mubr.bf16.gmra.mrb[0].mxu0 %v2015
  %v2117 = vpop.f32.mrb[0].mxu0
  %v2118 = vadd.f32 0.0, %v2117
  %v2119 = vpop.f32.mrb[0].mxu0
  %v2120 = vpop.f32.mrb[0].mxu0
  %v2121 = vadd.f32 0.0, %v2120
  %v2122 = vpop.f32.mrb[0].mxu0
  %2123 = vmatprep.mubr.bf16.mxu0 0
  %2124 = vmatmul.mubr.bf16.gmra.mrb[0].mxu0 %v2018
  %v2125 = vpop.f32.mrb[0].mxu0
  %v2126 = vadd.f32 0.0, %v2125
  %v2127 = vpop.f32.mrb[0].mxu0
  %v2128 = vpop.f32.mrb[0].mxu0
  %v2129 = vadd.f32 0.0, %v2128
  %v2130 = vpop.f32.mrb[0].mxu0
  %2131 = vmatprep.mubr.bf16.mxu0 0
  %2132 = vmatmul.mubr.bf16.gmra.mrb[0].mxu0 %v2021
  %v2133 = vpop.f32.mrb[0].mxu0
  %v2134 = vadd.f32 0.0, %v2133
  %v2135 = vpop.f32.mrb[0].mxu0
  %v2136 = vpop.f32.mrb[0].mxu0
  %v2137 = vadd.f32 0.0, %v2136
  %v2138 = vpop.f32.mrb[0].mxu0
  %2139 = vmatprep.mubr.bf16.mxu0 0
  %2140 = vmatmul.mubr.bf16.gmra.mrb[0].mxu0 %v2024
  %v2141 = vpop.f32.mrb[0].mxu0
  %v2142 = vadd.f32 0.0, %v2141
  %v2143 = vpop.f32.mrb[0].mxu0
  %v2144 = vpop.f32.mrb[0].mxu0
  %v2145 = vadd.f32 0.0, %v2144
  %v2146 = vpop.f32.mrb[0].mxu0
  %2147 = vmatprep.mubr.bf16.mxu0 0
  %2148 = vmatmul.mubr.bf16.gmra.mrb[0].mxu0 %v2027
  %v2149 = vpop.f32.mrb[0].mxu0
  %v2150 = vadd.f32 0.0, %v2149
  %v2151 = vpop.f32.mrb[0].mxu0
  %v2152 = vpop.f32.mrb[0].mxu0
  %v2153 = vadd.f32 0.0, %v2152
  %v2154 = vpop.f32.mrb[0].mxu0
  %2155 = vmatprep.mubr.bf16.mxu0 0
  %2156 = vmatmul.mubr.bf16.gmra.mrb[0].mxu0 %v2030
  %v2157 = vpop.f32.mrb[0].mxu0
  %v2158 = vadd.f32 0.0, %v2157
  %v2159 = vpop.f32.mrb[0].mxu0
  %v2160 = vpop.f32.mrb[0].mxu0
  %v2161 = vpop.f32.mrb[0].mxu0
  %2162 = vdwg.mxu0
  %v2163 = vadd.f32 %v1946, %v2070
  %v2164 = vadd.f32 %v1947, %v2073
  %v2165 = vadd.f32 %v1948, %v2078
  %v2166 = vadd.f32 %v1949, %v2081
  %v2167 = vadd.f32 %v1950, %v2086
  %v2168 = vadd.f32 %v1951, %v2089
  %v2169 = vadd.f32 %v1952, %v2094
  %v2170 = vadd.f32 %v1953, %v2097
  %v2171 = vadd.f32 %v1954, %v2102
  %v2172 = vadd.f32 %v1955, %v2105
  %v2173 = vadd.f32 %v1956, %v2110
  %v2174 = vadd.f32 %v1957, %v2113
  %v2175 = vadd.f32 %v1958, %v2118
  %v2176 = vadd.f32 %v1959, %v2121
  %v2177 = vadd.f32 %v1960, %v2126
  %v2178 = vadd.f32 %v1961, %v2129
  %v2179 = vadd.f32 %v1962, %v2134
  %v2180 = vadd.f32 %v1963, %v2137
  %v2181 = vadd.f32 %v1964, %v2142
  %v2182 = vadd.f32 %v1965, %v2145
  %v2183 = vadd.f32 %v1966, %v2150
  %v2184 = vadd.f32 %v1967, %v2153
  %v2185 = vadd.f32 %v1968, %v2158
  %s2186 = scalar_lea.vmem %s4, 28
  %v2187 = vld [vmem:[%s2186] sm:$0xf]
  %vm2188 = vsmask.f32 5376
  %v2189 = vrot.slane %v579, 2
  %v2190 = vrot.slane %v575, 3
  %v2191 = vor.u32 %v2189, %v2190
  %v2192 = vrot.slane %v587, 2
  %v2193 = vrot.slane %v583, 3
  %v2194 = vor.u32 %v2192, %v2193
  %v2195 = vsel %vm2188, %v2191, %v2194
  %v2196 = vrot.slane %v595, 2
  %v2197 = vrot.slane %v591, 3
  %v2198 = vor.u32 %v2196, %v2197
  %v2199 = vsel %vm2188, %v2194, %v2198
  %v2200 = vrot.slane %v603, 2
  %v2201 = vrot.slane %v599, 3
  %v2202 = vor.u32 %v2200, %v2201
  %v2203 = vsel %vm2188, %v2198, %v2202
  %v2204 = vrot.slane %v611, 2
  %v2205 = vrot.slane %v607, 3
  %v2206 = vor.u32 %v2204, %v2205
  %v2207 = vsel %vm2188, %v2202, %v2206
  %v2208 = vrot.slane %v619, 2
  %v2209 = vrot.slane %v615, 3
  %v2210 = vor.u32 %v2208, %v2209
  %v2211 = vsel %vm2188, %v2206, %v2210
  %v2212 = vrot.slane %v627, 2
  %v2213 = vrot.slane %v623, 3
  %v2214 = vor.u32 %v2212, %v2213
  %v2215 = vsel %vm2188, %v2210, %v2214
  %v2216 = vrot.slane %v635, 2
  %v2217 = vrot.slane %v631, 3
  %v2218 = vor.u32 %v2216, %v2217
  %v2219 = vsel %vm2188, %v2214, %v2218
  %v2220 = vrot.slane %v643, 2
  %v2221 = vrot.slane %v639, 3
  %v2222 = vor.u32 %v2220, %v2221
  %v2223 = vsel %vm2188, %v2218, %v2222
  %v2224 = vrot.slane %v651, 2
  %v2225 = vrot.slane %v647, 3
  %v2226 = vor.u32 %v2224, %v2225
  %v2227 = vsel %vm2188, %v2222, %v2226
  %v2228 = vrot.slane %v659, 2
  %v2229 = vrot.slane %v655, 3
  %v2230 = vor.u32 %v2228, %v2229
  %v2231 = vsel %vm2188, %v2226, %v2230
  %v2233 = vshrl.u32 %v1969, 16
  %v2235 = vrot.slane %v2233, 2
  %v2236 = vshll.u32 %v1969, 16
  %v2238 = vrot.slane %v2236, 3
  %v2239 = vor.u32 %v2235, %v2238
  %v2240 = vsel %vm2188, %v2230, %v2239
  %v2242 = vsel %vm662, %v2195, 0
  %v2245 = vsel %vm662, %v2199, 0
  %v2248 = vsel %vm662, %v2203, 0
  %v2251 = vsel %vm662, %v2207, 0
  %v2254 = vsel %vm662, %v2211, 0
  %v2257 = vsel %vm662, %v2215, 0
  %v2260 = vsel %vm662, %v2219, 0
  %v2263 = vsel %vm662, %v2223, 0
  %v2266 = vsel %vm662, %v2227, 0
  %v2269 = vsel %vm662, %v2231, 0
  %v2272 = vsel %vm662, %v2240, 0
  %v2275 = vsel %vm662, %v2239, 0
  %v2278 = vsel %vm201, %v2187, 0
  %2280 = vmatprep.subr.bf16.mxu0 0
  %2281 = vmatpush1.bf16.msra.mxu0 %v2278
  %2282 = vmatprep.subr.bf16.mxu0 0
  %2283 = vmatpush1.bf16.msra.mxu0 0
  %2284 = vmatprep.subr.bf16.mxu0 0
  %2285 = vmatpush1.bf16.msra.mxu0 0
  %2286 = vmatprep.subr.bf16.mxu0 0
  %2287 = vmatpush1.bf16.msra.mxu0 0
  %2288 = vmatprep.subr.bf16.mxu0 0
  %2289 = vmatpush1.bf16.msra.mxu0 0
  %2290 = vmatprep.subr.bf16.mxu0 0
  %2291 = vmatpush1.bf16.msra.mxu0 0
  %2292 = vmatprep.subr.bf16.mxu0 0
  %2293 = vmatpush1.bf16.msra.mxu0 0
  %2294 = vmatprep.subr.bf16.mxu0 0
  %2295 = vmatpush1.bf16.msra.mxu0 0
  %2296 = vmatprep.subr.bf16.mxu0 0
  %2297 = vmatpush1.bf16.msra.mxu0 0
  %2298 = vmatprep.subr.bf16.mxu0 0
  %2299 = vmatpush1.bf16.msra.mxu0 0
  %2300 = vmatprep.subr.bf16.mxu0 0
  %2301 = vmatpush1.bf16.msra.mxu0 0
  %2302 = vmatprep.subr.bf16.mxu0 0
  %2303 = vmatpush1.bf16.msra.mxu0 0
  %2304 = vmatprep.subr.bf16.mxu0 0
  %2305 = vmatpush1.bf16.msra.mxu0 0
  %2306 = vmatprep.subr.bf16.mxu0 0
  %2307 = vmatpush1.bf16.msra.mxu0 0
  %2308 = vmatprep.subr.bf16.mxu0 0
  %2309 = vmatpush1.bf16.msra.mxu0 0
  %2310 = vmatprep.subr.bf16.mxu0 0
  %2311 = vmatpush1.bf16.msra.mxu0 0
  %2312 = vmatprep.mubr.bf16.mxu0 0
  %2313 = vmatmul.mubr.bf16.gmra.mrb[0].mxu0 %v2242
  %v2314 = vpop.f32.mrb[0].mxu0
  %v2315 = vadd.f32 0.0, %v2314
  %v2316 = vpop.f32.mrb[0].mxu0
  %v2317 = vpop.f32.mrb[0].mxu0
  %v2318 = vadd.f32 0.0, %v2317
  %v2319 = vpop.f32.mrb[0].mxu0
  %2320 = vmatprep.mubr.bf16.mxu0 0
  %2321 = vmatmul.mubr.bf16.gmra.mrb[0].mxu0 %v2245
  %v2322 = vpop.f32.mrb[0].mxu0
  %v2323 = vadd.f32 0.0, %v2322
  %v2324 = vpop.f32.mrb[0].mxu0
  %v2325 = vpop.f32.mrb[0].mxu0
  %v2326 = vadd.f32 0.0, %v2325
  %v2327 = vpop.f32.mrb[0].mxu0
  %2328 = vmatprep.mubr.bf16.mxu0 0
  %2329 = vmatmul.mubr.bf16.gmra.mrb[0].mxu0 %v2248
  %v2330 = vpop.f32.mrb[0].mxu0
  %v2331 = vadd.f32 0.0, %v2330
  %v2332 = vpop.f32.mrb[0].mxu0
  %v2333 = vpop.f32.mrb[0].mxu0
  %v2334 = vadd.f32 0.0, %v2333
  %v2335 = vpop.f32.mrb[0].mxu0
  %2336 = vmatprep.mubr.bf16.mxu0 0
  %2337 = vmatmul.mubr.bf16.gmra.mrb[0].mxu0 %v2251
  %v2338 = vpop.f32.mrb[0].mxu0
  %v2339 = vadd.f32 0.0, %v2338
  %v2340 = vpop.f32.mrb[0].mxu0
  %v2341 = vpop.f32.mrb[0].mxu0
  %v2342 = vadd.f32 0.0, %v2341
  %v2343 = vpop.f32.mrb[0].mxu0
  %2344 = vmatprep.mubr.bf16.mxu0 0
  %2345 = vmatmul.mubr.bf16.gmra.mrb[0].mxu0 %v2254
  %v2346 = vpop.f32.mrb[0].mxu0
  %v2347 = vadd.f32 0.0, %v2346
  %v2348 = vpop.f32.mrb[0].mxu0
  %v2349 = vpop.f32.mrb[0].mxu0
  %v2350 = vadd.f32 0.0, %v2349
  %v2351 = vpop.f32.mrb[0].mxu0
  %2352 = vmatprep.mubr.bf16.mxu0 0
  %2353 = vmatmul.mubr.bf16.gmra.mrb[0].mxu0 %v2257
  %v2354 = vpop.f32.mrb[0].mxu0
  %v2355 = vadd.f32 0.0, %v2354
  %v2356 = vpop.f32.mrb[0].mxu0
  %v2357 = vpop.f32.mrb[0].mxu0
  %v2358 = vadd.f32 0.0, %v2357
  %v2359 = vpop.f32.mrb[0].mxu0
  %2360 = vmatprep.mubr.bf16.mxu0 0
  %2361 = vmatmul.mubr.bf16.gmra.mrb[0].mxu0 %v2260
  %v2362 = vpop.f32.mrb[0].mxu0
  %v2363 = vadd.f32 0.0, %v2362
  %v2364 = vpop.f32.mrb[0].mxu0
  %v2365 = vpop.f32.mrb[0].mxu0
  %v2366 = vadd.f32 0.0, %v2365
  %v2367 = vpop.f32.mrb[0].mxu0
  %2368 = vmatprep.mubr.bf16.mxu0 0
  %2369 = vmatmul.mubr.bf16.gmra.mrb[0].mxu0 %v2263
  %v2370 = vpop.f32.mrb[0].mxu0
  %v2371 = vadd.f32 0.0, %v2370
  %v2372 = vpop.f32.mrb[0].mxu0
  %v2373 = vpop.f32.mrb[0].mxu0
  %v2374 = vadd.f32 0.0, %v2373
  %v2375 = vpop.f32.mrb[0].mxu0
  %2376 = vmatprep.mubr.bf16.mxu0 0
  %2377 = vmatmul.mubr.bf16.gmra.mrb[0].mxu0 %v2266
  %v2378 = vpop.f32.mrb[0].mxu0
  %v2379 = vadd.f32 0.0, %v2378
  %v2380 = vpop.f32.mrb[0].mxu0
  %v2381 = vpop.f32.mrb[0].mxu0
  %v2382 = vadd.f32 0.0, %v2381
  %v2383 = vpop.f32.mrb[0].mxu0
  %2384 = vmatprep.mubr.bf16.mxu0 0
  %2385 = vmatmul.mubr.bf16.gmra.mrb[0].mxu0 %v2269
  %v2386 = vpop.f32.mrb[0].mxu0
  %v2387 = vadd.f32 0.0, %v2386
  %v2388 = vpop.f32.mrb[0].mxu0
  %v2389 = vpop.f32.mrb[0].mxu0
  %v2390 = vadd.f32 0.0, %v2389
  %v2391 = vpop.f32.mrb[0].mxu0
  %2392 = vmatprep.mubr.bf16.mxu0 0
  %2393 = vmatmul.mubr.bf16.gmra.mrb[0].mxu0 %v2272
  %v2394 = vpop.f32.mrb[0].mxu0
  %v2395 = vadd.f32 0.0, %v2394
  %v2396 = vpop.f32.mrb[0].mxu0
  %v2397 = vpop.f32.mrb[0].mxu0
  %v2398 = vadd.f32 0.0, %v2397
  %v2399 = vpop.f32.mrb[0].mxu0
  %2400 = vmatprep.mubr.bf16.mxu0 0
  %2401 = vmatmul.mubr.bf16.gmra.mrb[0].mxu0 %v2275
  %v2402 = vpop.f32.mrb[0].mxu0
  %v2403 = vadd.f32 0.0, %v2402
  %v2404 = vpop.f32.mrb[0].mxu0
  %v2405 = vpop.f32.mrb[0].mxu0
  %v2406 = vpop.f32.mrb[0].mxu0
  %2407 = vdwg.mxu0
  %v2408 = vadd.f32 %v2163, %v2315
  %v2409 = vadd.f32 %v2164, %v2318
  %v2410 = vadd.f32 %v2165, %v2323
  %v2411 = vadd.f32 %v2166, %v2326
  %v2412 = vadd.f32 %v2167, %v2331
  %v2413 = vadd.f32 %v2168, %v2334
  %v2414 = vadd.f32 %v2169, %v2339
  %v2415 = vadd.f32 %v2170, %v2342
  %v2416 = vadd.f32 %v2171, %v2347
  %v2417 = vadd.f32 %v2172, %v2350
  %v2418 = vadd.f32 %v2173, %v2355
  %v2419 = vadd.f32 %v2174, %v2358
  %v2420 = vadd.f32 %v2175, %v2363
  %v2421 = vadd.f32 %v2176, %v2366
  %v2422 = vadd.f32 %v2177, %v2371
  %v2423 = vadd.f32 %v2178, %v2374
  %v2424 = vadd.f32 %v2179, %v2379
  %v2425 = vadd.f32 %v2180, %v2382
  %v2426 = vadd.f32 %v2181, %v2387
  %v2427 = vadd.f32 %v2182, %v2390
  %v2428 = vadd.f32 %v2183, %v2395
  %v2429 = vadd.f32 %v2184, %v2398
  %v2430 = vadd.f32 %v2185, %v2403
  %s2431 = scalar_lea.vmem %s4, 32
  %v2432 = vld [vmem:[%s2431] sm:$0xf]
  %vm2433 = vcmask 1044480
  %v2434 = vrot.slane %v551, 3
  %v2435 = vrot.slane %v552, 3
  %v2436 = vsel %vm2433, %v2434, %v2435
  %v2437 = vrot.slane %v553, 3
  %v2438 = vsel %vm2433, %v2435, %v2437
  %v2439 = vrot.slane %v554, 3
  %v2440 = vsel %vm2433, %v2437, %v2439
  %v2441 = vrot.slane %v555, 3
  %v2442 = vsel %vm2433, %v2439, %v2441
  %v2443 = vrot.slane %v556, 3
  %v2444 = vsel %vm2433, %v2441, %v2443
  %v2445 = vrot.slane %v557, 3
  %v2446 = vsel %vm2433, %v2443, %v2445
  %v2447 = vrot.slane %v558, 3
  %v2448 = vsel %vm2433, %v2445, %v2447
  %v2449 = vrot.slane %v559, 3
  %v2450 = vsel %vm2433, %v2447, %v2449
  %v2451 = vrot.slane %v560, 3
  %v2452 = vsel %vm2433, %v2449, %v2451
  %v2453 = vrot.slane %v563, 3
  %v2454 = vsel %vm2433, %v2451, %v2453
  %v2455 = vrot.slane %v1969, 3
  %v2456 = vsel %vm2433, %v2453, %v2455
  %v2458 = vsel %vm662, %v2436, 0
  %v2461 = vsel %vm662, %v2438, 0
  %v2464 = vsel %vm662, %v2440, 0
  %v2467 = vsel %vm662, %v2442, 0
  %v2470 = vsel %vm662, %v2444, 0
  %v2473 = vsel %vm662, %v2446, 0
  %v2476 = vsel %vm662, %v2448, 0
  %v2479 = vsel %vm662, %v2450, 0
  %v2482 = vsel %vm662, %v2452, 0
  %v2485 = vsel %vm662, %v2454, 0
  %v2488 = vsel %vm662, %v2456, 0
  %v2491 = vsel %vm662, %v2455, 0
  %v2494 = vsel %vm201, %v2432, 0
  %2496 = vmatprep.subr.bf16.mxu0 0
  %2497 = vmatpush1.bf16.msra.mxu0 %v2494
  %2498 = vmatprep.subr.bf16.mxu0 0
  %2499 = vmatpush1.bf16.msra.mxu0 0
  %2500 = vmatprep.subr.bf16.mxu0 0
  %2501 = vmatpush1.bf16.msra.mxu0 0
  %2502 = vmatprep.subr.bf16.mxu0 0
  %2503 = vmatpush1.bf16.msra.mxu0 0
  %2504 = vmatprep.subr.bf16.mxu0 0
  %2505 = vmatpush1.bf16.msra.mxu0 0
  %2506 = vmatprep.subr.bf16.mxu0 0
  %2507 = vmatpush1.bf16.msra.mxu0 0
  %2508 = vmatprep.subr.bf16.mxu0 0
  %2509 = vmatpush1.bf16.msra.mxu0 0
  %2510 = vmatprep.subr.bf16.mxu0 0
  %2511 = vmatpush1.bf16.msra.mxu0 0
  %2512 = vmatprep.subr.bf16.mxu0 0
  %2513 = vmatpush1.bf16.msra.mxu0 0
  %2514 = vmatprep.subr.bf16.mxu0 0
  %2515 = vmatpush1.bf16.msra.mxu0 0
  %2516 = vmatprep.subr.bf16.mxu0 0
  %2517 = vmatpush1.bf16.msra.mxu0 0
  %2518 = vmatprep.subr.bf16.mxu0 0
  %2519 = vmatpush1.bf16.msra.mxu0 0
  %2520 = vmatprep.subr.bf16.mxu0 0
  %2521 = vmatpush1.bf16.msra.mxu0 0
  %2522 = vmatprep.subr.bf16.mxu0 0
  %2523 = vmatpush1.bf16.msra.mxu0 0
  %2524 = vmatprep.subr.bf16.mxu0 0
  %2525 = vmatpush1.bf16.msra.mxu0 0
  %2526 = vmatprep.subr.bf16.mxu0 0
  %2527 = vmatpush1.bf16.msra.mxu0 0
  %2528 = vmatprep.mubr.bf16.mxu0 0
  %2529 = vmatmul.mubr.bf16.gmra.mrb[0].mxu0 %v2458
  %v2530 = vpop.f32.mrb[0].mxu0
  %v2531 = vadd.f32 0.0, %v2530
  %v2532 = vpop.f32.mrb[0].mxu0
  %v2533 = vpop.f32.mrb[0].mxu0
  %v2534 = vadd.f32 0.0, %v2533
  %v2535 = vpop.f32.mrb[0].mxu0
  %2536 = vmatprep.mubr.bf16.mxu0 0
  %2537 = vmatmul.mubr.bf16.gmra.mrb[0].mxu0 %v2461
  %v2538 = vpop.f32.mrb[0].mxu0
  %v2539 = vadd.f32 0.0, %v2538
  %v2540 = vpop.f32.mrb[0].mxu0
  %v2541 = vpop.f32.mrb[0].mxu0
  %v2542 = vadd.f32 0.0, %v2541
  %v2543 = vpop.f32.mrb[0].mxu0
  %2544 = vmatprep.mubr.bf16.mxu0 0
  %2545 = vmatmul.mubr.bf16.gmra.mrb[0].mxu0 %v2464
  %v2546 = vpop.f32.mrb[0].mxu0
  %v2547 = vadd.f32 0.0, %v2546
  %v2548 = vpop.f32.mrb[0].mxu0
  %v2549 = vpop.f32.mrb[0].mxu0
  %v2550 = vadd.f32 0.0, %v2549
  %v2551 = vpop.f32.mrb[0].mxu0
  %2552 = vmatprep.mubr.bf16.mxu0 0
  %2553 = vmatmul.mubr.bf16.gmra.mrb[0].mxu0 %v2467
  %v2554 = vpop.f32.mrb[0].mxu0
  %v2555 = vadd.f32 0.0, %v2554
  %v2556 = vpop.f32.mrb[0].mxu0
  %v2557 = vpop.f32.mrb[0].mxu0
  %v2558 = vadd.f32 0.0, %v2557
  %v2559 = vpop.f32.mrb[0].mxu0
  %2560 = vmatprep.mubr.bf16.mxu0 0
  %2561 = vmatmul.mubr.bf16.gmra.mrb[0].mxu0 %v2470
  %v2562 = vpop.f32.mrb[0].mxu0
  %v2563 = vadd.f32 0.0, %v2562
  %v2564 = vpop.f32.mrb[0].mxu0
  %v2565 = vpop.f32.mrb[0].mxu0
  %v2566 = vadd.f32 0.0, %v2565
  %v2567 = vpop.f32.mrb[0].mxu0
  %2568 = vmatprep.mubr.bf16.mxu0 0
  %2569 = vmatmul.mubr.bf16.gmra.mrb[0].mxu0 %v2473
  %v2570 = vpop.f32.mrb[0].mxu0
  %v2571 = vadd.f32 0.0, %v2570
  %v2572 = vpop.f32.mrb[0].mxu0
  %v2573 = vpop.f32.mrb[0].mxu0
  %v2574 = vadd.f32 0.0, %v2573
  %v2575 = vpop.f32.mrb[0].mxu0
  %2576 = vmatprep.mubr.bf16.mxu0 0
  %2577 = vmatmul.mubr.bf16.gmra.mrb[0].mxu0 %v2476
  %v2578 = vpop.f32.mrb[0].mxu0
  %v2579 = vadd.f32 0.0, %v2578
  %v2580 = vpop.f32.mrb[0].mxu0
  %v2581 = vpop.f32.mrb[0].mxu0
  %v2582 = vadd.f32 0.0, %v2581
  %v2583 = vpop.f32.mrb[0].mxu0
  %2584 = vmatprep.mubr.bf16.mxu0 0
  %2585 = vmatmul.mubr.bf16.gmra.mrb[0].mxu0 %v2479
  %v2586 = vpop.f32.mrb[0].mxu0
  %v2587 = vadd.f32 0.0, %v2586
  %v2588 = vpop.f32.mrb[0].mxu0
  %v2589 = vpop.f32.mrb[0].mxu0
  %v2590 = vadd.f32 0.0, %v2589
  %v2591 = vpop.f32.mrb[0].mxu0
  %2592 = vmatprep.mubr.bf16.mxu0 0
  %2593 = vmatmul.mubr.bf16.gmra.mrb[0].mxu0 %v2482
  %v2594 = vpop.f32.mrb[0].mxu0
  %v2595 = vadd.f32 0.0, %v2594
  %v2596 = vpop.f32.mrb[0].mxu0
  %v2597 = vpop.f32.mrb[0].mxu0
  %v2598 = vadd.f32 0.0, %v2597
  %v2599 = vpop.f32.mrb[0].mxu0
  %2600 = vmatprep.mubr.bf16.mxu0 0
  %2601 = vmatmul.mubr.bf16.gmra.mrb[0].mxu0 %v2485
  %v2602 = vpop.f32.mrb[0].mxu0
  %v2603 = vadd.f32 0.0, %v2602
  %v2604 = vpop.f32.mrb[0].mxu0
  %v2605 = vpop.f32.mrb[0].mxu0
  %v2606 = vadd.f32 0.0, %v2605
  %v2607 = vpop.f32.mrb[0].mxu0
  %2608 = vmatprep.mubr.bf16.mxu0 0
  %2609 = vmatmul.mubr.bf16.gmra.mrb[0].mxu0 %v2488
  %v2610 = vpop.f32.mrb[0].mxu0
  %v2611 = vadd.f32 0.0, %v2610
  %v2612 = vpop.f32.mrb[0].mxu0
  %v2613 = vpop.f32.mrb[0].mxu0
  %v2614 = vadd.f32 0.0, %v2613
  %v2615 = vpop.f32.mrb[0].mxu0
  %2616 = vmatprep.mubr.bf16.mxu0 0
  %2617 = vmatmul.mubr.bf16.gmra.mrb[0].mxu0 %v2491
  %v2618 = vpop.f32.mrb[0].mxu0
  %v2619 = vadd.f32 0.0, %v2618
  %v2620 = vpop.f32.mrb[0].mxu0
  %v2621 = vpop.f32.mrb[0].mxu0
  %v2622 = vpop.f32.mrb[0].mxu0
  %2623 = vdwg.mxu0
  %v2624 = vadd.f32 %v2408, %v2531
  %v2625 = vadd.f32 %v2409, %v2534
  %v2626 = vadd.f32 %v2410, %v2539
  %v2627 = vadd.f32 %v2411, %v2542
  %v2628 = vadd.f32 %v2412, %v2547
  %v2629 = vadd.f32 %v2413, %v2550
  %v2630 = vadd.f32 %v2414, %v2555
  %v2631 = vadd.f32 %v2415, %v2558
  %v2632 = vadd.f32 %v2416, %v2563
  %v2633 = vadd.f32 %v2417, %v2566
  %v2634 = vadd.f32 %v2418, %v2571
  %v2635 = vadd.f32 %v2419, %v2574
  %v2636 = vadd.f32 %v2420, %v2579
  %v2637 = vadd.f32 %v2421, %v2582
  %v2638 = vadd.f32 %v2422, %v2587
  %v2639 = vadd.f32 %v2423, %v2590
  %v2640 = vadd.f32 %v2424, %v2595
  %v2641 = vadd.f32 %v2425, %v2598
  %v2642 = vadd.f32 %v2426, %v2603
  %v2643 = vadd.f32 %v2427, %v2606
  %v2644 = vadd.f32 %v2428, %v2611
  %v2645 = vadd.f32 %v2429, %v2614
  %v2646 = vadd.f32 %v2430, %v2619
  %v2647 = vld [vmem:[%s5] sm:$0x1]
  %v2649 = vlaneseq
  %v2650 = vshrl.u32 %v2649, 7
  %v2651 = vsub.s32 0, %v2650
  %v2652 = vrot.slane %v2647, %v2651
  %v2654 = vadd.f32 %v2624, %v2652
  %v2655 = vadd.f32 %v2625, %v2652
  %v2656 = vadd.f32 %v2626, %v2652
  %v2657 = vadd.f32 %v2627, %v2652
  %v2658 = vadd.f32 %v2628, %v2652
  %v2659 = vadd.f32 %v2629, %v2652
  %v2660 = vadd.f32 %v2630, %v2652
  %v2661 = vadd.f32 %v2631, %v2652
  %v2662 = vadd.f32 %v2632, %v2652
  %v2663 = vadd.f32 %v2633, %v2652
  %v2664 = vadd.f32 %v2634, %v2652
  %v2665 = vadd.f32 %v2635, %v2652
  %v2666 = vadd.f32 %v2636, %v2652
  %v2667 = vadd.f32 %v2637, %v2652
  %v2668 = vadd.f32 %v2638, %v2652
  %v2669 = vadd.f32 %v2639, %v2652
  %v2670 = vadd.f32 %v2640, %v2652
  %v2671 = vadd.f32 %v2641, %v2652
  %v2672 = vadd.f32 %v2642, %v2652
  %v2673 = vadd.f32 %v2643, %v2652
  %v2674 = vadd.f32 %v2644, %v2652
  %v2675 = vadd.f32 %v2645, %v2652
  %v2676 = vadd.f32 %v2646, %v2652
  %v2677 = vld [vmem:[%s6] sm:$0xf]
  %v2678 = vld [vmem:[%s6 + $0x4] sm:$0xf]
  %v2679 = vld [vmem:[%s6 + $0x8] sm:$0xf]
  %v2680 = vld [vmem:[%s6 + $0xc] sm:$0xf]
  %v2681 = vld [vmem:[%s6 + $0x10] sm:$0xf]
  %v2682 = vld [vmem:[%s6 + $0x14] sm:$0xf]
  %v2683 = vld [vmem:[%s6 + $0x18] sm:$0xf]
  %v2684 = vld [vmem:[%s6 + $0x1c] sm:$0xf]
  %v2685 = vld [vmem:[%s6 + $0x20] sm:$0xf]
  %v2686 = vld [vmem:[%s6 + $0x24] sm:$0xf]
  %v2687 = vld [vmem:[%s6 + $0x28] sm:$0xf]
  %v2688 = vld [vmem:[%s6 + $0x2c] sm:$0xf]
  %v2689 = vld [vmem:[%s6 + $0x30] sm:$0xf]
  %v2690 = vld [vmem:[%s6 + $0x34] sm:$0xf]
  %v2691 = vld [vmem:[%s6 + $0x38] sm:$0xf]
  %v2692 = vld [vmem:[%s6 + $0x3c] sm:$0xf]
  %v2693 = vld [vmem:[%s6 + $0x40] sm:$0xf]
  %v2694 = vld [vmem:[%s6 + $0x44] sm:$0xf]
  %v2695 = vld [vmem:[%s6 + $0x48] sm:$0xf]
  %v2696 = vld [vmem:[%s6 + $0x4c] sm:$0xf]
  %v2697 = vld [vmem:[%s6 + $0x50] sm:$0xf]
  %v2698 = vld [vmem:[%s6 + $0x54] sm:$0xf]
  %v2699 = vld [vmem:[%s6 + $0x58] sm:$0xf]
  %v2700 = vunpack.c.l.bf16 %v2677
  %v2701 = vunpack.c.l.bf16 %v2678
  %v2702 = vunpack.c.l.bf16 %v2679
  %v2703 = vunpack.c.l.bf16 %v2680
  %v2704 = vunpack.c.l.bf16 %v2681
  %v2705 = vunpack.c.l.bf16 %v2682
  %v2706 = vunpack.c.l.bf16 %v2683
  %v2707 = vunpack.c.l.bf16 %v2684
  %v2708 = vunpack.c.l.bf16 %v2685
  %v2709 = vunpack.c.l.bf16 %v2686
  %v2710 = vunpack.c.l.bf16 %v2687
  %v2711 = vunpack.c.l.bf16 %v2688
  %v2712 = vunpack.c.l.bf16 %v2689
  %v2713 = vunpack.c.l.bf16 %v2690
  %v2714 = vunpack.c.l.bf16 %v2691
  %v2715 = vunpack.c.l.bf16 %v2692
  %v2716 = vunpack.c.l.bf16 %v2693
  %v2717 = vunpack.c.l.bf16 %v2694
  %v2718 = vunpack.c.l.bf16 %v2695
  %v2719 = vunpack.c.l.bf16 %v2696
  %v2720 = vunpack.c.l.bf16 %v2697
  %v2721 = vunpack.c.l.bf16 %v2698
  %v2722 = vunpack.c.l.bf16 %v2699
  %v2723 = vadd.f32 %v2654, %v2700
  %v2724 = vadd.f32 %v2655, %v2701
  %v2725 = vadd.f32 %v2656, %v2702
  %v2726 = vadd.f32 %v2657, %v2703
  %v2727 = vadd.f32 %v2658, %v2704
  %v2728 = vadd.f32 %v2659, %v2705
  %v2729 = vadd.f32 %v2660, %v2706
  %v2730 = vadd.f32 %v2661, %v2707
  %v2731 = vadd.f32 %v2662, %v2708
  %v2732 = vadd.f32 %v2663, %v2709
  %v2733 = vadd.f32 %v2664, %v2710
  %v2734 = vadd.f32 %v2665, %v2711
  %v2735 = vadd.f32 %v2666, %v2712
  %v2736 = vadd.f32 %v2667, %v2713
  %v2737 = vadd.f32 %v2668, %v2714
  %v2738 = vadd.f32 %v2669, %v2715
  %v2739 = vadd.f32 %v2670, %v2716
  %v2740 = vadd.f32 %v2671, %v2717
  %v2741 = vadd.f32 %v2672, %v2718
  %v2742 = vadd.f32 %v2673, %v2719
  %v2743 = vadd.f32 %v2674, %v2720
  %v2744 = vadd.f32 %v2675, %v2721
  %v2745 = vadd.f32 %v2676, %v2722
  %v2746 = vmax.f32 %v2723, 0.0
  %v2747 = vmax.f32 %v2724, 0.0
  %v2748 = vmax.f32 %v2725, 0.0
  %v2749 = vmax.f32 %v2726, 0.0
  %v2750 = vmax.f32 %v2727, 0.0
  %v2751 = vmax.f32 %v2728, 0.0
  %v2752 = vmax.f32 %v2729, 0.0
  %v2753 = vmax.f32 %v2730, 0.0
  %v2754 = vmax.f32 %v2731, 0.0
  %v2755 = vmax.f32 %v2732, 0.0
  %v2756 = vmax.f32 %v2733, 0.0
  %v2757 = vmax.f32 %v2734, 0.0
  %v2758 = vmax.f32 %v2735, 0.0
  %v2759 = vmax.f32 %v2736, 0.0
  %v2760 = vmax.f32 %v2737, 0.0
  %v2761 = vmax.f32 %v2738, 0.0
  %v2762 = vmax.f32 %v2739, 0.0
  %v2763 = vmax.f32 %v2740, 0.0
  %v2764 = vmax.f32 %v2741, 0.0
  %v2765 = vmax.f32 %v2742, 0.0
  %v2766 = vmax.f32 %v2743, 0.0
  %v2767 = vmax.f32 %v2744, 0.0
  %v2768 = vmax.f32 %v2745, 0.0
  %v2769 = vpack.c.bf16 %v2747, %v2746
  %v2770 = vpack.c.bf16 %v2749, %v2748
  %v2771 = vpack.c.bf16 %v2751, %v2750
  %v2772 = vpack.c.bf16 %v2753, %v2752
  %v2773 = vpack.c.bf16 %v2755, %v2754
  %v2774 = vpack.c.bf16 %v2757, %v2756
  %v2775 = vpack.c.bf16 %v2759, %v2758
  %v2776 = vpack.c.bf16 %v2761, %v2760
  %v2777 = vpack.c.bf16 %v2763, %v2762
  %v2778 = vpack.c.bf16 %v2765, %v2764
  %v2779 = vpack.c.bf16 %v2767, %v2766
  %v2780 = vpack.c.bf16 %v2768, %v2768
  %v2793 = vunpack.c.l.b16 %v2769
  %v2794 = vunpack.c.h.b16 %v2769
  %v2795 = vunpack.c.l.b16 %v2770
  %v2796 = vunpack.c.h.b16 %v2770
  %v2797 = vunpack.c.l.b16 %v2771
  %v2798 = vunpack.c.h.b16 %v2771
  %v2799 = vunpack.c.l.b16 %v2772
  %v2800 = vunpack.c.h.b16 %v2772
  %v2801 = vunpack.c.l.b16 %v2773
  %v2802 = vunpack.c.h.b16 %v2773
  %v2803 = vunpack.c.l.b16 %v2774
  %v2804 = vunpack.c.h.b16 %v2774
  %v2805 = vunpack.c.l.b16 %v2775
  %v2806 = vunpack.c.h.b16 %v2775
  %v2807 = vunpack.c.l.b16 %v2776
  %v2808 = vunpack.c.h.b16 %v2776
  %v2809 = vunpack.c.l.b16 %v2777
  %v2810 = vunpack.c.h.b16 %v2777
  %v2811 = vunpack.c.l.b16 %v2778
  %v2812 = vunpack.c.h.b16 %v2778
  %v2813 = vunpack.c.l.b16 %v2779
  %v2814 = vunpack.c.h.b16 %v2779
  %v2815 = vunpack.c.l.b16 %v2780
  %v2816 = vpack.c.b16 %v2793, %v2793
  %v2817 = vpack.c.b16 %v2794, %v2794
  %v2818 = vpack.c.b16 %v2795, %v2795
  %v2819 = vpack.c.b16 %v2796, %v2796
  %v2820 = vpack.c.b16 %v2797, %v2797
  %v2821 = vpack.c.b16 %v2798, %v2798
  %v2822 = vpack.c.b16 %v2799, %v2799
  %v2823 = vpack.c.b16 %v2800, %v2800
  %v2824 = vpack.c.b16 %v2801, %v2801
  %v2825 = vpack.c.b16 %v2802, %v2802
  %v2826 = vpack.c.b16 %v2803, %v2803
  %v2827 = vpack.c.b16 %v2804, %v2804
  %v2828 = vpack.c.b16 %v2805, %v2805
  %v2829 = vpack.c.b16 %v2806, %v2806
  %v2830 = vpack.c.b16 %v2807, %v2807
  %v2831 = vpack.c.b16 %v2808, %v2808
  %v2832 = vpack.c.b16 %v2809, %v2809
  %v2833 = vpack.c.b16 %v2810, %v2810
  %v2834 = vpack.c.b16 %v2811, %v2811
  %v2835 = vpack.c.b16 %v2812, %v2812
  %v2836 = vpack.c.b16 %v2813, %v2813
  %v2837 = vpack.c.b16 %v2814, %v2814
  %v2838 = vpack.c.b16 %v2815, %v2815
  %vm2862 = vcmask 60416
  %2863 = vst.msk [vmem:[%s7] sm:$0xf] %vm2862, %v2816
  %2864 = vst.msk [vmem:[%s7 + $0x4] sm:$0xf] %vm2862, %v2817
  %2865 = vst.msk [vmem:[%s7 + $0x8] sm:$0xf] %vm2862, %v2818
  %2866 = vst.msk [vmem:[%s7 + $0xc] sm:$0xf] %vm2862, %v2819
  %2867 = vst.msk [vmem:[%s7 + $0x10] sm:$0xf] %vm2862, %v2820
  %2868 = vst.msk [vmem:[%s7 + $0x14] sm:$0xf] %vm2862, %v2821
  %2869 = vst.msk [vmem:[%s7 + $0x18] sm:$0xf] %vm2862, %v2822
  %2870 = vst.msk [vmem:[%s7 + $0x1c] sm:$0xf] %vm2862, %v2823
  %2871 = vst.msk [vmem:[%s7 + $0x20] sm:$0xf] %vm2862, %v2824
  %2872 = vst.msk [vmem:[%s7 + $0x24] sm:$0xf] %vm2862, %v2825
  %2873 = vst.msk [vmem:[%s7 + $0x28] sm:$0xf] %vm2862, %v2826
  %2874 = vst.msk [vmem:[%s7 + $0x2c] sm:$0xf] %vm2862, %v2827
  %2875 = vst.msk [vmem:[%s7 + $0x30] sm:$0xf] %vm2862, %v2828
  %2876 = vst.msk [vmem:[%s7 + $0x34] sm:$0xf] %vm2862, %v2829
  %2877 = vst.msk [vmem:[%s7 + $0x38] sm:$0xf] %vm2862, %v2830
  %2878 = vst.msk [vmem:[%s7 + $0x3c] sm:$0xf] %vm2862, %v2831
  %2879 = vst.msk [vmem:[%s7 + $0x40] sm:$0xf] %vm2862, %v2832
  %2880 = vst.msk [vmem:[%s7 + $0x44] sm:$0xf] %vm2862, %v2833
  %2881 = vst.msk [vmem:[%s7 + $0x48] sm:$0xf] %vm2862, %v2834
  %2882 = vst.msk [vmem:[%s7 + $0x4c] sm:$0xf] %vm2862, %v2835
  %2883 = vst.msk [vmem:[%s7 + $0x50] sm:$0xf] %vm2862, %v2836
  %2884 = vst.msk [vmem:[%s7 + $0x54] sm:$0xf] %vm2862, %v2837
  %2885 = vst.msk [vmem:[%s7 + $0x58] sm:$0xf] %vm2862, %v2838
  // Predicated region
  $region30: #{resnet18_forward.11} parent=0 // pred_check
    _
  $region31: #{resnet18_forward.11} parent=0 // pred_check_branch
    %2887 = sbr.rel (0) target = $region33
  $region32: #{resnet18_forward.11} parent=0 // pred_region
    _
  $region33: #{resnet18_forward.11} parent=0 // pred_fallthru
    _
  // Predicated region
  $region34: #{resnet18_forward.11} parent=0 // pred_check
    _
  $region35: #{resnet18_forward.11} parent=0 // pred_check_branch
    %2889 = sbr.rel (0) target = $region37
  $region36: #{resnet18_forward.11} parent=0 // pred_region
    _
  $region37: #{resnet18_forward.11} parent=0 // pred_fallthru
    _

// kernel: resnet18_forward.13
$region0: #{resnet18_forward.13}
  #allocation0 [shape = 'u32[]', space=smem, size = 0x4, offset = 0x4, fixed_abs, tag = 'smem constant byte address 0x4 - core index']
  #allocation1 [shape = 'u32[144,128]{1,0:T(1,128)}', space=vmem, size = 0x12000, scoped, tag = 'internal scratch']
  %s0 = inlined_call_operand.vmem [shape: bf16[80,72], index: 0, kind: input, shape index: {}]
  %s1 = inlined_call_operand.vmem [shape: bf16[72,16], index: 1, kind: input, shape index: {}]
  %s2 = inlined_call_operand.vmem [shape: f32[1,16], index: 2, kind: input, shape index: {}]
  %s3 = inlined_call_operand.vmem [shape: f32[80,1], index: 3, kind: input, shape index: {}]
  %s4 = inlined_call_operand.vmem [shape: bf16[9,16,16], index: 4, kind: input, shape index: {}]
  %s5 = inlined_call_operand.vmem [shape: f32[1,16], index: 5, kind: input, shape index: {}]
  %s6 = inlined_call_operand.vmem [shape: bf16[64,8], index: 6, kind: input, shape index: {}]
  %s7 = inlined_call_operand.vmem [shape: bf16[8,16], index: 7, kind: input, shape index: {}]
  %s8 = inlined_call_operand.vmem [shape: bf16[64,16], index: 8, kind: output, shape index: {}]
  %s9 = sld [smem:[#allocation0]]
  $region42: #{resnet18_forward.13} parent=0
    _
  %s11 = ssub.s32 1, %s9
  %s12 = scalar_select 0, %s11, %s9
  // Predicated region
  $region2: #{resnet18_forward.13} parent=0 // pred_check
    _
  $region3: #{resnet18_forward.13} parent=0 // pred_check_branch
    %14 = sbr.rel (0) target = $region5
  $region4: #{resnet18_forward.13} parent=0 // pred_region
    _
  $region5: #{resnet18_forward.13} parent=0 // pred_fallthru
    _
  // Predicated region
  $region6: #{resnet18_forward.13} parent=0 // pred_check
    _
  $region7: #{resnet18_forward.13} parent=0 // pred_check_branch
    %16 = sbr.rel (0) target = $region9
  $region8: #{resnet18_forward.13} parent=0 // pred_region
    _
  $region9: #{resnet18_forward.13} parent=0 // pred_fallthru
    _
  // Predicated region
  $region10: #{resnet18_forward.13} parent=0 // pred_check
    _
  $region11: #{resnet18_forward.13} parent=0 // pred_check_branch
    %18 = sbr.rel (0) target = $region13
  $region12: #{resnet18_forward.13} parent=0 // pred_region
    _
  $region13: #{resnet18_forward.13} parent=0 // pred_fallthru
    _
  // Predicated region
  $region14: #{resnet18_forward.13} parent=0 // pred_check
    _
  $region15: #{resnet18_forward.13} parent=0 // pred_check_branch
    %20 = sbr.rel (0) target = $region17
  $region16: #{resnet18_forward.13} parent=0 // pred_region
    _
  $region17: #{resnet18_forward.13} parent=0 // pred_fallthru
    _
  // Predicated region
  $region18: #{resnet18_forward.13} parent=0 // pred_check
    _
  $region19: #{resnet18_forward.13} parent=0 // pred_check_branch
    %22 = sbr.rel (0) target = $region21
  $region20: #{resnet18_forward.13} parent=0 // pred_region
    _
  $region21: #{resnet18_forward.13} parent=0 // pred_fallthru
    _
  // Predicated region
  $region22: #{resnet18_forward.13} parent=0 // pred_check
    _
  $region23: #{resnet18_forward.13} parent=0 // pred_check_branch
    %24 = sbr.rel (0) target = $region25
  $region24: #{resnet18_forward.13} parent=0 // pred_region
    _
  $region25: #{resnet18_forward.13} parent=0 // pred_fallthru
    _
  // Predicated region
  $region26: #{resnet18_forward.13} parent=0 // pred_check
    _
  $region27: #{resnet18_forward.13} parent=0 // pred_check_branch
    %26 = sbr.rel (0) target = $region29
  $region28: #{resnet18_forward.13} parent=0 // pred_region
    _
  $region29: #{resnet18_forward.13} parent=0 // pred_fallthru
    _
  // Predicated region
  $region30: #{resnet18_forward.13} parent=0 // pred_check
    _
  $region31: #{resnet18_forward.13} parent=0 // pred_check_branch
    %28 = sbr.rel (0) target = $region33
  $region32: #{resnet18_forward.13} parent=0 // pred_region
    _
  $region33: #{resnet18_forward.13} parent=0 // pred_fallthru
    _
  %v30 = vld [vmem:[%s0] sm:$0xf]
  %v31 = vld [vmem:[%s0 + $0x4] sm:$0xf]
  %v32 = vld [vmem:[%s0 + $0x8] sm:$0xf]
  %v33 = vld [vmem:[%s0 + $0xc] sm:$0xf]
  %v34 = vld [vmem:[%s0 + $0x10] sm:$0xf]
  %v35 = vld [vmem:[%s0 + $0x14] sm:$0xf]
  %v36 = vld [vmem:[%s0 + $0x18] sm:$0xf]
  %v37 = vld [vmem:[%s0 + $0x1c] sm:$0xf]
  %v38 = vld [vmem:[%s0 + $0x20] sm:$0xf]
  %v39 = vld [vmem:[%s0 + $0x24] sm:$0xf]
  %v40 = vld [vmem:[%s1] sm:$0xf]
  %v41 = vld [vmem:[%s1 + $0x4] sm:$0xf]
  %v42 = vld [vmem:[%s1 + $0x8] sm:$0xf]
  %v43 = vld [vmem:[%s1 + $0xc] sm:$0xf]
  %v44 = vld [vmem:[%s1 + $0x10] sm:$0xf]
  %v45 = vld [vmem:[%s1 + $0x14] sm:$0xf]
  %v46 = vld [vmem:[%s1 + $0x18] sm:$0xf]
  %v47 = vld [vmem:[%s1 + $0x1c] sm:$0xf]
  %v48 = vld [vmem:[%s1 + $0x20] sm:$0xf]
  %v49 = vld [vmem:[%s2] sm:$0x1]
  %v51 = vlaneseq
  %v52 = vshrl.u32 %v51, 7
  %v53 = vsub.s32 0, %v52
  %v54 = vrot.slane %v49, %v53
  %v66 = vunpack.c.l.b16 %v30
  %v67 = vunpack.c.l.b16 %v31
  %v68 = vunpack.c.l.b16 %v32
  %v69 = vunpack.c.l.b16 %v33
  %v70 = vunpack.c.l.b16 %v34
  %v71 = vunpack.c.l.b16 %v35
  %v72 = vunpack.c.l.b16 %v36
  %v73 = vunpack.c.l.b16 %v37
  %v74 = vunpack.c.l.b16 %v38
  %v75 = vunpack.c.l.b16 %v39
  %v76 = vpack.c.b16 %v67, %v66
  %v77 = vpack.c.b16 %v69, %v68
  %v78 = vpack.c.b16 %v71, %v70
  %v79 = vpack.c.b16 %v73, %v72
  %v80 = vpack.c.b16 %v75, %v74
  %v90 = vunpack.c.l.b16 %v40
  %v91 = vunpack.c.l.b16 %v41
  %v92 = vunpack.c.l.b16 %v42
  %v93 = vunpack.c.l.b16 %v43
  %v94 = vunpack.c.l.b16 %v44
  %v95 = vunpack.c.l.b16 %v45
  %v96 = vunpack.c.l.b16 %v46
  %v97 = vunpack.c.l.b16 %v47
  %v98 = vunpack.c.l.b16 %v48
  %v99 = vpack.c.b16 %v91, %v90
  %v100 = vpack.c.b16 %v93, %v92
  %v101 = vpack.c.b16 %v95, %v94
  %v102 = vpack.c.b16 %v97, %v96
  %v103 = vpack.c.b16 %v98, %v98
  %vm108 = vcmask 588800
  %v110 = vsel %vm108, %v76, 0
  %v113 = vsel %vm108, %v77, 0
  %v116 = vsel %vm108, %v78, 0
  %v119 = vsel %vm108, %v79, 0
  %v122 = vsel %vm108, %v80, 0
  %vm124 = vcmask 1043456
  %v126 = vsel %vm124, %v103, 0
  %128 = vmatprep.subr.bf16.mxu0 0
  %129 = vmatpush1.bf16.msra.mxu0 %v99
  %130 = vmatprep.subr.bf16.mxu0 0
  %131 = vmatpush1.bf16.msra.mxu0 %v100
  %132 = vmatprep.subr.bf16.mxu0 0
  %133 = vmatpush1.bf16.msra.mxu0 %v101
  %134 = vmatprep.subr.bf16.mxu0 0
  %135 = vmatpush1.bf16.msra.mxu0 %v102
  %136 = vmatprep.subr.bf16.mxu0 0
  %137 = vmatpush1.bf16.msra.mxu0 %v126
  %138 = vmatprep.subr.bf16.mxu0 0
  %139 = vmatpush1.bf16.msra.mxu0 0
  %140 = vmatprep.subr.bf16.mxu0 0
  %141 = vmatpush1.bf16.msra.mxu0 0
  %142 = vmatprep.subr.bf16.mxu0 0
  %143 = vmatpush1.bf16.msra.mxu0 0
  %144 = vmatprep.subr.bf16.mxu0 0
  %145 = vmatpush1.bf16.msra.mxu0 0
  %146 = vmatprep.subr.bf16.mxu0 0
  %147 = vmatpush1.bf16.msra.mxu0 0
  %148 = vmatprep.subr.bf16.mxu0 0
  %149 = vmatpush1.bf16.msra.mxu0 0
  %150 = vmatprep.subr.bf16.mxu0 0
  %151 = vmatpush1.bf16.msra.mxu0 0
  %152 = vmatprep.subr.bf16.mxu0 0
  %153 = vmatpush1.bf16.msra.mxu0 0
  %154 = vmatprep.subr.bf16.mxu0 0
  %155 = vmatpush1.bf16.msra.mxu0 0
  %156 = vmatprep.subr.bf16.mxu0 0
  %157 = vmatpush1.bf16.msra.mxu0 0
  %158 = vmatprep.subr.bf16.mxu0 0
  %159 = vmatpush1.bf16.msra.mxu0 0
  %160 = vmatprep.mubr.bf16.mxu0 0
  %161 = vmatmul.mubr.bf16.gmra.mrb[0].mxu0 %v110
  %v162 = vpop.f32.mrb[0].mxu0
  %v163 = vadd.f32 %v54, %v162
  %v164 = vpop.f32.mrb[0].mxu0
  %v165 = vpop.f32.mrb[0].mxu0
  %v166 = vadd.f32 %v54, %v165
  %v167 = vpop.f32.mrb[0].mxu0
  %168 = vmatprep.mubr.bf16.mxu0 0
  %169 = vmatmul.mubr.bf16.gmra.mrb[0].mxu0 %v113
  %v170 = vpop.f32.mrb[0].mxu0
  %v171 = vadd.f32 %v54, %v170
  %v172 = vpop.f32.mrb[0].mxu0
  %v173 = vpop.f32.mrb[0].mxu0
  %v174 = vadd.f32 %v54, %v173
  %v175 = vpop.f32.mrb[0].mxu0
  %176 = vmatprep.mubr.bf16.mxu0 0
  %177 = vmatmul.mubr.bf16.gmra.mrb[0].mxu0 %v116
  %v178 = vpop.f32.mrb[0].mxu0
  %v179 = vadd.f32 %v54, %v178
  %v180 = vpop.f32.mrb[0].mxu0
  %v181 = vpop.f32.mrb[0].mxu0
  %v182 = vadd.f32 %v54, %v181
  %v183 = vpop.f32.mrb[0].mxu0
  %184 = vmatprep.mubr.bf16.mxu0 0
  %185 = vmatmul.mubr.bf16.gmra.mrb[0].mxu0 %v119
  %v186 = vpop.f32.mrb[0].mxu0
  %v187 = vadd.f32 %v54, %v186
  %v188 = vpop.f32.mrb[0].mxu0
  %v189 = vpop.f32.mrb[0].mxu0
  %v190 = vadd.f32 %v54, %v189
  %v191 = vpop.f32.mrb[0].mxu0
  %192 = vmatprep.mubr.bf16.mxu0 0
  %193 = vmatmul.mubr.bf16.gmra.mrb[0].mxu0 %v122
  %v194 = vpop.f32.mrb[0].mxu0
  %v195 = vadd.f32 %v54, %v194
  %v196 = vpop.f32.mrb[0].mxu0
  %v197 = vpop.f32.mrb[0].mxu0
  %v198 = vadd.f32 %v54, %v197
  %v199 = vpop.f32.mrb[0].mxu0
  %200 = vdwg.mxu0
  %v201 = vmax.f32 %v163, 0.0
  %v202 = vmax.f32 %v166, 0.0
  %v203 = vmax.f32 %v171, 0.0
  %v204 = vmax.f32 %v174, 0.0
  %v205 = vmax.f32 %v179, 0.0
  %v206 = vmax.f32 %v182, 0.0
  %v207 = vmax.f32 %v187, 0.0
  %v208 = vmax.f32 %v190, 0.0
  %v209 = vmax.f32 %v195, 0.0
  %v210 = vmax.f32 %v198, 0.0
  %v211 = vld [vmem:[%s3] sm:$0xff]
  %v212 = vld [vmem:[%s3 + $0x8] sm:$0xff]
  %v213 = vld [vmem:[%s3 + $0x10] sm:$0xff]
  %v214 = vld [vmem:[%s3 + $0x18] sm:$0xff]
  %v215 = vld [vmem:[%s3 + $0x20] sm:$0xff]
  %v216 = vld [vmem:[%s3 + $0x28] sm:$0xff]
  %v217 = vld [vmem:[%s3 + $0x30] sm:$0xff]
  %v218 = vld [vmem:[%s3 + $0x38] sm:$0xff]
  %v219 = vld [vmem:[%s3 + $0x40] sm:$0xff]
  %v220 = vld [vmem:[%s3 + $0x48] sm:$0xff]
  %222 = vset.pattern.permute.xlu0 0
  %223 = vperm.xlu0 %222, %v211
  %v224 = vpop.permute.xlu0 %223
  %227 = vset.pattern.permute.xlu0 0
  %228 = vperm.xlu0 %227, %v212
  %v229 = vpop.permute.xlu0 %228
  %232 = vset.pattern.permute.xlu0 0
  %233 = vperm.xlu0 %232, %v213
  %v234 = vpop.permute.xlu0 %233
  %237 = vset.pattern.permute.xlu0 0
  %238 = vperm.xlu0 %237, %v214
  %v239 = vpop.permute.xlu0 %238
  %242 = vset.pattern.permute.xlu0 0
  %243 = vperm.xlu0 %242, %v215
  %v244 = vpop.permute.xlu0 %243
  %247 = vset.pattern.permute.xlu0 0
  %248 = vperm.xlu0 %247, %v216
  %v249 = vpop.permute.xlu0 %248
  %252 = vset.pattern.permute.xlu0 0
  %253 = vperm.xlu0 %252, %v217
  %v254 = vpop.permute.xlu0 %253
  %257 = vset.pattern.permute.xlu0 0
  %258 = vperm.xlu0 %257, %v218
  %v259 = vpop.permute.xlu0 %258
  %262 = vset.pattern.permute.xlu0 0
  %263 = vperm.xlu0 %262, %v219
  %v264 = vpop.permute.xlu0 %263
  %267 = vset.pattern.permute.xlu0 0
  %268 = vperm.xlu0 %267, %v220
  %v269 = vpop.permute.xlu0 %268
  %v271 = vmul.f32 %v201, %v224
  %v272 = vmul.f32 %v202, %v229
  %v273 = vmul.f32 %v203, %v234
  %v274 = vmul.f32 %v204, %v239
  %v275 = vmul.f32 %v205, %v244
  %v276 = vmul.f32 %v206, %v249
  %v277 = vmul.f32 %v207, %v254
  %v278 = vmul.f32 %v208, %v259
  %v279 = vmul.f32 %v209, %v264
  %v280 = vmul.f32 %v210, %v269
  %v281 = vpack.c.bf16 %v272, %v271
  %v282 = vpack.c.bf16 %v274, %v273
  %v283 = vpack.c.bf16 %v276, %v275
  %v284 = vpack.c.bf16 %v278, %v277
  %v285 = vld [vmem:[%s4] sm:$0xf]
  %v286 = vld [vmem:[%s4 + $0x4] sm:$0xf]
  %v287 = vpack.c.bf16 %v279, %v279
  %s288 = scalar_lea.vmem %s4, 8
  %v289 = vld [vmem:[%s288] sm:$0xf]
  %v290 = vld [vmem:[%s288 + $0x4] sm:$0xf]
  %vm291 = vsmask.f32 7424
  %v293 = vshrl.u32 %v281, 16
  %v295 = vshll.u32 %v281, 16
  %v297 = vrot.slane %v295, 1
  %v298 = vor.u32 %v293, %v297
  %v300 = vshll.u32 %v282, 16
  %v302 = vrot.slane %v300, 1
  %v303 = vsel %vm291, %v298, %v302
  %v304 = vshrl.u32 %v282, 16
  %v306 = vor.u32 %v304, %v302
  %v308 = vshll.u32 %v283, 16
  %v310 = vrot.slane %v308, 1
  %v311 = vsel %vm291, %v306, %v310
  %v312 = vshrl.u32 %v283, 16
  %v314 = vor.u32 %v312, %v310
  %v316 = vshll.u32 %v284, 16
  %v318 = vrot.slane %v316, 1
  %v319 = vsel %vm291, %v314, %v318
  %v320 = vshrl.u32 %v284, 16
  %v322 = vor.u32 %v320, %v318
  %v324 = vshll.u32 %v287, 16
  %v326 = vrot.slane %v324, 1
  %v327 = vsel %vm291, %v322, %v326
  %v330 = vunpack.c.l.b16 %v289
  %v331 = vunpack.c.l.b16 %v290
  %v332 = vpack.c.b16 %v331, %v330
  %vm334 = vcmask 130048
  %v336 = vsel %vm334, %v303, 0
  %v339 = vsel %vm334, %v311, 0
  %v342 = vsel %vm334, %v319, 0
  %v345 = vsel %vm334, %v327, 0
  %347 = vmatprep.subr.bf16.mxu0 0
  %348 = vmatpush1.bf16.msra.mxu0 %v332
  %349 = vmatprep.subr.bf16.mxu0 0
  %350 = vmatpush1.bf16.msra.mxu0 0
  %351 = vmatprep.subr.bf16.mxu0 0
  %352 = vmatpush1.bf16.msra.mxu0 0
  %353 = vmatprep.subr.bf16.mxu0 0
  %354 = vmatpush1.bf16.msra.mxu0 0
  %355 = vmatprep.subr.bf16.mxu0 0
  %356 = vmatpush1.bf16.msra.mxu0 0
  %357 = vmatprep.subr.bf16.mxu0 0
  %358 = vmatpush1.bf16.msra.mxu0 0
  %359 = vmatprep.subr.bf16.mxu0 0
  %360 = vmatpush1.bf16.msra.mxu0 0
  %361 = vmatprep.subr.bf16.mxu0 0
  %362 = vmatpush1.bf16.msra.mxu0 0
  %363 = vmatprep.subr.bf16.mxu0 0
  %364 = vmatpush1.bf16.msra.mxu0 0
  %365 = vmatprep.subr.bf16.mxu0 0
  %366 = vmatpush1.bf16.msra.mxu0 0
  %367 = vmatprep.subr.bf16.mxu0 0
  %368 = vmatpush1.bf16.msra.mxu0 0
  %369 = vmatprep.subr.bf16.mxu0 0
  %370 = vmatpush1.bf16.msra.mxu0 0
  %371 = vmatprep.subr.bf16.mxu0 0
  %372 = vmatpush1.bf16.msra.mxu0 0
  %373 = vmatprep.subr.bf16.mxu0 0
  %374 = vmatpush1.bf16.msra.mxu0 0
  %375 = vmatprep.subr.bf16.mxu0 0
  %376 = vmatpush1.bf16.msra.mxu0 0
  %377 = vmatprep.subr.bf16.mxu0 0
  %378 = vmatpush1.bf16.msra.mxu0 0
  %379 = vmatprep.mubr.bf16.mxu0 0
  %380 = vmatmul.mubr.bf16.gmra.mrb[0].mxu0 %v336
  %v381 = vpop.f32.mrb[0].mxu0
  %v382 = vadd.f32 0.0, %v381
  %v383 = vpop.f32.mrb[0].mxu0
  %v384 = vpop.f32.mrb[0].mxu0
  %v385 = vadd.f32 0.0, %v384
  %v386 = vpop.f32.mrb[0].mxu0
  %387 = vmatprep.mubr.bf16.mxu0 0
  %388 = vmatmul.mubr.bf16.gmra.mrb[0].mxu0 %v339
  %v389 = vpop.f32.mrb[0].mxu0
  %v390 = vadd.f32 0.0, %v389
  %v391 = vpop.f32.mrb[0].mxu0
  %v392 = vpop.f32.mrb[0].mxu0
  %v393 = vadd.f32 0.0, %v392
  %v394 = vpop.f32.mrb[0].mxu0
  %395 = vmatprep.mubr.bf16.mxu0 0
  %396 = vmatmul.mubr.bf16.gmra.mrb[0].mxu0 %v342
  %v397 = vpop.f32.mrb[0].mxu0
  %v398 = vadd.f32 0.0, %v397
  %v399 = vpop.f32.mrb[0].mxu0
  %v400 = vpop.f32.mrb[0].mxu0
  %v401 = vadd.f32 0.0, %v400
  %v402 = vpop.f32.mrb[0].mxu0
  %403 = vmatprep.mubr.bf16.mxu0 0
  %404 = vmatmul.mubr.bf16.gmra.mrb[0].mxu0 %v345
  %v405 = vpop.f32.mrb[0].mxu0
  %v406 = vadd.f32 0.0, %v405
  %v407 = vpop.f32.mrb[0].mxu0
  %v408 = vpop.f32.mrb[0].mxu0
  %v409 = vadd.f32 0.0, %v408
  %v410 = vpop.f32.mrb[0].mxu0
  %411 = vdwg.mxu0
  %v414 = vunpack.c.l.b16 %v285
  %v415 = vunpack.c.l.b16 %v286
  %v416 = vpack.c.b16 %v415, %v414
  %v418 = vsel %vm334, %v281, 0
  %v420 = vsel %vm334, %v282, 0
  %v422 = vsel %vm334, %v283, 0
  %v424 = vsel %vm334, %v284, 0
  %426 = vmatprep.subr.bf16.mxu0 0
  %427 = vmatpush1.bf16.msra.mxu0 %v416
  %428 = vmatprep.subr.bf16.mxu0 0
  %429 = vmatpush1.bf16.msra.mxu0 0
  %430 = vmatprep.subr.bf16.mxu0 0
  %431 = vmatpush1.bf16.msra.mxu0 0
  %432 = vmatprep.subr.bf16.mxu0 0
  %433 = vmatpush1.bf16.msra.mxu0 0
  %434 = vmatprep.subr.bf16.mxu0 0
  %435 = vmatpush1.bf16.msra.mxu0 0
  %436 = vmatprep.subr.bf16.mxu0 0
  %437 = vmatpush1.bf16.msra.mxu0 0
  %438 = vmatprep.subr.bf16.mxu0 0
  %439 = vmatpush1.bf16.msra.mxu0 0
  %440 = vmatprep.subr.bf16.mxu0 0
  %441 = vmatpush1.bf16.msra.mxu0 0
  %442 = vmatprep.subr.bf16.mxu0 0
  %443 = vmatpush1.bf16.msra.mxu0 0
  %444 = vmatprep.subr.bf16.mxu0 0
  %445 = vmatpush1.bf16.msra.mxu0 0
  %446 = vmatprep.subr.bf16.mxu0 0
  %447 = vmatpush1.bf16.msra.mxu0 0
  %448 = vmatprep.subr.bf16.mxu0 0
  %449 = vmatpush1.bf16.msra.mxu0 0
  %450 = vmatprep.subr.bf16.mxu0 0
  %451 = vmatpush1.bf16.msra.mxu0 0
  %452 = vmatprep.subr.bf16.mxu0 0
  %453 = vmatpush1.bf16.msra.mxu0 0
  %454 = vmatprep.subr.bf16.mxu0 0
  %455 = vmatpush1.bf16.msra.mxu0 0
  %456 = vmatprep.subr.bf16.mxu0 0
  %457 = vmatpush1.bf16.msra.mxu0 0
  %458 = vmatprep.mubr.bf16.mxu0 0
  %459 = vmatmul.mubr.bf16.gmra.mrb[0].mxu0 %v418
  %v460 = vpop.f32.mrb[0].mxu0
  %v461 = vadd.f32 %v382, %v460
  %v462 = vpop.f32.mrb[0].mxu0
  %v463 = vpop.f32.mrb[0].mxu0
  %v464 = vadd.f32 %v385, %v463
  %v465 = vpop.f32.mrb[0].mxu0
  %466 = vmatprep.mubr.bf16.mxu0 0
  %467 = vmatmul.mubr.bf16.gmra.mrb[0].mxu0 %v420
  %v468 = vpop.f32.mrb[0].mxu0
  %v469 = vadd.f32 %v390, %v468
  %v470 = vpop.f32.mrb[0].mxu0
  %v471 = vpop.f32.mrb[0].mxu0
  %v472 = vadd.f32 %v393, %v471
  %v473 = vpop.f32.mrb[0].mxu0
  %474 = vmatprep.mubr.bf16.mxu0 0
  %475 = vmatmul.mubr.bf16.gmra.mrb[0].mxu0 %v422
  %v476 = vpop.f32.mrb[0].mxu0
  %v477 = vadd.f32 %v398, %v476
  %v478 = vpop.f32.mrb[0].mxu0
  %v479 = vpop.f32.mrb[0].mxu0
  %v480 = vadd.f32 %v401, %v479
  %v481 = vpop.f32.mrb[0].mxu0
  %482 = vmatprep.mubr.bf16.mxu0 0
  %483 = vmatmul.mubr.bf16.gmra.mrb[0].mxu0 %v424
  %v484 = vpop.f32.mrb[0].mxu0
  %v485 = vadd.f32 %v406, %v484
  %v486 = vpop.f32.mrb[0].mxu0
  %v487 = vpop.f32.mrb[0].mxu0
  %v488 = vadd.f32 %v409, %v487
  %v489 = vpop.f32.mrb[0].mxu0
  %490 = vdwg.mxu0
  %s491 = scalar_lea.vmem %s4, 16
  %v492 = vld [vmem:[%s491] sm:$0xf]
  %v493 = vld [vmem:[%s491 + $0x4] sm:$0xf]
  %vm499 = vcmask 1046528
  %v500 = vrot.slane %v281, 1
  %v501 = vrot.slane %v282, 1
  %v502 = vsel %vm499, %v500, %v501
  %v503 = vrot.slane %v283, 1
  %v504 = vsel %vm499, %v501, %v503
  %v505 = vrot.slane %v284, 1
  %v506 = vsel %vm499, %v503, %v505
  %v507 = vrot.slane %v287, 1
  %v508 = vsel %vm499, %v505, %v507
  %v511 = vunpack.c.l.b16 %v492
  %v512 = vunpack.c.l.b16 %v493
  %v513 = vpack.c.b16 %v512, %v511
  %v516 = vsel %vm334, %v502, 0
  %v519 = vsel %vm334, %v504, 0
  %v522 = vsel %vm334, %v506, 0
  %v525 = vsel %vm334, %v508, 0
  %527 = vmatprep.subr.bf16.mxu0 0
  %528 = vmatpush1.bf16.msra.mxu0 %v513
  %529 = vmatprep.subr.bf16.mxu0 0
  %530 = vmatpush1.bf16.msra.mxu0 0
  %531 = vmatprep.subr.bf16.mxu0 0
  %532 = vmatpush1.bf16.msra.mxu0 0
  %533 = vmatprep.subr.bf16.mxu0 0
  %534 = vmatpush1.bf16.msra.mxu0 0
  %535 = vmatprep.subr.bf16.mxu0 0
  %536 = vmatpush1.bf16.msra.mxu0 0
  %537 = vmatprep.subr.bf16.mxu0 0
  %538 = vmatpush1.bf16.msra.mxu0 0
  %539 = vmatprep.subr.bf16.mxu0 0
  %540 = vmatpush1.bf16.msra.mxu0 0
  %541 = vmatprep.subr.bf16.mxu0 0
  %542 = vmatpush1.bf16.msra.mxu0 0
  %543 = vmatprep.subr.bf16.mxu0 0
  %544 = vmatpush1.bf16.msra.mxu0 0
  %545 = vmatprep.subr.bf16.mxu0 0
  %546 = vmatpush1.bf16.msra.mxu0 0
  %547 = vmatprep.subr.bf16.mxu0 0
  %548 = vmatpush1.bf16.msra.mxu0 0
  %549 = vmatprep.subr.bf16.mxu0 0
  %550 = vmatpush1.bf16.msra.mxu0 0
  %551 = vmatprep.subr.bf16.mxu0 0
  %552 = vmatpush1.bf16.msra.mxu0 0
  %553 = vmatprep.subr.bf16.mxu0 0
  %554 = vmatpush1.bf16.msra.mxu0 0
  %555 = vmatprep.subr.bf16.mxu0 0
  %556 = vmatpush1.bf16.msra.mxu0 0
  %557 = vmatprep.subr.bf16.mxu0 0
  %558 = vmatpush1.bf16.msra.mxu0 0
  %559 = vmatprep.mubr.bf16.mxu0 0
  %560 = vmatmul.mubr.bf16.gmra.mrb[0].mxu0 %v516
  %v561 = vpop.f32.mrb[0].mxu0
  %v562 = vadd.f32 0.0, %v561
  %v563 = vpop.f32.mrb[0].mxu0
  %v564 = vpop.f32.mrb[0].mxu0
  %v565 = vadd.f32 0.0, %v564
  %v566 = vpop.f32.mrb[0].mxu0
  %567 = vmatprep.mubr.bf16.mxu0 0
  %568 = vmatmul.mubr.bf16.gmra.mrb[0].mxu0 %v519
  %v569 = vpop.f32.mrb[0].mxu0
  %v570 = vadd.f32 0.0, %v569
  %v571 = vpop.f32.mrb[0].mxu0
  %v572 = vpop.f32.mrb[0].mxu0
  %v573 = vadd.f32 0.0, %v572
  %v574 = vpop.f32.mrb[0].mxu0
  %575 = vmatprep.mubr.bf16.mxu0 0
  %576 = vmatmul.mubr.bf16.gmra.mrb[0].mxu0 %v522
  %v577 = vpop.f32.mrb[0].mxu0
  %v578 = vadd.f32 0.0, %v577
  %v579 = vpop.f32.mrb[0].mxu0
  %v580 = vpop.f32.mrb[0].mxu0
  %v581 = vadd.f32 0.0, %v580
  %v582 = vpop.f32.mrb[0].mxu0
  %583 = vmatprep.mubr.bf16.mxu0 0
  %584 = vmatmul.mubr.bf16.gmra.mrb[0].mxu0 %v525
  %v585 = vpop.f32.mrb[0].mxu0
  %v586 = vadd.f32 0.0, %v585
  %v587 = vpop.f32.mrb[0].mxu0
  %v588 = vpop.f32.mrb[0].mxu0
  %v589 = vadd.f32 0.0, %v588
  %v590 = vpop.f32.mrb[0].mxu0
  %591 = vdwg.mxu0
  %v592 = vadd.f32 %v461, %v562
  %v593 = vadd.f32 %v464, %v565
  %v594 = vadd.f32 %v469, %v570
  %v595 = vadd.f32 %v472, %v573
  %v596 = vadd.f32 %v477, %v578
  %v597 = vadd.f32 %v480, %v581
  %v598 = vadd.f32 %v485, %v586
  %v599 = vadd.f32 %v488, %v589
  %s600 = scalar_lea.vmem %s4, 24
  %v601 = vld [vmem:[%s600] sm:$0xf]
  %v602 = vld [vmem:[%s600 + $0x4] sm:$0xf]
  %vm603 = vcmask 1044480
  %v604 = vrot.slane %v281, 3
  %v605 = vrot.slane %v282, 3
  %v606 = vsel %vm603, %v604, %v605
  %v607 = vrot.slane %v283, 3
  %v608 = vsel %vm603, %v605, %v607
  %v609 = vrot.slane %v284, 3
  %v610 = vsel %vm603, %v607, %v609
  %v611 = vrot.slane %v287, 3
  %v612 = vsel %vm603, %v609, %v611
  %v615 = vunpack.c.l.b16 %v601
  %v616 = vunpack.c.l.b16 %v602
  %v617 = vpack.c.b16 %v616, %v615
  %v620 = vsel %vm334, %v606, 0
  %v623 = vsel %vm334, %v608, 0
  %v626 = vsel %vm334, %v610, 0
  %v629 = vsel %vm334, %v612, 0
  %631 = vmatprep.subr.bf16.mxu0 0
  %632 = vmatpush1.bf16.msra.mxu0 %v617
  %633 = vmatprep.subr.bf16.mxu0 0
  %634 = vmatpush1.bf16.msra.mxu0 0
  %635 = vmatprep.subr.bf16.mxu0 0
  %636 = vmatpush1.bf16.msra.mxu0 0
  %637 = vmatprep.subr.bf16.mxu0 0
  %638 = vmatpush1.bf16.msra.mxu0 0
  %639 = vmatprep.subr.bf16.mxu0 0
  %640 = vmatpush1.bf16.msra.mxu0 0
  %641 = vmatprep.subr.bf16.mxu0 0
  %642 = vmatpush1.bf16.msra.mxu0 0
  %643 = vmatprep.subr.bf16.mxu0 0
  %644 = vmatpush1.bf16.msra.mxu0 0
  %645 = vmatprep.subr.bf16.mxu0 0
  %646 = vmatpush1.bf16.msra.mxu0 0
  %647 = vmatprep.subr.bf16.mxu0 0
  %648 = vmatpush1.bf16.msra.mxu0 0
  %649 = vmatprep.subr.bf16.mxu0 0
  %650 = vmatpush1.bf16.msra.mxu0 0
  %651 = vmatprep.subr.bf16.mxu0 0
  %652 = vmatpush1.bf16.msra.mxu0 0
  %653 = vmatprep.subr.bf16.mxu0 0
  %654 = vmatpush1.bf16.msra.mxu0 0
  %655 = vmatprep.subr.bf16.mxu0 0
  %656 = vmatpush1.bf16.msra.mxu0 0
  %657 = vmatprep.subr.bf16.mxu0 0
  %658 = vmatpush1.bf16.msra.mxu0 0
  %659 = vmatprep.subr.bf16.mxu0 0
  %660 = vmatpush1.bf16.msra.mxu0 0
  %661 = vmatprep.subr.bf16.mxu0 0
  %662 = vmatpush1.bf16.msra.mxu0 0
  %663 = vmatprep.mubr.bf16.mxu0 0
  %664 = vmatmul.mubr.bf16.gmra.mrb[0].mxu0 %v620
  %v665 = vpop.f32.mrb[0].mxu0
  %v666 = vadd.f32 0.0, %v665
  %v667 = vpop.f32.mrb[0].mxu0
  %v668 = vpop.f32.mrb[0].mxu0
  %v669 = vadd.f32 0.0, %v668
  %v670 = vpop.f32.mrb[0].mxu0
  %671 = vmatprep.mubr.bf16.mxu0 0
  %672 = vmatmul.mubr.bf16.gmra.mrb[0].mxu0 %v623
  %v673 = vpop.f32.mrb[0].mxu0
  %v674 = vadd.f32 0.0, %v673
  %v675 = vpop.f32.mrb[0].mxu0
  %v676 = vpop.f32.mrb[0].mxu0
  %v677 = vadd.f32 0.0, %v676
  %v678 = vpop.f32.mrb[0].mxu0
  %679 = vmatprep.mubr.bf16.mxu0 0
  %680 = vmatmul.mubr.bf16.gmra.mrb[0].mxu0 %v626
  %v681 = vpop.f32.mrb[0].mxu0
  %v682 = vadd.f32 0.0, %v681
  %v683 = vpop.f32.mrb[0].mxu0
  %v684 = vpop.f32.mrb[0].mxu0
  %v685 = vadd.f32 0.0, %v684
  %v686 = vpop.f32.mrb[0].mxu0
  %687 = vmatprep.mubr.bf16.mxu0 0
  %688 = vmatmul.mubr.bf16.gmra.mrb[0].mxu0 %v629
  %v689 = vpop.f32.mrb[0].mxu0
  %v690 = vadd.f32 0.0, %v689
  %v691 = vpop.f32.mrb[0].mxu0
  %v692 = vpop.f32.mrb[0].mxu0
  %v693 = vadd.f32 0.0, %v692
  %v694 = vpop.f32.mrb[0].mxu0
  %695 = vdwg.mxu0
  %v696 = vadd.f32 %v592, %v666
  %v697 = vadd.f32 %v593, %v669
  %v698 = vadd.f32 %v594, %v674
  %v699 = vadd.f32 %v595, %v677
  %v700 = vadd.f32 %v596, %v682
  %v701 = vadd.f32 %v597, %v685
  %v702 = vadd.f32 %v598, %v690
  %v703 = vadd.f32 %v599, %v693
  %s704 = scalar_lea.vmem %s4, 32
  %v705 = vld [vmem:[%s704] sm:$0xf]
  %v706 = vld [vmem:[%s704 + $0x4] sm:$0xf]
  %vm707 = vsmask.f32 4352
  %v708 = vrot.slane %v293, 3
  %v709 = vrot.slane %v295, 4
  %v710 = vor.u32 %v708, %v709
  %v711 = vrot.slane %v304, 3
  %v712 = vrot.slane %v300, 4
  %v713 = vor.u32 %v711, %v712
  %v714 = vsel %vm707, %v710, %v713
  %v715 = vrot.slane %v312, 3
  %v716 = vrot.slane %v308, 4
  %v717 = vor.u32 %v715, %v716
  %v718 = vsel %vm707, %v713, %v717
  %v719 = vrot.slane %v320, 3
  %v720 = vrot.slane %v316, 4
  %v721 = vor.u32 %v719, %v720
  %v722 = vsel %vm707, %v717, %v721
  %v723 = vshrl.u32 %v287, 16
  %v725 = vrot.slane %v723, 3
  %v726 = vrot.slane %v324, 4
  %v727 = vor.u32 %v725, %v726
  %v728 = vsel %vm707, %v721, %v727
  %v731 = vunpack.c.l.b16 %v705
  %v732 = vunpack.c.l.b16 %v706
  %v733 = vpack.c.b16 %v732, %v731
  %v736 = vsel %vm334, %v714, 0
  %v739 = vsel %vm334, %v718, 0
  %v742 = vsel %vm334, %v722, 0
  %v745 = vsel %vm334, %v728, 0
  %747 = vmatprep.subr.bf16.mxu0 0
  %748 = vmatpush1.bf16.msra.mxu0 %v733
  %749 = vmatprep.subr.bf16.mxu0 0
  %750 = vmatpush1.bf16.msra.mxu0 0
  %751 = vmatprep.subr.bf16.mxu0 0
  %752 = vmatpush1.bf16.msra.mxu0 0
  %753 = vmatprep.subr.bf16.mxu0 0
  %754 = vmatpush1.bf16.msra.mxu0 0
  %755 = vmatprep.subr.bf16.mxu0 0
  %756 = vmatpush1.bf16.msra.mxu0 0
  %757 = vmatprep.subr.bf16.mxu0 0
  %758 = vmatpush1.bf16.msra.mxu0 0
  %759 = vmatprep.subr.bf16.mxu0 0
  %760 = vmatpush1.bf16.msra.mxu0 0
  %761 = vmatprep.subr.bf16.mxu0 0
  %762 = vmatpush1.bf16.msra.mxu0 0
  %763 = vmatprep.subr.bf16.mxu0 0
  %764 = vmatpush1.bf16.msra.mxu0 0
  %765 = vmatprep.subr.bf16.mxu0 0
  %766 = vmatpush1.bf16.msra.mxu0 0
  %767 = vmatprep.subr.bf16.mxu0 0
  %768 = vmatpush1.bf16.msra.mxu0 0
  %769 = vmatprep.subr.bf16.mxu0 0
  %770 = vmatpush1.bf16.msra.mxu0 0
  %771 = vmatprep.subr.bf16.mxu0 0
  %772 = vmatpush1.bf16.msra.mxu0 0
  %773 = vmatprep.subr.bf16.mxu0 0
  %774 = vmatpush1.bf16.msra.mxu0 0
  %775 = vmatprep.subr.bf16.mxu0 0
  %776 = vmatpush1.bf16.msra.mxu0 0
  %777 = vmatprep.subr.bf16.mxu0 0
  %778 = vmatpush1.bf16.msra.mxu0 0
  %779 = vmatprep.mubr.bf16.mxu0 0
  %780 = vmatmul.mubr.bf16.gmra.mrb[0].mxu0 %v736
  %v781 = vpop.f32.mrb[0].mxu0
  %v782 = vadd.f32 0.0, %v781
  %v783 = vpop.f32.mrb[0].mxu0
  %v784 = vpop.f32.mrb[0].mxu0
  %v785 = vadd.f32 0.0, %v784
  %v786 = vpop.f32.mrb[0].mxu0
  %787 = vmatprep.mubr.bf16.mxu0 0
  %788 = vmatmul.mubr.bf16.gmra.mrb[0].mxu0 %v739
  %v789 = vpop.f32.mrb[0].mxu0
  %v790 = vadd.f32 0.0, %v789
  %v791 = vpop.f32.mrb[0].mxu0
  %v792 = vpop.f32.mrb[0].mxu0
  %v793 = vadd.f32 0.0, %v792
  %v794 = vpop.f32.mrb[0].mxu0
  %795 = vmatprep.mubr.bf16.mxu0 0
  %796 = vmatmul.mubr.bf16.gmra.mrb[0].mxu0 %v742
  %v797 = vpop.f32.mrb[0].mxu0
  %v798 = vadd.f32 0.0, %v797
  %v799 = vpop.f32.mrb[0].mxu0
  %v800 = vpop.f32.mrb[0].mxu0
  %v801 = vadd.f32 0.0, %v800
  %v802 = vpop.f32.mrb[0].mxu0
  %803 = vmatprep.mubr.bf16.mxu0 0
  %804 = vmatmul.mubr.bf16.gmra.mrb[0].mxu0 %v745
  %v805 = vpop.f32.mrb[0].mxu0
  %v806 = vadd.f32 0.0, %v805
  %v807 = vpop.f32.mrb[0].mxu0
  %v808 = vpop.f32.mrb[0].mxu0
  %v809 = vadd.f32 0.0, %v808
  %v810 = vpop.f32.mrb[0].mxu0
  %811 = vdwg.mxu0
  %v812 = vadd.f32 %v696, %v782
  %v813 = vadd.f32 %v697, %v785
  %v814 = vadd.f32 %v698, %v790
  %v815 = vadd.f32 %v699, %v793
  %v816 = vadd.f32 %v700, %v798
  %v817 = vadd.f32 %v701, %v801
  %v818 = vadd.f32 %v702, %v806
  %v819 = vadd.f32 %v703, %v809
  %v820 = vpack.c.bf16 %v273, %v272
  %v821 = vpack.c.bf16 %v275, %v274
  %v822 = vpack.c.bf16 %v277, %v276
  %v823 = vpack.c.bf16 %v279, %v278
  %s824 = scalar_lea.vmem %s4, 40
  %v825 = vld [vmem:[%s824] sm:$0xf]
  %v826 = vld [vmem:[%s824 + $0x4] sm:$0xf]
  %v829 = vunpack.c.l.b16 %v825
  %v830 = vunpack.c.l.b16 %v826
  %v831 = vpack.c.b16 %v830, %v829
  %v834 = vsel %vm334, %v820, 0
  %v837 = vsel %vm334, %v821, 0
  %v840 = vsel %vm334, %v822, 0
  %v843 = vsel %vm334, %v823, 0
  %845 = vmatprep.subr.bf16.mxu0 0
  %846 = vmatpush1.bf16.msra.mxu0 %v831
  %847 = vmatprep.subr.bf16.mxu0 0
  %848 = vmatpush1.bf16.msra.mxu0 0
  %849 = vmatprep.subr.bf16.mxu0 0
  %850 = vmatpush1.bf16.msra.mxu0 0
  %851 = vmatprep.subr.bf16.mxu0 0
  %852 = vmatpush1.bf16.msra.mxu0 0
  %853 = vmatprep.subr.bf16.mxu0 0
  %854 = vmatpush1.bf16.msra.mxu0 0
  %855 = vmatprep.subr.bf16.mxu0 0
  %856 = vmatpush1.bf16.msra.mxu0 0
  %857 = vmatprep.subr.bf16.mxu0 0
  %858 = vmatpush1.bf16.msra.mxu0 0
  %859 = vmatprep.subr.bf16.mxu0 0
  %860 = vmatpush1.bf16.msra.mxu0 0
  %861 = vmatprep.subr.bf16.mxu0 0
  %862 = vmatpush1.bf16.msra.mxu0 0
  %863 = vmatprep.subr.bf16.mxu0 0
  %864 = vmatpush1.bf16.msra.mxu0 0
  %865 = vmatprep.subr.bf16.mxu0 0
  %866 = vmatpush1.bf16.msra.mxu0 0
  %867 = vmatprep.subr.bf16.mxu0 0
  %868 = vmatpush1.bf16.msra.mxu0 0
  %869 = vmatprep.subr.bf16.mxu0 0
  %870 = vmatpush1.bf16.msra.mxu0 0
  %871 = vmatprep.subr.bf16.mxu0 0
  %872 = vmatpush1.bf16.msra.mxu0 0
  %873 = vmatprep.subr.bf16.mxu0 0
  %874 = vmatpush1.bf16.msra.mxu0 0
  %875 = vmatprep.subr.bf16.mxu0 0
  %876 = vmatpush1.bf16.msra.mxu0 0
  %877 = vmatprep.mubr.bf16.mxu0 0
  %878 = vmatmul.mubr.bf16.gmra.mrb[0].mxu0 %v834
  %v879 = vpop.f32.mrb[0].mxu0
  %v880 = vadd.f32 0.0, %v879
  %v881 = vpop.f32.mrb[0].mxu0
  %v882 = vpop.f32.mrb[0].mxu0
  %v883 = vadd.f32 0.0, %v882
  %v884 = vpop.f32.mrb[0].mxu0
  %885 = vmatprep.mubr.bf16.mxu0 0
  %886 = vmatmul.mubr.bf16.gmra.mrb[0].mxu0 %v837
  %v887 = vpop.f32.mrb[0].mxu0
  %v888 = vadd.f32 0.0, %v887
  %v889 = vpop.f32.mrb[0].mxu0
  %v890 = vpop.f32.mrb[0].mxu0
  %v891 = vadd.f32 0.0, %v890
  %v892 = vpop.f32.mrb[0].mxu0
  %893 = vmatprep.mubr.bf16.mxu0 0
  %894 = vmatmul.mubr.bf16.gmra.mrb[0].mxu0 %v840
  %v895 = vpop.f32.mrb[0].mxu0
  %v896 = vadd.f32 0.0, %v895
  %v897 = vpop.f32.mrb[0].mxu0
  %v898 = vpop.f32.mrb[0].mxu0
  %v899 = vadd.f32 0.0, %v898
  %v900 = vpop.f32.mrb[0].mxu0
  %901 = vmatprep.mubr.bf16.mxu0 0
  %902 = vmatmul.mubr.bf16.gmra.mrb[0].mxu0 %v843
  %v903 = vpop.f32.mrb[0].mxu0
  %v904 = vadd.f32 0.0, %v903
  %v905 = vpop.f32.mrb[0].mxu0
  %v906 = vpop.f32.mrb[0].mxu0
  %v907 = vadd.f32 0.0, %v906
  %v908 = vpop.f32.mrb[0].mxu0
  %909 = vdwg.mxu0
  %v910 = vadd.f32 %v812, %v880
  %v911 = vadd.f32 %v813, %v883
  %v912 = vadd.f32 %v814, %v888
  %v913 = vadd.f32 %v815, %v891
  %v914 = vadd.f32 %v816, %v896
  %v915 = vadd.f32 %v817, %v899
  %v916 = vadd.f32 %v818, %v904
  %v917 = vadd.f32 %v819, %v907
  %v918 = vpack.c.bf16 %v280, %v280
  %s919 = scalar_lea.vmem %s4, 48
  %v920 = vld [vmem:[%s919] sm:$0xf]
  %v921 = vld [vmem:[%s919 + $0x4] sm:$0xf]
  %vm927 = vcmask 1045504
  %v928 = vrot.slane %v820, 2
  %v929 = vrot.slane %v821, 2
  %v930 = vsel %vm927, %v928, %v929
  %v931 = vrot.slane %v822, 2
  %v932 = vsel %vm927, %v929, %v931
  %v933 = vrot.slane %v823, 2
  %v934 = vsel %vm927, %v931, %v933
  %v935 = vrot.slane %v918, 2
  %v936 = vsel %vm927, %v933, %v935
  %v939 = vunpack.c.l.b16 %v920
  %v940 = vunpack.c.l.b16 %v921
  %v941 = vpack.c.b16 %v940, %v939
  %v944 = vsel %vm334, %v930, 0
  %v947 = vsel %vm334, %v932, 0
  %v950 = vsel %vm334, %v934, 0
  %v953 = vsel %vm334, %v936, 0
  %955 = vmatprep.subr.bf16.mxu0 0
  %956 = vmatpush1.bf16.msra.mxu0 %v941
  %957 = vmatprep.subr.bf16.mxu0 0
  %958 = vmatpush1.bf16.msra.mxu0 0
  %959 = vmatprep.subr.bf16.mxu0 0
  %960 = vmatpush1.bf16.msra.mxu0 0
  %961 = vmatprep.subr.bf16.mxu0 0
  %962 = vmatpush1.bf16.msra.mxu0 0
  %963 = vmatprep.subr.bf16.mxu0 0
  %964 = vmatpush1.bf16.msra.mxu0 0
  %965 = vmatprep.subr.bf16.mxu0 0
  %966 = vmatpush1.bf16.msra.mxu0 0
  %967 = vmatprep.subr.bf16.mxu0 0
  %968 = vmatpush1.bf16.msra.mxu0 0
  %969 = vmatprep.subr.bf16.mxu0 0
  %970 = vmatpush1.bf16.msra.mxu0 0
  %971 = vmatprep.subr.bf16.mxu0 0
  %972 = vmatpush1.bf16.msra.mxu0 0
  %973 = vmatprep.subr.bf16.mxu0 0
  %974 = vmatpush1.bf16.msra.mxu0 0
  %975 = vmatprep.subr.bf16.mxu0 0
  %976 = vmatpush1.bf16.msra.mxu0 0
  %977 = vmatprep.subr.bf16.mxu0 0
  %978 = vmatpush1.bf16.msra.mxu0 0
  %979 = vmatprep.subr.bf16.mxu0 0
  %980 = vmatpush1.bf16.msra.mxu0 0
  %981 = vmatprep.subr.bf16.mxu0 0
  %982 = vmatpush1.bf16.msra.mxu0 0
  %983 = vmatprep.subr.bf16.mxu0 0
  %984 = vmatpush1.bf16.msra.mxu0 0
  %985 = vmatprep.subr.bf16.mxu0 0
  %986 = vmatpush1.bf16.msra.mxu0 0
  %987 = vmatprep.mubr.bf16.mxu0 0
  %988 = vmatmul.mubr.bf16.gmra.mrb[0].mxu0 %v944
  %v989 = vpop.f32.mrb[0].mxu0
  %v990 = vadd.f32 0.0, %v989
  %v991 = vpop.f32.mrb[0].mxu0
  %v992 = vpop.f32.mrb[0].mxu0
  %v993 = vadd.f32 0.0, %v992
  %v994 = vpop.f32.mrb[0].mxu0
  %995 = vmatprep.mubr.bf16.mxu0 0
  %996 = vmatmul.mubr.bf16.gmra.mrb[0].mxu0 %v947
  %v997 = vpop.f32.mrb[0].mxu0
  %v998 = vadd.f32 0.0, %v997
  %v999 = vpop.f32.mrb[0].mxu0
  %v1000 = vpop.f32.mrb[0].mxu0
  %v1001 = vadd.f32 0.0, %v1000
  %v1002 = vpop.f32.mrb[0].mxu0
  %1003 = vmatprep.mubr.bf16.mxu0 0
  %1004 = vmatmul.mubr.bf16.gmra.mrb[0].mxu0 %v950
  %v1005 = vpop.f32.mrb[0].mxu0
  %v1006 = vadd.f32 0.0, %v1005
  %v1007 = vpop.f32.mrb[0].mxu0
  %v1008 = vpop.f32.mrb[0].mxu0
  %v1009 = vadd.f32 0.0, %v1008
  %v1010 = vpop.f32.mrb[0].mxu0
  %1011 = vmatprep.mubr.bf16.mxu0 0
  %1012 = vmatmul.mubr.bf16.gmra.mrb[0].mxu0 %v953
  %v1013 = vpop.f32.mrb[0].mxu0
  %v1014 = vadd.f32 0.0, %v1013
  %v1015 = vpop.f32.mrb[0].mxu0
  %v1016 = vpop.f32.mrb[0].mxu0
  %v1017 = vadd.f32 0.0, %v1016
  %v1018 = vpop.f32.mrb[0].mxu0
  %1019 = vdwg.mxu0
  %v1020 = vadd.f32 %v910, %v990
  %v1021 = vadd.f32 %v911, %v993
  %v1022 = vadd.f32 %v912, %v998
  %v1023 = vadd.f32 %v913, %v1001
  %v1024 = vadd.f32 %v914, %v1006
  %v1025 = vadd.f32 %v915, %v1009
  %v1026 = vadd.f32 %v916, %v1014
  %v1027 = vadd.f32 %v917, %v1017
  %s1028 = scalar_lea.vmem %s4, 56
  %v1029 = vld [vmem:[%s1028] sm:$0xf]
  %v1030 = vld [vmem:[%s1028 + $0x4] sm:$0xf]
  %vm1031 = vsmask.f32 5376
  %v1032 = vshrl.u32 %v820, 16
  %v1034 = vrot.slane %v1032, 2
  %v1035 = vshll.u32 %v820, 16
  %v1037 = vrot.slane %v1035, 3
  %v1038 = vor.u32 %v1034, %v1037
  %v1039 = vshrl.u32 %v821, 16
  %v1041 = vrot.slane %v1039, 2
  %v1042 = vshll.u32 %v821, 16
  %v1044 = vrot.slane %v1042, 3
  %v1045 = vor.u32 %v1041, %v1044
  %v1046 = vsel %vm1031, %v1038, %v1045
  %v1047 = vshrl.u32 %v822, 16
  %v1049 = vrot.slane %v1047, 2
  %v1050 = vshll.u32 %v822, 16
  %v1052 = vrot.slane %v1050, 3
  %v1053 = vor.u32 %v1049, %v1052
  %v1054 = vsel %vm1031, %v1045, %v1053
  %v1055 = vshrl.u32 %v823, 16
  %v1057 = vrot.slane %v1055, 2
  %v1058 = vshll.u32 %v823, 16
  %v1060 = vrot.slane %v1058, 3
  %v1061 = vor.u32 %v1057, %v1060
  %v1062 = vsel %vm1031, %v1053, %v1061
  %v1064 = vshrl.u32 %v918, 16
  %v1066 = vrot.slane %v1064, 2
  %v1067 = vshll.u32 %v918, 16
  %v1069 = vrot.slane %v1067, 3
  %v1070 = vor.u32 %v1066, %v1069
  %v1071 = vsel %vm1031, %v1061, %v1070
  %v1074 = vunpack.c.l.b16 %v1029
  %v1075 = vunpack.c.l.b16 %v1030
  %v1076 = vpack.c.b16 %v1075, %v1074
  %v1079 = vsel %vm334, %v1046, 0
  %v1082 = vsel %vm334, %v1054, 0
  %v1085 = vsel %vm334, %v1062, 0
  %v1088 = vsel %vm334, %v1071, 0
  %1090 = vmatprep.subr.bf16.mxu0 0
  %1091 = vmatpush1.bf16.msra.mxu0 %v1076
  %1092 = vmatprep.subr.bf16.mxu0 0
  %1093 = vmatpush1.bf16.msra.mxu0 0
  %1094 = vmatprep.subr.bf16.mxu0 0
  %1095 = vmatpush1.bf16.msra.mxu0 0
  %1096 = vmatprep.subr.bf16.mxu0 0
  %1097 = vmatpush1.bf16.msra.mxu0 0
  %1098 = vmatprep.subr.bf16.mxu0 0
  %1099 = vmatpush1.bf16.msra.mxu0 0
  %1100 = vmatprep.subr.bf16.mxu0 0
  %1101 = vmatpush1.bf16.msra.mxu0 0
  %1102 = vmatprep.subr.bf16.mxu0 0
  %1103 = vmatpush1.bf16.msra.mxu0 0
  %1104 = vmatprep.subr.bf16.mxu0 0
  %1105 = vmatpush1.bf16.msra.mxu0 0
  %1106 = vmatprep.subr.bf16.mxu0 0
  %1107 = vmatpush1.bf16.msra.mxu0 0
  %1108 = vmatprep.subr.bf16.mxu0 0
  %1109 = vmatpush1.bf16.msra.mxu0 0
  %1110 = vmatprep.subr.bf16.mxu0 0
  %1111 = vmatpush1.bf16.msra.mxu0 0
  %1112 = vmatprep.subr.bf16.mxu0 0
  %1113 = vmatpush1.bf16.msra.mxu0 0
  %1114 = vmatprep.subr.bf16.mxu0 0
  %1115 = vmatpush1.bf16.msra.mxu0 0
  %1116 = vmatprep.subr.bf16.mxu0 0
  %1117 = vmatpush1.bf16.msra.mxu0 0
  %1118 = vmatprep.subr.bf16.mxu0 0
  %1119 = vmatpush1.bf16.msra.mxu0 0
  %1120 = vmatprep.subr.bf16.mxu0 0
  %1121 = vmatpush1.bf16.msra.mxu0 0
  %1122 = vmatprep.mubr.bf16.mxu0 0
  %1123 = vmatmul.mubr.bf16.gmra.mrb[0].mxu0 %v1079
  %v1124 = vpop.f32.mrb[0].mxu0
  %v1125 = vadd.f32 0.0, %v1124
  %v1126 = vpop.f32.mrb[0].mxu0
  %v1127 = vpop.f32.mrb[0].mxu0
  %v1128 = vadd.f32 0.0, %v1127
  %v1129 = vpop.f32.mrb[0].mxu0
  %1130 = vmatprep.mubr.bf16.mxu0 0
  %1131 = vmatmul.mubr.bf16.gmra.mrb[0].mxu0 %v1082
  %v1132 = vpop.f32.mrb[0].mxu0
  %v1133 = vadd.f32 0.0, %v1132
  %v1134 = vpop.f32.mrb[0].mxu0
  %v1135 = vpop.f32.mrb[0].mxu0
  %v1136 = vadd.f32 0.0, %v1135
  %v1137 = vpop.f32.mrb[0].mxu0
  %1138 = vmatprep.mubr.bf16.mxu0 0
  %1139 = vmatmul.mubr.bf16.gmra.mrb[0].mxu0 %v1085
  %v1140 = vpop.f32.mrb[0].mxu0
  %v1141 = vadd.f32 0.0, %v1140
  %v1142 = vpop.f32.mrb[0].mxu0
  %v1143 = vpop.f32.mrb[0].mxu0
  %v1144 = vadd.f32 0.0, %v1143
  %v1145 = vpop.f32.mrb[0].mxu0
  %1146 = vmatprep.mubr.bf16.mxu0 0
  %1147 = vmatmul.mubr.bf16.gmra.mrb[0].mxu0 %v1088
  %v1148 = vpop.f32.mrb[0].mxu0
  %v1149 = vadd.f32 0.0, %v1148
  %v1150 = vpop.f32.mrb[0].mxu0
  %v1151 = vpop.f32.mrb[0].mxu0
  %v1152 = vadd.f32 0.0, %v1151
  %v1153 = vpop.f32.mrb[0].mxu0
  %1154 = vdwg.mxu0
  %v1155 = vadd.f32 %v1020, %v1125
  %v1156 = vadd.f32 %v1021, %v1128
  %v1157 = vadd.f32 %v1022, %v1133
  %v1158 = vadd.f32 %v1023, %v1136
  %v1159 = vadd.f32 %v1024, %v1141
  %v1160 = vadd.f32 %v1025, %v1144
  %v1161 = vadd.f32 %v1026, %v1149
  %v1162 = vadd.f32 %v1027, %v1152
  %s1163 = scalar_lea.vmem %s4, 64
  %v1164 = vld [vmem:[%s1163] sm:$0xf]
  %v1165 = vld [vmem:[%s1163 + $0x4] sm:$0xf]
  %v1166 = vrot.slane %v820, 3
  %v1167 = vrot.slane %v821, 3
  %v1168 = vsel %vm603, %v1166, %v1167
  %v1169 = vrot.slane %v822, 3
  %v1170 = vsel %vm603, %v1167, %v1169
  %v1171 = vrot.slane %v823, 3
  %v1172 = vsel %vm603, %v1169, %v1171
  %v1173 = vrot.slane %v918, 3
  %v1174 = vsel %vm603, %v1171, %v1173
  %v1177 = vunpack.c.l.b16 %v1164
  %v1178 = vunpack.c.l.b16 %v1165
  %v1179 = vpack.c.b16 %v1178, %v1177
  %v1182 = vsel %vm334, %v1168, 0
  %v1185 = vsel %vm334, %v1170, 0
  %v1188 = vsel %vm334, %v1172, 0
  %v1191 = vsel %vm334, %v1174, 0
  %1193 = vmatprep.subr.bf16.mxu0 0
  %1194 = vmatpush1.bf16.msra.mxu0 %v1179
  %1195 = vmatprep.subr.bf16.mxu0 0
  %1196 = vmatpush1.bf16.msra.mxu0 0
  %1197 = vmatprep.subr.bf16.mxu0 0
  %1198 = vmatpush1.bf16.msra.mxu0 0
  %1199 = vmatprep.subr.bf16.mxu0 0
  %1200 = vmatpush1.bf16.msra.mxu0 0
  %1201 = vmatprep.subr.bf16.mxu0 0
  %1202 = vmatpush1.bf16.msra.mxu0 0
  %1203 = vmatprep.subr.bf16.mxu0 0
  %1204 = vmatpush1.bf16.msra.mxu0 0
  %1205 = vmatprep.subr.bf16.mxu0 0
  %1206 = vmatpush1.bf16.msra.mxu0 0
  %1207 = vmatprep.subr.bf16.mxu0 0
  %1208 = vmatpush1.bf16.msra.mxu0 0
  %1209 = vmatprep.subr.bf16.mxu0 0
  %1210 = vmatpush1.bf16.msra.mxu0 0
  %1211 = vmatprep.subr.bf16.mxu0 0
  %1212 = vmatpush1.bf16.msra.mxu0 0
  %1213 = vmatprep.subr.bf16.mxu0 0
  %1214 = vmatpush1.bf16.msra.mxu0 0
  %1215 = vmatprep.subr.bf16.mxu0 0
  %1216 = vmatpush1.bf16.msra.mxu0 0
  %1217 = vmatprep.subr.bf16.mxu0 0
  %1218 = vmatpush1.bf16.msra.mxu0 0
  %1219 = vmatprep.subr.bf16.mxu0 0
  %1220 = vmatpush1.bf16.msra.mxu0 0
  %1221 = vmatprep.subr.bf16.mxu0 0
  %1222 = vmatpush1.bf16.msra.mxu0 0
  %1223 = vmatprep.subr.bf16.mxu0 0
  %1224 = vmatpush1.bf16.msra.mxu0 0
  %1225 = vmatprep.mubr.bf16.mxu0 0
  %1226 = vmatmul.mubr.bf16.gmra.mrb[0].mxu0 %v1182
  %v1227 = vpop.f32.mrb[0].mxu0
  %v1228 = vadd.f32 0.0, %v1227
  %v1229 = vpop.f32.mrb[0].mxu0
  %v1230 = vpop.f32.mrb[0].mxu0
  %v1231 = vadd.f32 0.0, %v1230
  %v1232 = vpop.f32.mrb[0].mxu0
  %1233 = vmatprep.mubr.bf16.mxu0 0
  %1234 = vmatmul.mubr.bf16.gmra.mrb[0].mxu0 %v1185
  %v1235 = vpop.f32.mrb[0].mxu0
  %v1236 = vadd.f32 0.0, %v1235
  %v1237 = vpop.f32.mrb[0].mxu0
  %v1238 = vpop.f32.mrb[0].mxu0
  %v1239 = vadd.f32 0.0, %v1238
  %v1240 = vpop.f32.mrb[0].mxu0
  %1241 = vmatprep.mubr.bf16.mxu0 0
  %1242 = vmatmul.mubr.bf16.gmra.mrb[0].mxu0 %v1188
  %v1243 = vpop.f32.mrb[0].mxu0
  %v1244 = vadd.f32 0.0, %v1243
  %v1245 = vpop.f32.mrb[0].mxu0
  %v1246 = vpop.f32.mrb[0].mxu0
  %v1247 = vadd.f32 0.0, %v1246
  %v1248 = vpop.f32.mrb[0].mxu0
  %1249 = vmatprep.mubr.bf16.mxu0 0
  %1250 = vmatmul.mubr.bf16.gmra.mrb[0].mxu0 %v1191
  %v1251 = vpop.f32.mrb[0].mxu0
  %v1252 = vadd.f32 0.0, %v1251
  %v1253 = vpop.f32.mrb[0].mxu0
  %v1254 = vpop.f32.mrb[0].mxu0
  %v1255 = vadd.f32 0.0, %v1254
  %v1256 = vpop.f32.mrb[0].mxu0
  %1257 = vdwg.mxu0
  %v1258 = vadd.f32 %v1155, %v1228
  %v1259 = vadd.f32 %v1156, %v1231
  %v1260 = vadd.f32 %v1157, %v1236
  %v1261 = vadd.f32 %v1158, %v1239
  %v1262 = vadd.f32 %v1159, %v1244
  %v1263 = vadd.f32 %v1160, %v1247
  %v1264 = vadd.f32 %v1161, %v1252
  %v1265 = vadd.f32 %v1162, %v1255
  %v1266 = vld [vmem:[%s5] sm:$0x1]
  %v1268 = vlaneseq
  %v1269 = vshrl.u32 %v1268, 7
  %v1270 = vsub.s32 0, %v1269
  %v1271 = vrot.slane %v1266, %v1270
  %v1273 = vadd.f32 %v1258, %v1271
  %v1274 = vadd.f32 %v1259, %v1271
  %v1275 = vadd.f32 %v1260, %v1271
  %v1276 = vadd.f32 %v1261, %v1271
  %v1277 = vadd.f32 %v1262, %v1271
  %v1278 = vadd.f32 %v1263, %v1271
  %v1279 = vadd.f32 %v1264, %v1271
  %v1280 = vadd.f32 %v1265, %v1271
  %v1281 = vld [vmem:[%s6] sm:$0xf]
  %v1282 = vld [vmem:[%s6 + $0x4] sm:$0xf]
  %v1283 = vld [vmem:[%s6 + $0x8] sm:$0xf]
  %v1284 = vld [vmem:[%s6 + $0xc] sm:$0xf]
  %v1285 = vld [vmem:[%s6 + $0x10] sm:$0xf]
  %v1286 = vld [vmem:[%s6 + $0x14] sm:$0xf]
  %v1287 = vld [vmem:[%s6 + $0x18] sm:$0xf]
  %v1288 = vld [vmem:[%s6 + $0x1c] sm:$0xf]
  %v1289 = vld [vmem:[%s7] sm:$0xf]
  %v1298 = vunpack.c.l.b16 %v1281
  %v1299 = vunpack.c.l.b16 %v1282
  %v1300 = vunpack.c.l.b16 %v1283
  %v1301 = vunpack.c.l.b16 %v1284
  %v1302 = vunpack.c.l.b16 %v1285
  %v1303 = vunpack.c.l.b16 %v1286
  %v1304 = vunpack.c.l.b16 %v1287
  %v1305 = vunpack.c.l.b16 %v1288
  %v1306 = vpack.c.b16 %v1299, %v1298
  %v1307 = vpack.c.b16 %v1301, %v1300
  %v1308 = vpack.c.b16 %v1303, %v1302
  %v1309 = vpack.c.b16 %v1305, %v1304
  %vm1310 = vcmask 64512
  %v1312 = vsel %vm1310, %v1306, 0
  %v1315 = vsel %vm1310, %v1307, 0
  %v1318 = vsel %vm1310, %v1308, 0
  %v1321 = vsel %vm1310, %v1309, 0
  %v1324 = vsel %vm124, %v1289, 0
  %1326 = vmatprep.subr.bf16.mxu0 0
  %1327 = vmatpush1.bf16.msra.mxu0 %v1324
  %1328 = vmatprep.subr.bf16.mxu0 0
  %1329 = vmatpush1.bf16.msra.mxu0 0
  %1330 = vmatprep.subr.bf16.mxu0 0
  %1331 = vmatpush1.bf16.msra.mxu0 0
  %1332 = vmatprep.subr.bf16.mxu0 0
  %1333 = vmatpush1.bf16.msra.mxu0 0
  %1334 = vmatprep.subr.bf16.mxu0 0
  %1335 = vmatpush1.bf16.msra.mxu0 0
  %1336 = vmatprep.subr.bf16.mxu0 0
  %1337 = vmatpush1.bf16.msra.mxu0 0
  %1338 = vmatprep.subr.bf16.mxu0 0
  %1339 = vmatpush1.bf16.msra.mxu0 0
  %1340 = vmatprep.subr.bf16.mxu0 0
  %1341 = vmatpush1.bf16.msra.mxu0 0
  %1342 = vmatprep.subr.bf16.mxu0 0
  %1343 = vmatpush1.bf16.msra.mxu0 0
  %1344 = vmatprep.subr.bf16.mxu0 0
  %1345 = vmatpush1.bf16.msra.mxu0 0
  %1346 = vmatprep.subr.bf16.mxu0 0
  %1347 = vmatpush1.bf16.msra.mxu0 0
  %1348 = vmatprep.subr.bf16.mxu0 0
  %1349 = vmatpush1.bf16.msra.mxu0 0
  %1350 = vmatprep.subr.bf16.mxu0 0
  %1351 = vmatpush1.bf16.msra.mxu0 0
  %1352 = vmatprep.subr.bf16.mxu0 0
  %1353 = vmatpush1.bf16.msra.mxu0 0
  %1354 = vmatprep.subr.bf16.mxu0 0
  %1355 = vmatpush1.bf16.msra.mxu0 0
  %1356 = vmatprep.subr.bf16.mxu0 0
  %1357 = vmatpush1.bf16.msra.mxu0 0
  %1358 = vmatprep.mubr.bf16.mxu0 0
  %1359 = vmatmul.mubr.bf16.gmra.mrb[0].mxu0 %v1312
  %v1360 = vpop.f32.mrb[0].mxu0
  %v1361 = vadd.f32 0.0, %v1360
  %v1362 = vpop.f32.mrb[0].mxu0
  %v1363 = vpop.f32.mrb[0].mxu0
  %v1364 = vadd.f32 0.0, %v1363
  %v1365 = vpop.f32.mrb[0].mxu0
  %1366 = vmatprep.mubr.bf16.mxu0 0
  %1367 = vmatmul.mubr.bf16.gmra.mrb[0].mxu0 %v1315
  %v1368 = vpop.f32.mrb[0].mxu0
  %v1369 = vadd.f32 0.0, %v1368
  %v1370 = vpop.f32.mrb[0].mxu0
  %v1371 = vpop.f32.mrb[0].mxu0
  %v1372 = vadd.f32 0.0, %v1371
  %v1373 = vpop.f32.mrb[0].mxu0
  %1374 = vmatprep.mubr.bf16.mxu0 0
  %1375 = vmatmul.mubr.bf16.gmra.mrb[0].mxu0 %v1318
  %v1376 = vpop.f32.mrb[0].mxu0
  %v1377 = vadd.f32 0.0, %v1376
  %v1378 = vpop.f32.mrb[0].mxu0
  %v1379 = vpop.f32.mrb[0].mxu0
  %v1380 = vadd.f32 0.0, %v1379
  %v1381 = vpop.f32.mrb[0].mxu0
  %1382 = vmatprep.mubr.bf16.mxu0 0
  %1383 = vmatmul.mubr.bf16.gmra.mrb[0].mxu0 %v1321
  %v1384 = vpop.f32.mrb[0].mxu0
  %v1385 = vadd.f32 0.0, %v1384
  %v1386 = vpop.f32.mrb[0].mxu0
  %v1387 = vpop.f32.mrb[0].mxu0
  %v1388 = vadd.f32 0.0, %v1387
  %v1389 = vpop.f32.mrb[0].mxu0
  %1390 = vdwg.mxu0
  %v1391 = vadd.f32 %v1273, %v1361
  %v1392 = vadd.f32 %v1274, %v1364
  %v1393 = vadd.f32 %v1275, %v1369
  %v1394 = vadd.f32 %v1276, %v1372
  %v1395 = vadd.f32 %v1277, %v1377
  %v1396 = vadd.f32 %v1278, %v1380
  %v1397 = vadd.f32 %v1279, %v1385
  %v1398 = vadd.f32 %v1280, %v1388
  %v1399 = vmax.f32 %v1391, 0.0
  %v1400 = vmax.f32 %v1392, 0.0
  %v1401 = vmax.f32 %v1393, 0.0
  %v1402 = vmax.f32 %v1394, 0.0
  %v1403 = vmax.f32 %v1395, 0.0
  %v1404 = vmax.f32 %v1396, 0.0
  %v1405 = vmax.f32 %v1397, 0.0
  %v1406 = vmax.f32 %v1398, 0.0
  %v1407 = vpack.c.bf16 %v1400, %v1399
  %v1408 = vpack.c.bf16 %v1402, %v1401
  %v1409 = vpack.c.bf16 %v1404, %v1403
  %v1410 = vpack.c.bf16 %v1406, %v1405
  %v1415 = vunpack.c.l.b16 %v1407
  %v1416 = vunpack.c.h.b16 %v1407
  %v1417 = vunpack.c.l.b16 %v1408
  %v1418 = vunpack.c.h.b16 %v1408
  %v1419 = vunpack.c.l.b16 %v1409
  %v1420 = vunpack.c.h.b16 %v1409
  %v1421 = vunpack.c.l.b16 %v1410
  %v1422 = vunpack.c.h.b16 %v1410
  %v1423 = vpack.c.b16 %v1415, %v1415
  %v1424 = vpack.c.b16 %v1416, %v1416
  %v1425 = vpack.c.b16 %v1417, %v1417
  %v1426 = vpack.c.b16 %v1418, %v1418
  %v1427 = vpack.c.b16 %v1419, %v1419
  %v1428 = vpack.c.b16 %v1420, %v1420
  %v1429 = vpack.c.b16 %v1421, %v1421
  %v1430 = vpack.c.b16 %v1422, %v1422
  %vm1439 = vcmask 125952
  %1440 = vst.msk [vmem:[%s8] sm:$0xf] %vm1439, %v1423
  %1441 = vst.msk [vmem:[%s8 + $0x4] sm:$0xf] %vm1439, %v1424
  %1442 = vst.msk [vmem:[%s8 + $0x8] sm:$0xf] %vm1439, %v1425
  %1443 = vst.msk [vmem:[%s8 + $0xc] sm:$0xf] %vm1439, %v1426
  %1444 = vst.msk [vmem:[%s8 + $0x10] sm:$0xf] %vm1439, %v1427
  %1445 = vst.msk [vmem:[%s8 + $0x14] sm:$0xf] %vm1439, %v1428
  %1446 = vst.msk [vmem:[%s8 + $0x18] sm:$0xf] %vm1439, %v1429
  %1447 = vst.msk [vmem:[%s8 + $0x1c] sm:$0xf] %vm1439, %v1430
  // Predicated region
  $region34: #{resnet18_forward.13} parent=0 // pred_check
    _
  $region35: #{resnet18_forward.13} parent=0 // pred_check_branch
    %1449 = sbr.rel (0) target = $region37
  $region36: #{resnet18_forward.13} parent=0 // pred_region
    _
  $region37: #{resnet18_forward.13} parent=0 // pred_fallthru
    _
  // Predicated region
  $region38: #{resnet18_forward.13} parent=0 // pred_check
    _
  $region39: #{resnet18_forward.13} parent=0 // pred_check_branch
    %1451 = sbr.rel (0) target = $region41
  $region40: #{resnet18_forward.13} parent=0 // pred_region
    _
  $region41: #{resnet18_forward.13} parent=0 // pred_fallthru
    _

// kernel: resnet18_forward.14
$region0: #{resnet18_forward.14}
  #allocation0 [shape = 'u32[]', space=smem, size = 0x4, offset = 0x4, fixed_abs, tag = 'smem constant byte address 0x4 - core index']
  #allocation1 [shape = 'u32[144,128]{1,0:T(1,128)}', space=vmem, size = 0x12000, scoped, tag = 'internal scratch']
  %s0 = inlined_call_operand.vmem [shape: bf16[80,144], index: 0, kind: input, shape index: {}]
  %s1 = inlined_call_operand.vmem [shape: bf16[144,16], index: 1, kind: input, shape index: {}]
  %s2 = inlined_call_operand.vmem [shape: f32[1,16], index: 2, kind: input, shape index: {}]
  %s3 = inlined_call_operand.vmem [shape: f32[80,1], index: 3, kind: input, shape index: {}]
  %s4 = inlined_call_operand.vmem [shape: bf16[9,16,16], index: 4, kind: input, shape index: {}]
  %s5 = inlined_call_operand.vmem [shape: f32[1,16], index: 5, kind: input, shape index: {}]
  %s6 = inlined_call_operand.vmem [shape: bf16[64,16], index: 6, kind: input, shape index: {}]
  %s7 = inlined_call_operand.vmem [shape: bf16[64,16], index: 7, kind: output, shape index: {}]
  %s8 = sld [smem:[#allocation0]]
  $region38: #{resnet18_forward.14} parent=0
    _
  %s10 = ssub.s32 1, %s8
  %s11 = scalar_select 0, %s10, %s8
  // Predicated region
  $region2: #{resnet18_forward.14} parent=0 // pred_check
    _
  $region3: #{resnet18_forward.14} parent=0 // pred_check_branch
    %13 = sbr.rel (0) target = $region5
  $region4: #{resnet18_forward.14} parent=0 // pred_region
    _
  $region5: #{resnet18_forward.14} parent=0 // pred_fallthru
    _
  // Predicated region
  $region6: #{resnet18_forward.14} parent=0 // pred_check
    _
  $region7: #{resnet18_forward.14} parent=0 // pred_check_branch
    %15 = sbr.rel (0) target = $region9
  $region8: #{resnet18_forward.14} parent=0 // pred_region
    _
  $region9: #{resnet18_forward.14} parent=0 // pred_fallthru
    _
  // Predicated region
  $region10: #{resnet18_forward.14} parent=0 // pred_check
    _
  $region11: #{resnet18_forward.14} parent=0 // pred_check_branch
    %17 = sbr.rel (0) target = $region13
  $region12: #{resnet18_forward.14} parent=0 // pred_region
    _
  $region13: #{resnet18_forward.14} parent=0 // pred_fallthru
    _
  // Predicated region
  $region14: #{resnet18_forward.14} parent=0 // pred_check
    _
  $region15: #{resnet18_forward.14} parent=0 // pred_check_branch
    %19 = sbr.rel (0) target = $region17
  $region16: #{resnet18_forward.14} parent=0 // pred_region
    _
  $region17: #{resnet18_forward.14} parent=0 // pred_fallthru
    _
  // Predicated region
  $region18: #{resnet18_forward.14} parent=0 // pred_check
    _
  $region19: #{resnet18_forward.14} parent=0 // pred_check_branch
    %21 = sbr.rel (0) target = $region21
  $region20: #{resnet18_forward.14} parent=0 // pred_region
    _
  $region21: #{resnet18_forward.14} parent=0 // pred_fallthru
    _
  // Predicated region
  $region22: #{resnet18_forward.14} parent=0 // pred_check
    _
  $region23: #{resnet18_forward.14} parent=0 // pred_check_branch
    %23 = sbr.rel (0) target = $region25
  $region24: #{resnet18_forward.14} parent=0 // pred_region
    _
  $region25: #{resnet18_forward.14} parent=0 // pred_fallthru
    _
  // Predicated region
  $region26: #{resnet18_forward.14} parent=0 // pred_check
    _
  $region27: #{resnet18_forward.14} parent=0 // pred_check_branch
    %25 = sbr.rel (0) target = $region29
  $region28: #{resnet18_forward.14} parent=0 // pred_region
    _
  $region29: #{resnet18_forward.14} parent=0 // pred_fallthru
    _
  %v27 = vld [vmem:[%s0] sm:$0xff]
  %v28 = vld [vmem:[%s0 + $0x8] sm:$0xff]
  %v29 = vld [vmem:[%s0 + $0x10] sm:$0xff]
  %v30 = vld [vmem:[%s0 + $0x18] sm:$0xff]
  %v31 = vld [vmem:[%s0 + $0x20] sm:$0xff]
  %v32 = vld [vmem:[%s0 + $0x28] sm:$0xff]
  %v33 = vld [vmem:[%s0 + $0x30] sm:$0xff]
  %v34 = vld [vmem:[%s0 + $0x38] sm:$0xff]
  %v35 = vld [vmem:[%s0 + $0x40] sm:$0xff]
  %v36 = vld [vmem:[%s0 + $0x48] sm:$0xff]
  %v37 = vld [vmem:[%s1] sm:$0xf]
  %v38 = vld [vmem:[%s1 + $0x4] sm:$0xf]
  %v39 = vld [vmem:[%s1 + $0x8] sm:$0xf]
  %v40 = vld [vmem:[%s1 + $0xc] sm:$0xf]
  %v41 = vld [vmem:[%s1 + $0x10] sm:$0xf]
  %v42 = vld [vmem:[%s1 + $0x14] sm:$0xf]
  %v43 = vld [vmem:[%s1 + $0x18] sm:$0xf]
  %v44 = vld [vmem:[%s1 + $0x1c] sm:$0xf]
  %v45 = vld [vmem:[%s1 + $0x20] sm:$0xf]
  %v46 = vld [vmem:[%s1 + $0x24] sm:$0xf]
  %v47 = vld [vmem:[%s1 + $0x28] sm:$0xf]
  %v48 = vld [vmem:[%s1 + $0x2c] sm:$0xf]
  %v49 = vld [vmem:[%s1 + $0x30] sm:$0xf]
  %v50 = vld [vmem:[%s1 + $0x34] sm:$0xf]
  %v51 = vld [vmem:[%s1 + $0x38] sm:$0xf]
  %v52 = vld [vmem:[%s1 + $0x3c] sm:$0xf]
  %v53 = vld [vmem:[%s1 + $0x40] sm:$0xf]
  %v54 = vld [vmem:[%s1 + $0x44] sm:$0xf]
  %v55 = vld [vmem:[%s2] sm:$0x1]
  %v57 = vlaneseq
  %v58 = vshrl.u32 %v57, 7
  %v59 = vsub.s32 0, %v58
  %v60 = vrot.slane %v55, %v59
  %v72 = vunpack.c.l.b16 %v27
  %v73 = vunpack.c.h.b16 %v27
  %v74 = vunpack.c.l.b16 %v28
  %v75 = vunpack.c.h.b16 %v28
  %v76 = vunpack.c.l.b16 %v29
  %v77 = vunpack.c.h.b16 %v29
  %v78 = vunpack.c.l.b16 %v30
  %v79 = vunpack.c.h.b16 %v30
  %v80 = vunpack.c.l.b16 %v31
  %v81 = vunpack.c.h.b16 %v31
  %v82 = vunpack.c.l.b16 %v32
  %v83 = vunpack.c.h.b16 %v32
  %v84 = vunpack.c.l.b16 %v33
  %v85 = vunpack.c.h.b16 %v33
  %v86 = vunpack.c.l.b16 %v34
  %v87 = vunpack.c.h.b16 %v34
  %v88 = vunpack.c.l.b16 %v35
  %v89 = vunpack.c.h.b16 %v35
  %v90 = vunpack.c.l.b16 %v36
  %v91 = vunpack.c.h.b16 %v36
  %v92 = vpack.c.b16 %v74, %v72
  %v93 = vpack.c.b16 %v75, %v73
  %v94 = vpack.c.b16 %v78, %v76
  %v95 = vpack.c.b16 %v79, %v77
  %v96 = vpack.c.b16 %v82, %v80
  %v97 = vpack.c.b16 %v83, %v81
  %v98 = vpack.c.b16 %v86, %v84
  %v99 = vpack.c.b16 %v87, %v85
  %v100 = vpack.c.b16 %v90, %v88
  %v101 = vpack.c.b16 %v91, %v89
  %v125 = vunpack.c.l.b16 %v37
  %v126 = vunpack.c.l.b16 %v38
  %v127 = vunpack.c.l.b16 %v39
  %v128 = vunpack.c.l.b16 %v40
  %v129 = vunpack.c.l.b16 %v41
  %v130 = vunpack.c.l.b16 %v42
  %v131 = vunpack.c.l.b16 %v43
  %v132 = vunpack.c.l.b16 %v44
  %v133 = vunpack.c.l.b16 %v45
  %v134 = vunpack.c.l.b16 %v46
  %v135 = vunpack.c.l.b16 %v47
  %v136 = vunpack.c.l.b16 %v48
  %v137 = vunpack.c.l.b16 %v49
  %v138 = vunpack.c.l.b16 %v50
  %v139 = vunpack.c.l.b16 %v51
  %v140 = vunpack.c.l.b16 %v52
  %v141 = vunpack.c.l.b16 %v53
  %v142 = vunpack.c.l.b16 %v54
  %v143 = vpack.c.b16 %v126, %v125
  %v144 = vpack.c.b16 %v128, %v127
  %v145 = vpack.c.b16 %v130, %v129
  %v146 = vpack.c.b16 %v132, %v131
  %v147 = vpack.c.b16 %v134, %v133
  %v148 = vpack.c.b16 %v136, %v135
  %v149 = vpack.c.b16 %v138, %v137
  %v150 = vpack.c.b16 %v140, %v139
  %v151 = vpack.c.b16 %v142, %v141
  %vm161 = vcmask 130048
  %v163 = vsel %vm161, %v93, 0
  %v166 = vsel %vm161, %v95, 0
  %v169 = vsel %vm161, %v97, 0
  %v172 = vsel %vm161, %v99, 0
  %v175 = vsel %vm161, %v101, 0
  %177 = vmatprep.subr.bf16.mxu0 0
  %178 = vmatpush1.bf16.msra.mxu0 %v143
  %179 = vmatprep.subr.bf16.mxu0 0
  %180 = vmatpush1.bf16.msra.mxu0 %v144
  %181 = vmatprep.subr.bf16.mxu0 0
  %182 = vmatpush1.bf16.msra.mxu0 %v145
  %183 = vmatprep.subr.bf16.mxu0 0
  %184 = vmatpush1.bf16.msra.mxu0 %v146
  %185 = vmatprep.subr.bf16.mxu0 0
  %186 = vmatpush1.bf16.msra.mxu0 %v147
  %187 = vmatprep.subr.bf16.mxu0 0
  %188 = vmatpush1.bf16.msra.mxu0 %v148
  %189 = vmatprep.subr.bf16.mxu0 0
  %190 = vmatpush1.bf16.msra.mxu0 %v149
  %191 = vmatprep.subr.bf16.mxu0 0
  %192 = vmatpush1.bf16.msra.mxu0 %v150
  %193 = vmatprep.subr.bf16.mxu0 0
  %194 = vmatpush1.bf16.msra.mxu0 %v151
  %195 = vmatprep.subr.bf16.mxu0 0
  %196 = vmatpush1.bf16.msra.mxu0 0
  %197 = vmatprep.subr.bf16.mxu0 0
  %198 = vmatpush1.bf16.msra.mxu0 0
  %199 = vmatprep.subr.bf16.mxu0 0
  %200 = vmatpush1.bf16.msra.mxu0 0
  %201 = vmatprep.subr.bf16.mxu0 0
  %202 = vmatpush1.bf16.msra.mxu0 0
  %203 = vmatprep.subr.bf16.mxu0 0
  %204 = vmatpush1.bf16.msra.mxu0 0
  %205 = vmatprep.subr.bf16.mxu0 0
  %206 = vmatpush1.bf16.msra.mxu0 0
  %207 = vmatprep.subr.bf16.mxu0 0
  %208 = vmatpush1.bf16.msra.mxu0 0
  %209 = vmatprep.mubr.bf16.mxu0 %v163
  %210 = vmatmul.mubr.bf16.gmra.mrb[0].mxu0 %v92
  %v211 = vpop.f32.mrb[0].mxu0
  %v212 = vadd.f32 %v60, %v211
  %v213 = vpop.f32.mrb[0].mxu0
  %v214 = vpop.f32.mrb[0].mxu0
  %v215 = vadd.f32 %v60, %v214
  %v216 = vpop.f32.mrb[0].mxu0
  %217 = vmatprep.mubr.bf16.mxu0 %v166
  %218 = vmatmul.mubr.bf16.gmra.mrb[0].mxu0 %v94
  %v219 = vpop.f32.mrb[0].mxu0
  %v220 = vadd.f32 %v60, %v219
  %v221 = vpop.f32.mrb[0].mxu0
  %v222 = vpop.f32.mrb[0].mxu0
  %v223 = vadd.f32 %v60, %v222
  %v224 = vpop.f32.mrb[0].mxu0
  %225 = vmatprep.mubr.bf16.mxu0 %v169
  %226 = vmatmul.mubr.bf16.gmra.mrb[0].mxu0 %v96
  %v227 = vpop.f32.mrb[0].mxu0
  %v228 = vadd.f32 %v60, %v227
  %v229 = vpop.f32.mrb[0].mxu0
  %v230 = vpop.f32.mrb[0].mxu0
  %v231 = vadd.f32 %v60, %v230
  %v232 = vpop.f32.mrb[0].mxu0
  %233 = vmatprep.mubr.bf16.mxu0 %v172
  %234 = vmatmul.mubr.bf16.gmra.mrb[0].mxu0 %v98
  %v235 = vpop.f32.mrb[0].mxu0
  %v236 = vadd.f32 %v60, %v235
  %v237 = vpop.f32.mrb[0].mxu0
  %v238 = vpop.f32.mrb[0].mxu0
  %v239 = vadd.f32 %v60, %v238
  %v240 = vpop.f32.mrb[0].mxu0
  %241 = vmatprep.mubr.bf16.mxu0 %v175
  %242 = vmatmul.mubr.bf16.gmra.mrb[0].mxu0 %v100
  %v243 = vpop.f32.mrb[0].mxu0
  %v244 = vadd.f32 %v60, %v243
  %v245 = vpop.f32.mrb[0].mxu0
  %v246 = vpop.f32.mrb[0].mxu0
  %v247 = vadd.f32 %v60, %v246
  %v248 = vpop.f32.mrb[0].mxu0
  %249 = vdwg.mxu0
  %v250 = vmax.f32 %v212, 0.0
  %v251 = vmax.f32 %v215, 0.0
  %v252 = vmax.f32 %v220, 0.0
  %v253 = vmax.f32 %v223, 0.0
  %v254 = vmax.f32 %v228, 0.0
  %v255 = vmax.f32 %v231, 0.0
  %v256 = vmax.f32 %v236, 0.0
  %v257 = vmax.f32 %v239, 0.0
  %v258 = vmax.f32 %v244, 0.0
  %v259 = vmax.f32 %v247, 0.0
  %v260 = vld [vmem:[%s3] sm:$0xff]
  %v261 = vld [vmem:[%s3 + $0x8] sm:$0xff]
  %v262 = vld [vmem:[%s3 + $0x10] sm:$0xff]
  %v263 = vld [vmem:[%s3 + $0x18] sm:$0xff]
  %v264 = vld [vmem:[%s3 + $0x20] sm:$0xff]
  %v265 = vld [vmem:[%s3 + $0x28] sm:$0xff]
  %v266 = vld [vmem:[%s3 + $0x30] sm:$0xff]
  %v267 = vld [vmem:[%s3 + $0x38] sm:$0xff]
  %v268 = vld [vmem:[%s3 + $0x40] sm:$0xff]
  %v269 = vld [vmem:[%s3 + $0x48] sm:$0xff]
  %271 = vset.pattern.permute.xlu0 0
  %272 = vperm.xlu0 %271, %v260
  %v273 = vpop.permute.xlu0 %272
  %276 = vset.pattern.permute.xlu0 0
  %277 = vperm.xlu0 %276, %v261
  %v278 = vpop.permute.xlu0 %277
  %281 = vset.pattern.permute.xlu0 0
  %282 = vperm.xlu0 %281, %v262
  %v283 = vpop.permute.xlu0 %282
  %286 = vset.pattern.permute.xlu0 0
  %287 = vperm.xlu0 %286, %v263
  %v288 = vpop.permute.xlu0 %287
  %291 = vset.pattern.permute.xlu0 0
  %292 = vperm.xlu0 %291, %v264
  %v293 = vpop.permute.xlu0 %292
  %296 = vset.pattern.permute.xlu0 0
  %297 = vperm.xlu0 %296, %v265
  %v298 = vpop.permute.xlu0 %297
  %301 = vset.pattern.permute.xlu0 0
  %302 = vperm.xlu0 %301, %v266
  %v303 = vpop.permute.xlu0 %302
  %306 = vset.pattern.permute.xlu0 0
  %307 = vperm.xlu0 %306, %v267
  %v308 = vpop.permute.xlu0 %307
  %311 = vset.pattern.permute.xlu0 0
  %312 = vperm.xlu0 %311, %v268
  %v313 = vpop.permute.xlu0 %312
  %316 = vset.pattern.permute.xlu0 0
  %317 = vperm.xlu0 %316, %v269
  %v318 = vpop.permute.xlu0 %317
  %v320 = vmul.f32 %v250, %v273
  %v321 = vmul.f32 %v251, %v278
  %v322 = vmul.f32 %v252, %v283
  %v323 = vmul.f32 %v253, %v288
  %v324 = vmul.f32 %v254, %v293
  %v325 = vmul.f32 %v255, %v298
  %v326 = vmul.f32 %v256, %v303
  %v327 = vmul.f32 %v257, %v308
  %v328 = vmul.f32 %v258, %v313
  %v329 = vmul.f32 %v259, %v318
  %v330 = vpack.c.bf16 %v321, %v320
  %v331 = vpack.c.bf16 %v323, %v322
  %v332 = vpack.c.bf16 %v325, %v324
  %v333 = vpack.c.bf16 %v327, %v326
  %v334 = vld [vmem:[%s4] sm:$0xf]
  %v335 = vld [vmem:[%s4 + $0x4] sm:$0xf]
  %v336 = vpack.c.bf16 %v328, %v328
  %s337 = scalar_lea.vmem %s4, 8
  %v338 = vld [vmem:[%s337] sm:$0xf]
  %v339 = vld [vmem:[%s337 + $0x4] sm:$0xf]
  %vm340 = vsmask.f32 7424
  %v342 = vshrl.u32 %v330, 16
  %v344 = vshll.u32 %v330, 16
  %v346 = vrot.slane %v344, 1
  %v347 = vor.u32 %v342, %v346
  %v349 = vshll.u32 %v331, 16
  %v351 = vrot.slane %v349, 1
  %v352 = vsel %vm340, %v347, %v351
  %v353 = vshrl.u32 %v331, 16
  %v355 = vor.u32 %v353, %v351
  %v357 = vshll.u32 %v332, 16
  %v359 = vrot.slane %v357, 1
  %v360 = vsel %vm340, %v355, %v359
  %v361 = vshrl.u32 %v332, 16
  %v363 = vor.u32 %v361, %v359
  %v365 = vshll.u32 %v333, 16
  %v367 = vrot.slane %v365, 1
  %v368 = vsel %vm340, %v363, %v367
  %v369 = vshrl.u32 %v333, 16
  %v371 = vor.u32 %v369, %v367
  %v373 = vshll.u32 %v336, 16
  %v375 = vrot.slane %v373, 1
  %v376 = vsel %vm340, %v371, %v375
  %v379 = vunpack.c.l.b16 %v338
  %v380 = vunpack.c.l.b16 %v339
  %v381 = vpack.c.b16 %v380, %v379
  %v384 = vsel %vm161, %v352, 0
  %v387 = vsel %vm161, %v360, 0
  %v390 = vsel %vm161, %v368, 0
  %v393 = vsel %vm161, %v376, 0
  %395 = vmatprep.subr.bf16.mxu0 0
  %396 = vmatpush1.bf16.msra.mxu0 %v381
  %397 = vmatprep.subr.bf16.mxu0 0
  %398 = vmatpush1.bf16.msra.mxu0 0
  %399 = vmatprep.subr.bf16.mxu0 0
  %400 = vmatpush1.bf16.msra.mxu0 0
  %401 = vmatprep.subr.bf16.mxu0 0
  %402 = vmatpush1.bf16.msra.mxu0 0
  %403 = vmatprep.subr.bf16.mxu0 0
  %404 = vmatpush1.bf16.msra.mxu0 0
  %405 = vmatprep.subr.bf16.mxu0 0
  %406 = vmatpush1.bf16.msra.mxu0 0
  %407 = vmatprep.subr.bf16.mxu0 0
  %408 = vmatpush1.bf16.msra.mxu0 0
  %409 = vmatprep.subr.bf16.mxu0 0
  %410 = vmatpush1.bf16.msra.mxu0 0
  %411 = vmatprep.subr.bf16.mxu0 0
  %412 = vmatpush1.bf16.msra.mxu0 0
  %413 = vmatprep.subr.bf16.mxu0 0
  %414 = vmatpush1.bf16.msra.mxu0 0
  %415 = vmatprep.subr.bf16.mxu0 0
  %416 = vmatpush1.bf16.msra.mxu0 0
  %417 = vmatprep.subr.bf16.mxu0 0
  %418 = vmatpush1.bf16.msra.mxu0 0
  %419 = vmatprep.subr.bf16.mxu0 0
  %420 = vmatpush1.bf16.msra.mxu0 0
  %421 = vmatprep.subr.bf16.mxu0 0
  %422 = vmatpush1.bf16.msra.mxu0 0
  %423 = vmatprep.subr.bf16.mxu0 0
  %424 = vmatpush1.bf16.msra.mxu0 0
  %425 = vmatprep.subr.bf16.mxu0 0
  %426 = vmatpush1.bf16.msra.mxu0 0
  %427 = vmatprep.mubr.bf16.mxu0 0
  %428 = vmatmul.mubr.bf16.gmra.mrb[0].mxu0 %v384
  %v429 = vpop.f32.mrb[0].mxu0
  %v430 = vadd.f32 0.0, %v429
  %v431 = vpop.f32.mrb[0].mxu0
  %v432 = vpop.f32.mrb[0].mxu0
  %v433 = vadd.f32 0.0, %v432
  %v434 = vpop.f32.mrb[0].mxu0
  %435 = vmatprep.mubr.bf16.mxu0 0
  %436 = vmatmul.mubr.bf16.gmra.mrb[0].mxu0 %v387
  %v437 = vpop.f32.mrb[0].mxu0
  %v438 = vadd.f32 0.0, %v437
  %v439 = vpop.f32.mrb[0].mxu0
  %v440 = vpop.f32.mrb[0].mxu0
  %v441 = vadd.f32 0.0, %v440
  %v442 = vpop.f32.mrb[0].mxu0
  %443 = vmatprep.mubr.bf16.mxu0 0
  %444 = vmatmul.mubr.bf16.gmra.mrb[0].mxu0 %v390
  %v445 = vpop.f32.mrb[0].mxu0
  %v446 = vadd.f32 0.0, %v445
  %v447 = vpop.f32.mrb[0].mxu0
  %v448 = vpop.f32.mrb[0].mxu0
  %v449 = vadd.f32 0.0, %v448
  %v450 = vpop.f32.mrb[0].mxu0
  %451 = vmatprep.mubr.bf16.mxu0 0
  %452 = vmatmul.mubr.bf16.gmra.mrb[0].mxu0 %v393
  %v453 = vpop.f32.mrb[0].mxu0
  %v454 = vadd.f32 0.0, %v453
  %v455 = vpop.f32.mrb[0].mxu0
  %v456 = vpop.f32.mrb[0].mxu0
  %v457 = vadd.f32 0.0, %v456
  %v458 = vpop.f32.mrb[0].mxu0
  %459 = vdwg.mxu0
  %v462 = vunpack.c.l.b16 %v334
  %v463 = vunpack.c.l.b16 %v335
  %v464 = vpack.c.b16 %v463, %v462
  %v466 = vsel %vm161, %v330, 0
  %v468 = vsel %vm161, %v331, 0
  %v470 = vsel %vm161, %v332, 0
  %v472 = vsel %vm161, %v333, 0
  %474 = vmatprep.subr.bf16.mxu0 0
  %475 = vmatpush1.bf16.msra.mxu0 %v464
  %476 = vmatprep.subr.bf16.mxu0 0
  %477 = vmatpush1.bf16.msra.mxu0 0
  %478 = vmatprep.subr.bf16.mxu0 0
  %479 = vmatpush1.bf16.msra.mxu0 0
  %480 = vmatprep.subr.bf16.mxu0 0
  %481 = vmatpush1.bf16.msra.mxu0 0
  %482 = vmatprep.subr.bf16.mxu0 0
  %483 = vmatpush1.bf16.msra.mxu0 0
  %484 = vmatprep.subr.bf16.mxu0 0
  %485 = vmatpush1.bf16.msra.mxu0 0
  %486 = vmatprep.subr.bf16.mxu0 0
  %487 = vmatpush1.bf16.msra.mxu0 0
  %488 = vmatprep.subr.bf16.mxu0 0
  %489 = vmatpush1.bf16.msra.mxu0 0
  %490 = vmatprep.subr.bf16.mxu0 0
  %491 = vmatpush1.bf16.msra.mxu0 0
  %492 = vmatprep.subr.bf16.mxu0 0
  %493 = vmatpush1.bf16.msra.mxu0 0
  %494 = vmatprep.subr.bf16.mxu0 0
  %495 = vmatpush1.bf16.msra.mxu0 0
  %496 = vmatprep.subr.bf16.mxu0 0
  %497 = vmatpush1.bf16.msra.mxu0 0
  %498 = vmatprep.subr.bf16.mxu0 0
  %499 = vmatpush1.bf16.msra.mxu0 0
  %500 = vmatprep.subr.bf16.mxu0 0
  %501 = vmatpush1.bf16.msra.mxu0 0
  %502 = vmatprep.subr.bf16.mxu0 0
  %503 = vmatpush1.bf16.msra.mxu0 0
  %504 = vmatprep.subr.bf16.mxu0 0
  %505 = vmatpush1.bf16.msra.mxu0 0
  %506 = vmatprep.mubr.bf16.mxu0 0
  %507 = vmatmul.mubr.bf16.gmra.mrb[0].mxu0 %v466
  %v508 = vpop.f32.mrb[0].mxu0
  %v509 = vadd.f32 %v430, %v508
  %v510 = vpop.f32.mrb[0].mxu0
  %v511 = vpop.f32.mrb[0].mxu0
  %v512 = vadd.f32 %v433, %v511
  %v513 = vpop.f32.mrb[0].mxu0
  %514 = vmatprep.mubr.bf16.mxu0 0
  %515 = vmatmul.mubr.bf16.gmra.mrb[0].mxu0 %v468
  %v516 = vpop.f32.mrb[0].mxu0
  %v517 = vadd.f32 %v438, %v516
  %v518 = vpop.f32.mrb[0].mxu0
  %v519 = vpop.f32.mrb[0].mxu0
  %v520 = vadd.f32 %v441, %v519
  %v521 = vpop.f32.mrb[0].mxu0
  %522 = vmatprep.mubr.bf16.mxu0 0
  %523 = vmatmul.mubr.bf16.gmra.mrb[0].mxu0 %v470
  %v524 = vpop.f32.mrb[0].mxu0
  %v525 = vadd.f32 %v446, %v524
  %v526 = vpop.f32.mrb[0].mxu0
  %v527 = vpop.f32.mrb[0].mxu0
  %v528 = vadd.f32 %v449, %v527
  %v529 = vpop.f32.mrb[0].mxu0
  %530 = vmatprep.mubr.bf16.mxu0 0
  %531 = vmatmul.mubr.bf16.gmra.mrb[0].mxu0 %v472
  %v532 = vpop.f32.mrb[0].mxu0
  %v533 = vadd.f32 %v454, %v532
  %v534 = vpop.f32.mrb[0].mxu0
  %v535 = vpop.f32.mrb[0].mxu0
  %v536 = vadd.f32 %v457, %v535
  %v537 = vpop.f32.mrb[0].mxu0
  %538 = vdwg.mxu0
  %s539 = scalar_lea.vmem %s4, 16
  %v540 = vld [vmem:[%s539] sm:$0xf]
  %v541 = vld [vmem:[%s539 + $0x4] sm:$0xf]
  %vm547 = vcmask 1046528
  %v548 = vrot.slane %v330, 1
  %v549 = vrot.slane %v331, 1
  %v550 = vsel %vm547, %v548, %v549
  %v551 = vrot.slane %v332, 1
  %v552 = vsel %vm547, %v549, %v551
  %v553 = vrot.slane %v333, 1
  %v554 = vsel %vm547, %v551, %v553
  %v555 = vrot.slane %v336, 1
  %v556 = vsel %vm547, %v553, %v555
  %v559 = vunpack.c.l.b16 %v540
  %v560 = vunpack.c.l.b16 %v541
  %v561 = vpack.c.b16 %v560, %v559
  %v564 = vsel %vm161, %v550, 0
  %v567 = vsel %vm161, %v552, 0
  %v570 = vsel %vm161, %v554, 0
  %v573 = vsel %vm161, %v556, 0
  %575 = vmatprep.subr.bf16.mxu0 0
  %576 = vmatpush1.bf16.msra.mxu0 %v561
  %577 = vmatprep.subr.bf16.mxu0 0
  %578 = vmatpush1.bf16.msra.mxu0 0
  %579 = vmatprep.subr.bf16.mxu0 0
  %580 = vmatpush1.bf16.msra.mxu0 0
  %581 = vmatprep.subr.bf16.mxu0 0
  %582 = vmatpush1.bf16.msra.mxu0 0
  %583 = vmatprep.subr.bf16.mxu0 0
  %584 = vmatpush1.bf16.msra.mxu0 0
  %585 = vmatprep.subr.bf16.mxu0 0
  %586 = vmatpush1.bf16.msra.mxu0 0
  %587 = vmatprep.subr.bf16.mxu0 0
  %588 = vmatpush1.bf16.msra.mxu0 0
  %589 = vmatprep.subr.bf16.mxu0 0
  %590 = vmatpush1.bf16.msra.mxu0 0
  %591 = vmatprep.subr.bf16.mxu0 0
  %592 = vmatpush1.bf16.msra.mxu0 0
  %593 = vmatprep.subr.bf16.mxu0 0
  %594 = vmatpush1.bf16.msra.mxu0 0
  %595 = vmatprep.subr.bf16.mxu0 0
  %596 = vmatpush1.bf16.msra.mxu0 0
  %597 = vmatprep.subr.bf16.mxu0 0
  %598 = vmatpush1.bf16.msra.mxu0 0
  %599 = vmatprep.subr.bf16.mxu0 0
  %600 = vmatpush1.bf16.msra.mxu0 0
  %601 = vmatprep.subr.bf16.mxu0 0
  %602 = vmatpush1.bf16.msra.mxu0 0
  %603 = vmatprep.subr.bf16.mxu0 0
  %604 = vmatpush1.bf16.msra.mxu0 0
  %605 = vmatprep.subr.bf16.mxu0 0
  %606 = vmatpush1.bf16.msra.mxu0 0
  %607 = vmatprep.mubr.bf16.mxu0 0
  %608 = vmatmul.mubr.bf16.gmra.mrb[0].mxu0 %v564
  %v609 = vpop.f32.mrb[0].mxu0
  %v610 = vadd.f32 0.0, %v609
  %v611 = vpop.f32.mrb[0].mxu0
  %v612 = vpop.f32.mrb[0].mxu0
  %v613 = vadd.f32 0.0, %v612
  %v614 = vpop.f32.mrb[0].mxu0
  %615 = vmatprep.mubr.bf16.mxu0 0
  %616 = vmatmul.mubr.bf16.gmra.mrb[0].mxu0 %v567
  %v617 = vpop.f32.mrb[0].mxu0
  %v618 = vadd.f32 0.0, %v617
  %v619 = vpop.f32.mrb[0].mxu0
  %v620 = vpop.f32.mrb[0].mxu0
  %v621 = vadd.f32 0.0, %v620
  %v622 = vpop.f32.mrb[0].mxu0
  %623 = vmatprep.mubr.bf16.mxu0 0
  %624 = vmatmul.mubr.bf16.gmra.mrb[0].mxu0 %v570
  %v625 = vpop.f32.mrb[0].mxu0
  %v626 = vadd.f32 0.0, %v625
  %v627 = vpop.f32.mrb[0].mxu0
  %v628 = vpop.f32.mrb[0].mxu0
  %v629 = vadd.f32 0.0, %v628
  %v630 = vpop.f32.mrb[0].mxu0
  %631 = vmatprep.mubr.bf16.mxu0 0
  %632 = vmatmul.mubr.bf16.gmra.mrb[0].mxu0 %v573
  %v633 = vpop.f32.mrb[0].mxu0
  %v634 = vadd.f32 0.0, %v633
  %v635 = vpop.f32.mrb[0].mxu0
  %v636 = vpop.f32.mrb[0].mxu0
  %v637 = vadd.f32 0.0, %v636
  %v638 = vpop.f32.mrb[0].mxu0
  %639 = vdwg.mxu0
  %v640 = vadd.f32 %v509, %v610
  %v641 = vadd.f32 %v512, %v613
  %v642 = vadd.f32 %v517, %v618
  %v643 = vadd.f32 %v520, %v621
  %v644 = vadd.f32 %v525, %v626
  %v645 = vadd.f32 %v528, %v629
  %v646 = vadd.f32 %v533, %v634
  %v647 = vadd.f32 %v536, %v637
  %s648 = scalar_lea.vmem %s4, 24
  %v649 = vld [vmem:[%s648] sm:$0xf]
  %v650 = vld [vmem:[%s648 + $0x4] sm:$0xf]
  %vm651 = vcmask 1044480
  %v652 = vrot.slane %v330, 3
  %v653 = vrot.slane %v331, 3
  %v654 = vsel %vm651, %v652, %v653
  %v655 = vrot.slane %v332, 3
  %v656 = vsel %vm651, %v653, %v655
  %v657 = vrot.slane %v333, 3
  %v658 = vsel %vm651, %v655, %v657
  %v659 = vrot.slane %v336, 3
  %v660 = vsel %vm651, %v657, %v659
  %v663 = vunpack.c.l.b16 %v649
  %v664 = vunpack.c.l.b16 %v650
  %v665 = vpack.c.b16 %v664, %v663
  %v668 = vsel %vm161, %v654, 0
  %v671 = vsel %vm161, %v656, 0
  %v674 = vsel %vm161, %v658, 0
  %v677 = vsel %vm161, %v660, 0
  %679 = vmatprep.subr.bf16.mxu0 0
  %680 = vmatpush1.bf16.msra.mxu0 %v665
  %681 = vmatprep.subr.bf16.mxu0 0
  %682 = vmatpush1.bf16.msra.mxu0 0
  %683 = vmatprep.subr.bf16.mxu0 0
  %684 = vmatpush1.bf16.msra.mxu0 0
  %685 = vmatprep.subr.bf16.mxu0 0
  %686 = vmatpush1.bf16.msra.mxu0 0
  %687 = vmatprep.subr.bf16.mxu0 0
  %688 = vmatpush1.bf16.msra.mxu0 0
  %689 = vmatprep.subr.bf16.mxu0 0
  %690 = vmatpush1.bf16.msra.mxu0 0
  %691 = vmatprep.subr.bf16.mxu0 0
  %692 = vmatpush1.bf16.msra.mxu0 0
  %693 = vmatprep.subr.bf16.mxu0 0
  %694 = vmatpush1.bf16.msra.mxu0 0
  %695 = vmatprep.subr.bf16.mxu0 0
  %696 = vmatpush1.bf16.msra.mxu0 0
  %697 = vmatprep.subr.bf16.mxu0 0
  %698 = vmatpush1.bf16.msra.mxu0 0
  %699 = vmatprep.subr.bf16.mxu0 0
  %700 = vmatpush1.bf16.msra.mxu0 0
  %701 = vmatprep.subr.bf16.mxu0 0
  %702 = vmatpush1.bf16.msra.mxu0 0
  %703 = vmatprep.subr.bf16.mxu0 0
  %704 = vmatpush1.bf16.msra.mxu0 0
  %705 = vmatprep.subr.bf16.mxu0 0
  %706 = vmatpush1.bf16.msra.mxu0 0
  %707 = vmatprep.subr.bf16.mxu0 0
  %708 = vmatpush1.bf16.msra.mxu0 0
  %709 = vmatprep.subr.bf16.mxu0 0
  %710 = vmatpush1.bf16.msra.mxu0 0
  %711 = vmatprep.mubr.bf16.mxu0 0
  %712 = vmatmul.mubr.bf16.gmra.mrb[0].mxu0 %v668
  %v713 = vpop.f32.mrb[0].mxu0
  %v714 = vadd.f32 0.0, %v713
  %v715 = vpop.f32.mrb[0].mxu0
  %v716 = vpop.f32.mrb[0].mxu0
  %v717 = vadd.f32 0.0, %v716
  %v718 = vpop.f32.mrb[0].mxu0
  %719 = vmatprep.mubr.bf16.mxu0 0
  %720 = vmatmul.mubr.bf16.gmra.mrb[0].mxu0 %v671
  %v721 = vpop.f32.mrb[0].mxu0
  %v722 = vadd.f32 0.0, %v721
  %v723 = vpop.f32.mrb[0].mxu0
  %v724 = vpop.f32.mrb[0].mxu0
  %v725 = vadd.f32 0.0, %v724
  %v726 = vpop.f32.mrb[0].mxu0
  %727 = vmatprep.mubr.bf16.mxu0 0
  %728 = vmatmul.mubr.bf16.gmra.mrb[0].mxu0 %v674
  %v729 = vpop.f32.mrb[0].mxu0
  %v730 = vadd.f32 0.0, %v729
  %v731 = vpop.f32.mrb[0].mxu0
  %v732 = vpop.f32.mrb[0].mxu0
  %v733 = vadd.f32 0.0, %v732
  %v734 = vpop.f32.mrb[0].mxu0
  %735 = vmatprep.mubr.bf16.mxu0 0
  %736 = vmatmul.mubr.bf16.gmra.mrb[0].mxu0 %v677
  %v737 = vpop.f32.mrb[0].mxu0
  %v738 = vadd.f32 0.0, %v737
  %v739 = vpop.f32.mrb[0].mxu0
  %v740 = vpop.f32.mrb[0].mxu0
  %v741 = vadd.f32 0.0, %v740
  %v742 = vpop.f32.mrb[0].mxu0
  %743 = vdwg.mxu0
  %v744 = vadd.f32 %v640, %v714
  %v745 = vadd.f32 %v641, %v717
  %v746 = vadd.f32 %v642, %v722
  %v747 = vadd.f32 %v643, %v725
  %v748 = vadd.f32 %v644, %v730
  %v749 = vadd.f32 %v645, %v733
  %v750 = vadd.f32 %v646, %v738
  %v751 = vadd.f32 %v647, %v741
  %s752 = scalar_lea.vmem %s4, 32
  %v753 = vld [vmem:[%s752] sm:$0xf]
  %v754 = vld [vmem:[%s752 + $0x4] sm:$0xf]
  %vm755 = vsmask.f32 4352
  %v756 = vrot.slane %v342, 3
  %v757 = vrot.slane %v344, 4
  %v758 = vor.u32 %v756, %v757
  %v759 = vrot.slane %v353, 3
  %v760 = vrot.slane %v349, 4
  %v761 = vor.u32 %v759, %v760
  %v762 = vsel %vm755, %v758, %v761
  %v763 = vrot.slane %v361, 3
  %v764 = vrot.slane %v357, 4
  %v765 = vor.u32 %v763, %v764
  %v766 = vsel %vm755, %v761, %v765
  %v767 = vrot.slane %v369, 3
  %v768 = vrot.slane %v365, 4
  %v769 = vor.u32 %v767, %v768
  %v770 = vsel %vm755, %v765, %v769
  %v771 = vshrl.u32 %v336, 16
  %v773 = vrot.slane %v771, 3
  %v774 = vrot.slane %v373, 4
  %v775 = vor.u32 %v773, %v774
  %v776 = vsel %vm755, %v769, %v775
  %v779 = vunpack.c.l.b16 %v753
  %v780 = vunpack.c.l.b16 %v754
  %v781 = vpack.c.b16 %v780, %v779
  %v784 = vsel %vm161, %v762, 0
  %v787 = vsel %vm161, %v766, 0
  %v790 = vsel %vm161, %v770, 0
  %v793 = vsel %vm161, %v776, 0
  %795 = vmatprep.subr.bf16.mxu0 0
  %796 = vmatpush1.bf16.msra.mxu0 %v781
  %797 = vmatprep.subr.bf16.mxu0 0
  %798 = vmatpush1.bf16.msra.mxu0 0
  %799 = vmatprep.subr.bf16.mxu0 0
  %800 = vmatpush1.bf16.msra.mxu0 0
  %801 = vmatprep.subr.bf16.mxu0 0
  %802 = vmatpush1.bf16.msra.mxu0 0
  %803 = vmatprep.subr.bf16.mxu0 0
  %804 = vmatpush1.bf16.msra.mxu0 0
  %805 = vmatprep.subr.bf16.mxu0 0
  %806 = vmatpush1.bf16.msra.mxu0 0
  %807 = vmatprep.subr.bf16.mxu0 0
  %808 = vmatpush1.bf16.msra.mxu0 0
  %809 = vmatprep.subr.bf16.mxu0 0
  %810 = vmatpush1.bf16.msra.mxu0 0
  %811 = vmatprep.subr.bf16.mxu0 0
  %812 = vmatpush1.bf16.msra.mxu0 0
  %813 = vmatprep.subr.bf16.mxu0 0
  %814 = vmatpush1.bf16.msra.mxu0 0
  %815 = vmatprep.subr.bf16.mxu0 0
  %816 = vmatpush1.bf16.msra.mxu0 0
  %817 = vmatprep.subr.bf16.mxu0 0
  %818 = vmatpush1.bf16.msra.mxu0 0
  %819 = vmatprep.subr.bf16.mxu0 0
  %820 = vmatpush1.bf16.msra.mxu0 0
  %821 = vmatprep.subr.bf16.mxu0 0
  %822 = vmatpush1.bf16.msra.mxu0 0
  %823 = vmatprep.subr.bf16.mxu0 0
  %824 = vmatpush1.bf16.msra.mxu0 0
  %825 = vmatprep.subr.bf16.mxu0 0
  %826 = vmatpush1.bf16.msra.mxu0 0
  %827 = vmatprep.mubr.bf16.mxu0 0
  %828 = vmatmul.mubr.bf16.gmra.mrb[0].mxu0 %v784
  %v829 = vpop.f32.mrb[0].mxu0
  %v830 = vadd.f32 0.0, %v829
  %v831 = vpop.f32.mrb[0].mxu0
  %v832 = vpop.f32.mrb[0].mxu0
  %v833 = vadd.f32 0.0, %v832
  %v834 = vpop.f32.mrb[0].mxu0
  %835 = vmatprep.mubr.bf16.mxu0 0
  %836 = vmatmul.mubr.bf16.gmra.mrb[0].mxu0 %v787
  %v837 = vpop.f32.mrb[0].mxu0
  %v838 = vadd.f32 0.0, %v837
  %v839 = vpop.f32.mrb[0].mxu0
  %v840 = vpop.f32.mrb[0].mxu0
  %v841 = vadd.f32 0.0, %v840
  %v842 = vpop.f32.mrb[0].mxu0
  %843 = vmatprep.mubr.bf16.mxu0 0
  %844 = vmatmul.mubr.bf16.gmra.mrb[0].mxu0 %v790
  %v845 = vpop.f32.mrb[0].mxu0
  %v846 = vadd.f32 0.0, %v845
  %v847 = vpop.f32.mrb[0].mxu0
  %v848 = vpop.f32.mrb[0].mxu0
  %v849 = vadd.f32 0.0, %v848
  %v850 = vpop.f32.mrb[0].mxu0
  %851 = vmatprep.mubr.bf16.mxu0 0
  %852 = vmatmul.mubr.bf16.gmra.mrb[0].mxu0 %v793
  %v853 = vpop.f32.mrb[0].mxu0
  %v854 = vadd.f32 0.0, %v853
  %v855 = vpop.f32.mrb[0].mxu0
  %v856 = vpop.f32.mrb[0].mxu0
  %v857 = vadd.f32 0.0, %v856
  %v858 = vpop.f32.mrb[0].mxu0
  %859 = vdwg.mxu0
  %v860 = vadd.f32 %v744, %v830
  %v861 = vadd.f32 %v745, %v833
  %v862 = vadd.f32 %v746, %v838
  %v863 = vadd.f32 %v747, %v841
  %v864 = vadd.f32 %v748, %v846
  %v865 = vadd.f32 %v749, %v849
  %v866 = vadd.f32 %v750, %v854
  %v867 = vadd.f32 %v751, %v857
  %v868 = vpack.c.bf16 %v322, %v321
  %v869 = vpack.c.bf16 %v324, %v323
  %v870 = vpack.c.bf16 %v326, %v325
  %v871 = vpack.c.bf16 %v328, %v327
  %s872 = scalar_lea.vmem %s4, 40
  %v873 = vld [vmem:[%s872] sm:$0xf]
  %v874 = vld [vmem:[%s872 + $0x4] sm:$0xf]
  %v877 = vunpack.c.l.b16 %v873
  %v878 = vunpack.c.l.b16 %v874
  %v879 = vpack.c.b16 %v878, %v877
  %v882 = vsel %vm161, %v868, 0
  %v885 = vsel %vm161, %v869, 0
  %v888 = vsel %vm161, %v870, 0
  %v891 = vsel %vm161, %v871, 0
  %893 = vmatprep.subr.bf16.mxu0 0
  %894 = vmatpush1.bf16.msra.mxu0 %v879
  %895 = vmatprep.subr.bf16.mxu0 0
  %896 = vmatpush1.bf16.msra.mxu0 0
  %897 = vmatprep.subr.bf16.mxu0 0
  %898 = vmatpush1.bf16.msra.mxu0 0
  %899 = vmatprep.subr.bf16.mxu0 0
  %900 = vmatpush1.bf16.msra.mxu0 0
  %901 = vmatprep.subr.bf16.mxu0 0
  %902 = vmatpush1.bf16.msra.mxu0 0
  %903 = vmatprep.subr.bf16.mxu0 0
  %904 = vmatpush1.bf16.msra.mxu0 0
  %905 = vmatprep.subr.bf16.mxu0 0
  %906 = vmatpush1.bf16.msra.mxu0 0
  %907 = vmatprep.subr.bf16.mxu0 0
  %908 = vmatpush1.bf16.msra.mxu0 0
  %909 = vmatprep.subr.bf16.mxu0 0
  %910 = vmatpush1.bf16.msra.mxu0 0
  %911 = vmatprep.subr.bf16.mxu0 0
  %912 = vmatpush1.bf16.msra.mxu0 0
  %913 = vmatprep.subr.bf16.mxu0 0
  %914 = vmatpush1.bf16.msra.mxu0 0
  %915 = vmatprep.subr.bf16.mxu0 0
  %916 = vmatpush1.bf16.msra.mxu0 0
  %917 = vmatprep.subr.bf16.mxu0 0
  %918 = vmatpush1.bf16.msra.mxu0 0
  %919 = vmatprep.subr.bf16.mxu0 0
  %920 = vmatpush1.bf16.msra.mxu0 0
  %921 = vmatprep.subr.bf16.mxu0 0
  %922 = vmatpush1.bf16.msra.mxu0 0
  %923 = vmatprep.subr.bf16.mxu0 0
  %924 = vmatpush1.bf16.msra.mxu0 0
  %925 = vmatprep.mubr.bf16.mxu0 0
  %926 = vmatmul.mubr.bf16.gmra.mrb[0].mxu0 %v882
  %v927 = vpop.f32.mrb[0].mxu0
  %v928 = vadd.f32 0.0, %v927
  %v929 = vpop.f32.mrb[0].mxu0
  %v930 = vpop.f32.mrb[0].mxu0
  %v931 = vadd.f32 0.0, %v930
  %v932 = vpop.f32.mrb[0].mxu0
  %933 = vmatprep.mubr.bf16.mxu0 0
  %934 = vmatmul.mubr.bf16.gmra.mrb[0].mxu0 %v885
  %v935 = vpop.f32.mrb[0].mxu0
  %v936 = vadd.f32 0.0, %v935
  %v937 = vpop.f32.mrb[0].mxu0
  %v938 = vpop.f32.mrb[0].mxu0
  %v939 = vadd.f32 0.0, %v938
  %v940 = vpop.f32.mrb[0].mxu0
  %941 = vmatprep.mubr.bf16.mxu0 0
  %942 = vmatmul.mubr.bf16.gmra.mrb[0].mxu0 %v888
  %v943 = vpop.f32.mrb[0].mxu0
  %v944 = vadd.f32 0.0, %v943
  %v945 = vpop.f32.mrb[0].mxu0
  %v946 = vpop.f32.mrb[0].mxu0
  %v947 = vadd.f32 0.0, %v946
  %v948 = vpop.f32.mrb[0].mxu0
  %949 = vmatprep.mubr.bf16.mxu0 0
  %950 = vmatmul.mubr.bf16.gmra.mrb[0].mxu0 %v891
  %v951 = vpop.f32.mrb[0].mxu0
  %v952 = vadd.f32 0.0, %v951
  %v953 = vpop.f32.mrb[0].mxu0
  %v954 = vpop.f32.mrb[0].mxu0
  %v955 = vadd.f32 0.0, %v954
  %v956 = vpop.f32.mrb[0].mxu0
  %957 = vdwg.mxu0
  %v958 = vadd.f32 %v860, %v928
  %v959 = vadd.f32 %v861, %v931
  %v960 = vadd.f32 %v862, %v936
  %v961 = vadd.f32 %v863, %v939
  %v962 = vadd.f32 %v864, %v944
  %v963 = vadd.f32 %v865, %v947
  %v964 = vadd.f32 %v866, %v952
  %v965 = vadd.f32 %v867, %v955
  %v966 = vpack.c.bf16 %v329, %v329
  %s967 = scalar_lea.vmem %s4, 48
  %v968 = vld [vmem:[%s967] sm:$0xf]
  %v969 = vld [vmem:[%s967 + $0x4] sm:$0xf]
  %vm975 = vcmask 1045504
  %v976 = vrot.slane %v868, 2
  %v977 = vrot.slane %v869, 2
  %v978 = vsel %vm975, %v976, %v977
  %v979 = vrot.slane %v870, 2
  %v980 = vsel %vm975, %v977, %v979
  %v981 = vrot.slane %v871, 2
  %v982 = vsel %vm975, %v979, %v981
  %v983 = vrot.slane %v966, 2
  %v984 = vsel %vm975, %v981, %v983
  %v987 = vunpack.c.l.b16 %v968
  %v988 = vunpack.c.l.b16 %v969
  %v989 = vpack.c.b16 %v988, %v987
  %v992 = vsel %vm161, %v978, 0
  %v995 = vsel %vm161, %v980, 0
  %v998 = vsel %vm161, %v982, 0
  %v1001 = vsel %vm161, %v984, 0
  %1003 = vmatprep.subr.bf16.mxu0 0
  %1004 = vmatpush1.bf16.msra.mxu0 %v989
  %1005 = vmatprep.subr.bf16.mxu0 0
  %1006 = vmatpush1.bf16.msra.mxu0 0
  %1007 = vmatprep.subr.bf16.mxu0 0
  %1008 = vmatpush1.bf16.msra.mxu0 0
  %1009 = vmatprep.subr.bf16.mxu0 0
  %1010 = vmatpush1.bf16.msra.mxu0 0
  %1011 = vmatprep.subr.bf16.mxu0 0
  %1012 = vmatpush1.bf16.msra.mxu0 0
  %1013 = vmatprep.subr.bf16.mxu0 0
  %1014 = vmatpush1.bf16.msra.mxu0 0
  %1015 = vmatprep.subr.bf16.mxu0 0
  %1016 = vmatpush1.bf16.msra.mxu0 0
  %1017 = vmatprep.subr.bf16.mxu0 0
  %1018 = vmatpush1.bf16.msra.mxu0 0
  %1019 = vmatprep.subr.bf16.mxu0 0
  %1020 = vmatpush1.bf16.msra.mxu0 0
  %1021 = vmatprep.subr.bf16.mxu0 0
  %1022 = vmatpush1.bf16.msra.mxu0 0
  %1023 = vmatprep.subr.bf16.mxu0 0
  %1024 = vmatpush1.bf16.msra.mxu0 0
  %1025 = vmatprep.subr.bf16.mxu0 0
  %1026 = vmatpush1.bf16.msra.mxu0 0
  %1027 = vmatprep.subr.bf16.mxu0 0
  %1028 = vmatpush1.bf16.msra.mxu0 0
  %1029 = vmatprep.subr.bf16.mxu0 0
  %1030 = vmatpush1.bf16.msra.mxu0 0
  %1031 = vmatprep.subr.bf16.mxu0 0
  %1032 = vmatpush1.bf16.msra.mxu0 0
  %1033 = vmatprep.subr.bf16.mxu0 0
  %1034 = vmatpush1.bf16.msra.mxu0 0
  %1035 = vmatprep.mubr.bf16.mxu0 0
  %1036 = vmatmul.mubr.bf16.gmra.mrb[0].mxu0 %v992
  %v1037 = vpop.f32.mrb[0].mxu0
  %v1038 = vadd.f32 0.0, %v1037
  %v1039 = vpop.f32.mrb[0].mxu0
  %v1040 = vpop.f32.mrb[0].mxu0
  %v1041 = vadd.f32 0.0, %v1040
  %v1042 = vpop.f32.mrb[0].mxu0
  %1043 = vmatprep.mubr.bf16.mxu0 0
  %1044 = vmatmul.mubr.bf16.gmra.mrb[0].mxu0 %v995
  %v1045 = vpop.f32.mrb[0].mxu0
  %v1046 = vadd.f32 0.0, %v1045
  %v1047 = vpop.f32.mrb[0].mxu0
  %v1048 = vpop.f32.mrb[0].mxu0
  %v1049 = vadd.f32 0.0, %v1048
  %v1050 = vpop.f32.mrb[0].mxu0
  %1051 = vmatprep.mubr.bf16.mxu0 0
  %1052 = vmatmul.mubr.bf16.gmra.mrb[0].mxu0 %v998
  %v1053 = vpop.f32.mrb[0].mxu0
  %v1054 = vadd.f32 0.0, %v1053
  %v1055 = vpop.f32.mrb[0].mxu0
  %v1056 = vpop.f32.mrb[0].mxu0
  %v1057 = vadd.f32 0.0, %v1056
  %v1058 = vpop.f32.mrb[0].mxu0
  %1059 = vmatprep.mubr.bf16.mxu0 0
  %1060 = vmatmul.mubr.bf16.gmra.mrb[0].mxu0 %v1001
  %v1061 = vpop.f32.mrb[0].mxu0
  %v1062 = vadd.f32 0.0, %v1061
  %v1063 = vpop.f32.mrb[0].mxu0
  %v1064 = vpop.f32.mrb[0].mxu0
  %v1065 = vadd.f32 0.0, %v1064
  %v1066 = vpop.f32.mrb[0].mxu0
  %1067 = vdwg.mxu0
  %v1068 = vadd.f32 %v958, %v1038
  %v1069 = vadd.f32 %v959, %v1041
  %v1070 = vadd.f32 %v960, %v1046
  %v1071 = vadd.f32 %v961, %v1049
  %v1072 = vadd.f32 %v962, %v1054
  %v1073 = vadd.f32 %v963, %v1057
  %v1074 = vadd.f32 %v964, %v1062
  %v1075 = vadd.f32 %v965, %v1065
  %s1076 = scalar_lea.vmem %s4, 56
  %v1077 = vld [vmem:[%s1076] sm:$0xf]
  %v1078 = vld [vmem:[%s1076 + $0x4] sm:$0xf]
  %vm1079 = vsmask.f32 5376
  %v1080 = vshrl.u32 %v868, 16
  %v1082 = vrot.slane %v1080, 2
  %v1083 = vshll.u32 %v868, 16
  %v1085 = vrot.slane %v1083, 3
  %v1086 = vor.u32 %v1082, %v1085
  %v1087 = vshrl.u32 %v869, 16
  %v1089 = vrot.slane %v1087, 2
  %v1090 = vshll.u32 %v869, 16
  %v1092 = vrot.slane %v1090, 3
  %v1093 = vor.u32 %v1089, %v1092
  %v1094 = vsel %vm1079, %v1086, %v1093
  %v1095 = vshrl.u32 %v870, 16
  %v1097 = vrot.slane %v1095, 2
  %v1098 = vshll.u32 %v870, 16
  %v1100 = vrot.slane %v1098, 3
  %v1101 = vor.u32 %v1097, %v1100
  %v1102 = vsel %vm1079, %v1093, %v1101
  %v1103 = vshrl.u32 %v871, 16
  %v1105 = vrot.slane %v1103, 2
  %v1106 = vshll.u32 %v871, 16
  %v1108 = vrot.slane %v1106, 3
  %v1109 = vor.u32 %v1105, %v1108
  %v1110 = vsel %vm1079, %v1101, %v1109
  %v1112 = vshrl.u32 %v966, 16
  %v1114 = vrot.slane %v1112, 2
  %v1115 = vshll.u32 %v966, 16
  %v1117 = vrot.slane %v1115, 3
  %v1118 = vor.u32 %v1114, %v1117
  %v1119 = vsel %vm1079, %v1109, %v1118
  %v1122 = vunpack.c.l.b16 %v1077
  %v1123 = vunpack.c.l.b16 %v1078
  %v1124 = vpack.c.b16 %v1123, %v1122
  %v1127 = vsel %vm161, %v1094, 0
  %v1130 = vsel %vm161, %v1102, 0
  %v1133 = vsel %vm161, %v1110, 0
  %v1136 = vsel %vm161, %v1119, 0
  %1138 = vmatprep.subr.bf16.mxu0 0
  %1139 = vmatpush1.bf16.msra.mxu0 %v1124
  %1140 = vmatprep.subr.bf16.mxu0 0
  %1141 = vmatpush1.bf16.msra.mxu0 0
  %1142 = vmatprep.subr.bf16.mxu0 0
  %1143 = vmatpush1.bf16.msra.mxu0 0
  %1144 = vmatprep.subr.bf16.mxu0 0
  %1145 = vmatpush1.bf16.msra.mxu0 0
  %1146 = vmatprep.subr.bf16.mxu0 0
  %1147 = vmatpush1.bf16.msra.mxu0 0
  %1148 = vmatprep.subr.bf16.mxu0 0
  %1149 = vmatpush1.bf16.msra.mxu0 0
  %1150 = vmatprep.subr.bf16.mxu0 0
  %1151 = vmatpush1.bf16.msra.mxu0 0
  %1152 = vmatprep.subr.bf16.mxu0 0
  %1153 = vmatpush1.bf16.msra.mxu0 0
  %1154 = vmatprep.subr.bf16.mxu0 0
  %1155 = vmatpush1.bf16.msra.mxu0 0
  %1156 = vmatprep.subr.bf16.mxu0 0
  %1157 = vmatpush1.bf16.msra.mxu0 0
  %1158 = vmatprep.subr.bf16.mxu0 0
  %1159 = vmatpush1.bf16.msra.mxu0 0
  %1160 = vmatprep.subr.bf16.mxu0 0
  %1161 = vmatpush1.bf16.msra.mxu0 0
  %1162 = vmatprep.subr.bf16.mxu0 0
  %1163 = vmatpush1.bf16.msra.mxu0 0
  %1164 = vmatprep.subr.bf16.mxu0 0
  %1165 = vmatpush1.bf16.msra.mxu0 0
  %1166 = vmatprep.subr.bf16.mxu0 0
  %1167 = vmatpush1.bf16.msra.mxu0 0
  %1168 = vmatprep.subr.bf16.mxu0 0
  %1169 = vmatpush1.bf16.msra.mxu0 0
  %1170 = vmatprep.mubr.bf16.mxu0 0
  %1171 = vmatmul.mubr.bf16.gmra.mrb[0].mxu0 %v1127
  %v1172 = vpop.f32.mrb[0].mxu0
  %v1173 = vadd.f32 0.0, %v1172
  %v1174 = vpop.f32.mrb[0].mxu0
  %v1175 = vpop.f32.mrb[0].mxu0
  %v1176 = vadd.f32 0.0, %v1175
  %v1177 = vpop.f32.mrb[0].mxu0
  %1178 = vmatprep.mubr.bf16.mxu0 0
  %1179 = vmatmul.mubr.bf16.gmra.mrb[0].mxu0 %v1130
  %v1180 = vpop.f32.mrb[0].mxu0
  %v1181 = vadd.f32 0.0, %v1180
  %v1182 = vpop.f32.mrb[0].mxu0
  %v1183 = vpop.f32.mrb[0].mxu0
  %v1184 = vadd.f32 0.0, %v1183
  %v1185 = vpop.f32.mrb[0].mxu0
  %1186 = vmatprep.mubr.bf16.mxu0 0
  %1187 = vmatmul.mubr.bf16.gmra.mrb[0].mxu0 %v1133
  %v1188 = vpop.f32.mrb[0].mxu0
  %v1189 = vadd.f32 0.0, %v1188
  %v1190 = vpop.f32.mrb[0].mxu0
  %v1191 = vpop.f32.mrb[0].mxu0
  %v1192 = vadd.f32 0.0, %v1191
  %v1193 = vpop.f32.mrb[0].mxu0
  %1194 = vmatprep.mubr.bf16.mxu0 0
  %1195 = vmatmul.mubr.bf16.gmra.mrb[0].mxu0 %v1136
  %v1196 = vpop.f32.mrb[0].mxu0
  %v1197 = vadd.f32 0.0, %v1196
  %v1198 = vpop.f32.mrb[0].mxu0
  %v1199 = vpop.f32.mrb[0].mxu0
  %v1200 = vadd.f32 0.0, %v1199
  %v1201 = vpop.f32.mrb[0].mxu0
  %1202 = vdwg.mxu0
  %v1203 = vadd.f32 %v1068, %v1173
  %v1204 = vadd.f32 %v1069, %v1176
  %v1205 = vadd.f32 %v1070, %v1181
  %v1206 = vadd.f32 %v1071, %v1184
  %v1207 = vadd.f32 %v1072, %v1189
  %v1208 = vadd.f32 %v1073, %v1192
  %v1209 = vadd.f32 %v1074, %v1197
  %v1210 = vadd.f32 %v1075, %v1200
  %s1211 = scalar_lea.vmem %s4, 64
  %v1212 = vld [vmem:[%s1211] sm:$0xf]
  %v1213 = vld [vmem:[%s1211 + $0x4] sm:$0xf]
  %v1214 = vrot.slane %v868, 3
  %v1215 = vrot.slane %v869, 3
  %v1216 = vsel %vm651, %v1214, %v1215
  %v1217 = vrot.slane %v870, 3
  %v1218 = vsel %vm651, %v1215, %v1217
  %v1219 = vrot.slane %v871, 3
  %v1220 = vsel %vm651, %v1217, %v1219
  %v1221 = vrot.slane %v966, 3
  %v1222 = vsel %vm651, %v1219, %v1221
  %v1225 = vunpack.c.l.b16 %v1212
  %v1226 = vunpack.c.l.b16 %v1213
  %v1227 = vpack.c.b16 %v1226, %v1225
  %v1230 = vsel %vm161, %v1216, 0
  %v1233 = vsel %vm161, %v1218, 0
  %v1236 = vsel %vm161, %v1220, 0
  %v1239 = vsel %vm161, %v1222, 0
  %1241 = vmatprep.subr.bf16.mxu0 0
  %1242 = vmatpush1.bf16.msra.mxu0 %v1227
  %1243 = vmatprep.subr.bf16.mxu0 0
  %1244 = vmatpush1.bf16.msra.mxu0 0
  %1245 = vmatprep.subr.bf16.mxu0 0
  %1246 = vmatpush1.bf16.msra.mxu0 0
  %1247 = vmatprep.subr.bf16.mxu0 0
  %1248 = vmatpush1.bf16.msra.mxu0 0
  %1249 = vmatprep.subr.bf16.mxu0 0
  %1250 = vmatpush1.bf16.msra.mxu0 0
  %1251 = vmatprep.subr.bf16.mxu0 0
  %1252 = vmatpush1.bf16.msra.mxu0 0
  %1253 = vmatprep.subr.bf16.mxu0 0
  %1254 = vmatpush1.bf16.msra.mxu0 0
  %1255 = vmatprep.subr.bf16.mxu0 0
  %1256 = vmatpush1.bf16.msra.mxu0 0
  %1257 = vmatprep.subr.bf16.mxu0 0
  %1258 = vmatpush1.bf16.msra.mxu0 0
  %1259 = vmatprep.subr.bf16.mxu0 0
  %1260 = vmatpush1.bf16.msra.mxu0 0
  %1261 = vmatprep.subr.bf16.mxu0 0
  %1262 = vmatpush1.bf16.msra.mxu0 0
  %1263 = vmatprep.subr.bf16.mxu0 0
  %1264 = vmatpush1.bf16.msra.mxu0 0
  %1265 = vmatprep.subr.bf16.mxu0 0
  %1266 = vmatpush1.bf16.msra.mxu0 0
  %1267 = vmatprep.subr.bf16.mxu0 0
  %1268 = vmatpush1.bf16.msra.mxu0 0
  %1269 = vmatprep.subr.bf16.mxu0 0
  %1270 = vmatpush1.bf16.msra.mxu0 0
  %1271 = vmatprep.subr.bf16.mxu0 0
  %1272 = vmatpush1.bf16.msra.mxu0 0
  %1273 = vmatprep.mubr.bf16.mxu0 0
  %1274 = vmatmul.mubr.bf16.gmra.mrb[0].mxu0 %v1230
  %v1275 = vpop.f32.mrb[0].mxu0
  %v1276 = vadd.f32 0.0, %v1275
  %v1277 = vpop.f32.mrb[0].mxu0
  %v1278 = vpop.f32.mrb[0].mxu0
  %v1279 = vadd.f32 0.0, %v1278
  %v1280 = vpop.f32.mrb[0].mxu0
  %1281 = vmatprep.mubr.bf16.mxu0 0
  %1282 = vmatmul.mubr.bf16.gmra.mrb[0].mxu0 %v1233
  %v1283 = vpop.f32.mrb[0].mxu0
  %v1284 = vadd.f32 0.0, %v1283
  %v1285 = vpop.f32.mrb[0].mxu0
  %v1286 = vpop.f32.mrb[0].mxu0
  %v1287 = vadd.f32 0.0, %v1286
  %v1288 = vpop.f32.mrb[0].mxu0
  %1289 = vmatprep.mubr.bf16.mxu0 0
  %1290 = vmatmul.mubr.bf16.gmra.mrb[0].mxu0 %v1236
  %v1291 = vpop.f32.mrb[0].mxu0
  %v1292 = vadd.f32 0.0, %v1291
  %v1293 = vpop.f32.mrb[0].mxu0
  %v1294 = vpop.f32.mrb[0].mxu0
  %v1295 = vadd.f32 0.0, %v1294
  %v1296 = vpop.f32.mrb[0].mxu0
  %1297 = vmatprep.mubr.bf16.mxu0 0
  %1298 = vmatmul.mubr.bf16.gmra.mrb[0].mxu0 %v1239
  %v1299 = vpop.f32.mrb[0].mxu0
  %v1300 = vadd.f32 0.0, %v1299
  %v1301 = vpop.f32.mrb[0].mxu0
  %v1302 = vpop.f32.mrb[0].mxu0
  %v1303 = vadd.f32 0.0, %v1302
  %v1304 = vpop.f32.mrb[0].mxu0
  %1305 = vdwg.mxu0
  %v1306 = vadd.f32 %v1203, %v1276
  %v1307 = vadd.f32 %v1204, %v1279
  %v1308 = vadd.f32 %v1205, %v1284
  %v1309 = vadd.f32 %v1206, %v1287
  %v1310 = vadd.f32 %v1207, %v1292
  %v1311 = vadd.f32 %v1208, %v1295
  %v1312 = vadd.f32 %v1209, %v1300
  %v1313 = vadd.f32 %v1210, %v1303
  %v1314 = vld [vmem:[%s5] sm:$0x1]
  %v1316 = vlaneseq
  %v1317 = vshrl.u32 %v1316, 7
  %v1318 = vsub.s32 0, %v1317
  %v1319 = vrot.slane %v1314, %v1318
  %v1321 = vadd.f32 %v1306, %v1319
  %v1322 = vadd.f32 %v1307, %v1319
  %v1323 = vadd.f32 %v1308, %v1319
  %v1324 = vadd.f32 %v1309, %v1319
  %v1325 = vadd.f32 %v1310, %v1319
  %v1326 = vadd.f32 %v1311, %v1319
  %v1327 = vadd.f32 %v1312, %v1319
  %v1328 = vadd.f32 %v1313, %v1319
  %v1329 = vld [vmem:[%s6] sm:$0xf]
  %v1330 = vld [vmem:[%s6 + $0x4] sm:$0xf]
  %v1331 = vld [vmem:[%s6 + $0x8] sm:$0xf]
  %v1332 = vld [vmem:[%s6 + $0xc] sm:$0xf]
  %v1333 = vld [vmem:[%s6 + $0x10] sm:$0xf]
  %v1334 = vld [vmem:[%s6 + $0x14] sm:$0xf]
  %v1335 = vld [vmem:[%s6 + $0x18] sm:$0xf]
  %v1336 = vld [vmem:[%s6 + $0x1c] sm:$0xf]
  %v1337 = vunpack.c.l.bf16 %v1329
  %v1338 = vunpack.c.l.bf16 %v1330
  %v1339 = vunpack.c.l.bf16 %v1331
  %v1340 = vunpack.c.l.bf16 %v1332
  %v1341 = vunpack.c.l.bf16 %v1333
  %v1342 = vunpack.c.l.bf16 %v1334
  %v1343 = vunpack.c.l.bf16 %v1335
  %v1344 = vunpack.c.l.bf16 %v1336
  %v1345 = vadd.f32 %v1321, %v1337
  %v1346 = vadd.f32 %v1322, %v1338
  %v1347 = vadd.f32 %v1323, %v1339
  %v1348 = vadd.f32 %v1324, %v1340
  %v1349 = vadd.f32 %v1325, %v1341
  %v1350 = vadd.f32 %v1326, %v1342
  %v1351 = vadd.f32 %v1327, %v1343
  %v1352 = vadd.f32 %v1328, %v1344
  %v1353 = vmax.f32 %v1345, 0.0
  %v1354 = vmax.f32 %v1346, 0.0
  %v1355 = vmax.f32 %v1347, 0.0
  %v1356 = vmax.f32 %v1348, 0.0
  %v1357 = vmax.f32 %v1349, 0.0
  %v1358 = vmax.f32 %v1350, 0.0
  %v1359 = vmax.f32 %v1351, 0.0
  %v1360 = vmax.f32 %v1352, 0.0
  %v1361 = vpack.c.bf16 %v1354, %v1353
  %v1362 = vpack.c.bf16 %v1356, %v1355
  %v1363 = vpack.c.bf16 %v1358, %v1357
  %v1364 = vpack.c.bf16 %v1360, %v1359
  %v1369 = vunpack.c.l.b16 %v1361
  %v1370 = vunpack.c.h.b16 %v1361
  %v1371 = vunpack.c.l.b16 %v1362
  %v1372 = vunpack.c.h.b16 %v1362
  %v1373 = vunpack.c.l.b16 %v1363
  %v1374 = vunpack.c.h.b16 %v1363
  %v1375 = vunpack.c.l.b16 %v1364
  %v1376 = vunpack.c.h.b16 %v1364
  %v1377 = vpack.c.b16 %v1369, %v1369
  %v1378 = vpack.c.b16 %v1370, %v1370
  %v1379 = vpack.c.b16 %v1371, %v1371
  %v1380 = vpack.c.b16 %v1372, %v1372
  %v1381 = vpack.c.b16 %v1373, %v1373
  %v1382 = vpack.c.b16 %v1374, %v1374
  %v1383 = vpack.c.b16 %v1375, %v1375
  %v1384 = vpack.c.b16 %v1376, %v1376
  %vm1393 = vcmask 125952
  %1394 = vst.msk [vmem:[%s7] sm:$0xf] %vm1393, %v1377
  %1395 = vst.msk [vmem:[%s7 + $0x4] sm:$0xf] %vm1393, %v1378
  %1396 = vst.msk [vmem:[%s7 + $0x8] sm:$0xf] %vm1393, %v1379
  %1397 = vst.msk [vmem:[%s7 + $0xc] sm:$0xf] %vm1393, %v1380
  %1398 = vst.msk [vmem:[%s7 + $0x10] sm:$0xf] %vm1393, %v1381
  %1399 = vst.msk [vmem:[%s7 + $0x14] sm:$0xf] %vm1393, %v1382
  %1400 = vst.msk [vmem:[%s7 + $0x18] sm:$0xf] %vm1393, %v1383
  %1401 = vst.msk [vmem:[%s7 + $0x1c] sm:$0xf] %vm1393, %v1384
  // Predicated region
  $region30: #{resnet18_forward.14} parent=0 // pred_check
    _
  $region31: #{resnet18_forward.14} parent=0 // pred_check_branch
    %1403 = sbr.rel (0) target = $region33
  $region32: #{resnet18_forward.14} parent=0 // pred_region
    _
  $region33: #{resnet18_forward.14} parent=0 // pred_fallthru
    _
  // Predicated region
  $region34: #{resnet18_forward.14} parent=0 // pred_check
    _
  $region35: #{resnet18_forward.14} parent=0 // pred_check_branch
    %1405 = sbr.rel (0) target = $region37
  $region36: #{resnet18_forward.14} parent=0 // pred_region
    _
  $region37: #{resnet18_forward.14} parent=0 // pred_fallthru
    _

// kernel: resnet18_forward.15
$region0: #{resnet18_forward.15}
  #allocation0 [shape = 'u32[]', space=smem, size = 0x4, offset = 0x4, fixed_abs, tag = 'smem constant byte address 0x4 - core index']
  #allocation1 [shape = 'u32[144,128]{1,0:T(1,128)}', space=vmem, size = 0x12000, scoped, tag = 'internal scratch']
  %s0 = inlined_call_operand.vmem [shape: bf16[40,144], index: 0, kind: input, shape index: {}]
  %s1 = inlined_call_operand.vmem [shape: bf16[144,32], index: 1, kind: input, shape index: {}]
  %s2 = inlined_call_operand.vmem [shape: f32[1,32], index: 2, kind: input, shape index: {}]
  %s3 = inlined_call_operand.vmem [shape: f32[40,1], index: 3, kind: input, shape index: {}]
  %s4 = inlined_call_operand.vmem [shape: bf16[9,32,32], index: 4, kind: input, shape index: {}]
  %s5 = inlined_call_operand.vmem [shape: f32[1,32], index: 5, kind: input, shape index: {}]
  %s6 = inlined_call_operand.vmem [shape: bf16[24,16], index: 6, kind: input, shape index: {}]
  %s7 = inlined_call_operand.vmem [shape: bf16[16,32], index: 7, kind: input, shape index: {}]
  %s8 = inlined_call_operand.vmem [shape: bf16[24,32], index: 8, kind: output, shape index: {}]
  %s9 = sld [smem:[#allocation0]]
  $region42: #{resnet18_forward.15} parent=0
    _
  %s11 = ssub.s32 1, %s9
  %s12 = scalar_select 0, %s11, %s9
  // Predicated region
  $region2: #{resnet18_forward.15} parent=0 // pred_check
    _
  $region3: #{resnet18_forward.15} parent=0 // pred_check_branch
    %14 = sbr.rel (0) target = $region5
  $region4: #{resnet18_forward.15} parent=0 // pred_region
    _
  $region5: #{resnet18_forward.15} parent=0 // pred_fallthru
    _
  // Predicated region
  $region6: #{resnet18_forward.15} parent=0 // pred_check
    _
  $region7: #{resnet18_forward.15} parent=0 // pred_check_branch
    %16 = sbr.rel (0) target = $region9
  $region8: #{resnet18_forward.15} parent=0 // pred_region
    _
  $region9: #{resnet18_forward.15} parent=0 // pred_fallthru
    _
  // Predicated region
  $region10: #{resnet18_forward.15} parent=0 // pred_check
    _
  $region11: #{resnet18_forward.15} parent=0 // pred_check_branch
    %18 = sbr.rel (0) target = $region13
  $region12: #{resnet18_forward.15} parent=0 // pred_region
    _
  $region13: #{resnet18_forward.15} parent=0 // pred_fallthru
    _
  // Predicated region
  $region14: #{resnet18_forward.15} parent=0 // pred_check
    _
  $region15: #{resnet18_forward.15} parent=0 // pred_check_branch
    %20 = sbr.rel (0) target = $region17
  $region16: #{resnet18_forward.15} parent=0 // pred_region
    _
  $region17: #{resnet18_forward.15} parent=0 // pred_fallthru
    _
  // Predicated region
  $region18: #{resnet18_forward.15} parent=0 // pred_check
    _
  $region19: #{resnet18_forward.15} parent=0 // pred_check_branch
    %22 = sbr.rel (0) target = $region21
  $region20: #{resnet18_forward.15} parent=0 // pred_region
    _
  $region21: #{resnet18_forward.15} parent=0 // pred_fallthru
    _
  // Predicated region
  $region22: #{resnet18_forward.15} parent=0 // pred_check
    _
  $region23: #{resnet18_forward.15} parent=0 // pred_check_branch
    %24 = sbr.rel (0) target = $region25
  $region24: #{resnet18_forward.15} parent=0 // pred_region
    _
  $region25: #{resnet18_forward.15} parent=0 // pred_fallthru
    _
  // Predicated region
  $region26: #{resnet18_forward.15} parent=0 // pred_check
    _
  $region27: #{resnet18_forward.15} parent=0 // pred_check_branch
    %26 = sbr.rel (0) target = $region29
  $region28: #{resnet18_forward.15} parent=0 // pred_region
    _
  $region29: #{resnet18_forward.15} parent=0 // pred_fallthru
    _
  // Predicated region
  $region30: #{resnet18_forward.15} parent=0 // pred_check
    _
  $region31: #{resnet18_forward.15} parent=0 // pred_check_branch
    %28 = sbr.rel (0) target = $region33
  $region32: #{resnet18_forward.15} parent=0 // pred_region
    _
  $region33: #{resnet18_forward.15} parent=0 // pred_fallthru
    _
  %v30 = vld [vmem:[%s0] sm:$0xff]
  %v31 = vld [vmem:[%s0 + $0x8] sm:$0xff]
  %v32 = vld [vmem:[%s0 + $0x10] sm:$0xff]
  %v33 = vld [vmem:[%s0 + $0x18] sm:$0xff]
  %v34 = vld [vmem:[%s0 + $0x20] sm:$0xff]
  %v35 = vld [vmem:[%s1] sm:$0xf]
  %v36 = vld [vmem:[%s1 + $0x4] sm:$0xf]
  %v37 = vld [vmem:[%s1 + $0x8] sm:$0xf]
  %v38 = vld [vmem:[%s1 + $0xc] sm:$0xf]
  %v39 = vld [vmem:[%s1 + $0x10] sm:$0xf]
  %v40 = vld [vmem:[%s1 + $0x14] sm:$0xf]
  %v41 = vld [vmem:[%s1 + $0x18] sm:$0xf]
  %v42 = vld [vmem:[%s1 + $0x1c] sm:$0xf]
  %v43 = vld [vmem:[%s1 + $0x20] sm:$0xf]
  %v44 = vld [vmem:[%s1 + $0x24] sm:$0xf]
  %v45 = vld [vmem:[%s1 + $0x28] sm:$0xf]
  %v46 = vld [vmem:[%s1 + $0x2c] sm:$0xf]
  %v47 = vld [vmem:[%s1 + $0x30] sm:$0xf]
  %v48 = vld [vmem:[%s1 + $0x34] sm:$0xf]
  %v49 = vld [vmem:[%s1 + $0x38] sm:$0xf]
  %v50 = vld [vmem:[%s1 + $0x3c] sm:$0xf]
  %v51 = vld [vmem:[%s1 + $0x40] sm:$0xf]
  %v52 = vld [vmem:[%s1 + $0x44] sm:$0xf]
  %v53 = vld [vmem:[%s2] sm:$0x1]
  %v55 = vlaneseq
  %v56 = vshrl.u32 %v55, 7
  %v57 = vsub.s32 0, %v56
  %v58 = vrot.slane %v53, %v57
  %v65 = vunpack.c.l.b16 %v30
  %v66 = vunpack.c.h.b16 %v30
  %v67 = vunpack.c.l.b16 %v31
  %v68 = vunpack.c.h.b16 %v31
  %v69 = vunpack.c.l.b16 %v32
  %v70 = vunpack.c.h.b16 %v32
  %v71 = vunpack.c.l.b16 %v33
  %v72 = vunpack.c.h.b16 %v33
  %v73 = vunpack.c.l.b16 %v34
  %v74 = vunpack.c.h.b16 %v34
  %v75 = vpack.c.b16 %v67, %v65
  %v76 = vpack.c.b16 %v68, %v66
  %v77 = vpack.c.b16 %v71, %v69
  %v78 = vpack.c.b16 %v72, %v70
  %v79 = vpack.c.b16 %v73, %v73
  %v80 = vpack.c.b16 %v74, %v74
  %v102 = vunpack.c.l.b16 %v35
  %v103 = vunpack.c.l.b16 %v36
  %v104 = vunpack.c.l.b16 %v37
  %v105 = vunpack.c.l.b16 %v38
  %v106 = vunpack.c.l.b16 %v39
  %v107 = vunpack.c.l.b16 %v40
  %v108 = vunpack.c.l.b16 %v41
  %v109 = vunpack.c.l.b16 %v42
  %v110 = vunpack.c.l.b16 %v43
  %v111 = vunpack.c.l.b16 %v44
  %v112 = vunpack.c.l.b16 %v45
  %v113 = vunpack.c.l.b16 %v46
  %v114 = vunpack.c.l.b16 %v47
  %v115 = vunpack.c.l.b16 %v48
  %v116 = vunpack.c.l.b16 %v49
  %v117 = vunpack.c.l.b16 %v50
  %v118 = vunpack.c.l.b16 %v51
  %v119 = vunpack.c.l.b16 %v52
  %v120 = vpack.c.b16 %v103, %v102
  %v121 = vpack.c.b16 %v105, %v104
  %v122 = vpack.c.b16 %v107, %v106
  %v123 = vpack.c.b16 %v109, %v108
  %v124 = vpack.c.b16 %v111, %v110
  %v125 = vpack.c.b16 %v113, %v112
  %v126 = vpack.c.b16 %v115, %v114
  %v127 = vpack.c.b16 %v117, %v116
  %v128 = vpack.c.b16 %v119, %v118
  %vm138 = vcmask 130048
  %v140 = vsel %vm138, %v76, 0
  %v143 = vsel %vm138, %v78, 0
  %v146 = vsel %vm138, %v80, 0
  %148 = vmatprep.subr.bf16.mxu0 0
  %149 = vmatpush1.bf16.msra.mxu0 %v120
  %150 = vmatprep.subr.bf16.mxu0 0
  %151 = vmatpush1.bf16.msra.mxu0 %v121
  %152 = vmatprep.subr.bf16.mxu0 0
  %153 = vmatpush1.bf16.msra.mxu0 %v122
  %154 = vmatprep.subr.bf16.mxu0 0
  %155 = vmatpush1.bf16.msra.mxu0 %v123
  %156 = vmatprep.subr.bf16.mxu0 0
  %157 = vmatpush1.bf16.msra.mxu0 %v124
  %158 = vmatprep.subr.bf16.mxu0 0
  %159 = vmatpush1.bf16.msra.mxu0 %v125
  %160 = vmatprep.subr.bf16.mxu0 0
  %161 = vmatpush1.bf16.msra.mxu0 %v126
  %162 = vmatprep.subr.bf16.mxu0 0
  %163 = vmatpush1.bf16.msra.mxu0 %v127
  %164 = vmatprep.subr.bf16.mxu0 0
  %165 = vmatpush1.bf16.msra.mxu0 %v128
  %166 = vmatprep.subr.bf16.mxu0 0
  %167 = vmatpush1.bf16.msra.mxu0 0
  %168 = vmatprep.subr.bf16.mxu0 0
  %169 = vmatpush1.bf16.msra.mxu0 0
  %170 = vmatprep.subr.bf16.mxu0 0
  %171 = vmatpush1.bf16.msra.mxu0 0
  %172 = vmatprep.subr.bf16.mxu0 0
  %173 = vmatpush1.bf16.msra.mxu0 0
  %174 = vmatprep.subr.bf16.mxu0 0
  %175 = vmatpush1.bf16.msra.mxu0 0
  %176 = vmatprep.subr.bf16.mxu0 0
  %177 = vmatpush1.bf16.msra.mxu0 0
  %178 = vmatprep.subr.bf16.mxu0 0
  %179 = vmatpush1.bf16.msra.mxu0 0
  %180 = vmatprep.mubr.bf16.mxu0 %v140
  %181 = vmatmul.mubr.bf16.gmra.mrb[0].mxu0 %v75
  %v182 = vpop.f32.mrb[0].mxu0
  %v183 = vadd.f32 %v58, %v182
  %v184 = vpop.f32.mrb[0].mxu0
  %v185 = vpop.f32.mrb[0].mxu0
  %v186 = vadd.f32 %v58, %v185
  %v187 = vpop.f32.mrb[0].mxu0
  %188 = vmatprep.mubr.bf16.mxu0 %v143
  %189 = vmatmul.mubr.bf16.gmra.mrb[0].mxu0 %v77
  %v190 = vpop.f32.mrb[0].mxu0
  %v191 = vadd.f32 %v58, %v190
  %v192 = vpop.f32.mrb[0].mxu0
  %v193 = vpop.f32.mrb[0].mxu0
  %v194 = vadd.f32 %v58, %v193
  %v195 = vpop.f32.mrb[0].mxu0
  %196 = vmatprep.mubr.bf16.mxu0 %v146
  %197 = vmatmul.mubr.bf16.gmra.mrb[0].mxu0 %v79
  %v198 = vpop.f32.mrb[0].mxu0
  %v199 = vadd.f32 %v58, %v198
  %v200 = vpop.f32.mrb[0].mxu0
  %v201 = vpop.f32.mrb[0].mxu0
  %v202 = vpop.f32.mrb[0].mxu0
  %203 = vdwg.mxu0
  %v204 = vmax.f32 %v183, 0.0
  %v205 = vmax.f32 %v186, 0.0
  %v206 = vmax.f32 %v191, 0.0
  %v207 = vmax.f32 %v194, 0.0
  %v208 = vmax.f32 %v199, 0.0
  %v209 = vld [vmem:[%s3] sm:$0xff]
  %v210 = vld [vmem:[%s3 + $0x8] sm:$0xff]
  %v211 = vld [vmem:[%s3 + $0x10] sm:$0xff]
  %v212 = vld [vmem:[%s3 + $0x18] sm:$0xff]
  %v213 = vld [vmem:[%s3 + $0x20] sm:$0xff]
  %215 = vset.pattern.permute.xlu0 0
  %216 = vperm.xlu0 %215, %v209
  %v217 = vpop.permute.xlu0 %216
  %220 = vset.pattern.permute.xlu0 0
  %221 = vperm.xlu0 %220, %v210
  %v222 = vpop.permute.xlu0 %221
  %225 = vset.pattern.permute.xlu0 0
  %226 = vperm.xlu0 %225, %v211
  %v227 = vpop.permute.xlu0 %226
  %230 = vset.pattern.permute.xlu0 0
  %231 = vperm.xlu0 %230, %v212
  %v232 = vpop.permute.xlu0 %231
  %235 = vset.pattern.permute.xlu0 0
  %236 = vperm.xlu0 %235, %v213
  %v237 = vpop.permute.xlu0 %236
  %v239 = vmul.f32 %v204, %v217
  %v240 = vmul.f32 %v205, %v222
  %v241 = vmul.f32 %v206, %v227
  %v242 = vmul.f32 %v207, %v232
  %v243 = vmul.f32 %v208, %v237
  %v244 = vpack.c.bf16 %v240, %v239
  %v245 = vpack.c.bf16 %v241, %v241
  %v246 = vld [vmem:[%s4] sm:$0xf]
  %v247 = vld [vmem:[%s4 + $0x4] sm:$0xf]
  %v248 = vld [vmem:[%s4 + $0x8] sm:$0xf]
  %v249 = vld [vmem:[%s4 + $0xc] sm:$0xf]
  %v250 = vpack.c.bf16 %v242, %v241
  %s251 = scalar_lea.vmem %s4, 16
  %v252 = vld [vmem:[%s251] sm:$0xf]
  %v253 = vld [vmem:[%s251 + $0x4] sm:$0xf]
  %v254 = vld [vmem:[%s251 + $0x8] sm:$0xf]
  %v255 = vld [vmem:[%s251 + $0xc] sm:$0xf]
  %vm256 = vsmask.f32 7424
  %v258 = vshrl.u32 %v244, 16
  %v260 = vshll.u32 %v244, 16
  %v262 = vrot.slane %v260, 1
  %v263 = vor.u32 %v258, %v262
  %v265 = vshll.u32 %v250, 16
  %v267 = vrot.slane %v265, 1
  %v268 = vsel %vm256, %v263, %v267
  %v269 = vshrl.u32 %v250, 16
  %v271 = vor.u32 %v269, %v267
  %v276 = vunpack.c.l.b16 %v252
  %v277 = vunpack.c.l.b16 %v253
  %v278 = vunpack.c.l.b16 %v254
  %v279 = vunpack.c.l.b16 %v255
  %v280 = vpack.c.b16 %v277, %v276
  %v281 = vpack.c.b16 %v279, %v278
  %vm284 = vcmask 261120
  %v286 = vsel %vm284, %v268, 0
  %v289 = vsel %vm284, %v271, 0
  %291 = vmatprep.subr.bf16.mxu0 0
  %292 = vmatpush1.bf16.msra.mxu0 %v280
  %293 = vmatprep.subr.bf16.mxu0 0
  %294 = vmatpush1.bf16.msra.mxu0 %v281
  %295 = vmatprep.subr.bf16.mxu0 0
  %296 = vmatpush1.bf16.msra.mxu0 0
  %297 = vmatprep.subr.bf16.mxu0 0
  %298 = vmatpush1.bf16.msra.mxu0 0
  %299 = vmatprep.subr.bf16.mxu0 0
  %300 = vmatpush1.bf16.msra.mxu0 0
  %301 = vmatprep.subr.bf16.mxu0 0
  %302 = vmatpush1.bf16.msra.mxu0 0
  %303 = vmatprep.subr.bf16.mxu0 0
  %304 = vmatpush1.bf16.msra.mxu0 0
  %305 = vmatprep.subr.bf16.mxu0 0
  %306 = vmatpush1.bf16.msra.mxu0 0
  %307 = vmatprep.subr.bf16.mxu0 0
  %308 = vmatpush1.bf16.msra.mxu0 0
  %309 = vmatprep.subr.bf16.mxu0 0
  %310 = vmatpush1.bf16.msra.mxu0 0
  %311 = vmatprep.subr.bf16.mxu0 0
  %312 = vmatpush1.bf16.msra.mxu0 0
  %313 = vmatprep.subr.bf16.mxu0 0
  %314 = vmatpush1.bf16.msra.mxu0 0
  %315 = vmatprep.subr.bf16.mxu0 0
  %316 = vmatpush1.bf16.msra.mxu0 0
  %317 = vmatprep.subr.bf16.mxu0 0
  %318 = vmatpush1.bf16.msra.mxu0 0
  %319 = vmatprep.subr.bf16.mxu0 0
  %320 = vmatpush1.bf16.msra.mxu0 0
  %321 = vmatprep.subr.bf16.mxu0 0
  %322 = vmatpush1.bf16.msra.mxu0 0
  %323 = vmatprep.mubr.bf16.mxu0 0
  %324 = vmatmul.mubr.bf16.gmra.mrb[0].mxu0 %v286
  %v325 = vpop.f32.mrb[0].mxu0
  %v326 = vadd.f32 0.0, %v325
  %v327 = vpop.f32.mrb[0].mxu0
  %v328 = vpop.f32.mrb[0].mxu0
  %v329 = vadd.f32 0.0, %v328
  %v330 = vpop.f32.mrb[0].mxu0
  %331 = vmatprep.mubr.bf16.mxu0 0
  %332 = vmatmul.mubr.bf16.gmra.mrb[0].mxu0 %v289
  %v333 = vpop.f32.mrb[0].mxu0
  %v334 = vadd.f32 0.0, %v333
  %v335 = vpop.f32.mrb[0].mxu0
  %v336 = vpop.f32.mrb[0].mxu0
  %v337 = vpop.f32.mrb[0].mxu0
  %338 = vdwg.mxu0
  %v343 = vunpack.c.l.b16 %v246
  %v344 = vunpack.c.l.b16 %v247
  %v345 = vunpack.c.l.b16 %v248
  %v346 = vunpack.c.l.b16 %v249
  %v347 = vpack.c.b16 %v344, %v343
  %v348 = vpack.c.b16 %v346, %v345
  %v351 = vsel %vm284, %v244, 0
  %v354 = vsel %vm284, %v245, 0
  %356 = vmatprep.subr.bf16.mxu0 0
  %357 = vmatpush1.bf16.msra.mxu0 %v347
  %358 = vmatprep.subr.bf16.mxu0 0
  %359 = vmatpush1.bf16.msra.mxu0 %v348
  %360 = vmatprep.subr.bf16.mxu0 0
  %361 = vmatpush1.bf16.msra.mxu0 0
  %362 = vmatprep.subr.bf16.mxu0 0
  %363 = vmatpush1.bf16.msra.mxu0 0
  %364 = vmatprep.subr.bf16.mxu0 0
  %365 = vmatpush1.bf16.msra.mxu0 0
  %366 = vmatprep.subr.bf16.mxu0 0
  %367 = vmatpush1.bf16.msra.mxu0 0
  %368 = vmatprep.subr.bf16.mxu0 0
  %369 = vmatpush1.bf16.msra.mxu0 0
  %370 = vmatprep.subr.bf16.mxu0 0
  %371 = vmatpush1.bf16.msra.mxu0 0
  %372 = vmatprep.subr.bf16.mxu0 0
  %373 = vmatpush1.bf16.msra.mxu0 0
  %374 = vmatprep.subr.bf16.mxu0 0
  %375 = vmatpush1.bf16.msra.mxu0 0
  %376 = vmatprep.subr.bf16.mxu0 0
  %377 = vmatpush1.bf16.msra.mxu0 0
  %378 = vmatprep.subr.bf16.mxu0 0
  %379 = vmatpush1.bf16.msra.mxu0 0
  %380 = vmatprep.subr.bf16.mxu0 0
  %381 = vmatpush1.bf16.msra.mxu0 0
  %382 = vmatprep.subr.bf16.mxu0 0
  %383 = vmatpush1.bf16.msra.mxu0 0
  %384 = vmatprep.subr.bf16.mxu0 0
  %385 = vmatpush1.bf16.msra.mxu0 0
  %386 = vmatprep.subr.bf16.mxu0 0
  %387 = vmatpush1.bf16.msra.mxu0 0
  %388 = vmatprep.mubr.bf16.mxu0 0
  %389 = vmatmul.mubr.bf16.gmra.mrb[0].mxu0 %v351
  %v390 = vpop.f32.mrb[0].mxu0
  %v391 = vadd.f32 %v326, %v390
  %v392 = vpop.f32.mrb[0].mxu0
  %v393 = vpop.f32.mrb[0].mxu0
  %v394 = vadd.f32 %v329, %v393
  %v395 = vpop.f32.mrb[0].mxu0
  %396 = vmatprep.mubr.bf16.mxu0 0
  %397 = vmatmul.mubr.bf16.gmra.mrb[0].mxu0 %v354
  %v398 = vpop.f32.mrb[0].mxu0
  %v399 = vadd.f32 %v334, %v398
  %v400 = vpop.f32.mrb[0].mxu0
  %v401 = vpop.f32.mrb[0].mxu0
  %v402 = vpop.f32.mrb[0].mxu0
  %403 = vdwg.mxu0
  %s404 = scalar_lea.vmem %s4, 32
  %v405 = vld [vmem:[%s404] sm:$0xf]
  %v406 = vld [vmem:[%s404 + $0x4] sm:$0xf]
  %v407 = vld [vmem:[%s404 + $0x8] sm:$0xf]
  %v408 = vld [vmem:[%s404 + $0xc] sm:$0xf]
  %vm411 = vcmask 1046528
  %v412 = vrot.slane %v244, 1
  %v413 = vrot.slane %v250, 1
  %v414 = vsel %vm411, %v412, %v413
  %v419 = vunpack.c.l.b16 %v405
  %v420 = vunpack.c.l.b16 %v406
  %v421 = vunpack.c.l.b16 %v407
  %v422 = vunpack.c.l.b16 %v408
  %v423 = vpack.c.b16 %v420, %v419
  %v424 = vpack.c.b16 %v422, %v421
  %v428 = vsel %vm284, %v414, 0
  %v431 = vsel %vm284, %v413, 0
  %433 = vmatprep.subr.bf16.mxu0 0
  %434 = vmatpush1.bf16.msra.mxu0 %v423
  %435 = vmatprep.subr.bf16.mxu0 0
  %436 = vmatpush1.bf16.msra.mxu0 %v424
  %437 = vmatprep.subr.bf16.mxu0 0
  %438 = vmatpush1.bf16.msra.mxu0 0
  %439 = vmatprep.subr.bf16.mxu0 0
  %440 = vmatpush1.bf16.msra.mxu0 0
  %441 = vmatprep.subr.bf16.mxu0 0
  %442 = vmatpush1.bf16.msra.mxu0 0
  %443 = vmatprep.subr.bf16.mxu0 0
  %444 = vmatpush1.bf16.msra.mxu0 0
  %445 = vmatprep.subr.bf16.mxu0 0
  %446 = vmatpush1.bf16.msra.mxu0 0
  %447 = vmatprep.subr.bf16.mxu0 0
  %448 = vmatpush1.bf16.msra.mxu0 0
  %449 = vmatprep.subr.bf16.mxu0 0
  %450 = vmatpush1.bf16.msra.mxu0 0
  %451 = vmatprep.subr.bf16.mxu0 0
  %452 = vmatpush1.bf16.msra.mxu0 0
  %453 = vmatprep.subr.bf16.mxu0 0
  %454 = vmatpush1.bf16.msra.mxu0 0
  %455 = vmatprep.subr.bf16.mxu0 0
  %456 = vmatpush1.bf16.msra.mxu0 0
  %457 = vmatprep.subr.bf16.mxu0 0
  %458 = vmatpush1.bf16.msra.mxu0 0
  %459 = vmatprep.subr.bf16.mxu0 0
  %460 = vmatpush1.bf16.msra.mxu0 0
  %461 = vmatprep.subr.bf16.mxu0 0
  %462 = vmatpush1.bf16.msra.mxu0 0
  %463 = vmatprep.subr.bf16.mxu0 0
  %464 = vmatpush1.bf16.msra.mxu0 0
  %465 = vmatprep.mubr.bf16.mxu0 0
  %466 = vmatmul.mubr.bf16.gmra.mrb[0].mxu0 %v428
  %v467 = vpop.f32.mrb[0].mxu0
  %v468 = vadd.f32 0.0, %v467
  %v469 = vpop.f32.mrb[0].mxu0
  %v470 = vpop.f32.mrb[0].mxu0
  %v471 = vadd.f32 0.0, %v470
  %v472 = vpop.f32.mrb[0].mxu0
  %473 = vmatprep.mubr.bf16.mxu0 0
  %474 = vmatmul.mubr.bf16.gmra.mrb[0].mxu0 %v431
  %v475 = vpop.f32.mrb[0].mxu0
  %v476 = vadd.f32 0.0, %v475
  %v477 = vpop.f32.mrb[0].mxu0
  %v478 = vpop.f32.mrb[0].mxu0
  %v479 = vpop.f32.mrb[0].mxu0
  %480 = vdwg.mxu0
  %v481 = vadd.f32 %v391, %v468
  %v482 = vadd.f32 %v394, %v471
  %v483 = vadd.f32 %v399, %v476
  %s484 = scalar_lea.vmem %s4, 48
  %v485 = vld [vmem:[%s484] sm:$0xf]
  %v486 = vld [vmem:[%s484 + $0x4] sm:$0xf]
  %v487 = vld [vmem:[%s484 + $0x8] sm:$0xf]
  %v488 = vld [vmem:[%s484 + $0xc] sm:$0xf]
  %vm489 = vcmask 1045504
  %v490 = vrot.slane %v244, 2
  %v491 = vrot.slane %v250, 2
  %v492 = vsel %vm489, %v490, %v491
  %v497 = vunpack.c.l.b16 %v485
  %v498 = vunpack.c.l.b16 %v486
  %v499 = vunpack.c.l.b16 %v487
  %v500 = vunpack.c.l.b16 %v488
  %v501 = vpack.c.b16 %v498, %v497
  %v502 = vpack.c.b16 %v500, %v499
  %v506 = vsel %vm284, %v492, 0
  %v509 = vsel %vm284, %v491, 0
  %511 = vmatprep.subr.bf16.mxu0 0
  %512 = vmatpush1.bf16.msra.mxu0 %v501
  %513 = vmatprep.subr.bf16.mxu0 0
  %514 = vmatpush1.bf16.msra.mxu0 %v502
  %515 = vmatprep.subr.bf16.mxu0 0
  %516 = vmatpush1.bf16.msra.mxu0 0
  %517 = vmatprep.subr.bf16.mxu0 0
  %518 = vmatpush1.bf16.msra.mxu0 0
  %519 = vmatprep.subr.bf16.mxu0 0
  %520 = vmatpush1.bf16.msra.mxu0 0
  %521 = vmatprep.subr.bf16.mxu0 0
  %522 = vmatpush1.bf16.msra.mxu0 0
  %523 = vmatprep.subr.bf16.mxu0 0
  %524 = vmatpush1.bf16.msra.mxu0 0
  %525 = vmatprep.subr.bf16.mxu0 0
  %526 = vmatpush1.bf16.msra.mxu0 0
  %527 = vmatprep.subr.bf16.mxu0 0
  %528 = vmatpush1.bf16.msra.mxu0 0
  %529 = vmatprep.subr.bf16.mxu0 0
  %530 = vmatpush1.bf16.msra.mxu0 0
  %531 = vmatprep.subr.bf16.mxu0 0
  %532 = vmatpush1.bf16.msra.mxu0 0
  %533 = vmatprep.subr.bf16.mxu0 0
  %534 = vmatpush1.bf16.msra.mxu0 0
  %535 = vmatprep.subr.bf16.mxu0 0
  %536 = vmatpush1.bf16.msra.mxu0 0
  %537 = vmatprep.subr.bf16.mxu0 0
  %538 = vmatpush1.bf16.msra.mxu0 0
  %539 = vmatprep.subr.bf16.mxu0 0
  %540 = vmatpush1.bf16.msra.mxu0 0
  %541 = vmatprep.subr.bf16.mxu0 0
  %542 = vmatpush1.bf16.msra.mxu0 0
  %543 = vmatprep.mubr.bf16.mxu0 0
  %544 = vmatmul.mubr.bf16.gmra.mrb[0].mxu0 %v506
  %v545 = vpop.f32.mrb[0].mxu0
  %v546 = vadd.f32 0.0, %v545
  %v547 = vpop.f32.mrb[0].mxu0
  %v548 = vpop.f32.mrb[0].mxu0
  %v549 = vadd.f32 0.0, %v548
  %v550 = vpop.f32.mrb[0].mxu0
  %551 = vmatprep.mubr.bf16.mxu0 0
  %552 = vmatmul.mubr.bf16.gmra.mrb[0].mxu0 %v509
  %v553 = vpop.f32.mrb[0].mxu0
  %v554 = vadd.f32 0.0, %v553
  %v555 = vpop.f32.mrb[0].mxu0
  %v556 = vpop.f32.mrb[0].mxu0
  %v557 = vpop.f32.mrb[0].mxu0
  %558 = vdwg.mxu0
  %v559 = vadd.f32 %v481, %v546
  %v560 = vadd.f32 %v482, %v549
  %v561 = vadd.f32 %v483, %v554
  %s562 = scalar_lea.vmem %s4, 64
  %v563 = vld [vmem:[%s562] sm:$0xf]
  %v564 = vld [vmem:[%s562 + $0x4] sm:$0xf]
  %v565 = vld [vmem:[%s562 + $0x8] sm:$0xf]
  %v566 = vld [vmem:[%s562 + $0xc] sm:$0xf]
  %vm567 = vsmask.f32 5376
  %v568 = vrot.slane %v258, 2
  %v569 = vrot.slane %v260, 3
  %v570 = vor.u32 %v568, %v569
  %v571 = vrot.slane %v269, 2
  %v572 = vrot.slane %v265, 3
  %v573 = vor.u32 %v571, %v572
  %v574 = vsel %vm567, %v570, %v573
  %v579 = vunpack.c.l.b16 %v563
  %v580 = vunpack.c.l.b16 %v564
  %v581 = vunpack.c.l.b16 %v565
  %v582 = vunpack.c.l.b16 %v566
  %v583 = vpack.c.b16 %v580, %v579
  %v584 = vpack.c.b16 %v582, %v581
  %v588 = vsel %vm284, %v574, 0
  %v591 = vsel %vm284, %v573, 0
  %593 = vmatprep.subr.bf16.mxu0 0
  %594 = vmatpush1.bf16.msra.mxu0 %v583
  %595 = vmatprep.subr.bf16.mxu0 0
  %596 = vmatpush1.bf16.msra.mxu0 %v584
  %597 = vmatprep.subr.bf16.mxu0 0
  %598 = vmatpush1.bf16.msra.mxu0 0
  %599 = vmatprep.subr.bf16.mxu0 0
  %600 = vmatpush1.bf16.msra.mxu0 0
  %601 = vmatprep.subr.bf16.mxu0 0
  %602 = vmatpush1.bf16.msra.mxu0 0
  %603 = vmatprep.subr.bf16.mxu0 0
  %604 = vmatpush1.bf16.msra.mxu0 0
  %605 = vmatprep.subr.bf16.mxu0 0
  %606 = vmatpush1.bf16.msra.mxu0 0
  %607 = vmatprep.subr.bf16.mxu0 0
  %608 = vmatpush1.bf16.msra.mxu0 0
  %609 = vmatprep.subr.bf16.mxu0 0
  %610 = vmatpush1.bf16.msra.mxu0 0
  %611 = vmatprep.subr.bf16.mxu0 0
  %612 = vmatpush1.bf16.msra.mxu0 0
  %613 = vmatprep.subr.bf16.mxu0 0
  %614 = vmatpush1.bf16.msra.mxu0 0
  %615 = vmatprep.subr.bf16.mxu0 0
  %616 = vmatpush1.bf16.msra.mxu0 0
  %617 = vmatprep.subr.bf16.mxu0 0
  %618 = vmatpush1.bf16.msra.mxu0 0
  %619 = vmatprep.subr.bf16.mxu0 0
  %620 = vmatpush1.bf16.msra.mxu0 0
  %621 = vmatprep.subr.bf16.mxu0 0
  %622 = vmatpush1.bf16.msra.mxu0 0
  %623 = vmatprep.subr.bf16.mxu0 0
  %624 = vmatpush1.bf16.msra.mxu0 0
  %625 = vmatprep.mubr.bf16.mxu0 0
  %626 = vmatmul.mubr.bf16.gmra.mrb[0].mxu0 %v588
  %v627 = vpop.f32.mrb[0].mxu0
  %v628 = vadd.f32 0.0, %v627
  %v629 = vpop.f32.mrb[0].mxu0
  %v630 = vpop.f32.mrb[0].mxu0
  %v631 = vadd.f32 0.0, %v630
  %v632 = vpop.f32.mrb[0].mxu0
  %633 = vmatprep.mubr.bf16.mxu0 0
  %634 = vmatmul.mubr.bf16.gmra.mrb[0].mxu0 %v591
  %v635 = vpop.f32.mrb[0].mxu0
  %v636 = vadd.f32 0.0, %v635
  %v637 = vpop.f32.mrb[0].mxu0
  %v638 = vpop.f32.mrb[0].mxu0
  %v639 = vpop.f32.mrb[0].mxu0
  %640 = vdwg.mxu0
  %v641 = vadd.f32 %v559, %v628
  %v642 = vadd.f32 %v560, %v631
  %v643 = vadd.f32 %v561, %v636
  %s644 = scalar_lea.vmem %s4, 80
  %v645 = vld [vmem:[%s644] sm:$0xf]
  %v646 = vld [vmem:[%s644 + $0x4] sm:$0xf]
  %v647 = vld [vmem:[%s644 + $0x8] sm:$0xf]
  %v648 = vld [vmem:[%s644 + $0xc] sm:$0xf]
  %vm649 = vcmask 1044480
  %v650 = vrot.slane %v244, 3
  %v651 = vrot.slane %v250, 3
  %v652 = vsel %vm649, %v650, %v651
  %v657 = vunpack.c.l.b16 %v645
  %v658 = vunpack.c.l.b16 %v646
  %v659 = vunpack.c.l.b16 %v647
  %v660 = vunpack.c.l.b16 %v648
  %v661 = vpack.c.b16 %v658, %v657
  %v662 = vpack.c.b16 %v660, %v659
  %v666 = vsel %vm284, %v652, 0
  %v669 = vsel %vm284, %v651, 0
  %671 = vmatprep.subr.bf16.mxu0 0
  %672 = vmatpush1.bf16.msra.mxu0 %v661
  %673 = vmatprep.subr.bf16.mxu0 0
  %674 = vmatpush1.bf16.msra.mxu0 %v662
  %675 = vmatprep.subr.bf16.mxu0 0
  %676 = vmatpush1.bf16.msra.mxu0 0
  %677 = vmatprep.subr.bf16.mxu0 0
  %678 = vmatpush1.bf16.msra.mxu0 0
  %679 = vmatprep.subr.bf16.mxu0 0
  %680 = vmatpush1.bf16.msra.mxu0 0
  %681 = vmatprep.subr.bf16.mxu0 0
  %682 = vmatpush1.bf16.msra.mxu0 0
  %683 = vmatprep.subr.bf16.mxu0 0
  %684 = vmatpush1.bf16.msra.mxu0 0
  %685 = vmatprep.subr.bf16.mxu0 0
  %686 = vmatpush1.bf16.msra.mxu0 0
  %687 = vmatprep.subr.bf16.mxu0 0
  %688 = vmatpush1.bf16.msra.mxu0 0
  %689 = vmatprep.subr.bf16.mxu0 0
  %690 = vmatpush1.bf16.msra.mxu0 0
  %691 = vmatprep.subr.bf16.mxu0 0
  %692 = vmatpush1.bf16.msra.mxu0 0
  %693 = vmatprep.subr.bf16.mxu0 0
  %694 = vmatpush1.bf16.msra.mxu0 0
  %695 = vmatprep.subr.bf16.mxu0 0
  %696 = vmatpush1.bf16.msra.mxu0 0
  %697 = vmatprep.subr.bf16.mxu0 0
  %698 = vmatpush1.bf16.msra.mxu0 0
  %699 = vmatprep.subr.bf16.mxu0 0
  %700 = vmatpush1.bf16.msra.mxu0 0
  %701 = vmatprep.subr.bf16.mxu0 0
  %702 = vmatpush1.bf16.msra.mxu0 0
  %703 = vmatprep.mubr.bf16.mxu0 0
  %704 = vmatmul.mubr.bf16.gmra.mrb[0].mxu0 %v666
  %v705 = vpop.f32.mrb[0].mxu0
  %v706 = vadd.f32 0.0, %v705
  %v707 = vpop.f32.mrb[0].mxu0
  %v708 = vpop.f32.mrb[0].mxu0
  %v709 = vadd.f32 0.0, %v708
  %v710 = vpop.f32.mrb[0].mxu0
  %711 = vmatprep.mubr.bf16.mxu0 0
  %712 = vmatmul.mubr.bf16.gmra.mrb[0].mxu0 %v669
  %v713 = vpop.f32.mrb[0].mxu0
  %v714 = vadd.f32 0.0, %v713
  %v715 = vpop.f32.mrb[0].mxu0
  %v716 = vpop.f32.mrb[0].mxu0
  %v717 = vpop.f32.mrb[0].mxu0
  %718 = vdwg.mxu0
  %v719 = vadd.f32 %v641, %v706
  %v720 = vadd.f32 %v642, %v709
  %v721 = vadd.f32 %v643, %v714
  %v722 = vpack.c.bf16 %v241, %v240
  %v723 = vpack.c.bf16 %v242, %v242
  %s724 = scalar_lea.vmem %s4, 96
  %v725 = vld [vmem:[%s724] sm:$0xf]
  %v726 = vld [vmem:[%s724 + $0x4] sm:$0xf]
  %v727 = vld [vmem:[%s724 + $0x8] sm:$0xf]
  %v728 = vld [vmem:[%s724 + $0xc] sm:$0xf]
  %v733 = vunpack.c.l.b16 %v725
  %v734 = vunpack.c.l.b16 %v726
  %v735 = vunpack.c.l.b16 %v727
  %v736 = vunpack.c.l.b16 %v728
  %v737 = vpack.c.b16 %v734, %v733
  %v738 = vpack.c.b16 %v736, %v735
  %v742 = vsel %vm284, %v722, 0
  %v745 = vsel %vm284, %v723, 0
  %747 = vmatprep.subr.bf16.mxu0 0
  %748 = vmatpush1.bf16.msra.mxu0 %v737
  %749 = vmatprep.subr.bf16.mxu0 0
  %750 = vmatpush1.bf16.msra.mxu0 %v738
  %751 = vmatprep.subr.bf16.mxu0 0
  %752 = vmatpush1.bf16.msra.mxu0 0
  %753 = vmatprep.subr.bf16.mxu0 0
  %754 = vmatpush1.bf16.msra.mxu0 0
  %755 = vmatprep.subr.bf16.mxu0 0
  %756 = vmatpush1.bf16.msra.mxu0 0
  %757 = vmatprep.subr.bf16.mxu0 0
  %758 = vmatpush1.bf16.msra.mxu0 0
  %759 = vmatprep.subr.bf16.mxu0 0
  %760 = vmatpush1.bf16.msra.mxu0 0
  %761 = vmatprep.subr.bf16.mxu0 0
  %762 = vmatpush1.bf16.msra.mxu0 0
  %763 = vmatprep.subr.bf16.mxu0 0
  %764 = vmatpush1.bf16.msra.mxu0 0
  %765 = vmatprep.subr.bf16.mxu0 0
  %766 = vmatpush1.bf16.msra.mxu0 0
  %767 = vmatprep.subr.bf16.mxu0 0
  %768 = vmatpush1.bf16.msra.mxu0 0
  %769 = vmatprep.subr.bf16.mxu0 0
  %770 = vmatpush1.bf16.msra.mxu0 0
  %771 = vmatprep.subr.bf16.mxu0 0
  %772 = vmatpush1.bf16.msra.mxu0 0
  %773 = vmatprep.subr.bf16.mxu0 0
  %774 = vmatpush1.bf16.msra.mxu0 0
  %775 = vmatprep.subr.bf16.mxu0 0
  %776 = vmatpush1.bf16.msra.mxu0 0
  %777 = vmatprep.subr.bf16.mxu0 0
  %778 = vmatpush1.bf16.msra.mxu0 0
  %779 = vmatprep.mubr.bf16.mxu0 0
  %780 = vmatmul.mubr.bf16.gmra.mrb[0].mxu0 %v742
  %v781 = vpop.f32.mrb[0].mxu0
  %v782 = vadd.f32 0.0, %v781
  %v783 = vpop.f32.mrb[0].mxu0
  %v784 = vpop.f32.mrb[0].mxu0
  %v785 = vadd.f32 0.0, %v784
  %v786 = vpop.f32.mrb[0].mxu0
  %787 = vmatprep.mubr.bf16.mxu0 0
  %788 = vmatmul.mubr.bf16.gmra.mrb[0].mxu0 %v745
  %v789 = vpop.f32.mrb[0].mxu0
  %v790 = vadd.f32 0.0, %v789
  %v791 = vpop.f32.mrb[0].mxu0
  %v792 = vpop.f32.mrb[0].mxu0
  %v793 = vpop.f32.mrb[0].mxu0
  %794 = vdwg.mxu0
  %v795 = vadd.f32 %v719, %v782
  %v796 = vadd.f32 %v720, %v785
  %v797 = vadd.f32 %v721, %v790
  %v798 = vpack.c.bf16 %v243, %v242
  %s799 = scalar_lea.vmem %s4, 112
  %v800 = vld [vmem:[%s799] sm:$0xf]
  %v801 = vld [vmem:[%s799 + $0x4] sm:$0xf]
  %v802 = vld [vmem:[%s799 + $0x8] sm:$0xf]
  %v803 = vld [vmem:[%s799 + $0xc] sm:$0xf]
  %v804 = vshrl.u32 %v722, 16
  %v806 = vshll.u32 %v722, 16
  %v808 = vrot.slane %v806, 1
  %v809 = vor.u32 %v804, %v808
  %v811 = vshll.u32 %v798, 16
  %v813 = vrot.slane %v811, 1
  %v814 = vsel %vm256, %v809, %v813
  %v815 = vshrl.u32 %v798, 16
  %v817 = vor.u32 %v815, %v813
  %v822 = vunpack.c.l.b16 %v800
  %v823 = vunpack.c.l.b16 %v801
  %v824 = vunpack.c.l.b16 %v802
  %v825 = vunpack.c.l.b16 %v803
  %v826 = vpack.c.b16 %v823, %v822
  %v827 = vpack.c.b16 %v825, %v824
  %v831 = vsel %vm284, %v814, 0
  %v834 = vsel %vm284, %v817, 0
  %836 = vmatprep.subr.bf16.mxu0 0
  %837 = vmatpush1.bf16.msra.mxu0 %v826
  %838 = vmatprep.subr.bf16.mxu0 0
  %839 = vmatpush1.bf16.msra.mxu0 %v827
  %840 = vmatprep.subr.bf16.mxu0 0
  %841 = vmatpush1.bf16.msra.mxu0 0
  %842 = vmatprep.subr.bf16.mxu0 0
  %843 = vmatpush1.bf16.msra.mxu0 0
  %844 = vmatprep.subr.bf16.mxu0 0
  %845 = vmatpush1.bf16.msra.mxu0 0
  %846 = vmatprep.subr.bf16.mxu0 0
  %847 = vmatpush1.bf16.msra.mxu0 0
  %848 = vmatprep.subr.bf16.mxu0 0
  %849 = vmatpush1.bf16.msra.mxu0 0
  %850 = vmatprep.subr.bf16.mxu0 0
  %851 = vmatpush1.bf16.msra.mxu0 0
  %852 = vmatprep.subr.bf16.mxu0 0
  %853 = vmatpush1.bf16.msra.mxu0 0
  %854 = vmatprep.subr.bf16.mxu0 0
  %855 = vmatpush1.bf16.msra.mxu0 0
  %856 = vmatprep.subr.bf16.mxu0 0
  %857 = vmatpush1.bf16.msra.mxu0 0
  %858 = vmatprep.subr.bf16.mxu0 0
  %859 = vmatpush1.bf16.msra.mxu0 0
  %860 = vmatprep.subr.bf16.mxu0 0
  %861 = vmatpush1.bf16.msra.mxu0 0
  %862 = vmatprep.subr.bf16.mxu0 0
  %863 = vmatpush1.bf16.msra.mxu0 0
  %864 = vmatprep.subr.bf16.mxu0 0
  %865 = vmatpush1.bf16.msra.mxu0 0
  %866 = vmatprep.subr.bf16.mxu0 0
  %867 = vmatpush1.bf16.msra.mxu0 0
  %868 = vmatprep.mubr.bf16.mxu0 0
  %869 = vmatmul.mubr.bf16.gmra.mrb[0].mxu0 %v831
  %v870 = vpop.f32.mrb[0].mxu0
  %v871 = vadd.f32 0.0, %v870
  %v872 = vpop.f32.mrb[0].mxu0
  %v873 = vpop.f32.mrb[0].mxu0
  %v874 = vadd.f32 0.0, %v873
  %v875 = vpop.f32.mrb[0].mxu0
  %876 = vmatprep.mubr.bf16.mxu0 0
  %877 = vmatmul.mubr.bf16.gmra.mrb[0].mxu0 %v834
  %v878 = vpop.f32.mrb[0].mxu0
  %v879 = vadd.f32 0.0, %v878
  %v880 = vpop.f32.mrb[0].mxu0
  %v881 = vpop.f32.mrb[0].mxu0
  %v882 = vpop.f32.mrb[0].mxu0
  %883 = vdwg.mxu0
  %v884 = vadd.f32 %v795, %v871
  %v885 = vadd.f32 %v796, %v874
  %v886 = vadd.f32 %v797, %v879
  %s887 = scalar_lea.vmem %s4, 128
  %v888 = vld [vmem:[%s887] sm:$0xf]
  %v889 = vld [vmem:[%s887 + $0x4] sm:$0xf]
  %v890 = vld [vmem:[%s887 + $0x8] sm:$0xf]
  %v891 = vld [vmem:[%s887 + $0xc] sm:$0xf]
  %v894 = vrot.slane %v722, 1
  %v895 = vrot.slane %v798, 1
  %v896 = vsel %vm411, %v894, %v895
  %v901 = vunpack.c.l.b16 %v888
  %v902 = vunpack.c.l.b16 %v889
  %v903 = vunpack.c.l.b16 %v890
  %v904 = vunpack.c.l.b16 %v891
  %v905 = vpack.c.b16 %v902, %v901
  %v906 = vpack.c.b16 %v904, %v903
  %v910 = vsel %vm284, %v896, 0
  %v913 = vsel %vm284, %v895, 0
  %915 = vmatprep.subr.bf16.mxu0 0
  %916 = vmatpush1.bf16.msra.mxu0 %v905
  %917 = vmatprep.subr.bf16.mxu0 0
  %918 = vmatpush1.bf16.msra.mxu0 %v906
  %919 = vmatprep.subr.bf16.mxu0 0
  %920 = vmatpush1.bf16.msra.mxu0 0
  %921 = vmatprep.subr.bf16.mxu0 0
  %922 = vmatpush1.bf16.msra.mxu0 0
  %923 = vmatprep.subr.bf16.mxu0 0
  %924 = vmatpush1.bf16.msra.mxu0 0
  %925 = vmatprep.subr.bf16.mxu0 0
  %926 = vmatpush1.bf16.msra.mxu0 0
  %927 = vmatprep.subr.bf16.mxu0 0
  %928 = vmatpush1.bf16.msra.mxu0 0
  %929 = vmatprep.subr.bf16.mxu0 0
  %930 = vmatpush1.bf16.msra.mxu0 0
  %931 = vmatprep.subr.bf16.mxu0 0
  %932 = vmatpush1.bf16.msra.mxu0 0
  %933 = vmatprep.subr.bf16.mxu0 0
  %934 = vmatpush1.bf16.msra.mxu0 0
  %935 = vmatprep.subr.bf16.mxu0 0
  %936 = vmatpush1.bf16.msra.mxu0 0
  %937 = vmatprep.subr.bf16.mxu0 0
  %938 = vmatpush1.bf16.msra.mxu0 0
  %939 = vmatprep.subr.bf16.mxu0 0
  %940 = vmatpush1.bf16.msra.mxu0 0
  %941 = vmatprep.subr.bf16.mxu0 0
  %942 = vmatpush1.bf16.msra.mxu0 0
  %943 = vmatprep.subr.bf16.mxu0 0
  %944 = vmatpush1.bf16.msra.mxu0 0
  %945 = vmatprep.subr.bf16.mxu0 0
  %946 = vmatpush1.bf16.msra.mxu0 0
  %947 = vmatprep.mubr.bf16.mxu0 0
  %948 = vmatmul.mubr.bf16.gmra.mrb[0].mxu0 %v910
  %v949 = vpop.f32.mrb[0].mxu0
  %v950 = vadd.f32 0.0, %v949
  %v951 = vpop.f32.mrb[0].mxu0
  %v952 = vpop.f32.mrb[0].mxu0
  %v953 = vadd.f32 0.0, %v952
  %v954 = vpop.f32.mrb[0].mxu0
  %955 = vmatprep.mubr.bf16.mxu0 0
  %956 = vmatmul.mubr.bf16.gmra.mrb[0].mxu0 %v913
  %v957 = vpop.f32.mrb[0].mxu0
  %v958 = vadd.f32 0.0, %v957
  %v959 = vpop.f32.mrb[0].mxu0
  %v960 = vpop.f32.mrb[0].mxu0
  %v961 = vpop.f32.mrb[0].mxu0
  %962 = vdwg.mxu0
  %v963 = vadd.f32 %v884, %v950
  %v964 = vadd.f32 %v885, %v953
  %v965 = vadd.f32 %v886, %v958
  %v966 = vld [vmem:[%s5] sm:$0x1]
  %v968 = vlaneseq
  %v969 = vshrl.u32 %v968, 7
  %v970 = vsub.s32 0, %v969
  %v971 = vrot.slane %v966, %v970
  %v973 = vadd.f32 %v963, %v971
  %v974 = vadd.f32 %v964, %v971
  %v975 = vadd.f32 %v965, %v971
  %v976 = vld [vmem:[%s6] sm:$0xf]
  %v977 = vld [vmem:[%s6 + $0x4] sm:$0xf]
  %v978 = vld [vmem:[%s6 + $0x8] sm:$0xf]
  %v979 = vld [vmem:[%s7] sm:$0xf]
  %v980 = vld [vmem:[%s7 + $0x4] sm:$0xf]
  %v984 = vunpack.c.l.b16 %v976
  %v985 = vunpack.c.l.b16 %v977
  %v986 = vunpack.c.l.b16 %v978
  %v987 = vpack.c.b16 %v985, %v984
  %v988 = vpack.c.b16 %v986, %v986
  %v991 = vunpack.c.l.b16 %v979
  %v992 = vunpack.c.l.b16 %v980
  %v993 = vpack.c.b16 %v992, %v991
  %v996 = vsel %vm138, %v987, 0
  %v999 = vsel %vm138, %v988, 0
  %1001 = vmatprep.subr.bf16.mxu0 0
  %1002 = vmatpush1.bf16.msra.mxu0 %v993
  %1003 = vmatprep.subr.bf16.mxu0 0
  %1004 = vmatpush1.bf16.msra.mxu0 0
  %1005 = vmatprep.subr.bf16.mxu0 0
  %1006 = vmatpush1.bf16.msra.mxu0 0
  %1007 = vmatprep.subr.bf16.mxu0 0
  %1008 = vmatpush1.bf16.msra.mxu0 0
  %1009 = vmatprep.subr.bf16.mxu0 0
  %1010 = vmatpush1.bf16.msra.mxu0 0
  %1011 = vmatprep.subr.bf16.mxu0 0
  %1012 = vmatpush1.bf16.msra.mxu0 0
  %1013 = vmatprep.subr.bf16.mxu0 0
  %1014 = vmatpush1.bf16.msra.mxu0 0
  %1015 = vmatprep.subr.bf16.mxu0 0
  %1016 = vmatpush1.bf16.msra.mxu0 0
  %1017 = vmatprep.subr.bf16.mxu0 0
  %1018 = vmatpush1.bf16.msra.mxu0 0
  %1019 = vmatprep.subr.bf16.mxu0 0
  %1020 = vmatpush1.bf16.msra.mxu0 0
  %1021 = vmatprep.subr.bf16.mxu0 0
  %1022 = vmatpush1.bf16.msra.mxu0 0
  %1023 = vmatprep.subr.bf16.mxu0 0
  %1024 = vmatpush1.bf16.msra.mxu0 0
  %1025 = vmatprep.subr.bf16.mxu0 0
  %1026 = vmatpush1.bf16.msra.mxu0 0
  %1027 = vmatprep.subr.bf16.mxu0 0
  %1028 = vmatpush1.bf16.msra.mxu0 0
  %1029 = vmatprep.subr.bf16.mxu0 0
  %1030 = vmatpush1.bf16.msra.mxu0 0
  %1031 = vmatprep.subr.bf16.mxu0 0
  %1032 = vmatpush1.bf16.msra.mxu0 0
  %1033 = vmatprep.mubr.bf16.mxu0 0
  %1034 = vmatmul.mubr.bf16.gmra.mrb[0].mxu0 %v996
  %v1035 = vpop.f32.mrb[0].mxu0
  %v1036 = vadd.f32 0.0, %v1035
  %v1037 = vpop.f32.mrb[0].mxu0
  %v1038 = vpop.f32.mrb[0].mxu0
  %v1039 = vadd.f32 0.0, %v1038
  %v1040 = vpop.f32.mrb[0].mxu0
  %1041 = vmatprep.mubr.bf16.mxu0 0
  %1042 = vmatmul.mubr.bf16.gmra.mrb[0].mxu0 %v999
  %v1043 = vpop.f32.mrb[0].mxu0
  %v1044 = vadd.f32 0.0, %v1043
  %v1045 = vpop.f32.mrb[0].mxu0
  %v1046 = vpop.f32.mrb[0].mxu0
  %v1047 = vpop.f32.mrb[0].mxu0
  %1048 = vdwg.mxu0
  %v1049 = vadd.f32 %v973, %v1036
  %v1050 = vadd.f32 %v974, %v1039
  %v1051 = vadd.f32 %v975, %v1044
  %v1052 = vmax.f32 %v1049, 0.0
  %v1053 = vmax.f32 %v1050, 0.0
  %v1054 = vmax.f32 %v1051, 0.0
  %v1055 = vpack.c.bf16 %v1053, %v1052
  %v1056 = vpack.c.bf16 %v1054, %v1054
  %v1059 = vunpack.c.l.b16 %v1055
  %v1060 = vunpack.c.h.b16 %v1055
  %v1061 = vunpack.c.l.b16 %v1056
  %v1062 = vpack.c.b16 %v1059, %v1059
  %v1063 = vpack.c.b16 %v1060, %v1060
  %v1064 = vpack.c.b16 %v1061, %v1061
  %vm1068 = vcmask 257024
  %1069 = vst.msk [vmem:[%s8] sm:$0xf] %vm1068, %v1062
  %1070 = vst.msk [vmem:[%s8 + $0x4] sm:$0xf] %vm1068, %v1063
  %1071 = vst.msk [vmem:[%s8 + $0x8] sm:$0xf] %vm1068, %v1064
  // Predicated region
  $region34: #{resnet18_forward.15} parent=0 // pred_check
    _
  $region35: #{resnet18_forward.15} parent=0 // pred_check_branch
    %1073 = sbr.rel (0) target = $region37
  $region36: #{resnet18_forward.15} parent=0 // pred_region
    _
  $region37: #{resnet18_forward.15} parent=0 // pred_fallthru
    _
  // Predicated region
  $region38: #{resnet18_forward.15} parent=0 // pred_check
    _
  $region39: #{resnet18_forward.15} parent=0 // pred_check_branch
    %1075 = sbr.rel (0) target = $region41
  $region40: #{resnet18_forward.15} parent=0 // pred_region
    _
  $region41: #{resnet18_forward.15} parent=0 // pred_fallthru
    _

// kernel: resnet18_forward.16
$region0: #{resnet18_forward.16}
  #allocation0 [shape = 'u32[]', space=smem, size = 0x4, offset = 0x4, fixed_abs, tag = 'smem constant byte address 0x4 - core index']
  #allocation1 [shape = 'u32[144,128]{1,0:T(1,128)}', space=vmem, size = 0x12000, scoped, tag = 'internal scratch']
  %s0 = inlined_call_operand.vmem [shape: bf16[40,288], index: 0, kind: input, shape index: {}]
  %s1 = inlined_call_operand.vmem [shape: bf16[288,32], index: 1, kind: input, shape index: {}]
  %s2 = inlined_call_operand.vmem [shape: f32[1,32], index: 2, kind: input, shape index: {}]
  %s3 = inlined_call_operand.vmem [shape: f32[40,1], index: 3, kind: input, shape index: {}]
  %s4 = inlined_call_operand.vmem [shape: bf16[9,32,32], index: 4, kind: input, shape index: {}]
  %s5 = inlined_call_operand.vmem [shape: f32[1,32], index: 5, kind: input, shape index: {}]
  %s6 = inlined_call_operand.vmem [shape: bf16[24,32], index: 6, kind: input, shape index: {}]
  %s7 = inlined_call_operand.vmem [shape: bf16[24,32], index: 7, kind: output, shape index: {}]
  %s8 = sld [smem:[#allocation0]]
  $region38: #{resnet18_forward.16} parent=0
    _
  %s10 = ssub.s32 1, %s8
  %s11 = scalar_select 0, %s10, %s8
  // Predicated region
  $region2: #{resnet18_forward.16} parent=0 // pred_check
    _
  $region3: #{resnet18_forward.16} parent=0 // pred_check_branch
    %13 = sbr.rel (0) target = $region5
  $region4: #{resnet18_forward.16} parent=0 // pred_region
    _
  $region5: #{resnet18_forward.16} parent=0 // pred_fallthru
    _
  // Predicated region
  $region6: #{resnet18_forward.16} parent=0 // pred_check
    _
  $region7: #{resnet18_forward.16} parent=0 // pred_check_branch
    %15 = sbr.rel (0) target = $region9
  $region8: #{resnet18_forward.16} parent=0 // pred_region
    _
  $region9: #{resnet18_forward.16} parent=0 // pred_fallthru
    _
  // Predicated region
  $region10: #{resnet18_forward.16} parent=0 // pred_check
    _
  $region11: #{resnet18_forward.16} parent=0 // pred_check_branch
    %17 = sbr.rel (0) target = $region13
  $region12: #{resnet18_forward.16} parent=0 // pred_region
    _
  $region13: #{resnet18_forward.16} parent=0 // pred_fallthru
    _
  // Predicated region
  $region14: #{resnet18_forward.16} parent=0 // pred_check
    _
  $region15: #{resnet18_forward.16} parent=0 // pred_check_branch
    %19 = sbr.rel (0) target = $region17
  $region16: #{resnet18_forward.16} parent=0 // pred_region
    _
  $region17: #{resnet18_forward.16} parent=0 // pred_fallthru
    _
  // Predicated region
  $region18: #{resnet18_forward.16} parent=0 // pred_check
    _
  $region19: #{resnet18_forward.16} parent=0 // pred_check_branch
    %21 = sbr.rel (0) target = $region21
  $region20: #{resnet18_forward.16} parent=0 // pred_region
    _
  $region21: #{resnet18_forward.16} parent=0 // pred_fallthru
    _
  // Predicated region
  $region22: #{resnet18_forward.16} parent=0 // pred_check
    _
  $region23: #{resnet18_forward.16} parent=0 // pred_check_branch
    %23 = sbr.rel (0) target = $region25
  $region24: #{resnet18_forward.16} parent=0 // pred_region
    _
  $region25: #{resnet18_forward.16} parent=0 // pred_fallthru
    _
  // Predicated region
  $region26: #{resnet18_forward.16} parent=0 // pred_check
    _
  $region27: #{resnet18_forward.16} parent=0 // pred_check_branch
    %25 = sbr.rel (0) target = $region29
  $region28: #{resnet18_forward.16} parent=0 // pred_region
    _
  $region29: #{resnet18_forward.16} parent=0 // pred_fallthru
    _
  %v27 = vld [vmem:[%s0] sm:$0xff]
  %v28 = vld [vmem:[%s0 + $0x8] sm:$0xf]
  %v29 = vld [vmem:[%s0 + $0xc] sm:$0xff]
  %v30 = vld [vmem:[%s0 + $0x14] sm:$0xf]
  %v31 = vld [vmem:[%s0 + $0x18] sm:$0xff]
  %v32 = vld [vmem:[%s0 + $0x20] sm:$0xf]
  %v33 = vld [vmem:[%s0 + $0x24] sm:$0xff]
  %v34 = vld [vmem:[%s0 + $0x2c] sm:$0xf]
  %v35 = vld [vmem:[%s0 + $0x30] sm:$0xff]
  %v36 = vld [vmem:[%s0 + $0x38] sm:$0xf]
  %v37 = vld [vmem:[%s1] sm:$0xf]
  %v38 = vld [vmem:[%s1 + $0x4] sm:$0xf]
  %v39 = vld [vmem:[%s1 + $0x8] sm:$0xf]
  %v40 = vld [vmem:[%s1 + $0xc] sm:$0xf]
  %v41 = vld [vmem:[%s1 + $0x10] sm:$0xf]
  %v42 = vld [vmem:[%s1 + $0x14] sm:$0xf]
  %v43 = vld [vmem:[%s1 + $0x18] sm:$0xf]
  %v44 = vld [vmem:[%s1 + $0x1c] sm:$0xf]
  %v45 = vld [vmem:[%s1 + $0x20] sm:$0xf]
  %v46 = vld [vmem:[%s1 + $0x24] sm:$0xf]
  %v47 = vld [vmem:[%s1 + $0x28] sm:$0xf]
  %v48 = vld [vmem:[%s1 + $0x2c] sm:$0xf]
  %v49 = vld [vmem:[%s1 + $0x30] sm:$0xf]
  %v50 = vld [vmem:[%s1 + $0x34] sm:$0xf]
  %v51 = vld [vmem:[%s1 + $0x38] sm:$0xf]
  %v52 = vld [vmem:[%s1 + $0x3c] sm:$0xf]
  %v53 = vld [vmem:[%s1 + $0x40] sm:$0xf]
  %v54 = vld [vmem:[%s1 + $0x44] sm:$0xf]
  %v55 = vld [vmem:[%s1 + $0x48] sm:$0xf]
  %v56 = vld [vmem:[%s1 + $0x4c] sm:$0xf]
  %v57 = vld [vmem:[%s1 + $0x50] sm:$0xf]
  %v58 = vld [vmem:[%s1 + $0x54] sm:$0xf]
  %v59 = vld [vmem:[%s1 + $0x58] sm:$0xf]
  %v60 = vld [vmem:[%s1 + $0x5c] sm:$0xf]
  %v61 = vld [vmem:[%s1 + $0x60] sm:$0xf]
  %v62 = vld [vmem:[%s1 + $0x64] sm:$0xf]
  %v63 = vld [vmem:[%s1 + $0x68] sm:$0xf]
  %v64 = vld [vmem:[%s1 + $0x6c] sm:$0xf]
  %v65 = vld [vmem:[%s1 + $0x70] sm:$0xf]
  %v66 = vld [vmem:[%s1 + $0x74] sm:$0xf]
  %v67 = vld [vmem:[%s1 + $0x78] sm:$0xf]
  %v68 = vld [vmem:[%s1 + $0x7c] sm:$0xf]
  %v69 = vld [vmem:[%s1 + $0x80] sm:$0xf]
  %v70 = vld [vmem:[%s1 + $0x84] sm:$0xf]
  %v71 = vld [vmem:[%s1 + $0x88] sm:$0xf]
  %v72 = vld [vmem:[%s1 + $0x8c] sm:$0xf]
  %v73 = vld [vmem:[%s2] sm:$0x1]
  %v75 = vlaneseq
  %v76 = vshrl.u32 %v75, 7
  %v77 = vsub.s32 0, %v76
  %v78 = vrot.slane %v73, %v77
  %v90 = vunpack.c.l.b16 %v27
  %v91 = vunpack.c.h.b16 %v27
  %v92 = vunpack.c.l.b16 %v28
  %v93 = vunpack.c.l.b16 %v29
  %v94 = vunpack.c.h.b16 %v29
  %v95 = vunpack.c.l.b16 %v30
  %v96 = vunpack.c.l.b16 %v31
  %v97 = vunpack.c.h.b16 %v31
  %v98 = vunpack.c.l.b16 %v32
  %v99 = vunpack.c.l.b16 %v33
  %v100 = vunpack.c.h.b16 %v33
  %v101 = vunpack.c.l.b16 %v34
  %v102 = vunpack.c.l.b16 %v35
  %v103 = vunpack.c.h.b16 %v35
  %v104 = vunpack.c.l.b16 %v36
  %v105 = vpack.c.b16 %v93, %v90
  %v106 = vpack.c.b16 %v94, %v91
  %v107 = vpack.c.b16 %v95, %v92
  %v108 = vpack.c.b16 %v99, %v96
  %v109 = vpack.c.b16 %v100, %v97
  %v110 = vpack.c.b16 %v101, %v98
  %v111 = vpack.c.b16 %v102, %v102
  %v112 = vpack.c.b16 %v103, %v103
  %v113 = vpack.c.b16 %v104, %v104
  %v156 = vunpack.c.l.b16 %v37
  %v157 = vunpack.c.l.b16 %v38
  %v158 = vunpack.c.l.b16 %v39
  %v159 = vunpack.c.l.b16 %v40
  %v160 = vunpack.c.l.b16 %v41
  %v161 = vunpack.c.l.b16 %v42
  %v162 = vunpack.c.l.b16 %v43
  %v163 = vunpack.c.l.b16 %v44
  %v164 = vunpack.c.l.b16 %v45
  %v165 = vunpack.c.l.b16 %v46
  %v166 = vunpack.c.l.b16 %v47
  %v167 = vunpack.c.l.b16 %v48
  %v168 = vunpack.c.l.b16 %v49
  %v169 = vunpack.c.l.b16 %v50
  %v170 = vunpack.c.l.b16 %v51
  %v171 = vunpack.c.l.b16 %v52
  %v172 = vunpack.c.l.b16 %v53
  %v173 = vunpack.c.l.b16 %v54
  %v174 = vunpack.c.l.b16 %v55
  %v175 = vunpack.c.l.b16 %v56
  %v176 = vunpack.c.l.b16 %v57
  %v177 = vunpack.c.l.b16 %v58
  %v178 = vunpack.c.l.b16 %v59
  %v179 = vunpack.c.l.b16 %v60
  %v180 = vunpack.c.l.b16 %v61
  %v181 = vunpack.c.l.b16 %v62
  %v182 = vunpack.c.l.b16 %v63
  %v183 = vunpack.c.l.b16 %v64
  %v184 = vunpack.c.l.b16 %v65
  %v185 = vunpack.c.l.b16 %v66
  %v186 = vunpack.c.l.b16 %v67
  %v187 = vunpack.c.l.b16 %v68
  %v188 = vunpack.c.l.b16 %v69
  %v189 = vunpack.c.l.b16 %v70
  %v190 = vunpack.c.l.b16 %v71
  %v191 = vunpack.c.l.b16 %v72
  %v192 = vpack.c.b16 %v157, %v156
  %v193 = vpack.c.b16 %v159, %v158
  %v194 = vpack.c.b16 %v161, %v160
  %v195 = vpack.c.b16 %v163, %v162
  %v196 = vpack.c.b16 %v165, %v164
  %v197 = vpack.c.b16 %v167, %v166
  %v198 = vpack.c.b16 %v169, %v168
  %v199 = vpack.c.b16 %v171, %v170
  %v200 = vpack.c.b16 %v173, %v172
  %v201 = vpack.c.b16 %v175, %v174
  %v202 = vpack.c.b16 %v177, %v176
  %v203 = vpack.c.b16 %v179, %v178
  %v204 = vpack.c.b16 %v181, %v180
  %v205 = vpack.c.b16 %v183, %v182
  %v206 = vpack.c.b16 %v185, %v184
  %v207 = vpack.c.b16 %v187, %v186
  %v208 = vpack.c.b16 %v189, %v188
  %v209 = vpack.c.b16 %v191, %v190
  %vm228 = vcmask 261120
  %v230 = vsel %vm228, %v107, 0
  %v233 = vsel %vm228, %v110, 0
  %v236 = vsel %vm228, %v113, 0
  %238 = vmatprep.subr.bf16.mxu0 0
  %239 = vmatpush1.bf16.msra.mxu0 %v192
  %240 = vmatprep.subr.bf16.mxu0 0
  %241 = vmatpush1.bf16.msra.mxu0 %v193
  %242 = vmatprep.subr.bf16.mxu0 0
  %243 = vmatpush1.bf16.msra.mxu0 %v194
  %244 = vmatprep.subr.bf16.mxu0 0
  %245 = vmatpush1.bf16.msra.mxu0 %v195
  %246 = vmatprep.subr.bf16.mxu0 0
  %247 = vmatpush1.bf16.msra.mxu0 %v196
  %248 = vmatprep.subr.bf16.mxu0 0
  %249 = vmatpush1.bf16.msra.mxu0 %v197
  %250 = vmatprep.subr.bf16.mxu0 0
  %251 = vmatpush1.bf16.msra.mxu0 %v198
  %252 = vmatprep.subr.bf16.mxu0 0
  %253 = vmatpush1.bf16.msra.mxu0 %v199
  %254 = vmatprep.subr.bf16.mxu0 0
  %255 = vmatpush1.bf16.msra.mxu0 %v200
  %256 = vmatprep.subr.bf16.mxu0 0
  %257 = vmatpush1.bf16.msra.mxu0 %v201
  %258 = vmatprep.subr.bf16.mxu0 0
  %259 = vmatpush1.bf16.msra.mxu0 %v202
  %260 = vmatprep.subr.bf16.mxu0 0
  %261 = vmatpush1.bf16.msra.mxu0 %v203
  %262 = vmatprep.subr.bf16.mxu0 0
  %263 = vmatpush1.bf16.msra.mxu0 %v204
  %264 = vmatprep.subr.bf16.mxu0 0
  %265 = vmatpush1.bf16.msra.mxu0 %v205
  %266 = vmatprep.subr.bf16.mxu0 0
  %267 = vmatpush1.bf16.msra.mxu0 %v206
  %268 = vmatprep.subr.bf16.mxu0 0
  %269 = vmatpush1.bf16.msra.mxu0 %v207
  %270 = vmatprep.mubr.bf16.mxu0 %v106
  %271 = vmatmul.mubr.bf16.gmra.mrb[0].mxu0 %v105
  %v272 = vpop.f32.mrb[0].mxu0
  %v273 = vadd.f32 %v78, %v272
  %v274 = vpop.f32.mrb[0].mxu0
  %v275 = vpop.f32.mrb[0].mxu0
  %v276 = vadd.f32 %v78, %v275
  %v277 = vpop.f32.mrb[0].mxu0
  %278 = vmatprep.mubr.bf16.mxu0 %v109
  %279 = vmatmul.mubr.bf16.gmra.mrb[0].mxu0 %v108
  %v280 = vpop.f32.mrb[0].mxu0
  %v281 = vadd.f32 %v78, %v280
  %v282 = vpop.f32.mrb[0].mxu0
  %v283 = vpop.f32.mrb[0].mxu0
  %v284 = vadd.f32 %v78, %v283
  %v285 = vpop.f32.mrb[0].mxu0
  %286 = vmatprep.mubr.bf16.mxu0 %v112
  %287 = vmatmul.mubr.bf16.gmra.mrb[0].mxu0 %v111
  %v288 = vpop.f32.mrb[0].mxu0
  %v289 = vadd.f32 %v78, %v288
  %v290 = vpop.f32.mrb[0].mxu0
  %v291 = vpop.f32.mrb[0].mxu0
  %v292 = vpop.f32.mrb[0].mxu0
  %293 = vdwg.mxu0
  %294 = vmatprep.subr.bf16.mxu0 0
  %295 = vmatpush1.bf16.msra.mxu0 %v208
  %296 = vmatprep.subr.bf16.mxu0 0
  %297 = vmatpush1.bf16.msra.mxu0 %v209
  %298 = vmatprep.subr.bf16.mxu0 0
  %299 = vmatpush1.bf16.msra.mxu0 0
  %300 = vmatprep.subr.bf16.mxu0 0
  %301 = vmatpush1.bf16.msra.mxu0 0
  %302 = vmatprep.subr.bf16.mxu0 0
  %303 = vmatpush1.bf16.msra.mxu0 0
  %304 = vmatprep.subr.bf16.mxu0 0
  %305 = vmatpush1.bf16.msra.mxu0 0
  %306 = vmatprep.subr.bf16.mxu0 0
  %307 = vmatpush1.bf16.msra.mxu0 0
  %308 = vmatprep.subr.bf16.mxu0 0
  %309 = vmatpush1.bf16.msra.mxu0 0
  %310 = vmatprep.subr.bf16.mxu0 0
  %311 = vmatpush1.bf16.msra.mxu0 0
  %312 = vmatprep.subr.bf16.mxu0 0
  %313 = vmatpush1.bf16.msra.mxu0 0
  %314 = vmatprep.subr.bf16.mxu0 0
  %315 = vmatpush1.bf16.msra.mxu0 0
  %316 = vmatprep.subr.bf16.mxu0 0
  %317 = vmatpush1.bf16.msra.mxu0 0
  %318 = vmatprep.subr.bf16.mxu0 0
  %319 = vmatpush1.bf16.msra.mxu0 0
  %320 = vmatprep.subr.bf16.mxu0 0
  %321 = vmatpush1.bf16.msra.mxu0 0
  %322 = vmatprep.subr.bf16.mxu0 0
  %323 = vmatpush1.bf16.msra.mxu0 0
  %324 = vmatprep.subr.bf16.mxu0 0
  %325 = vmatpush1.bf16.msra.mxu0 0
  %326 = vmatprep.mubr.bf16.mxu0 0
  %327 = vmatmul.mubr.bf16.gmra.mrb[0].mxu0 %v230
  %v328 = vpop.f32.mrb[0].mxu0
  %v329 = vadd.f32 %v273, %v328
  %v330 = vpop.f32.mrb[0].mxu0
  %v331 = vpop.f32.mrb[0].mxu0
  %v332 = vadd.f32 %v276, %v331
  %v333 = vpop.f32.mrb[0].mxu0
  %334 = vmatprep.mubr.bf16.mxu0 0
  %335 = vmatmul.mubr.bf16.gmra.mrb[0].mxu0 %v233
  %v336 = vpop.f32.mrb[0].mxu0
  %v337 = vadd.f32 %v281, %v336
  %v338 = vpop.f32.mrb[0].mxu0
  %v339 = vpop.f32.mrb[0].mxu0
  %v340 = vadd.f32 %v284, %v339
  %v341 = vpop.f32.mrb[0].mxu0
  %342 = vmatprep.mubr.bf16.mxu0 0
  %343 = vmatmul.mubr.bf16.gmra.mrb[0].mxu0 %v236
  %v344 = vpop.f32.mrb[0].mxu0
  %v345 = vadd.f32 %v289, %v344
  %v346 = vpop.f32.mrb[0].mxu0
  %v347 = vpop.f32.mrb[0].mxu0
  %v348 = vpop.f32.mrb[0].mxu0
  %349 = vdwg.mxu0
  %v350 = vmax.f32 %v329, 0.0
  %v351 = vmax.f32 %v332, 0.0
  %v352 = vmax.f32 %v337, 0.0
  %v353 = vmax.f32 %v340, 0.0
  %v354 = vmax.f32 %v345, 0.0
  %v355 = vld [vmem:[%s3] sm:$0xff]
  %v356 = vld [vmem:[%s3 + $0x8] sm:$0xff]
  %v357 = vld [vmem:[%s3 + $0x10] sm:$0xff]
  %v358 = vld [vmem:[%s3 + $0x18] sm:$0xff]
  %v359 = vld [vmem:[%s3 + $0x20] sm:$0xff]
  %361 = vset.pattern.permute.xlu0 0
  %362 = vperm.xlu0 %361, %v355
  %v363 = vpop.permute.xlu0 %362
  %366 = vset.pattern.permute.xlu0 0
  %367 = vperm.xlu0 %366, %v356
  %v368 = vpop.permute.xlu0 %367
  %371 = vset.pattern.permute.xlu0 0
  %372 = vperm.xlu0 %371, %v357
  %v373 = vpop.permute.xlu0 %372
  %376 = vset.pattern.permute.xlu0 0
  %377 = vperm.xlu0 %376, %v358
  %v378 = vpop.permute.xlu0 %377
  %381 = vset.pattern.permute.xlu0 0
  %382 = vperm.xlu0 %381, %v359
  %v383 = vpop.permute.xlu0 %382
  %v385 = vmul.f32 %v350, %v363
  %v386 = vmul.f32 %v351, %v368
  %v387 = vmul.f32 %v352, %v373
  %v388 = vmul.f32 %v353, %v378
  %v389 = vmul.f32 %v354, %v383
  %v390 = vpack.c.bf16 %v386, %v385
  %v391 = vpack.c.bf16 %v387, %v387
  %v392 = vld [vmem:[%s4] sm:$0xf]
  %v393 = vld [vmem:[%s4 + $0x4] sm:$0xf]
  %v394 = vld [vmem:[%s4 + $0x8] sm:$0xf]
  %v395 = vld [vmem:[%s4 + $0xc] sm:$0xf]
  %v396 = vpack.c.bf16 %v388, %v387
  %s397 = scalar_lea.vmem %s4, 16
  %v398 = vld [vmem:[%s397] sm:$0xf]
  %v399 = vld [vmem:[%s397 + $0x4] sm:$0xf]
  %v400 = vld [vmem:[%s397 + $0x8] sm:$0xf]
  %v401 = vld [vmem:[%s397 + $0xc] sm:$0xf]
  %vm402 = vsmask.f32 7424
  %v404 = vshrl.u32 %v390, 16
  %v406 = vshll.u32 %v390, 16
  %v408 = vrot.slane %v406, 1
  %v409 = vor.u32 %v404, %v408
  %v411 = vshll.u32 %v396, 16
  %v413 = vrot.slane %v411, 1
  %v414 = vsel %vm402, %v409, %v413
  %v415 = vshrl.u32 %v396, 16
  %v417 = vor.u32 %v415, %v413
  %v422 = vunpack.c.l.b16 %v398
  %v423 = vunpack.c.l.b16 %v399
  %v424 = vunpack.c.l.b16 %v400
  %v425 = vunpack.c.l.b16 %v401
  %v426 = vpack.c.b16 %v423, %v422
  %v427 = vpack.c.b16 %v425, %v424
  %v431 = vsel %vm228, %v414, 0
  %v434 = vsel %vm228, %v417, 0
  %436 = vmatprep.subr.bf16.mxu0 0
  %437 = vmatpush1.bf16.msra.mxu0 %v426
  %438 = vmatprep.subr.bf16.mxu0 0
  %439 = vmatpush1.bf16.msra.mxu0 %v427
  %440 = vmatprep.subr.bf16.mxu0 0
  %441 = vmatpush1.bf16.msra.mxu0 0
  %442 = vmatprep.subr.bf16.mxu0 0
  %443 = vmatpush1.bf16.msra.mxu0 0
  %444 = vmatprep.subr.bf16.mxu0 0
  %445 = vmatpush1.bf16.msra.mxu0 0
  %446 = vmatprep.subr.bf16.mxu0 0
  %447 = vmatpush1.bf16.msra.mxu0 0
  %448 = vmatprep.subr.bf16.mxu0 0
  %449 = vmatpush1.bf16.msra.mxu0 0
  %450 = vmatprep.subr.bf16.mxu0 0
  %451 = vmatpush1.bf16.msra.mxu0 0
  %452 = vmatprep.subr.bf16.mxu0 0
  %453 = vmatpush1.bf16.msra.mxu0 0
  %454 = vmatprep.subr.bf16.mxu0 0
  %455 = vmatpush1.bf16.msra.mxu0 0
  %456 = vmatprep.subr.bf16.mxu0 0
  %457 = vmatpush1.bf16.msra.mxu0 0
  %458 = vmatprep.subr.bf16.mxu0 0
  %459 = vmatpush1.bf16.msra.mxu0 0
  %460 = vmatprep.subr.bf16.mxu0 0
  %461 = vmatpush1.bf16.msra.mxu0 0
  %462 = vmatprep.subr.bf16.mxu0 0
  %463 = vmatpush1.bf16.msra.mxu0 0
  %464 = vmatprep.subr.bf16.mxu0 0
  %465 = vmatpush1.bf16.msra.mxu0 0
  %466 = vmatprep.subr.bf16.mxu0 0
  %467 = vmatpush1.bf16.msra.mxu0 0
  %468 = vmatprep.mubr.bf16.mxu0 0
  %469 = vmatmul.mubr.bf16.gmra.mrb[0].mxu0 %v431
  %v470 = vpop.f32.mrb[0].mxu0
  %v471 = vadd.f32 0.0, %v470
  %v472 = vpop.f32.mrb[0].mxu0
  %v473 = vpop.f32.mrb[0].mxu0
  %v474 = vadd.f32 0.0, %v473
  %v475 = vpop.f32.mrb[0].mxu0
  %476 = vmatprep.mubr.bf16.mxu0 0
  %477 = vmatmul.mubr.bf16.gmra.mrb[0].mxu0 %v434
  %v478 = vpop.f32.mrb[0].mxu0
  %v479 = vadd.f32 0.0, %v478
  %v480 = vpop.f32.mrb[0].mxu0
  %v481 = vpop.f32.mrb[0].mxu0
  %v482 = vpop.f32.mrb[0].mxu0
  %483 = vdwg.mxu0
  %v488 = vunpack.c.l.b16 %v392
  %v489 = vunpack.c.l.b16 %v393
  %v490 = vunpack.c.l.b16 %v394
  %v491 = vunpack.c.l.b16 %v395
  %v492 = vpack.c.b16 %v489, %v488
  %v493 = vpack.c.b16 %v491, %v490
  %v496 = vsel %vm228, %v390, 0
  %v499 = vsel %vm228, %v391, 0
  %501 = vmatprep.subr.bf16.mxu0 0
  %502 = vmatpush1.bf16.msra.mxu0 %v492
  %503 = vmatprep.subr.bf16.mxu0 0
  %504 = vmatpush1.bf16.msra.mxu0 %v493
  %505 = vmatprep.subr.bf16.mxu0 0
  %506 = vmatpush1.bf16.msra.mxu0 0
  %507 = vmatprep.subr.bf16.mxu0 0
  %508 = vmatpush1.bf16.msra.mxu0 0
  %509 = vmatprep.subr.bf16.mxu0 0
  %510 = vmatpush1.bf16.msra.mxu0 0
  %511 = vmatprep.subr.bf16.mxu0 0
  %512 = vmatpush1.bf16.msra.mxu0 0
  %513 = vmatprep.subr.bf16.mxu0 0
  %514 = vmatpush1.bf16.msra.mxu0 0
  %515 = vmatprep.subr.bf16.mxu0 0
  %516 = vmatpush1.bf16.msra.mxu0 0
  %517 = vmatprep.subr.bf16.mxu0 0
  %518 = vmatpush1.bf16.msra.mxu0 0
  %519 = vmatprep.subr.bf16.mxu0 0
  %520 = vmatpush1.bf16.msra.mxu0 0
  %521 = vmatprep.subr.bf16.mxu0 0
  %522 = vmatpush1.bf16.msra.mxu0 0
  %523 = vmatprep.subr.bf16.mxu0 0
  %524 = vmatpush1.bf16.msra.mxu0 0
  %525 = vmatprep.subr.bf16.mxu0 0
  %526 = vmatpush1.bf16.msra.mxu0 0
  %527 = vmatprep.subr.bf16.mxu0 0
  %528 = vmatpush1.bf16.msra.mxu0 0
  %529 = vmatprep.subr.bf16.mxu0 0
  %530 = vmatpush1.bf16.msra.mxu0 0
  %531 = vmatprep.subr.bf16.mxu0 0
  %532 = vmatpush1.bf16.msra.mxu0 0
  %533 = vmatprep.mubr.bf16.mxu0 0
  %534 = vmatmul.mubr.bf16.gmra.mrb[0].mxu0 %v496
  %v535 = vpop.f32.mrb[0].mxu0
  %v536 = vadd.f32 %v471, %v535
  %v537 = vpop.f32.mrb[0].mxu0
  %v538 = vpop.f32.mrb[0].mxu0
  %v539 = vadd.f32 %v474, %v538
  %v540 = vpop.f32.mrb[0].mxu0
  %541 = vmatprep.mubr.bf16.mxu0 0
  %542 = vmatmul.mubr.bf16.gmra.mrb[0].mxu0 %v499
  %v543 = vpop.f32.mrb[0].mxu0
  %v544 = vadd.f32 %v479, %v543
  %v545 = vpop.f32.mrb[0].mxu0
  %v546 = vpop.f32.mrb[0].mxu0
  %v547 = vpop.f32.mrb[0].mxu0
  %548 = vdwg.mxu0
  %s549 = scalar_lea.vmem %s4, 32
  %v550 = vld [vmem:[%s549] sm:$0xf]
  %v551 = vld [vmem:[%s549 + $0x4] sm:$0xf]
  %v552 = vld [vmem:[%s549 + $0x8] sm:$0xf]
  %v553 = vld [vmem:[%s549 + $0xc] sm:$0xf]
  %vm556 = vcmask 1046528
  %v557 = vrot.slane %v390, 1
  %v558 = vrot.slane %v396, 1
  %v559 = vsel %vm556, %v557, %v558
  %v564 = vunpack.c.l.b16 %v550
  %v565 = vunpack.c.l.b16 %v551
  %v566 = vunpack.c.l.b16 %v552
  %v567 = vunpack.c.l.b16 %v553
  %v568 = vpack.c.b16 %v565, %v564
  %v569 = vpack.c.b16 %v567, %v566
  %v573 = vsel %vm228, %v559, 0
  %v576 = vsel %vm228, %v558, 0
  %578 = vmatprep.subr.bf16.mxu0 0
  %579 = vmatpush1.bf16.msra.mxu0 %v568
  %580 = vmatprep.subr.bf16.mxu0 0
  %581 = vmatpush1.bf16.msra.mxu0 %v569
  %582 = vmatprep.subr.bf16.mxu0 0
  %583 = vmatpush1.bf16.msra.mxu0 0
  %584 = vmatprep.subr.bf16.mxu0 0
  %585 = vmatpush1.bf16.msra.mxu0 0
  %586 = vmatprep.subr.bf16.mxu0 0
  %587 = vmatpush1.bf16.msra.mxu0 0
  %588 = vmatprep.subr.bf16.mxu0 0
  %589 = vmatpush1.bf16.msra.mxu0 0
  %590 = vmatprep.subr.bf16.mxu0 0
  %591 = vmatpush1.bf16.msra.mxu0 0
  %592 = vmatprep.subr.bf16.mxu0 0
  %593 = vmatpush1.bf16.msra.mxu0 0
  %594 = vmatprep.subr.bf16.mxu0 0
  %595 = vmatpush1.bf16.msra.mxu0 0
  %596 = vmatprep.subr.bf16.mxu0 0
  %597 = vmatpush1.bf16.msra.mxu0 0
  %598 = vmatprep.subr.bf16.mxu0 0
  %599 = vmatpush1.bf16.msra.mxu0 0
  %600 = vmatprep.subr.bf16.mxu0 0
  %601 = vmatpush1.bf16.msra.mxu0 0
  %602 = vmatprep.subr.bf16.mxu0 0
  %603 = vmatpush1.bf16.msra.mxu0 0
  %604 = vmatprep.subr.bf16.mxu0 0
  %605 = vmatpush1.bf16.msra.mxu0 0
  %606 = vmatprep.subr.bf16.mxu0 0
  %607 = vmatpush1.bf16.msra.mxu0 0
  %608 = vmatprep.subr.bf16.mxu0 0
  %609 = vmatpush1.bf16.msra.mxu0 0
  %610 = vmatprep.mubr.bf16.mxu0 0
  %611 = vmatmul.mubr.bf16.gmra.mrb[0].mxu0 %v573
  %v612 = vpop.f32.mrb[0].mxu0
  %v613 = vadd.f32 0.0, %v612
  %v614 = vpop.f32.mrb[0].mxu0
  %v615 = vpop.f32.mrb[0].mxu0
  %v616 = vadd.f32 0.0, %v615
  %v617 = vpop.f32.mrb[0].mxu0
  %618 = vmatprep.mubr.bf16.mxu0 0
  %619 = vmatmul.mubr.bf16.gmra.mrb[0].mxu0 %v576
  %v620 = vpop.f32.mrb[0].mxu0
  %v621 = vadd.f32 0.0, %v620
  %v622 = vpop.f32.mrb[0].mxu0
  %v623 = vpop.f32.mrb[0].mxu0
  %v624 = vpop.f32.mrb[0].mxu0
  %625 = vdwg.mxu0
  %v626 = vadd.f32 %v536, %v613
  %v627 = vadd.f32 %v539, %v616
  %v628 = vadd.f32 %v544, %v621
  %s629 = scalar_lea.vmem %s4, 48
  %v630 = vld [vmem:[%s629] sm:$0xf]
  %v631 = vld [vmem:[%s629 + $0x4] sm:$0xf]
  %v632 = vld [vmem:[%s629 + $0x8] sm:$0xf]
  %v633 = vld [vmem:[%s629 + $0xc] sm:$0xf]
  %vm634 = vcmask 1045504
  %v635 = vrot.slane %v390, 2
  %v636 = vrot.slane %v396, 2
  %v637 = vsel %vm634, %v635, %v636
  %v642 = vunpack.c.l.b16 %v630
  %v643 = vunpack.c.l.b16 %v631
  %v644 = vunpack.c.l.b16 %v632
  %v645 = vunpack.c.l.b16 %v633
  %v646 = vpack.c.b16 %v643, %v642
  %v647 = vpack.c.b16 %v645, %v644
  %v651 = vsel %vm228, %v637, 0
  %v654 = vsel %vm228, %v636, 0
  %656 = vmatprep.subr.bf16.mxu0 0
  %657 = vmatpush1.bf16.msra.mxu0 %v646
  %658 = vmatprep.subr.bf16.mxu0 0
  %659 = vmatpush1.bf16.msra.mxu0 %v647
  %660 = vmatprep.subr.bf16.mxu0 0
  %661 = vmatpush1.bf16.msra.mxu0 0
  %662 = vmatprep.subr.bf16.mxu0 0
  %663 = vmatpush1.bf16.msra.mxu0 0
  %664 = vmatprep.subr.bf16.mxu0 0
  %665 = vmatpush1.bf16.msra.mxu0 0
  %666 = vmatprep.subr.bf16.mxu0 0
  %667 = vmatpush1.bf16.msra.mxu0 0
  %668 = vmatprep.subr.bf16.mxu0 0
  %669 = vmatpush1.bf16.msra.mxu0 0
  %670 = vmatprep.subr.bf16.mxu0 0
  %671 = vmatpush1.bf16.msra.mxu0 0
  %672 = vmatprep.subr.bf16.mxu0 0
  %673 = vmatpush1.bf16.msra.mxu0 0
  %674 = vmatprep.subr.bf16.mxu0 0
  %675 = vmatpush1.bf16.msra.mxu0 0
  %676 = vmatprep.subr.bf16.mxu0 0
  %677 = vmatpush1.bf16.msra.mxu0 0
  %678 = vmatprep.subr.bf16.mxu0 0
  %679 = vmatpush1.bf16.msra.mxu0 0
  %680 = vmatprep.subr.bf16.mxu0 0
  %681 = vmatpush1.bf16.msra.mxu0 0
  %682 = vmatprep.subr.bf16.mxu0 0
  %683 = vmatpush1.bf16.msra.mxu0 0
  %684 = vmatprep.subr.bf16.mxu0 0
  %685 = vmatpush1.bf16.msra.mxu0 0
  %686 = vmatprep.subr.bf16.mxu0 0
  %687 = vmatpush1.bf16.msra.mxu0 0
  %688 = vmatprep.mubr.bf16.mxu0 0
  %689 = vmatmul.mubr.bf16.gmra.mrb[0].mxu0 %v651
  %v690 = vpop.f32.mrb[0].mxu0
  %v691 = vadd.f32 0.0, %v690
  %v692 = vpop.f32.mrb[0].mxu0
  %v693 = vpop.f32.mrb[0].mxu0
  %v694 = vadd.f32 0.0, %v693
  %v695 = vpop.f32.mrb[0].mxu0
  %696 = vmatprep.mubr.bf16.mxu0 0
  %697 = vmatmul.mubr.bf16.gmra.mrb[0].mxu0 %v654
  %v698 = vpop.f32.mrb[0].mxu0
  %v699 = vadd.f32 0.0, %v698
  %v700 = vpop.f32.mrb[0].mxu0
  %v701 = vpop.f32.mrb[0].mxu0
  %v702 = vpop.f32.mrb[0].mxu0
  %703 = vdwg.mxu0
  %v704 = vadd.f32 %v626, %v691
  %v705 = vadd.f32 %v627, %v694
  %v706 = vadd.f32 %v628, %v699
  %s707 = scalar_lea.vmem %s4, 64
  %v708 = vld [vmem:[%s707] sm:$0xf]
  %v709 = vld [vmem:[%s707 + $0x4] sm:$0xf]
  %v710 = vld [vmem:[%s707 + $0x8] sm:$0xf]
  %v711 = vld [vmem:[%s707 + $0xc] sm:$0xf]
  %vm712 = vsmask.f32 5376
  %v713 = vrot.slane %v404, 2
  %v714 = vrot.slane %v406, 3
  %v715 = vor.u32 %v713, %v714
  %v716 = vrot.slane %v415, 2
  %v717 = vrot.slane %v411, 3
  %v718 = vor.u32 %v716, %v717
  %v719 = vsel %vm712, %v715, %v718
  %v724 = vunpack.c.l.b16 %v708
  %v725 = vunpack.c.l.b16 %v709
  %v726 = vunpack.c.l.b16 %v710
  %v727 = vunpack.c.l.b16 %v711
  %v728 = vpack.c.b16 %v725, %v724
  %v729 = vpack.c.b16 %v727, %v726
  %v733 = vsel %vm228, %v719, 0
  %v736 = vsel %vm228, %v718, 0
  %738 = vmatprep.subr.bf16.mxu0 0
  %739 = vmatpush1.bf16.msra.mxu0 %v728
  %740 = vmatprep.subr.bf16.mxu0 0
  %741 = vmatpush1.bf16.msra.mxu0 %v729
  %742 = vmatprep.subr.bf16.mxu0 0
  %743 = vmatpush1.bf16.msra.mxu0 0
  %744 = vmatprep.subr.bf16.mxu0 0
  %745 = vmatpush1.bf16.msra.mxu0 0
  %746 = vmatprep.subr.bf16.mxu0 0
  %747 = vmatpush1.bf16.msra.mxu0 0
  %748 = vmatprep.subr.bf16.mxu0 0
  %749 = vmatpush1.bf16.msra.mxu0 0
  %750 = vmatprep.subr.bf16.mxu0 0
  %751 = vmatpush1.bf16.msra.mxu0 0
  %752 = vmatprep.subr.bf16.mxu0 0
  %753 = vmatpush1.bf16.msra.mxu0 0
  %754 = vmatprep.subr.bf16.mxu0 0
  %755 = vmatpush1.bf16.msra.mxu0 0
  %756 = vmatprep.subr.bf16.mxu0 0
  %757 = vmatpush1.bf16.msra.mxu0 0
  %758 = vmatprep.subr.bf16.mxu0 0
  %759 = vmatpush1.bf16.msra.mxu0 0
  %760 = vmatprep.subr.bf16.mxu0 0
  %761 = vmatpush1.bf16.msra.mxu0 0
  %762 = vmatprep.subr.bf16.mxu0 0
  %763 = vmatpush1.bf16.msra.mxu0 0
  %764 = vmatprep.subr.bf16.mxu0 0
  %765 = vmatpush1.bf16.msra.mxu0 0
  %766 = vmatprep.subr.bf16.mxu0 0
  %767 = vmatpush1.bf16.msra.mxu0 0
  %768 = vmatprep.subr.bf16.mxu0 0
  %769 = vmatpush1.bf16.msra.mxu0 0
  %770 = vmatprep.mubr.bf16.mxu0 0
  %771 = vmatmul.mubr.bf16.gmra.mrb[0].mxu0 %v733
  %v772 = vpop.f32.mrb[0].mxu0
  %v773 = vadd.f32 0.0, %v772
  %v774 = vpop.f32.mrb[0].mxu0
  %v775 = vpop.f32.mrb[0].mxu0
  %v776 = vadd.f32 0.0, %v775
  %v777 = vpop.f32.mrb[0].mxu0
  %778 = vmatprep.mubr.bf16.mxu0 0
  %779 = vmatmul.mubr.bf16.gmra.mrb[0].mxu0 %v736
  %v780 = vpop.f32.mrb[0].mxu0
  %v781 = vadd.f32 0.0, %v780
  %v782 = vpop.f32.mrb[0].mxu0
  %v783 = vpop.f32.mrb[0].mxu0
  %v784 = vpop.f32.mrb[0].mxu0
  %785 = vdwg.mxu0
  %v786 = vadd.f32 %v704, %v773
  %v787 = vadd.f32 %v705, %v776
  %v788 = vadd.f32 %v706, %v781
  %s789 = scalar_lea.vmem %s4, 80
  %v790 = vld [vmem:[%s789] sm:$0xf]
  %v791 = vld [vmem:[%s789 + $0x4] sm:$0xf]
  %v792 = vld [vmem:[%s789 + $0x8] sm:$0xf]
  %v793 = vld [vmem:[%s789 + $0xc] sm:$0xf]
  %vm794 = vcmask 1044480
  %v795 = vrot.slane %v390, 3
  %v796 = vrot.slane %v396, 3
  %v797 = vsel %vm794, %v795, %v796
  %v802 = vunpack.c.l.b16 %v790
  %v803 = vunpack.c.l.b16 %v791
  %v804 = vunpack.c.l.b16 %v792
  %v805 = vunpack.c.l.b16 %v793
  %v806 = vpack.c.b16 %v803, %v802
  %v807 = vpack.c.b16 %v805, %v804
  %v811 = vsel %vm228, %v797, 0
  %v814 = vsel %vm228, %v796, 0
  %816 = vmatprep.subr.bf16.mxu0 0
  %817 = vmatpush1.bf16.msra.mxu0 %v806
  %818 = vmatprep.subr.bf16.mxu0 0
  %819 = vmatpush1.bf16.msra.mxu0 %v807
  %820 = vmatprep.subr.bf16.mxu0 0
  %821 = vmatpush1.bf16.msra.mxu0 0
  %822 = vmatprep.subr.bf16.mxu0 0
  %823 = vmatpush1.bf16.msra.mxu0 0
  %824 = vmatprep.subr.bf16.mxu0 0
  %825 = vmatpush1.bf16.msra.mxu0 0
  %826 = vmatprep.subr.bf16.mxu0 0
  %827 = vmatpush1.bf16.msra.mxu0 0
  %828 = vmatprep.subr.bf16.mxu0 0
  %829 = vmatpush1.bf16.msra.mxu0 0
  %830 = vmatprep.subr.bf16.mxu0 0
  %831 = vmatpush1.bf16.msra.mxu0 0
  %832 = vmatprep.subr.bf16.mxu0 0
  %833 = vmatpush1.bf16.msra.mxu0 0
  %834 = vmatprep.subr.bf16.mxu0 0
  %835 = vmatpush1.bf16.msra.mxu0 0
  %836 = vmatprep.subr.bf16.mxu0 0
  %837 = vmatpush1.bf16.msra.mxu0 0
  %838 = vmatprep.subr.bf16.mxu0 0
  %839 = vmatpush1.bf16.msra.mxu0 0
  %840 = vmatprep.subr.bf16.mxu0 0
  %841 = vmatpush1.bf16.msra.mxu0 0
  %842 = vmatprep.subr.bf16.mxu0 0
  %843 = vmatpush1.bf16.msra.mxu0 0
  %844 = vmatprep.subr.bf16.mxu0 0
  %845 = vmatpush1.bf16.msra.mxu0 0
  %846 = vmatprep.subr.bf16.mxu0 0
  %847 = vmatpush1.bf16.msra.mxu0 0
  %848 = vmatprep.mubr.bf16.mxu0 0
  %849 = vmatmul.mubr.bf16.gmra.mrb[0].mxu0 %v811
  %v850 = vpop.f32.mrb[0].mxu0
  %v851 = vadd.f32 0.0, %v850
  %v852 = vpop.f32.mrb[0].mxu0
  %v853 = vpop.f32.mrb[0].mxu0
  %v854 = vadd.f32 0.0, %v853
  %v855 = vpop.f32.mrb[0].mxu0
  %856 = vmatprep.mubr.bf16.mxu0 0
  %857 = vmatmul.mubr.bf16.gmra.mrb[0].mxu0 %v814
  %v858 = vpop.f32.mrb[0].mxu0
  %v859 = vadd.f32 0.0, %v858
  %v860 = vpop.f32.mrb[0].mxu0
  %v861 = vpop.f32.mrb[0].mxu0
  %v862 = vpop.f32.mrb[0].mxu0
  %863 = vdwg.mxu0
  %v864 = vadd.f32 %v786, %v851
  %v865 = vadd.f32 %v787, %v854
  %v866 = vadd.f32 %v788, %v859
  %v867 = vpack.c.bf16 %v387, %v386
  %v868 = vpack.c.bf16 %v388, %v388
  %s869 = scalar_lea.vmem %s4, 96
  %v870 = vld [vmem:[%s869] sm:$0xf]
  %v871 = vld [vmem:[%s869 + $0x4] sm:$0xf]
  %v872 = vld [vmem:[%s869 + $0x8] sm:$0xf]
  %v873 = vld [vmem:[%s869 + $0xc] sm:$0xf]
  %v878 = vunpack.c.l.b16 %v870
  %v879 = vunpack.c.l.b16 %v871
  %v880 = vunpack.c.l.b16 %v872
  %v881 = vunpack.c.l.b16 %v873
  %v882 = vpack.c.b16 %v879, %v878
  %v883 = vpack.c.b16 %v881, %v880
  %v887 = vsel %vm228, %v867, 0
  %v890 = vsel %vm228, %v868, 0
  %892 = vmatprep.subr.bf16.mxu0 0
  %893 = vmatpush1.bf16.msra.mxu0 %v882
  %894 = vmatprep.subr.bf16.mxu0 0
  %895 = vmatpush1.bf16.msra.mxu0 %v883
  %896 = vmatprep.subr.bf16.mxu0 0
  %897 = vmatpush1.bf16.msra.mxu0 0
  %898 = vmatprep.subr.bf16.mxu0 0
  %899 = vmatpush1.bf16.msra.mxu0 0
  %900 = vmatprep.subr.bf16.mxu0 0
  %901 = vmatpush1.bf16.msra.mxu0 0
  %902 = vmatprep.subr.bf16.mxu0 0
  %903 = vmatpush1.bf16.msra.mxu0 0
  %904 = vmatprep.subr.bf16.mxu0 0
  %905 = vmatpush1.bf16.msra.mxu0 0
  %906 = vmatprep.subr.bf16.mxu0 0
  %907 = vmatpush1.bf16.msra.mxu0 0
  %908 = vmatprep.subr.bf16.mxu0 0
  %909 = vmatpush1.bf16.msra.mxu0 0
  %910 = vmatprep.subr.bf16.mxu0 0
  %911 = vmatpush1.bf16.msra.mxu0 0
  %912 = vmatprep.subr.bf16.mxu0 0
  %913 = vmatpush1.bf16.msra.mxu0 0
  %914 = vmatprep.subr.bf16.mxu0 0
  %915 = vmatpush1.bf16.msra.mxu0 0
  %916 = vmatprep.subr.bf16.mxu0 0
  %917 = vmatpush1.bf16.msra.mxu0 0
  %918 = vmatprep.subr.bf16.mxu0 0
  %919 = vmatpush1.bf16.msra.mxu0 0
  %920 = vmatprep.subr.bf16.mxu0 0
  %921 = vmatpush1.bf16.msra.mxu0 0
  %922 = vmatprep.subr.bf16.mxu0 0
  %923 = vmatpush1.bf16.msra.mxu0 0
  %924 = vmatprep.mubr.bf16.mxu0 0
  %925 = vmatmul.mubr.bf16.gmra.mrb[0].mxu0 %v887
  %v926 = vpop.f32.mrb[0].mxu0
  %v927 = vadd.f32 0.0, %v926
  %v928 = vpop.f32.mrb[0].mxu0
  %v929 = vpop.f32.mrb[0].mxu0
  %v930 = vadd.f32 0.0, %v929
  %v931 = vpop.f32.mrb[0].mxu0
  %932 = vmatprep.mubr.bf16.mxu0 0
  %933 = vmatmul.mubr.bf16.gmra.mrb[0].mxu0 %v890
  %v934 = vpop.f32.mrb[0].mxu0
  %v935 = vadd.f32 0.0, %v934
  %v936 = vpop.f32.mrb[0].mxu0
  %v937 = vpop.f32.mrb[0].mxu0
  %v938 = vpop.f32.mrb[0].mxu0
  %939 = vdwg.mxu0
  %v940 = vadd.f32 %v864, %v927
  %v941 = vadd.f32 %v865, %v930
  %v942 = vadd.f32 %v866, %v935
  %v943 = vpack.c.bf16 %v389, %v388
  %s944 = scalar_lea.vmem %s4, 112
  %v945 = vld [vmem:[%s944] sm:$0xf]
  %v946 = vld [vmem:[%s944 + $0x4] sm:$0xf]
  %v947 = vld [vmem:[%s944 + $0x8] sm:$0xf]
  %v948 = vld [vmem:[%s944 + $0xc] sm:$0xf]
  %v949 = vshrl.u32 %v867, 16
  %v951 = vshll.u32 %v867, 16
  %v953 = vrot.slane %v951, 1
  %v954 = vor.u32 %v949, %v953
  %v956 = vshll.u32 %v943, 16
  %v958 = vrot.slane %v956, 1
  %v959 = vsel %vm402, %v954, %v958
  %v960 = vshrl.u32 %v943, 16
  %v962 = vor.u32 %v960, %v958
  %v967 = vunpack.c.l.b16 %v945
  %v968 = vunpack.c.l.b16 %v946
  %v969 = vunpack.c.l.b16 %v947
  %v970 = vunpack.c.l.b16 %v948
  %v971 = vpack.c.b16 %v968, %v967
  %v972 = vpack.c.b16 %v970, %v969
  %v976 = vsel %vm228, %v959, 0
  %v979 = vsel %vm228, %v962, 0
  %981 = vmatprep.subr.bf16.mxu0 0
  %982 = vmatpush1.bf16.msra.mxu0 %v971
  %983 = vmatprep.subr.bf16.mxu0 0
  %984 = vmatpush1.bf16.msra.mxu0 %v972
  %985 = vmatprep.subr.bf16.mxu0 0
  %986 = vmatpush1.bf16.msra.mxu0 0
  %987 = vmatprep.subr.bf16.mxu0 0
  %988 = vmatpush1.bf16.msra.mxu0 0
  %989 = vmatprep.subr.bf16.mxu0 0
  %990 = vmatpush1.bf16.msra.mxu0 0
  %991 = vmatprep.subr.bf16.mxu0 0
  %992 = vmatpush1.bf16.msra.mxu0 0
  %993 = vmatprep.subr.bf16.mxu0 0
  %994 = vmatpush1.bf16.msra.mxu0 0
  %995 = vmatprep.subr.bf16.mxu0 0
  %996 = vmatpush1.bf16.msra.mxu0 0
  %997 = vmatprep.subr.bf16.mxu0 0
  %998 = vmatpush1.bf16.msra.mxu0 0
  %999 = vmatprep.subr.bf16.mxu0 0
  %1000 = vmatpush1.bf16.msra.mxu0 0
  %1001 = vmatprep.subr.bf16.mxu0 0
  %1002 = vmatpush1.bf16.msra.mxu0 0
  %1003 = vmatprep.subr.bf16.mxu0 0
  %1004 = vmatpush1.bf16.msra.mxu0 0
  %1005 = vmatprep.subr.bf16.mxu0 0
  %1006 = vmatpush1.bf16.msra.mxu0 0
  %1007 = vmatprep.subr.bf16.mxu0 0
  %1008 = vmatpush1.bf16.msra.mxu0 0
  %1009 = vmatprep.subr.bf16.mxu0 0
  %1010 = vmatpush1.bf16.msra.mxu0 0
  %1011 = vmatprep.subr.bf16.mxu0 0
  %1012 = vmatpush1.bf16.msra.mxu0 0
  %1013 = vmatprep.mubr.bf16.mxu0 0
  %1014 = vmatmul.mubr.bf16.gmra.mrb[0].mxu0 %v976
  %v1015 = vpop.f32.mrb[0].mxu0
  %v1016 = vadd.f32 0.0, %v1015
  %v1017 = vpop.f32.mrb[0].mxu0
  %v1018 = vpop.f32.mrb[0].mxu0
  %v1019 = vadd.f32 0.0, %v1018
  %v1020 = vpop.f32.mrb[0].mxu0
  %1021 = vmatprep.mubr.bf16.mxu0 0
  %1022 = vmatmul.mubr.bf16.gmra.mrb[0].mxu0 %v979
  %v1023 = vpop.f32.mrb[0].mxu0
  %v1024 = vadd.f32 0.0, %v1023
  %v1025 = vpop.f32.mrb[0].mxu0
  %v1026 = vpop.f32.mrb[0].mxu0
  %v1027 = vpop.f32.mrb[0].mxu0
  %1028 = vdwg.mxu0
  %v1029 = vadd.f32 %v940, %v1016
  %v1030 = vadd.f32 %v941, %v1019
  %v1031 = vadd.f32 %v942, %v1024
  %s1032 = scalar_lea.vmem %s4, 128
  %v1033 = vld [vmem:[%s1032] sm:$0xf]
  %v1034 = vld [vmem:[%s1032 + $0x4] sm:$0xf]
  %v1035 = vld [vmem:[%s1032 + $0x8] sm:$0xf]
  %v1036 = vld [vmem:[%s1032 + $0xc] sm:$0xf]
  %v1039 = vrot.slane %v867, 1
  %v1040 = vrot.slane %v943, 1
  %v1041 = vsel %vm556, %v1039, %v1040
  %v1046 = vunpack.c.l.b16 %v1033
  %v1047 = vunpack.c.l.b16 %v1034
  %v1048 = vunpack.c.l.b16 %v1035
  %v1049 = vunpack.c.l.b16 %v1036
  %v1050 = vpack.c.b16 %v1047, %v1046
  %v1051 = vpack.c.b16 %v1049, %v1048
  %v1055 = vsel %vm228, %v1041, 0
  %v1058 = vsel %vm228, %v1040, 0
  %1060 = vmatprep.subr.bf16.mxu0 0
  %1061 = vmatpush1.bf16.msra.mxu0 %v1050
  %1062 = vmatprep.subr.bf16.mxu0 0
  %1063 = vmatpush1.bf16.msra.mxu0 %v1051
  %1064 = vmatprep.subr.bf16.mxu0 0
  %1065 = vmatpush1.bf16.msra.mxu0 0
  %1066 = vmatprep.subr.bf16.mxu0 0
  %1067 = vmatpush1.bf16.msra.mxu0 0
  %1068 = vmatprep.subr.bf16.mxu0 0
  %1069 = vmatpush1.bf16.msra.mxu0 0
  %1070 = vmatprep.subr.bf16.mxu0 0
  %1071 = vmatpush1.bf16.msra.mxu0 0
  %1072 = vmatprep.subr.bf16.mxu0 0
  %1073 = vmatpush1.bf16.msra.mxu0 0
  %1074 = vmatprep.subr.bf16.mxu0 0
  %1075 = vmatpush1.bf16.msra.mxu0 0
  %1076 = vmatprep.subr.bf16.mxu0 0
  %1077 = vmatpush1.bf16.msra.mxu0 0
  %1078 = vmatprep.subr.bf16.mxu0 0
  %1079 = vmatpush1.bf16.msra.mxu0 0
  %1080 = vmatprep.subr.bf16.mxu0 0
  %1081 = vmatpush1.bf16.msra.mxu0 0
  %1082 = vmatprep.subr.bf16.mxu0 0
  %1083 = vmatpush1.bf16.msra.mxu0 0
  %1084 = vmatprep.subr.bf16.mxu0 0
  %1085 = vmatpush1.bf16.msra.mxu0 0
  %1086 = vmatprep.subr.bf16.mxu0 0
  %1087 = vmatpush1.bf16.msra.mxu0 0
  %1088 = vmatprep.subr.bf16.mxu0 0
  %1089 = vmatpush1.bf16.msra.mxu0 0
  %1090 = vmatprep.subr.bf16.mxu0 0
  %1091 = vmatpush1.bf16.msra.mxu0 0
  %1092 = vmatprep.mubr.bf16.mxu0 0
  %1093 = vmatmul.mubr.bf16.gmra.mrb[0].mxu0 %v1055
  %v1094 = vpop.f32.mrb[0].mxu0
  %v1095 = vadd.f32 0.0, %v1094
  %v1096 = vpop.f32.mrb[0].mxu0
  %v1097 = vpop.f32.mrb[0].mxu0
  %v1098 = vadd.f32 0.0, %v1097
  %v1099 = vpop.f32.mrb[0].mxu0
  %1100 = vmatprep.mubr.bf16.mxu0 0
  %1101 = vmatmul.mubr.bf16.gmra.mrb[0].mxu0 %v1058
  %v1102 = vpop.f32.mrb[0].mxu0
  %v1103 = vadd.f32 0.0, %v1102
  %v1104 = vpop.f32.mrb[0].mxu0
  %v1105 = vpop.f32.mrb[0].mxu0
  %v1106 = vpop.f32.mrb[0].mxu0
  %1107 = vdwg.mxu0
  %v1108 = vadd.f32 %v1029, %v1095
  %v1109 = vadd.f32 %v1030, %v1098
  %v1110 = vadd.f32 %v1031, %v1103
  %v1111 = vld [vmem:[%s5] sm:$0x1]
  %v1113 = vlaneseq
  %v1114 = vshrl.u32 %v1113, 7
  %v1115 = vsub.s32 0, %v1114
  %v1116 = vrot.slane %v1111, %v1115
  %v1118 = vadd.f32 %v1108, %v1116
  %v1119 = vadd.f32 %v1109, %v1116
  %v1120 = vadd.f32 %v1110, %v1116
  %v1121 = vld [vmem:[%s6] sm:$0xf]
  %v1122 = vld [vmem:[%s6 + $0x4] sm:$0xf]
  %v1123 = vld [vmem:[%s6 + $0x8] sm:$0xf]
  %v1124 = vunpack.c.l.bf16 %v1121
  %v1125 = vunpack.c.l.bf16 %v1122
  %v1126 = vunpack.c.l.bf16 %v1123
  %v1127 = vadd.f32 %v1118, %v1124
  %v1128 = vadd.f32 %v1119, %v1125
  %v1129 = vadd.f32 %v1120, %v1126
  %v1130 = vmax.f32 %v1127, 0.0
  %v1131 = vmax.f32 %v1128, 0.0
  %v1132 = vmax.f32 %v1129, 0.0
  %v1133 = vpack.c.bf16 %v1131, %v1130
  %v1134 = vpack.c.bf16 %v1132, %v1132
  %v1137 = vunpack.c.l.b16 %v1133
  %v1138 = vunpack.c.h.b16 %v1133
  %v1139 = vunpack.c.l.b16 %v1134
  %v1140 = vpack.c.b16 %v1137, %v1137
  %v1141 = vpack.c.b16 %v1138, %v1138
  %v1142 = vpack.c.b16 %v1139, %v1139
  %vm1146 = vcmask 257024
  %1147 = vst.msk [vmem:[%s7] sm:$0xf] %vm1146, %v1140
  %1148 = vst.msk [vmem:[%s7 + $0x4] sm:$0xf] %vm1146, %v1141
  %1149 = vst.msk [vmem:[%s7 + $0x8] sm:$0xf] %vm1146, %v1142
  // Predicated region
  $region30: #{resnet18_forward.16} parent=0 // pred_check
    _
  $region31: #{resnet18_forward.16} parent=0 // pred_check_branch
    %1151 = sbr.rel (0) target = $region33
  $region32: #{resnet18_forward.16} parent=0 // pred_region
    _
  $region33: #{resnet18_forward.16} parent=0 // pred_fallthru
    _
  // Predicated region
  $region34: #{resnet18_forward.16} parent=0 // pred_check
    _
  $region35: #{resnet18_forward.16} parent=0 // pred_check_branch
    %1153 = sbr.rel (0) target = $region37
  $region36: #{resnet18_forward.16} parent=0 // pred_region
    _
  $region37: #{resnet18_forward.16} parent=0 // pred_fallthru
    _

// kernel: resnet18_forward.17
$region0: #{resnet18_forward.17}
  #allocation0 [shape = 'u32[]', space=smem, size = 0x4, offset = 0x4, fixed_abs, tag = 'smem constant byte address 0x4 - core index']
  #allocation1 [shape = 'u32[144,128]{1,0:T(1,128)}', space=vmem, size = 0x12000, scoped, tag = 'internal scratch']
  %s0 = inlined_call_operand.vmem [shape: bf16[24,288], index: 0, kind: input, shape index: {}]
  %s1 = inlined_call_operand.vmem [shape: bf16[288,64], index: 1, kind: input, shape index: {}]
  %s2 = inlined_call_operand.vmem [shape: f32[1,64], index: 2, kind: input, shape index: {}]
  %s3 = inlined_call_operand.vmem [shape: f32[24,1], index: 3, kind: input, shape index: {}]
  %s4 = inlined_call_operand.vmem [shape: bf16[9,64,64], index: 4, kind: input, shape index: {}]
  %s5 = inlined_call_operand.vmem [shape: f32[1,64], index: 5, kind: input, shape index: {}]
  %s6 = inlined_call_operand.vmem [shape: bf16[16,32], index: 6, kind: input, shape index: {}]
  %s7 = inlined_call_operand.vmem [shape: bf16[32,64], index: 7, kind: input, shape index: {}]
  %s8 = inlined_call_operand.vmem [shape: bf16[16,64], index: 8, kind: output, shape index: {}]
  %s9 = sld [smem:[#allocation0]]
  $region42: #{resnet18_forward.17} parent=0
    _
  %s11 = ssub.s32 1, %s9
  %s12 = scalar_select 0, %s11, %s9
  // Predicated region
  $region2: #{resnet18_forward.17} parent=0 // pred_check
    _
  $region3: #{resnet18_forward.17} parent=0 // pred_check_branch
    %14 = sbr.rel (0) target = $region5
  $region4: #{resnet18_forward.17} parent=0 // pred_region
    _
  $region5: #{resnet18_forward.17} parent=0 // pred_fallthru
    _
  // Predicated region
  $region6: #{resnet18_forward.17} parent=0 // pred_check
    _
  $region7: #{resnet18_forward.17} parent=0 // pred_check_branch
    %16 = sbr.rel (0) target = $region9
  $region8: #{resnet18_forward.17} parent=0 // pred_region
    _
  $region9: #{resnet18_forward.17} parent=0 // pred_fallthru
    _
  // Predicated region
  $region10: #{resnet18_forward.17} parent=0 // pred_check
    _
  $region11: #{resnet18_forward.17} parent=0 // pred_check_branch
    %18 = sbr.rel (0) target = $region13
  $region12: #{resnet18_forward.17} parent=0 // pred_region
    _
  $region13: #{resnet18_forward.17} parent=0 // pred_fallthru
    _
  // Predicated region
  $region14: #{resnet18_forward.17} parent=0 // pred_check
    _
  $region15: #{resnet18_forward.17} parent=0 // pred_check_branch
    %20 = sbr.rel (0) target = $region17
  $region16: #{resnet18_forward.17} parent=0 // pred_region
    _
  $region17: #{resnet18_forward.17} parent=0 // pred_fallthru
    _
  // Predicated region
  $region18: #{resnet18_forward.17} parent=0 // pred_check
    _
  $region19: #{resnet18_forward.17} parent=0 // pred_check_branch
    %22 = sbr.rel (0) target = $region21
  $region20: #{resnet18_forward.17} parent=0 // pred_region
    _
  $region21: #{resnet18_forward.17} parent=0 // pred_fallthru
    _
  // Predicated region
  $region22: #{resnet18_forward.17} parent=0 // pred_check
    _
  $region23: #{resnet18_forward.17} parent=0 // pred_check_branch
    %24 = sbr.rel (0) target = $region25
  $region24: #{resnet18_forward.17} parent=0 // pred_region
    _
  $region25: #{resnet18_forward.17} parent=0 // pred_fallthru
    _
  // Predicated region
  $region26: #{resnet18_forward.17} parent=0 // pred_check
    _
  $region27: #{resnet18_forward.17} parent=0 // pred_check_branch
    %26 = sbr.rel (0) target = $region29
  $region28: #{resnet18_forward.17} parent=0 // pred_region
    _
  $region29: #{resnet18_forward.17} parent=0 // pred_fallthru
    _
  // Predicated region
  $region30: #{resnet18_forward.17} parent=0 // pred_check
    _
  $region31: #{resnet18_forward.17} parent=0 // pred_check_branch
    %28 = sbr.rel (0) target = $region33
  $region32: #{resnet18_forward.17} parent=0 // pred_region
    _
  $region33: #{resnet18_forward.17} parent=0 // pred_fallthru
    _
  %v30 = vld [vmem:[%s0] sm:$0xff]
  %v31 = vld [vmem:[%s0 + $0x8] sm:$0xf]
  %v32 = vld [vmem:[%s0 + $0xc] sm:$0xff]
  %v33 = vld [vmem:[%s0 + $0x14] sm:$0xf]
  %v34 = vld [vmem:[%s0 + $0x18] sm:$0xff]
  %v35 = vld [vmem:[%s0 + $0x20] sm:$0xf]
  %v36 = vld [vmem:[%s1] sm:$0xf]
  %v37 = vld [vmem:[%s1 + $0x4] sm:$0xf]
  %v38 = vld [vmem:[%s1 + $0x8] sm:$0xf]
  %v39 = vld [vmem:[%s1 + $0xc] sm:$0xf]
  %v40 = vld [vmem:[%s1 + $0x10] sm:$0xf]
  %v41 = vld [vmem:[%s1 + $0x14] sm:$0xf]
  %v42 = vld [vmem:[%s1 + $0x18] sm:$0xf]
  %v43 = vld [vmem:[%s1 + $0x1c] sm:$0xf]
  %v44 = vld [vmem:[%s1 + $0x20] sm:$0xf]
  %v45 = vld [vmem:[%s1 + $0x24] sm:$0xf]
  %v46 = vld [vmem:[%s1 + $0x28] sm:$0xf]
  %v47 = vld [vmem:[%s1 + $0x2c] sm:$0xf]
  %v48 = vld [vmem:[%s1 + $0x30] sm:$0xf]
  %v49 = vld [vmem:[%s1 + $0x34] sm:$0xf]
  %v50 = vld [vmem:[%s1 + $0x38] sm:$0xf]
  %v51 = vld [vmem:[%s1 + $0x3c] sm:$0xf]
  %v52 = vld [vmem:[%s1 + $0x40] sm:$0xf]
  %v53 = vld [vmem:[%s1 + $0x44] sm:$0xf]
  %v54 = vld [vmem:[%s1 + $0x48] sm:$0xf]
  %v55 = vld [vmem:[%s1 + $0x4c] sm:$0xf]
  %v56 = vld [vmem:[%s1 + $0x50] sm:$0xf]
  %v57 = vld [vmem:[%s1 + $0x54] sm:$0xf]
  %v58 = vld [vmem:[%s1 + $0x58] sm:$0xf]
  %v59 = vld [vmem:[%s1 + $0x5c] sm:$0xf]
  %v60 = vld [vmem:[%s1 + $0x60] sm:$0xf]
  %v61 = vld [vmem:[%s1 + $0x64] sm:$0xf]
  %v62 = vld [vmem:[%s1 + $0x68] sm:$0xf]
  %v63 = vld [vmem:[%s1 + $0x6c] sm:$0xf]
  %v64 = vld [vmem:[%s1 + $0x70] sm:$0xf]
  %v65 = vld [vmem:[%s1 + $0x74] sm:$0xf]
  %v66 = vld [vmem:[%s1 + $0x78] sm:$0xf]
  %v67 = vld [vmem:[%s1 + $0x7c] sm:$0xf]
  %v68 = vld [vmem:[%s1 + $0x80] sm:$0xf]
  %v69 = vld [vmem:[%s1 + $0x84] sm:$0xf]
  %v70 = vld [vmem:[%s1 + $0x88] sm:$0xf]
  %v71 = vld [vmem:[%s1 + $0x8c] sm:$0xf]
  %v72 = vld [vmem:[%s2] sm:$0x1]
  %v74 = vlaneseq
  %v75 = vshrl.u32 %v74, 7
  %v76 = vsub.s32 0, %v75
  %v77 = vrot.slane %v72, %v76
  %v85 = vunpack.c.l.b16 %v30
  %v86 = vunpack.c.h.b16 %v30
  %v87 = vunpack.c.l.b16 %v31
  %v88 = vunpack.c.l.b16 %v32
  %v89 = vunpack.c.h.b16 %v32
  %v90 = vunpack.c.l.b16 %v33
  %v91 = vunpack.c.l.b16 %v34
  %v92 = vunpack.c.h.b16 %v34
  %v93 = vunpack.c.l.b16 %v35
  %v94 = vpack.c.b16 %v88, %v85
  %v95 = vpack.c.b16 %v89, %v86
  %v96 = vpack.c.b16 %v90, %v87
  %v97 = vpack.c.b16 %v91, %v91
  %v98 = vpack.c.b16 %v92, %v92
  %v99 = vpack.c.b16 %v93, %v93
  %v140 = vunpack.c.l.b16 %v36
  %v141 = vunpack.c.l.b16 %v37
  %v142 = vunpack.c.l.b16 %v38
  %v143 = vunpack.c.l.b16 %v39
  %v144 = vunpack.c.l.b16 %v40
  %v145 = vunpack.c.l.b16 %v41
  %v146 = vunpack.c.l.b16 %v42
  %v147 = vunpack.c.l.b16 %v43
  %v148 = vunpack.c.l.b16 %v44
  %v149 = vunpack.c.l.b16 %v45
  %v150 = vunpack.c.l.b16 %v46
  %v151 = vunpack.c.l.b16 %v47
  %v152 = vunpack.c.l.b16 %v48
  %v153 = vunpack.c.l.b16 %v49
  %v154 = vunpack.c.l.b16 %v50
  %v155 = vunpack.c.l.b16 %v51
  %v156 = vunpack.c.l.b16 %v52
  %v157 = vunpack.c.l.b16 %v53
  %v158 = vunpack.c.l.b16 %v54
  %v159 = vunpack.c.l.b16 %v55
  %v160 = vunpack.c.l.b16 %v56
  %v161 = vunpack.c.l.b16 %v57
  %v162 = vunpack.c.l.b16 %v58
  %v163 = vunpack.c.l.b16 %v59
  %v164 = vunpack.c.l.b16 %v60
  %v165 = vunpack.c.l.b16 %v61
  %v166 = vunpack.c.l.b16 %v62
  %v167 = vunpack.c.l.b16 %v63
  %v168 = vunpack.c.l.b16 %v64
  %v169 = vunpack.c.l.b16 %v65
  %v170 = vunpack.c.l.b16 %v66
  %v171 = vunpack.c.l.b16 %v67
  %v172 = vunpack.c.l.b16 %v68
  %v173 = vunpack.c.l.b16 %v69
  %v174 = vunpack.c.l.b16 %v70
  %v175 = vunpack.c.l.b16 %v71
  %v176 = vpack.c.b16 %v141, %v140
  %v177 = vpack.c.b16 %v143, %v142
  %v178 = vpack.c.b16 %v145, %v144
  %v179 = vpack.c.b16 %v147, %v146
  %v180 = vpack.c.b16 %v149, %v148
  %v181 = vpack.c.b16 %v151, %v150
  %v182 = vpack.c.b16 %v153, %v152
  %v183 = vpack.c.b16 %v155, %v154
  %v184 = vpack.c.b16 %v157, %v156
  %v185 = vpack.c.b16 %v159, %v158
  %v186 = vpack.c.b16 %v161, %v160
  %v187 = vpack.c.b16 %v163, %v162
  %v188 = vpack.c.b16 %v165, %v164
  %v189 = vpack.c.b16 %v167, %v166
  %v190 = vpack.c.b16 %v169, %v168
  %v191 = vpack.c.b16 %v171, %v170
  %v192 = vpack.c.b16 %v173, %v172
  %v193 = vpack.c.b16 %v175, %v174
  %vm212 = vcmask 261120
  %v214 = vsel %vm212, %v96, 0
  %v217 = vsel %vm212, %v99, 0
  %219 = vmatprep.subr.bf16.mxu0 0
  %220 = vmatpush1.bf16.msra.mxu0 %v176
  %221 = vmatprep.subr.bf16.mxu0 0
  %222 = vmatpush1.bf16.msra.mxu0 %v177
  %223 = vmatprep.subr.bf16.mxu0 0
  %224 = vmatpush1.bf16.msra.mxu0 %v178
  %225 = vmatprep.subr.bf16.mxu0 0
  %226 = vmatpush1.bf16.msra.mxu0 %v179
  %227 = vmatprep.subr.bf16.mxu0 0
  %228 = vmatpush1.bf16.msra.mxu0 %v180
  %229 = vmatprep.subr.bf16.mxu0 0
  %230 = vmatpush1.bf16.msra.mxu0 %v181
  %231 = vmatprep.subr.bf16.mxu0 0
  %232 = vmatpush1.bf16.msra.mxu0 %v182
  %233 = vmatprep.subr.bf16.mxu0 0
  %234 = vmatpush1.bf16.msra.mxu0 %v183
  %235 = vmatprep.subr.bf16.mxu0 0
  %236 = vmatpush1.bf16.msra.mxu0 %v184
  %237 = vmatprep.subr.bf16.mxu0 0
  %238 = vmatpush1.bf16.msra.mxu0 %v185
  %239 = vmatprep.subr.bf16.mxu0 0
  %240 = vmatpush1.bf16.msra.mxu0 %v186
  %241 = vmatprep.subr.bf16.mxu0 0
  %242 = vmatpush1.bf16.msra.mxu0 %v187
  %243 = vmatprep.subr.bf16.mxu0 0
  %244 = vmatpush1.bf16.msra.mxu0 %v188
  %245 = vmatprep.subr.bf16.mxu0 0
  %246 = vmatpush1.bf16.msra.mxu0 %v189
  %247 = vmatprep.subr.bf16.mxu0 0
  %248 = vmatpush1.bf16.msra.mxu0 %v190
  %249 = vmatprep.subr.bf16.mxu0 0
  %250 = vmatpush1.bf16.msra.mxu0 %v191
  %251 = vmatprep.mubr.bf16.mxu0 %v95
  %252 = vmatmul.mubr.bf16.gmra.mrb[0].mxu0 %v94
  %v253 = vpop.f32.mrb[0].mxu0
  %v254 = vadd.f32 %v77, %v253
  %v255 = vpop.f32.mrb[0].mxu0
  %v256 = vpop.f32.mrb[0].mxu0
  %v257 = vadd.f32 %v77, %v256
  %v258 = vpop.f32.mrb[0].mxu0
  %259 = vmatprep.mubr.bf16.mxu0 %v98
  %260 = vmatmul.mubr.bf16.gmra.mrb[0].mxu0 %v97
  %v261 = vpop.f32.mrb[0].mxu0
  %v262 = vadd.f32 %v77, %v261
  %v263 = vpop.f32.mrb[0].mxu0
  %v264 = vpop.f32.mrb[0].mxu0
  %v265 = vpop.f32.mrb[0].mxu0
  %266 = vdwg.mxu0
  %267 = vmatprep.subr.bf16.mxu0 0
  %268 = vmatpush1.bf16.msra.mxu0 %v192
  %269 = vmatprep.subr.bf16.mxu0 0
  %270 = vmatpush1.bf16.msra.mxu0 %v193
  %271 = vmatprep.subr.bf16.mxu0 0
  %272 = vmatpush1.bf16.msra.mxu0 0
  %273 = vmatprep.subr.bf16.mxu0 0
  %274 = vmatpush1.bf16.msra.mxu0 0
  %275 = vmatprep.subr.bf16.mxu0 0
  %276 = vmatpush1.bf16.msra.mxu0 0
  %277 = vmatprep.subr.bf16.mxu0 0
  %278 = vmatpush1.bf16.msra.mxu0 0
  %279 = vmatprep.subr.bf16.mxu0 0
  %280 = vmatpush1.bf16.msra.mxu0 0
  %281 = vmatprep.subr.bf16.mxu0 0
  %282 = vmatpush1.bf16.msra.mxu0 0
  %283 = vmatprep.subr.bf16.mxu0 0
  %284 = vmatpush1.bf16.msra.mxu0 0
  %285 = vmatprep.subr.bf16.mxu0 0
  %286 = vmatpush1.bf16.msra.mxu0 0
  %287 = vmatprep.subr.bf16.mxu0 0
  %288 = vmatpush1.bf16.msra.mxu0 0
  %289 = vmatprep.subr.bf16.mxu0 0
  %290 = vmatpush1.bf16.msra.mxu0 0
  %291 = vmatprep.subr.bf16.mxu0 0
  %292 = vmatpush1.bf16.msra.mxu0 0
  %293 = vmatprep.subr.bf16.mxu0 0
  %294 = vmatpush1.bf16.msra.mxu0 0
  %295 = vmatprep.subr.bf16.mxu0 0
  %296 = vmatpush1.bf16.msra.mxu0 0
  %297 = vmatprep.subr.bf16.mxu0 0
  %298 = vmatpush1.bf16.msra.mxu0 0
  %299 = vmatprep.mubr.bf16.mxu0 0
  %300 = vmatmul.mubr.bf16.gmra.mrb[0].mxu0 %v214
  %v301 = vpop.f32.mrb[0].mxu0
  %v302 = vadd.f32 %v254, %v301
  %v303 = vpop.f32.mrb[0].mxu0
  %v304 = vpop.f32.mrb[0].mxu0
  %v305 = vadd.f32 %v257, %v304
  %v306 = vpop.f32.mrb[0].mxu0
  %307 = vmatprep.mubr.bf16.mxu0 0
  %308 = vmatmul.mubr.bf16.gmra.mrb[0].mxu0 %v217
  %v309 = vpop.f32.mrb[0].mxu0
  %v310 = vadd.f32 %v262, %v309
  %v311 = vpop.f32.mrb[0].mxu0
  %v312 = vpop.f32.mrb[0].mxu0
  %v313 = vpop.f32.mrb[0].mxu0
  %314 = vdwg.mxu0
  %v315 = vmax.f32 %v302, 0.0
  %v316 = vmax.f32 %v305, 0.0
  %v317 = vmax.f32 %v310, 0.0
  %v318 = vld [vmem:[%s3] sm:$0xff]
  %v319 = vld [vmem:[%s3 + $0x8] sm:$0xff]
  %v320 = vld [vmem:[%s3 + $0x10] sm:$0xff]
  %322 = vset.pattern.permute.xlu0 0
  %323 = vperm.xlu0 %322, %v318
  %v324 = vpop.permute.xlu0 %323
  %327 = vset.pattern.permute.xlu0 0
  %328 = vperm.xlu0 %327, %v319
  %v329 = vpop.permute.xlu0 %328
  %332 = vset.pattern.permute.xlu0 0
  %333 = vperm.xlu0 %332, %v320
  %v334 = vpop.permute.xlu0 %333
  %v336 = vmul.f32 %v315, %v324
  %v337 = vmul.f32 %v316, %v329
  %v338 = vmul.f32 %v317, %v334
  %v339 = vpack.c.bf16 %v337, %v336
  %v340 = vld [vmem:[%s4] sm:$0xf]
  %v341 = vld [vmem:[%s4 + $0x4] sm:$0xf]
  %v342 = vld [vmem:[%s4 + $0x8] sm:$0xf]
  %v343 = vld [vmem:[%s4 + $0xc] sm:$0xf]
  %v344 = vld [vmem:[%s4 + $0x10] sm:$0xf]
  %v345 = vld [vmem:[%s4 + $0x14] sm:$0xf]
  %v346 = vld [vmem:[%s4 + $0x18] sm:$0xf]
  %v347 = vld [vmem:[%s4 + $0x1c] sm:$0xf]
  %v348 = vpack.c.bf16 %v338, %v338
  %s349 = scalar_lea.vmem %s4, 32
  %v350 = vld [vmem:[%s349] sm:$0xf]
  %v351 = vld [vmem:[%s349 + $0x4] sm:$0xf]
  %v352 = vld [vmem:[%s349 + $0x8] sm:$0xf]
  %v353 = vld [vmem:[%s349 + $0xc] sm:$0xf]
  %v354 = vld [vmem:[%s349 + $0x10] sm:$0xf]
  %v355 = vld [vmem:[%s349 + $0x14] sm:$0xf]
  %v356 = vld [vmem:[%s349 + $0x18] sm:$0xf]
  %v357 = vld [vmem:[%s349 + $0x1c] sm:$0xf]
  %vm358 = vsmask.f32 7424
  %v360 = vshrl.u32 %v339, 16
  %v362 = vshll.u32 %v339, 16
  %v364 = vrot.slane %v362, 1
  %v365 = vor.u32 %v360, %v364
  %v367 = vshll.u32 %v348, 16
  %v369 = vrot.slane %v367, 1
  %v370 = vsel %vm358, %v365, %v369
  %v379 = vunpack.c.l.b16 %v350
  %v380 = vunpack.c.l.b16 %v351
  %v381 = vunpack.c.l.b16 %v352
  %v382 = vunpack.c.l.b16 %v353
  %v383 = vunpack.c.l.b16 %v354
  %v384 = vunpack.c.l.b16 %v355
  %v385 = vunpack.c.l.b16 %v356
  %v386 = vunpack.c.l.b16 %v357
  %v387 = vpack.c.b16 %v380, %v379
  %v388 = vpack.c.b16 %v382, %v381
  %v389 = vpack.c.b16 %v384, %v383
  %v390 = vpack.c.b16 %v386, %v385
  %vm395 = vcmask 523264
  %v397 = vsel %vm395, %v370, 0
  %399 = vmatprep.subr.bf16.mxu0 0
  %400 = vmatpush1.bf16.msra.mxu0 %v387
  %401 = vmatprep.subr.bf16.mxu0 0
  %402 = vmatpush1.bf16.msra.mxu0 %v388
  %403 = vmatprep.subr.bf16.mxu0 0
  %404 = vmatpush1.bf16.msra.mxu0 %v389
  %405 = vmatprep.subr.bf16.mxu0 0
  %406 = vmatpush1.bf16.msra.mxu0 %v390
  %407 = vmatprep.subr.bf16.mxu0 0
  %408 = vmatpush1.bf16.msra.mxu0 0
  %409 = vmatprep.subr.bf16.mxu0 0
  %410 = vmatpush1.bf16.msra.mxu0 0
  %411 = vmatprep.subr.bf16.mxu0 0
  %412 = vmatpush1.bf16.msra.mxu0 0
  %413 = vmatprep.subr.bf16.mxu0 0
  %414 = vmatpush1.bf16.msra.mxu0 0
  %415 = vmatprep.subr.bf16.mxu0 0
  %416 = vmatpush1.bf16.msra.mxu0 0
  %417 = vmatprep.subr.bf16.mxu0 0
  %418 = vmatpush1.bf16.msra.mxu0 0
  %419 = vmatprep.subr.bf16.mxu0 0
  %420 = vmatpush1.bf16.msra.mxu0 0
  %421 = vmatprep.subr.bf16.mxu0 0
  %422 = vmatpush1.bf16.msra.mxu0 0
  %423 = vmatprep.subr.bf16.mxu0 0
  %424 = vmatpush1.bf16.msra.mxu0 0
  %425 = vmatprep.subr.bf16.mxu0 0
  %426 = vmatpush1.bf16.msra.mxu0 0
  %427 = vmatprep.subr.bf16.mxu0 0
  %428 = vmatpush1.bf16.msra.mxu0 0
  %429 = vmatprep.subr.bf16.mxu0 0
  %430 = vmatpush1.bf16.msra.mxu0 0
  %431 = vmatprep.mubr.bf16.mxu0 0
  %432 = vmatmul.mubr.bf16.gmra.mrb[0].mxu0 %v397
  %v433 = vpop.f32.mrb[0].mxu0
  %v434 = vadd.f32 0.0, %v433
  %v435 = vpop.f32.mrb[0].mxu0
  %v436 = vpop.f32.mrb[0].mxu0
  %v437 = vadd.f32 0.0, %v436
  %v438 = vpop.f32.mrb[0].mxu0
  %439 = vdwg.mxu0
  %v448 = vunpack.c.l.b16 %v340
  %v449 = vunpack.c.l.b16 %v341
  %v450 = vunpack.c.l.b16 %v342
  %v451 = vunpack.c.l.b16 %v343
  %v452 = vunpack.c.l.b16 %v344
  %v453 = vunpack.c.l.b16 %v345
  %v454 = vunpack.c.l.b16 %v346
  %v455 = vunpack.c.l.b16 %v347
  %v456 = vpack.c.b16 %v449, %v448
  %v457 = vpack.c.b16 %v451, %v450
  %v458 = vpack.c.b16 %v453, %v452
  %v459 = vpack.c.b16 %v455, %v454
  %v464 = vsel %vm395, %v339, 0
  %466 = vmatprep.subr.bf16.mxu0 0
  %467 = vmatpush1.bf16.msra.mxu0 %v456
  %468 = vmatprep.subr.bf16.mxu0 0
  %469 = vmatpush1.bf16.msra.mxu0 %v457
  %470 = vmatprep.subr.bf16.mxu0 0
  %471 = vmatpush1.bf16.msra.mxu0 %v458
  %472 = vmatprep.subr.bf16.mxu0 0
  %473 = vmatpush1.bf16.msra.mxu0 %v459
  %474 = vmatprep.subr.bf16.mxu0 0
  %475 = vmatpush1.bf16.msra.mxu0 0
  %476 = vmatprep.subr.bf16.mxu0 0
  %477 = vmatpush1.bf16.msra.mxu0 0
  %478 = vmatprep.subr.bf16.mxu0 0
  %479 = vmatpush1.bf16.msra.mxu0 0
  %480 = vmatprep.subr.bf16.mxu0 0
  %481 = vmatpush1.bf16.msra.mxu0 0
  %482 = vmatprep.subr.bf16.mxu0 0
  %483 = vmatpush1.bf16.msra.mxu0 0
  %484 = vmatprep.subr.bf16.mxu0 0
  %485 = vmatpush1.bf16.msra.mxu0 0
  %486 = vmatprep.subr.bf16.mxu0 0
  %487 = vmatpush1.bf16.msra.mxu0 0
  %488 = vmatprep.subr.bf16.mxu0 0
  %489 = vmatpush1.bf16.msra.mxu0 0
  %490 = vmatprep.subr.bf16.mxu0 0
  %491 = vmatpush1.bf16.msra.mxu0 0
  %492 = vmatprep.subr.bf16.mxu0 0
  %493 = vmatpush1.bf16.msra.mxu0 0
  %494 = vmatprep.subr.bf16.mxu0 0
  %495 = vmatpush1.bf16.msra.mxu0 0
  %496 = vmatprep.subr.bf16.mxu0 0
  %497 = vmatpush1.bf16.msra.mxu0 0
  %498 = vmatprep.mubr.bf16.mxu0 0
  %499 = vmatmul.mubr.bf16.gmra.mrb[0].mxu0 %v464
  %v500 = vpop.f32.mrb[0].mxu0
  %v501 = vadd.f32 %v434, %v500
  %v502 = vpop.f32.mrb[0].mxu0
  %v503 = vpop.f32.mrb[0].mxu0
  %v504 = vadd.f32 %v437, %v503
  %v505 = vpop.f32.mrb[0].mxu0
  %506 = vdwg.mxu0
  %s507 = scalar_lea.vmem %s4, 64
  %v508 = vld [vmem:[%s507] sm:$0xf]
  %v509 = vld [vmem:[%s507 + $0x4] sm:$0xf]
  %v510 = vld [vmem:[%s507 + $0x8] sm:$0xf]
  %v511 = vld [vmem:[%s507 + $0xc] sm:$0xf]
  %v512 = vld [vmem:[%s507 + $0x10] sm:$0xf]
  %v513 = vld [vmem:[%s507 + $0x14] sm:$0xf]
  %v514 = vld [vmem:[%s507 + $0x18] sm:$0xf]
  %v515 = vld [vmem:[%s507 + $0x1c] sm:$0xf]
  %vm518 = vcmask 1046528
  %v519 = vrot.slane %v339, 1
  %v520 = vrot.slane %v348, 1
  %v521 = vsel %vm518, %v519, %v520
  %v530 = vunpack.c.l.b16 %v508
  %v531 = vunpack.c.l.b16 %v509
  %v532 = vunpack.c.l.b16 %v510
  %v533 = vunpack.c.l.b16 %v511
  %v534 = vunpack.c.l.b16 %v512
  %v535 = vunpack.c.l.b16 %v513
  %v536 = vunpack.c.l.b16 %v514
  %v537 = vunpack.c.l.b16 %v515
  %v538 = vpack.c.b16 %v531, %v530
  %v539 = vpack.c.b16 %v533, %v532
  %v540 = vpack.c.b16 %v535, %v534
  %v541 = vpack.c.b16 %v537, %v536
  %v547 = vsel %vm395, %v521, 0
  %549 = vmatprep.subr.bf16.mxu0 0
  %550 = vmatpush1.bf16.msra.mxu0 %v538
  %551 = vmatprep.subr.bf16.mxu0 0
  %552 = vmatpush1.bf16.msra.mxu0 %v539
  %553 = vmatprep.subr.bf16.mxu0 0
  %554 = vmatpush1.bf16.msra.mxu0 %v540
  %555 = vmatprep.subr.bf16.mxu0 0
  %556 = vmatpush1.bf16.msra.mxu0 %v541
  %557 = vmatprep.subr.bf16.mxu0 0
  %558 = vmatpush1.bf16.msra.mxu0 0
  %559 = vmatprep.subr.bf16.mxu0 0
  %560 = vmatpush1.bf16.msra.mxu0 0
  %561 = vmatprep.subr.bf16.mxu0 0
  %562 = vmatpush1.bf16.msra.mxu0 0
  %563 = vmatprep.subr.bf16.mxu0 0
  %564 = vmatpush1.bf16.msra.mxu0 0
  %565 = vmatprep.subr.bf16.mxu0 0
  %566 = vmatpush1.bf16.msra.mxu0 0
  %567 = vmatprep.subr.bf16.mxu0 0
  %568 = vmatpush1.bf16.msra.mxu0 0
  %569 = vmatprep.subr.bf16.mxu0 0
  %570 = vmatpush1.bf16.msra.mxu0 0
  %571 = vmatprep.subr.bf16.mxu0 0
  %572 = vmatpush1.bf16.msra.mxu0 0
  %573 = vmatprep.subr.bf16.mxu0 0
  %574 = vmatpush1.bf16.msra.mxu0 0
  %575 = vmatprep.subr.bf16.mxu0 0
  %576 = vmatpush1.bf16.msra.mxu0 0
  %577 = vmatprep.subr.bf16.mxu0 0
  %578 = vmatpush1.bf16.msra.mxu0 0
  %579 = vmatprep.subr.bf16.mxu0 0
  %580 = vmatpush1.bf16.msra.mxu0 0
  %581 = vmatprep.mubr.bf16.mxu0 0
  %582 = vmatmul.mubr.bf16.gmra.mrb[0].mxu0 %v547
  %v583 = vpop.f32.mrb[0].mxu0
  %v584 = vadd.f32 0.0, %v583
  %v585 = vpop.f32.mrb[0].mxu0
  %v586 = vpop.f32.mrb[0].mxu0
  %v587 = vadd.f32 0.0, %v586
  %v588 = vpop.f32.mrb[0].mxu0
  %589 = vdwg.mxu0
  %v590 = vadd.f32 %v501, %v584
  %v591 = vadd.f32 %v504, %v587
  %s592 = scalar_lea.vmem %s4, 96
  %v593 = vld [vmem:[%s592] sm:$0xf]
  %v594 = vld [vmem:[%s592 + $0x4] sm:$0xf]
  %v595 = vld [vmem:[%s592 + $0x8] sm:$0xf]
  %v596 = vld [vmem:[%s592 + $0xc] sm:$0xf]
  %v597 = vld [vmem:[%s592 + $0x10] sm:$0xf]
  %v598 = vld [vmem:[%s592 + $0x14] sm:$0xf]
  %v599 = vld [vmem:[%s592 + $0x18] sm:$0xf]
  %v600 = vld [vmem:[%s592 + $0x1c] sm:$0xf]
  %vm601 = vsmask.f32 6400
  %v602 = vrot.slane %v360, 1
  %v603 = vrot.slane %v362, 2
  %v604 = vor.u32 %v602, %v603
  %v605 = vshrl.u32 %v348, 16
  %v607 = vrot.slane %v605, 1
  %v608 = vrot.slane %v367, 2
  %v609 = vor.u32 %v607, %v608
  %v610 = vsel %vm601, %v604, %v609
  %v619 = vunpack.c.l.b16 %v593
  %v620 = vunpack.c.l.b16 %v594
  %v621 = vunpack.c.l.b16 %v595
  %v622 = vunpack.c.l.b16 %v596
  %v623 = vunpack.c.l.b16 %v597
  %v624 = vunpack.c.l.b16 %v598
  %v625 = vunpack.c.l.b16 %v599
  %v626 = vunpack.c.l.b16 %v600
  %v627 = vpack.c.b16 %v620, %v619
  %v628 = vpack.c.b16 %v622, %v621
  %v629 = vpack.c.b16 %v624, %v623
  %v630 = vpack.c.b16 %v626, %v625
  %v636 = vsel %vm395, %v610, 0
  %638 = vmatprep.subr.bf16.mxu0 0
  %639 = vmatpush1.bf16.msra.mxu0 %v627
  %640 = vmatprep.subr.bf16.mxu0 0
  %641 = vmatpush1.bf16.msra.mxu0 %v628
  %642 = vmatprep.subr.bf16.mxu0 0
  %643 = vmatpush1.bf16.msra.mxu0 %v629
  %644 = vmatprep.subr.bf16.mxu0 0
  %645 = vmatpush1.bf16.msra.mxu0 %v630
  %646 = vmatprep.subr.bf16.mxu0 0
  %647 = vmatpush1.bf16.msra.mxu0 0
  %648 = vmatprep.subr.bf16.mxu0 0
  %649 = vmatpush1.bf16.msra.mxu0 0
  %650 = vmatprep.subr.bf16.mxu0 0
  %651 = vmatpush1.bf16.msra.mxu0 0
  %652 = vmatprep.subr.bf16.mxu0 0
  %653 = vmatpush1.bf16.msra.mxu0 0
  %654 = vmatprep.subr.bf16.mxu0 0
  %655 = vmatpush1.bf16.msra.mxu0 0
  %656 = vmatprep.subr.bf16.mxu0 0
  %657 = vmatpush1.bf16.msra.mxu0 0
  %658 = vmatprep.subr.bf16.mxu0 0
  %659 = vmatpush1.bf16.msra.mxu0 0
  %660 = vmatprep.subr.bf16.mxu0 0
  %661 = vmatpush1.bf16.msra.mxu0 0
  %662 = vmatprep.subr.bf16.mxu0 0
  %663 = vmatpush1.bf16.msra.mxu0 0
  %664 = vmatprep.subr.bf16.mxu0 0
  %665 = vmatpush1.bf16.msra.mxu0 0
  %666 = vmatprep.subr.bf16.mxu0 0
  %667 = vmatpush1.bf16.msra.mxu0 0
  %668 = vmatprep.subr.bf16.mxu0 0
  %669 = vmatpush1.bf16.msra.mxu0 0
  %670 = vmatprep.mubr.bf16.mxu0 0
  %671 = vmatmul.mubr.bf16.gmra.mrb[0].mxu0 %v636
  %v672 = vpop.f32.mrb[0].mxu0
  %v673 = vadd.f32 0.0, %v672
  %v674 = vpop.f32.mrb[0].mxu0
  %v675 = vpop.f32.mrb[0].mxu0
  %v676 = vadd.f32 0.0, %v675
  %v677 = vpop.f32.mrb[0].mxu0
  %678 = vdwg.mxu0
  %v679 = vadd.f32 %v590, %v673
  %v680 = vadd.f32 %v591, %v676
  %s681 = scalar_lea.vmem %s4, 128
  %v682 = vld [vmem:[%s681] sm:$0xf]
  %v683 = vld [vmem:[%s681 + $0x4] sm:$0xf]
  %v684 = vld [vmem:[%s681 + $0x8] sm:$0xf]
  %v685 = vld [vmem:[%s681 + $0xc] sm:$0xf]
  %v686 = vld [vmem:[%s681 + $0x10] sm:$0xf]
  %v687 = vld [vmem:[%s681 + $0x14] sm:$0xf]
  %v688 = vld [vmem:[%s681 + $0x18] sm:$0xf]
  %v689 = vld [vmem:[%s681 + $0x1c] sm:$0xf]
  %vm690 = vcmask 1045504
  %v691 = vrot.slane %v339, 2
  %v692 = vrot.slane %v348, 2
  %v693 = vsel %vm690, %v691, %v692
  %v702 = vunpack.c.l.b16 %v682
  %v703 = vunpack.c.l.b16 %v683
  %v704 = vunpack.c.l.b16 %v684
  %v705 = vunpack.c.l.b16 %v685
  %v706 = vunpack.c.l.b16 %v686
  %v707 = vunpack.c.l.b16 %v687
  %v708 = vunpack.c.l.b16 %v688
  %v709 = vunpack.c.l.b16 %v689
  %v710 = vpack.c.b16 %v703, %v702
  %v711 = vpack.c.b16 %v705, %v704
  %v712 = vpack.c.b16 %v707, %v706
  %v713 = vpack.c.b16 %v709, %v708
  %v719 = vsel %vm395, %v693, 0
  %721 = vmatprep.subr.bf16.mxu0 0
  %722 = vmatpush1.bf16.msra.mxu0 %v710
  %723 = vmatprep.subr.bf16.mxu0 0
  %724 = vmatpush1.bf16.msra.mxu0 %v711
  %725 = vmatprep.subr.bf16.mxu0 0
  %726 = vmatpush1.bf16.msra.mxu0 %v712
  %727 = vmatprep.subr.bf16.mxu0 0
  %728 = vmatpush1.bf16.msra.mxu0 %v713
  %729 = vmatprep.subr.bf16.mxu0 0
  %730 = vmatpush1.bf16.msra.mxu0 0
  %731 = vmatprep.subr.bf16.mxu0 0
  %732 = vmatpush1.bf16.msra.mxu0 0
  %733 = vmatprep.subr.bf16.mxu0 0
  %734 = vmatpush1.bf16.msra.mxu0 0
  %735 = vmatprep.subr.bf16.mxu0 0
  %736 = vmatpush1.bf16.msra.mxu0 0
  %737 = vmatprep.subr.bf16.mxu0 0
  %738 = vmatpush1.bf16.msra.mxu0 0
  %739 = vmatprep.subr.bf16.mxu0 0
  %740 = vmatpush1.bf16.msra.mxu0 0
  %741 = vmatprep.subr.bf16.mxu0 0
  %742 = vmatpush1.bf16.msra.mxu0 0
  %743 = vmatprep.subr.bf16.mxu0 0
  %744 = vmatpush1.bf16.msra.mxu0 0
  %745 = vmatprep.subr.bf16.mxu0 0
  %746 = vmatpush1.bf16.msra.mxu0 0
  %747 = vmatprep.subr.bf16.mxu0 0
  %748 = vmatpush1.bf16.msra.mxu0 0
  %749 = vmatprep.subr.bf16.mxu0 0
  %750 = vmatpush1.bf16.msra.mxu0 0
  %751 = vmatprep.subr.bf16.mxu0 0
  %752 = vmatpush1.bf16.msra.mxu0 0
  %753 = vmatprep.mubr.bf16.mxu0 0
  %754 = vmatmul.mubr.bf16.gmra.mrb[0].mxu0 %v719
  %v755 = vpop.f32.mrb[0].mxu0
  %v756 = vadd.f32 0.0, %v755
  %v757 = vpop.f32.mrb[0].mxu0
  %v758 = vpop.f32.mrb[0].mxu0
  %v759 = vadd.f32 0.0, %v758
  %v760 = vpop.f32.mrb[0].mxu0
  %761 = vdwg.mxu0
  %v762 = vadd.f32 %v679, %v756
  %v763 = vadd.f32 %v680, %v759
  %s764 = scalar_lea.vmem %s4, 160
  %v765 = vld [vmem:[%s764] sm:$0xf]
  %v766 = vld [vmem:[%s764 + $0x4] sm:$0xf]
  %v767 = vld [vmem:[%s764 + $0x8] sm:$0xf]
  %v768 = vld [vmem:[%s764 + $0xc] sm:$0xf]
  %v769 = vld [vmem:[%s764 + $0x10] sm:$0xf]
  %v770 = vld [vmem:[%s764 + $0x14] sm:$0xf]
  %v771 = vld [vmem:[%s764 + $0x18] sm:$0xf]
  %v772 = vld [vmem:[%s764 + $0x1c] sm:$0xf]
  %vm773 = vsmask.f32 5376
  %v774 = vrot.slane %v360, 2
  %v775 = vrot.slane %v362, 3
  %v776 = vor.u32 %v774, %v775
  %v777 = vrot.slane %v605, 2
  %v778 = vrot.slane %v367, 3
  %v779 = vor.u32 %v777, %v778
  %v780 = vsel %vm773, %v776, %v779
  %v789 = vunpack.c.l.b16 %v765
  %v790 = vunpack.c.l.b16 %v766
  %v791 = vunpack.c.l.b16 %v767
  %v792 = vunpack.c.l.b16 %v768
  %v793 = vunpack.c.l.b16 %v769
  %v794 = vunpack.c.l.b16 %v770
  %v795 = vunpack.c.l.b16 %v771
  %v796 = vunpack.c.l.b16 %v772
  %v797 = vpack.c.b16 %v790, %v789
  %v798 = vpack.c.b16 %v792, %v791
  %v799 = vpack.c.b16 %v794, %v793
  %v800 = vpack.c.b16 %v796, %v795
  %v806 = vsel %vm395, %v780, 0
  %808 = vmatprep.subr.bf16.mxu0 0
  %809 = vmatpush1.bf16.msra.mxu0 %v797
  %810 = vmatprep.subr.bf16.mxu0 0
  %811 = vmatpush1.bf16.msra.mxu0 %v798
  %812 = vmatprep.subr.bf16.mxu0 0
  %813 = vmatpush1.bf16.msra.mxu0 %v799
  %814 = vmatprep.subr.bf16.mxu0 0
  %815 = vmatpush1.bf16.msra.mxu0 %v800
  %816 = vmatprep.subr.bf16.mxu0 0
  %817 = vmatpush1.bf16.msra.mxu0 0
  %818 = vmatprep.subr.bf16.mxu0 0
  %819 = vmatpush1.bf16.msra.mxu0 0
  %820 = vmatprep.subr.bf16.mxu0 0
  %821 = vmatpush1.bf16.msra.mxu0 0
  %822 = vmatprep.subr.bf16.mxu0 0
  %823 = vmatpush1.bf16.msra.mxu0 0
  %824 = vmatprep.subr.bf16.mxu0 0
  %825 = vmatpush1.bf16.msra.mxu0 0
  %826 = vmatprep.subr.bf16.mxu0 0
  %827 = vmatpush1.bf16.msra.mxu0 0
  %828 = vmatprep.subr.bf16.mxu0 0
  %829 = vmatpush1.bf16.msra.mxu0 0
  %830 = vmatprep.subr.bf16.mxu0 0
  %831 = vmatpush1.bf16.msra.mxu0 0
  %832 = vmatprep.subr.bf16.mxu0 0
  %833 = vmatpush1.bf16.msra.mxu0 0
  %834 = vmatprep.subr.bf16.mxu0 0
  %835 = vmatpush1.bf16.msra.mxu0 0
  %836 = vmatprep.subr.bf16.mxu0 0
  %837 = vmatpush1.bf16.msra.mxu0 0
  %838 = vmatprep.subr.bf16.mxu0 0
  %839 = vmatpush1.bf16.msra.mxu0 0
  %840 = vmatprep.mubr.bf16.mxu0 0
  %841 = vmatmul.mubr.bf16.gmra.mrb[0].mxu0 %v806
  %v842 = vpop.f32.mrb[0].mxu0
  %v843 = vadd.f32 0.0, %v842
  %v844 = vpop.f32.mrb[0].mxu0
  %v845 = vpop.f32.mrb[0].mxu0
  %v846 = vadd.f32 0.0, %v845
  %v847 = vpop.f32.mrb[0].mxu0
  %848 = vdwg.mxu0
  %v849 = vadd.f32 %v762, %v843
  %v850 = vadd.f32 %v763, %v846
  %s851 = scalar_lea.vmem %s4, 192
  %v852 = vld [vmem:[%s851] sm:$0xf]
  %v853 = vld [vmem:[%s851 + $0x4] sm:$0xf]
  %v854 = vld [vmem:[%s851 + $0x8] sm:$0xf]
  %v855 = vld [vmem:[%s851 + $0xc] sm:$0xf]
  %v856 = vld [vmem:[%s851 + $0x10] sm:$0xf]
  %v857 = vld [vmem:[%s851 + $0x14] sm:$0xf]
  %v858 = vld [vmem:[%s851 + $0x18] sm:$0xf]
  %v859 = vld [vmem:[%s851 + $0x1c] sm:$0xf]
  %vm860 = vcmask 1044480
  %v861 = vrot.slane %v339, 3
  %v862 = vrot.slane %v348, 3
  %v863 = vsel %vm860, %v861, %v862
  %v872 = vunpack.c.l.b16 %v852
  %v873 = vunpack.c.l.b16 %v853
  %v874 = vunpack.c.l.b16 %v854
  %v875 = vunpack.c.l.b16 %v855
  %v876 = vunpack.c.l.b16 %v856
  %v877 = vunpack.c.l.b16 %v857
  %v878 = vunpack.c.l.b16 %v858
  %v879 = vunpack.c.l.b16 %v859
  %v880 = vpack.c.b16 %v873, %v872
  %v881 = vpack.c.b16 %v875, %v874
  %v882 = vpack.c.b16 %v877, %v876
  %v883 = vpack.c.b16 %v879, %v878
  %v889 = vsel %vm395, %v863, 0
  %891 = vmatprep.subr.bf16.mxu0 0
  %892 = vmatpush1.bf16.msra.mxu0 %v880
  %893 = vmatprep.subr.bf16.mxu0 0
  %894 = vmatpush1.bf16.msra.mxu0 %v881
  %895 = vmatprep.subr.bf16.mxu0 0
  %896 = vmatpush1.bf16.msra.mxu0 %v882
  %897 = vmatprep.subr.bf16.mxu0 0
  %898 = vmatpush1.bf16.msra.mxu0 %v883
  %899 = vmatprep.subr.bf16.mxu0 0
  %900 = vmatpush1.bf16.msra.mxu0 0
  %901 = vmatprep.subr.bf16.mxu0 0
  %902 = vmatpush1.bf16.msra.mxu0 0
  %903 = vmatprep.subr.bf16.mxu0 0
  %904 = vmatpush1.bf16.msra.mxu0 0
  %905 = vmatprep.subr.bf16.mxu0 0
  %906 = vmatpush1.bf16.msra.mxu0 0
  %907 = vmatprep.subr.bf16.mxu0 0
  %908 = vmatpush1.bf16.msra.mxu0 0
  %909 = vmatprep.subr.bf16.mxu0 0
  %910 = vmatpush1.bf16.msra.mxu0 0
  %911 = vmatprep.subr.bf16.mxu0 0
  %912 = vmatpush1.bf16.msra.mxu0 0
  %913 = vmatprep.subr.bf16.mxu0 0
  %914 = vmatpush1.bf16.msra.mxu0 0
  %915 = vmatprep.subr.bf16.mxu0 0
  %916 = vmatpush1.bf16.msra.mxu0 0
  %917 = vmatprep.subr.bf16.mxu0 0
  %918 = vmatpush1.bf16.msra.mxu0 0
  %919 = vmatprep.subr.bf16.mxu0 0
  %920 = vmatpush1.bf16.msra.mxu0 0
  %921 = vmatprep.subr.bf16.mxu0 0
  %922 = vmatpush1.bf16.msra.mxu0 0
  %923 = vmatprep.mubr.bf16.mxu0 0
  %924 = vmatmul.mubr.bf16.gmra.mrb[0].mxu0 %v889
  %v925 = vpop.f32.mrb[0].mxu0
  %v926 = vadd.f32 0.0, %v925
  %v927 = vpop.f32.mrb[0].mxu0
  %v928 = vpop.f32.mrb[0].mxu0
  %v929 = vadd.f32 0.0, %v928
  %v930 = vpop.f32.mrb[0].mxu0
  %931 = vdwg.mxu0
  %v932 = vadd.f32 %v849, %v926
  %v933 = vadd.f32 %v850, %v929
  %s934 = scalar_lea.vmem %s4, 224
  %v935 = vld [vmem:[%s934] sm:$0xf]
  %v936 = vld [vmem:[%s934 + $0x4] sm:$0xf]
  %v937 = vld [vmem:[%s934 + $0x8] sm:$0xf]
  %v938 = vld [vmem:[%s934 + $0xc] sm:$0xf]
  %v939 = vld [vmem:[%s934 + $0x10] sm:$0xf]
  %v940 = vld [vmem:[%s934 + $0x14] sm:$0xf]
  %v941 = vld [vmem:[%s934 + $0x18] sm:$0xf]
  %v942 = vld [vmem:[%s934 + $0x1c] sm:$0xf]
  %vm943 = vsmask.f32 4352
  %v944 = vrot.slane %v360, 3
  %v945 = vrot.slane %v362, 4
  %v946 = vor.u32 %v944, %v945
  %v947 = vrot.slane %v605, 3
  %v948 = vrot.slane %v367, 4
  %v949 = vor.u32 %v947, %v948
  %v950 = vsel %vm943, %v946, %v949
  %v959 = vunpack.c.l.b16 %v935
  %v960 = vunpack.c.l.b16 %v936
  %v961 = vunpack.c.l.b16 %v937
  %v962 = vunpack.c.l.b16 %v938
  %v963 = vunpack.c.l.b16 %v939
  %v964 = vunpack.c.l.b16 %v940
  %v965 = vunpack.c.l.b16 %v941
  %v966 = vunpack.c.l.b16 %v942
  %v967 = vpack.c.b16 %v960, %v959
  %v968 = vpack.c.b16 %v962, %v961
  %v969 = vpack.c.b16 %v964, %v963
  %v970 = vpack.c.b16 %v966, %v965
  %v976 = vsel %vm395, %v950, 0
  %978 = vmatprep.subr.bf16.mxu0 0
  %979 = vmatpush1.bf16.msra.mxu0 %v967
  %980 = vmatprep.subr.bf16.mxu0 0
  %981 = vmatpush1.bf16.msra.mxu0 %v968
  %982 = vmatprep.subr.bf16.mxu0 0
  %983 = vmatpush1.bf16.msra.mxu0 %v969
  %984 = vmatprep.subr.bf16.mxu0 0
  %985 = vmatpush1.bf16.msra.mxu0 %v970
  %986 = vmatprep.subr.bf16.mxu0 0
  %987 = vmatpush1.bf16.msra.mxu0 0
  %988 = vmatprep.subr.bf16.mxu0 0
  %989 = vmatpush1.bf16.msra.mxu0 0
  %990 = vmatprep.subr.bf16.mxu0 0
  %991 = vmatpush1.bf16.msra.mxu0 0
  %992 = vmatprep.subr.bf16.mxu0 0
  %993 = vmatpush1.bf16.msra.mxu0 0
  %994 = vmatprep.subr.bf16.mxu0 0
  %995 = vmatpush1.bf16.msra.mxu0 0
  %996 = vmatprep.subr.bf16.mxu0 0
  %997 = vmatpush1.bf16.msra.mxu0 0
  %998 = vmatprep.subr.bf16.mxu0 0
  %999 = vmatpush1.bf16.msra.mxu0 0
  %1000 = vmatprep.subr.bf16.mxu0 0
  %1001 = vmatpush1.bf16.msra.mxu0 0
  %1002 = vmatprep.subr.bf16.mxu0 0
  %1003 = vmatpush1.bf16.msra.mxu0 0
  %1004 = vmatprep.subr.bf16.mxu0 0
  %1005 = vmatpush1.bf16.msra.mxu0 0
  %1006 = vmatprep.subr.bf16.mxu0 0
  %1007 = vmatpush1.bf16.msra.mxu0 0
  %1008 = vmatprep.subr.bf16.mxu0 0
  %1009 = vmatpush1.bf16.msra.mxu0 0
  %1010 = vmatprep.mubr.bf16.mxu0 0
  %1011 = vmatmul.mubr.bf16.gmra.mrb[0].mxu0 %v976
  %v1012 = vpop.f32.mrb[0].mxu0
  %v1013 = vadd.f32 0.0, %v1012
  %v1014 = vpop.f32.mrb[0].mxu0
  %v1015 = vpop.f32.mrb[0].mxu0
  %v1016 = vadd.f32 0.0, %v1015
  %v1017 = vpop.f32.mrb[0].mxu0
  %1018 = vdwg.mxu0
  %v1019 = vadd.f32 %v932, %v1013
  %v1020 = vadd.f32 %v933, %v1016
  %v1021 = vpack.c.bf16 %v338, %v337
  %s1022 = scalar_lea.vmem %s4, 256
  %v1023 = vld [vmem:[%s1022] sm:$0xf]
  %v1024 = vld [vmem:[%s1022 + $0x4] sm:$0xf]
  %v1025 = vld [vmem:[%s1022 + $0x8] sm:$0xf]
  %v1026 = vld [vmem:[%s1022 + $0xc] sm:$0xf]
  %v1027 = vld [vmem:[%s1022 + $0x10] sm:$0xf]
  %v1028 = vld [vmem:[%s1022 + $0x14] sm:$0xf]
  %v1029 = vld [vmem:[%s1022 + $0x18] sm:$0xf]
  %v1030 = vld [vmem:[%s1022 + $0x1c] sm:$0xf]
  %v1039 = vunpack.c.l.b16 %v1023
  %v1040 = vunpack.c.l.b16 %v1024
  %v1041 = vunpack.c.l.b16 %v1025
  %v1042 = vunpack.c.l.b16 %v1026
  %v1043 = vunpack.c.l.b16 %v1027
  %v1044 = vunpack.c.l.b16 %v1028
  %v1045 = vunpack.c.l.b16 %v1029
  %v1046 = vunpack.c.l.b16 %v1030
  %v1047 = vpack.c.b16 %v1040, %v1039
  %v1048 = vpack.c.b16 %v1042, %v1041
  %v1049 = vpack.c.b16 %v1044, %v1043
  %v1050 = vpack.c.b16 %v1046, %v1045
  %v1056 = vsel %vm395, %v1021, 0
  %1058 = vmatprep.subr.bf16.mxu0 0
  %1059 = vmatpush1.bf16.msra.mxu0 %v1047
  %1060 = vmatprep.subr.bf16.mxu0 0
  %1061 = vmatpush1.bf16.msra.mxu0 %v1048
  %1062 = vmatprep.subr.bf16.mxu0 0
  %1063 = vmatpush1.bf16.msra.mxu0 %v1049
  %1064 = vmatprep.subr.bf16.mxu0 0
  %1065 = vmatpush1.bf16.msra.mxu0 %v1050
  %1066 = vmatprep.subr.bf16.mxu0 0
  %1067 = vmatpush1.bf16.msra.mxu0 0
  %1068 = vmatprep.subr.bf16.mxu0 0
  %1069 = vmatpush1.bf16.msra.mxu0 0
  %1070 = vmatprep.subr.bf16.mxu0 0
  %1071 = vmatpush1.bf16.msra.mxu0 0
  %1072 = vmatprep.subr.bf16.mxu0 0
  %1073 = vmatpush1.bf16.msra.mxu0 0
  %1074 = vmatprep.subr.bf16.mxu0 0
  %1075 = vmatpush1.bf16.msra.mxu0 0
  %1076 = vmatprep.subr.bf16.mxu0 0
  %1077 = vmatpush1.bf16.msra.mxu0 0
  %1078 = vmatprep.subr.bf16.mxu0 0
  %1079 = vmatpush1.bf16.msra.mxu0 0
  %1080 = vmatprep.subr.bf16.mxu0 0
  %1081 = vmatpush1.bf16.msra.mxu0 0
  %1082 = vmatprep.subr.bf16.mxu0 0
  %1083 = vmatpush1.bf16.msra.mxu0 0
  %1084 = vmatprep.subr.bf16.mxu0 0
  %1085 = vmatpush1.bf16.msra.mxu0 0
  %1086 = vmatprep.subr.bf16.mxu0 0
  %1087 = vmatpush1.bf16.msra.mxu0 0
  %1088 = vmatprep.subr.bf16.mxu0 0
  %1089 = vmatpush1.bf16.msra.mxu0 0
  %1090 = vmatprep.mubr.bf16.mxu0 0
  %1091 = vmatmul.mubr.bf16.gmra.mrb[0].mxu0 %v1056
  %v1092 = vpop.f32.mrb[0].mxu0
  %v1093 = vadd.f32 0.0, %v1092
  %v1094 = vpop.f32.mrb[0].mxu0
  %v1095 = vpop.f32.mrb[0].mxu0
  %v1096 = vadd.f32 0.0, %v1095
  %v1097 = vpop.f32.mrb[0].mxu0
  %1098 = vdwg.mxu0
  %v1099 = vadd.f32 %v1019, %v1093
  %v1100 = vadd.f32 %v1020, %v1096
  %v1101 = vld [vmem:[%s5] sm:$0x1]
  %v1103 = vlaneseq
  %v1104 = vshrl.u32 %v1103, 7
  %v1105 = vsub.s32 0, %v1104
  %v1106 = vrot.slane %v1101, %v1105
  %v1108 = vadd.f32 %v1099, %v1106
  %v1109 = vadd.f32 %v1100, %v1106
  %v1110 = vld [vmem:[%s6] sm:$0xf]
  %v1111 = vld [vmem:[%s6 + $0x4] sm:$0xf]
  %v1112 = vld [vmem:[%s7] sm:$0xf]
  %v1113 = vld [vmem:[%s7 + $0x4] sm:$0xf]
  %v1114 = vld [vmem:[%s7 + $0x8] sm:$0xf]
  %v1115 = vld [vmem:[%s7 + $0xc] sm:$0xf]
  %v1118 = vunpack.c.l.b16 %v1110
  %v1119 = vunpack.c.l.b16 %v1111
  %v1120 = vpack.c.b16 %v1119, %v1118
  %v1125 = vunpack.c.l.b16 %v1112
  %v1126 = vunpack.c.l.b16 %v1113
  %v1127 = vunpack.c.l.b16 %v1114
  %v1128 = vunpack.c.l.b16 %v1115
  %v1129 = vpack.c.b16 %v1126, %v1125
  %v1130 = vpack.c.b16 %v1128, %v1127
  %v1134 = vsel %vm212, %v1120, 0
  %1136 = vmatprep.subr.bf16.mxu0 0
  %1137 = vmatpush1.bf16.msra.mxu0 %v1129
  %1138 = vmatprep.subr.bf16.mxu0 0
  %1139 = vmatpush1.bf16.msra.mxu0 %v1130
  %1140 = vmatprep.subr.bf16.mxu0 0
  %1141 = vmatpush1.bf16.msra.mxu0 0
  %1142 = vmatprep.subr.bf16.mxu0 0
  %1143 = vmatpush1.bf16.msra.mxu0 0
  %1144 = vmatprep.subr.bf16.mxu0 0
  %1145 = vmatpush1.bf16.msra.mxu0 0
  %1146 = vmatprep.subr.bf16.mxu0 0
  %1147 = vmatpush1.bf16.msra.mxu0 0
  %1148 = vmatprep.subr.bf16.mxu0 0
  %1149 = vmatpush1.bf16.msra.mxu0 0
  %1150 = vmatprep.subr.bf16.mxu0 0
  %1151 = vmatpush1.bf16.msra.mxu0 0
  %1152 = vmatprep.subr.bf16.mxu0 0
  %1153 = vmatpush1.bf16.msra.mxu0 0
  %1154 = vmatprep.subr.bf16.mxu0 0
  %1155 = vmatpush1.bf16.msra.mxu0 0
  %1156 = vmatprep.subr.bf16.mxu0 0
  %1157 = vmatpush1.bf16.msra.mxu0 0
  %1158 = vmatprep.subr.bf16.mxu0 0
  %1159 = vmatpush1.bf16.msra.mxu0 0
  %1160 = vmatprep.subr.bf16.mxu0 0
  %1161 = vmatpush1.bf16.msra.mxu0 0
  %1162 = vmatprep.subr.bf16.mxu0 0
  %1163 = vmatpush1.bf16.msra.mxu0 0
  %1164 = vmatprep.subr.bf16.mxu0 0
  %1165 = vmatpush1.bf16.msra.mxu0 0
  %1166 = vmatprep.subr.bf16.mxu0 0
  %1167 = vmatpush1.bf16.msra.mxu0 0
  %1168 = vmatprep.mubr.bf16.mxu0 0
  %1169 = vmatmul.mubr.bf16.gmra.mrb[0].mxu0 %v1134
  %v1170 = vpop.f32.mrb[0].mxu0
  %v1171 = vadd.f32 0.0, %v1170
  %v1172 = vpop.f32.mrb[0].mxu0
  %v1173 = vpop.f32.mrb[0].mxu0
  %v1174 = vadd.f32 0.0, %v1173
  %v1175 = vpop.f32.mrb[0].mxu0
  %1176 = vdwg.mxu0
  %v1177 = vadd.f32 %v1108, %v1171
  %v1178 = vadd.f32 %v1109, %v1174
  %v1179 = vmax.f32 %v1177, 0.0
  %v1180 = vmax.f32 %v1178, 0.0
  %v1181 = vpack.c.bf16 %v1180, %v1179
  %v1183 = vunpack.c.l.b16 %v1181
  %v1184 = vunpack.c.h.b16 %v1181
  %v1185 = vpack.c.b16 %v1183, %v1183
  %v1186 = vpack.c.b16 %v1184, %v1184
  %vm1189 = vcmask 519168
  %1190 = vst.msk [vmem:[%s8] sm:$0xf] %vm1189, %v1185
  %1191 = vst.msk [vmem:[%s8 + $0x4] sm:$0xf] %vm1189, %v1186
  // Predicated region
  $region34: #{resnet18_forward.17} parent=0 // pred_check
    _
  $region35: #{resnet18_forward.17} parent=0 // pred_check_branch
    %1193 = sbr.rel (0) target = $region37
  $region36: #{resnet18_forward.17} parent=0 // pred_region
    _
  $region37: #{resnet18_forward.17} parent=0 // pred_fallthru
    _
  // Predicated region
  $region38: #{resnet18_forward.17} parent=0 // pred_check
    _
  $region39: #{resnet18_forward.17} parent=0 // pred_check_branch
    %1195 = sbr.rel (0) target = $region41
  $region40: #{resnet18_forward.17} parent=0 // pred_region
    _
  $region41: #{resnet18_forward.17} parent=0 // pred_fallthru
    _

// kernel: resnet18_forward.19
$region0: #{resnet18_forward.19}
  #allocation0 [shape = 'u32[]', space=smem, size = 0x4, offset = 0x4, fixed_abs, tag = 'smem constant byte address 0x4 - core index']
  #allocation1 [shape = 'u32[144,128]{1,0:T(1,128)}', space=vmem, size = 0x12000, scoped, tag = 'internal scratch']
  %s0 = inlined_call_operand.vmem [shape: bf16[8,1,64], index: 0, kind: input, shape index: {}]
  %s1 = inlined_call_operand.vmem [shape: f32[64,10], index: 1, kind: input, shape index: {}]
  %s2 = inlined_call_operand.vmem [shape: f32[1,10], index: 2, kind: input, shape index: {}]
  %s3 = inlined_call_operand.vmem [shape: f32[8,10], index: 3, kind: output, shape index: {}]
  %s4 = sld [smem:[#allocation0]]
  $region22: #{resnet18_forward.19} parent=0
    _
  %s6 = ssub.s32 1, %s4
  %s7 = scalar_select 0, %s6, %s4
  // Predicated region
  $region2: #{resnet18_forward.19} parent=0 // pred_check
    _
  $region3: #{resnet18_forward.19} parent=0 // pred_check_branch
    %9 = sbr.rel (0) target = $region5
  $region4: #{resnet18_forward.19} parent=0 // pred_region
    _
  $region5: #{resnet18_forward.19} parent=0 // pred_fallthru
    _
  // Predicated region
  $region6: #{resnet18_forward.19} parent=0 // pred_check
    _
  $region7: #{resnet18_forward.19} parent=0 // pred_check_branch
    %11 = sbr.rel (0) target = $region9
  $region8: #{resnet18_forward.19} parent=0 // pred_region
    _
  $region9: #{resnet18_forward.19} parent=0 // pred_fallthru
    _
  // Predicated region
  $region10: #{resnet18_forward.19} parent=0 // pred_check
    _
  $region11: #{resnet18_forward.19} parent=0 // pred_check_branch
    %13 = sbr.rel (0) target = $region13
  $region12: #{resnet18_forward.19} parent=0 // pred_region
    _
  $region13: #{resnet18_forward.19} parent=0 // pred_fallthru
    _
  %v14 = vld [vmem:[%s0] sm:$0x1]
  %v15 = vld [vmem:[%s0 + $0x1] sm:$0x1]
  %v16 = vld [vmem:[%s0 + $0x2] sm:$0x1]
  %v17 = vld [vmem:[%s0 + $0x3] sm:$0x1]
  %v18 = vld [vmem:[%s0 + $0x4] sm:$0x1]
  %v19 = vld [vmem:[%s0 + $0x5] sm:$0x1]
  %v20 = vld [vmem:[%s0 + $0x6] sm:$0x1]
  %v21 = vld [vmem:[%s0 + $0x7] sm:$0x1]
  %v22 = vunpack.c.l.bf16 %v14
  %v23 = vunpack.c.l.bf16 %v15
  %v24 = vunpack.c.l.bf16 %v16
  %v25 = vunpack.c.l.bf16 %v17
  %v26 = vunpack.c.l.bf16 %v18
  %v27 = vunpack.c.l.bf16 %v19
  %v28 = vunpack.c.l.bf16 %v20
  %v29 = vunpack.c.l.bf16 %v21
  %v30 = vadd.f32 %v22, 0.0
  %v31 = vadd.f32 %v23, 0.0
  %v32 = vadd.f32 %v24, 0.0
  %v33 = vadd.f32 %v25, 0.0
  %v34 = vadd.f32 %v26, 0.0
  %v35 = vadd.f32 %v27, 0.0
  %v36 = vadd.f32 %v28, 0.0
  %v37 = vadd.f32 %v29, 0.0
  %v38 = vld [vmem:[%s1] sm:$0xff]
  %v39 = vld [vmem:[%s1 + $0x8] sm:$0xff]
  %v40 = vld [vmem:[%s1 + $0x10] sm:$0xff]
  %v41 = vld [vmem:[%s1 + $0x18] sm:$0xff]
  %v42 = vld [vmem:[%s1 + $0x20] sm:$0xff]
  %v43 = vld [vmem:[%s1 + $0x28] sm:$0xff]
  %v44 = vld [vmem:[%s1 + $0x30] sm:$0xff]
  %v45 = vld [vmem:[%s1 + $0x38] sm:$0xff]
  %v46 = vld [vmem:[%s2] sm:$0x1]
  %v48 = vlaneseq
  %v49 = vshrl.u32 %v48, 7
  %v50 = vsub.s32 0, %v49
  %v51 = vrot.slane %v46, %v50
  %v61 = vlaneseq
  %v62 = vshrl.u32 %v61, 7
  %v63 = vsub.s32 0, %v62
  %v64 = vrot.slane %v30, %v63
  %v65 = vlaneseq
  %v66 = vshrl.u32 %v65, 7
  %v67 = vsub.s32 0, %v66
  %v68 = vrot.slane %v31, %v67
  %v69 = vlaneseq
  %v70 = vshrl.u32 %v69, 7
  %v71 = vsub.s32 0, %v70
  %v72 = vrot.slane %v32, %v71
  %v73 = vlaneseq
  %v74 = vshrl.u32 %v73, 7
  %v75 = vsub.s32 0, %v74
  %v76 = vrot.slane %v33, %v75
  %v77 = vlaneseq
  %v78 = vshrl.u32 %v77, 7
  %v79 = vsub.s32 0, %v78
  %v80 = vrot.slane %v34, %v79
  %v81 = vlaneseq
  %v82 = vshrl.u32 %v81, 7
  %v83 = vsub.s32 0, %v82
  %v84 = vrot.slane %v35, %v83
  %v85 = vlaneseq
  %v86 = vshrl.u32 %v85, 7
  %v87 = vsub.s32 0, %v86
  %v88 = vrot.slane %v36, %v87
  %v89 = vlaneseq
  %v90 = vshrl.u32 %v89, 7
  %v91 = vsub.s32 0, %v90
  %v92 = vrot.slane %v37, %v91
  %vm93 = vcmask 1041409
  %v94 = vsel %vm93, %v68, %v64
  %vm95 = vcmask 1042434
  %v96 = vsel %vm95, %v72, %v94
  %vm97 = vcmask 1043459
  %v98 = vsel %vm97, %v76, %v96
  %vm99 = vcmask 1044484
  %v100 = vsel %vm99, %v80, %v98
  %vm101 = vcmask 1045509
  %v102 = vsel %vm101, %v84, %v100
  %vm103 = vcmask 1046534
  %v104 = vsel %vm103, %v88, %v102
  %vm105 = vcmask 1047559
  %v106 = vsel %vm105, %v92, %v104
  %vm107 = vcmask 523264
  %v108 = vsel %vm107, %v106, 0
  %110 = vmatprep.subr.mxu0 0.0
  %111 = vmatpush1.msra.mxu0 %v38
  %112 = vmatprep.subr.mxu0 0.0
  %113 = vmatpush1.msra.mxu0 %v39
  %114 = vmatprep.subr.mxu0 0.0
  %115 = vmatpush1.msra.mxu0 %v40
  %116 = vmatprep.subr.mxu0 0.0
  %117 = vmatpush1.msra.mxu0 %v41
  %118 = vmatprep.subr.mxu0 0.0
  %119 = vmatpush1.msra.mxu0 %v42
  %120 = vmatprep.subr.mxu0 0.0
  %121 = vmatpush1.msra.mxu0 %v43
  %122 = vmatprep.subr.mxu0 0.0
  %123 = vmatpush1.msra.mxu0 %v44
  %124 = vmatprep.subr.mxu0 0.0
  %125 = vmatpush1.msra.mxu0 %v45
  %126 = vmatprep.subr.mxu0 0.0
  %127 = vmatpush1.msra.mxu0 0.0
  %128 = vmatprep.subr.mxu0 0.0
  %129 = vmatpush1.msra.mxu0 0.0
  %130 = vmatprep.subr.mxu0 0.0
  %131 = vmatpush1.msra.mxu0 0.0
  %132 = vmatprep.subr.mxu0 0.0
  %133 = vmatpush1.msra.mxu0 0.0
  %134 = vmatprep.subr.mxu0 0.0
  %135 = vmatpush1.msra.mxu0 0.0
  %136 = vmatprep.subr.mxu0 0.0
  %137 = vmatpush1.msra.mxu0 0.0
  %138 = vmatprep.subr.mxu0 0.0
  %139 = vmatpush1.msra.mxu0 0.0
  %140 = vmatprep.subr.mxu0 0.0
  %141 = vmatpush1.msra.mxu0 0.0
  %142 = vmatprep.subr.mxu0 0.0
  %143 = vmatpush1.msra.mxu0 0.0
  %144 = vmatprep.subr.mxu0 0.0
  %145 = vmatpush1.msra.mxu0 0.0
  %146 = vmatprep.subr.mxu0 0.0
  %147 = vmatpush1.msra.mxu0 0.0
  %148 = vmatprep.subr.mxu0 0.0
  %149 = vmatpush1.msra.mxu0 0.0
  %150 = vmatprep.subr.mxu0 0.0
  %151 = vmatpush1.msra.mxu0 0.0
  %152 = vmatprep.subr.mxu0 0.0
  %153 = vmatpush1.msra.mxu0 0.0
  %154 = vmatprep.subr.mxu0 0.0
  %155 = vmatpush1.msra.mxu0 0.0
  %156 = vmatprep.subr.mxu0 0.0
  %157 = vmatpush1.msra.mxu0 0.0
  %158 = vmatprep.subr.mxu0 0.0
  %159 = vmatpush1.msra.mxu0 0.0
  %160 = vmatprep.subr.mxu0 0.0
  %161 = vmatpush1.msra.mxu0 0.0
  %162 = vmatprep.subr.mxu0 0.0
  %163 = vmatpush1.msra.mxu0 0.0
  %164 = vmatprep.subr.mxu0 0.0
  %165 = vmatpush1.msra.mxu0 0.0
  %166 = vmatprep.subr.mxu0 0.0
  %167 = vmatpush1.msra.mxu0 0.0
  %168 = vmatprep.subr.mxu0 0.0
  %169 = vmatpush1.msra.mxu0 0.0
  %170 = vmatprep.subr.mxu0 0.0
  %171 = vmatpush1.msra.mxu0 0.0
  %172 = vmatprep.subr.mxu0 0.0
  %173 = vmatpush1.msra.mxu0 0.0
  %174 = vmatprep.mubr.f32.mxu0 0.0
  %175 = vmatmul.mubr.f32.gmra.mrb[0].mxu0 %v108
  %v176 = vpop.f32.mrb[0].mxu0
  %v177 = vadd.f32 %v51, %v176
  %v178 = vpop.f32.mrb[0].mxu0
  %179 = vdwg.mxu0
  %vm180 = vcmask 80896
  %181 = vst.msk [vmem:[%s3] sm:$0xff] %vm180, %v177
  // Predicated region
  $region14: #{resnet18_forward.19} parent=0 // pred_check
    _
  $region15: #{resnet18_forward.19} parent=0 // pred_check_branch
    %183 = sbr.rel (0) target = $region17
  $region16: #{resnet18_forward.19} parent=0 // pred_region
    _
  $region17: #{resnet18_forward.19} parent=0 // pred_fallthru
    _
  // Predicated region
  $region18: #{resnet18_forward.19} parent=0 // pred_check
    _
  $region19: #{resnet18_forward.19} parent=0 // pred_check_branch
    %185 = sbr.rel (0) target = $region21
  $region20: #{resnet18_forward.19} parent=0 // pred_region
    _
  $region21: #{resnet18_forward.19} parent=0 // pred_fallthru
    _

// kernel: resnet18_forward.18
$region0: #{resnet18_forward.18}
  #allocation0 [shape = 'u32[]', space=smem, size = 0x4, offset = 0x4, fixed_abs, tag = 'smem constant byte address 0x4 - core index']
  #allocation1 [shape = 'u32[144,128]{1,0:T(1,128)}', space=vmem, size = 0x12000, scoped, tag = 'internal scratch']
  %s0 = inlined_call_operand.vmem [shape: bf16[24,576], index: 0, kind: input, shape index: {}]
  %s1 = inlined_call_operand.vmem [shape: bf16[576,64], index: 1, kind: input, shape index: {}]
  %s2 = inlined_call_operand.vmem [shape: f32[1,64], index: 2, kind: input, shape index: {}]
  %s3 = inlined_call_operand.vmem [shape: f32[24,1], index: 3, kind: input, shape index: {}]
  %s4 = inlined_call_operand.vmem [shape: bf16[9,64,64], index: 4, kind: input, shape index: {}]
  %s5 = inlined_call_operand.vmem [shape: f32[1,64], index: 5, kind: input, shape index: {}]
  %s6 = inlined_call_operand.vmem [shape: bf16[16,64], index: 6, kind: input, shape index: {}]
  %s7 = inlined_call_operand.vmem [shape: bf16[16,64], index: 7, kind: output, shape index: {}]
  %s8 = sld [smem:[#allocation0]]
  $region38: #{resnet18_forward.18} parent=0
    _
  %s10 = ssub.s32 1, %s8
  %s11 = scalar_select 0, %s10, %s8
  // Predicated region
  $region2: #{resnet18_forward.18} parent=0 // pred_check
    _
  $region3: #{resnet18_forward.18} parent=0 // pred_check_branch
    %13 = sbr.rel (0) target = $region5
  $region4: #{resnet18_forward.18} parent=0 // pred_region
    _
  $region5: #{resnet18_forward.18} parent=0 // pred_fallthru
    _
  // Predicated region
  $region6: #{resnet18_forward.18} parent=0 // pred_check
    _
  $region7: #{resnet18_forward.18} parent=0 // pred_check_branch
    %15 = sbr.rel (0) target = $region9
  $region8: #{resnet18_forward.18} parent=0 // pred_region
    _
  $region9: #{resnet18_forward.18} parent=0 // pred_fallthru
    _
  // Predicated region
  $region10: #{resnet18_forward.18} parent=0 // pred_check
    _
  $region11: #{resnet18_forward.18} parent=0 // pred_check_branch
    %17 = sbr.rel (0) target = $region13
  $region12: #{resnet18_forward.18} parent=0 // pred_region
    _
  $region13: #{resnet18_forward.18} parent=0 // pred_fallthru
    _
  // Predicated region
  $region14: #{resnet18_forward.18} parent=0 // pred_check
    _
  $region15: #{resnet18_forward.18} parent=0 // pred_check_branch
    %19 = sbr.rel (0) target = $region17
  $region16: #{resnet18_forward.18} parent=0 // pred_region
    _
  $region17: #{resnet18_forward.18} parent=0 // pred_fallthru
    _
  // Predicated region
  $region18: #{resnet18_forward.18} parent=0 // pred_check
    _
  $region19: #{resnet18_forward.18} parent=0 // pred_check_branch
    %21 = sbr.rel (0) target = $region21
  $region20: #{resnet18_forward.18} parent=0 // pred_region
    _
  $region21: #{resnet18_forward.18} parent=0 // pred_fallthru
    _
  // Predicated region
  $region22: #{resnet18_forward.18} parent=0 // pred_check
    _
  $region23: #{resnet18_forward.18} parent=0 // pred_check_branch
    %23 = sbr.rel (0) target = $region25
  $region24: #{resnet18_forward.18} parent=0 // pred_region
    _
  $region25: #{resnet18_forward.18} parent=0 // pred_fallthru
    _
  // Predicated region
  $region26: #{resnet18_forward.18} parent=0 // pred_check
    _
  $region27: #{resnet18_forward.18} parent=0 // pred_check_branch
    %25 = sbr.rel (0) target = $region29
  $region28: #{resnet18_forward.18} parent=0 // pred_region
    _
  $region29: #{resnet18_forward.18} parent=0 // pred_fallthru
    _
  %v27 = vld [vmem:[%s0] sm:$0xff]
  %v28 = vld [vmem:[%s0 + $0x8] sm:$0xff]
  %v29 = vld [vmem:[%s0 + $0x10] sm:$0xf]
  %v30 = vld [vmem:[%s0 + $0x14] sm:$0xff]
  %v31 = vld [vmem:[%s0 + $0x1c] sm:$0xff]
  %v32 = vld [vmem:[%s0 + $0x24] sm:$0xf]
  %v33 = vld [vmem:[%s0 + $0x28] sm:$0xff]
  %v34 = vld [vmem:[%s0 + $0x30] sm:$0xff]
  %v35 = vld [vmem:[%s0 + $0x38] sm:$0xf]
  %v36 = vld [vmem:[%s1] sm:$0xf]
  %v37 = vld [vmem:[%s1 + $0x4] sm:$0xf]
  %v38 = vld [vmem:[%s1 + $0x8] sm:$0xf]
  %v39 = vld [vmem:[%s1 + $0xc] sm:$0xf]
  %v40 = vld [vmem:[%s1 + $0x10] sm:$0xf]
  %v41 = vld [vmem:[%s1 + $0x14] sm:$0xf]
  %v42 = vld [vmem:[%s1 + $0x18] sm:$0xf]
  %v43 = vld [vmem:[%s1 + $0x1c] sm:$0xf]
  %v44 = vld [vmem:[%s1 + $0x20] sm:$0xf]
  %v45 = vld [vmem:[%s1 + $0x24] sm:$0xf]
  %v46 = vld [vmem:[%s1 + $0x28] sm:$0xf]
  %v47 = vld [vmem:[%s1 + $0x2c] sm:$0xf]
  %v48 = vld [vmem:[%s1 + $0x30] sm:$0xf]
  %v49 = vld [vmem:[%s1 + $0x34] sm:$0xf]
  %v50 = vld [vmem:[%s1 + $0x38] sm:$0xf]
  %v51 = vld [vmem:[%s1 + $0x3c] sm:$0xf]
  %v52 = vld [vmem:[%s1 + $0x40] sm:$0xf]
  %v53 = vld [vmem:[%s1 + $0x44] sm:$0xf]
  %v54 = vld [vmem:[%s1 + $0x48] sm:$0xf]
  %v55 = vld [vmem:[%s1 + $0x4c] sm:$0xf]
  %v56 = vld [vmem:[%s1 + $0x50] sm:$0xf]
  %v57 = vld [vmem:[%s1 + $0x54] sm:$0xf]
  %v58 = vld [vmem:[%s1 + $0x58] sm:$0xf]
  %v59 = vld [vmem:[%s1 + $0x5c] sm:$0xf]
  %v60 = vld [vmem:[%s1 + $0x60] sm:$0xf]
  %v61 = vld [vmem:[%s1 + $0x64] sm:$0xf]
  %v62 = vld [vmem:[%s1 + $0x68] sm:$0xf]
  %v63 = vld [vmem:[%s1 + $0x6c] sm:$0xf]
  %v64 = vld [vmem:[%s1 + $0x70] sm:$0xf]
  %v65 = vld [vmem:[%s1 + $0x74] sm:$0xf]
  %v66 = vld [vmem:[%s1 + $0x78] sm:$0xf]
  %v67 = vld [vmem:[%s1 + $0x7c] sm:$0xf]
  %v68 = vld [vmem:[%s1 + $0x80] sm:$0xf]
  %v69 = vld [vmem:[%s1 + $0x84] sm:$0xf]
  %v70 = vld [vmem:[%s1 + $0x88] sm:$0xf]
  %v71 = vld [vmem:[%s1 + $0x8c] sm:$0xf]
  %v72 = vld [vmem:[%s1 + $0x90] sm:$0xf]
  %v73 = vld [vmem:[%s1 + $0x94] sm:$0xf]
  %v74 = vld [vmem:[%s1 + $0x98] sm:$0xf]
  %v75 = vld [vmem:[%s1 + $0x9c] sm:$0xf]
  %v76 = vld [vmem:[%s1 + $0xa0] sm:$0xf]
  %v77 = vld [vmem:[%s1 + $0xa4] sm:$0xf]
  %v78 = vld [vmem:[%s1 + $0xa8] sm:$0xf]
  %v79 = vld [vmem:[%s1 + $0xac] sm:$0xf]
  %v80 = vld [vmem:[%s1 + $0xb0] sm:$0xf]
  %v81 = vld [vmem:[%s1 + $0xb4] sm:$0xf]
  %v82 = vld [vmem:[%s1 + $0xb8] sm:$0xf]
  %v83 = vld [vmem:[%s1 + $0xbc] sm:$0xf]
  %v84 = vld [vmem:[%s1 + $0xc0] sm:$0xf]
  %v85 = vld [vmem:[%s1 + $0xc4] sm:$0xf]
  %v86 = vld [vmem:[%s1 + $0xc8] sm:$0xf]
  %v87 = vld [vmem:[%s1 + $0xcc] sm:$0xf]
  %v88 = vld [vmem:[%s1 + $0xd0] sm:$0xf]
  %v89 = vld [vmem:[%s1 + $0xd4] sm:$0xf]
  %v90 = vld [vmem:[%s1 + $0xd8] sm:$0xf]
  %v91 = vld [vmem:[%s1 + $0xdc] sm:$0xf]
  %v92 = vld [vmem:[%s1 + $0xe0] sm:$0xf]
  %v93 = vld [vmem:[%s1 + $0xe4] sm:$0xf]
  %v94 = vld [vmem:[%s1 + $0xe8] sm:$0xf]
  %v95 = vld [vmem:[%s1 + $0xec] sm:$0xf]
  %v96 = vld [vmem:[%s1 + $0xf0] sm:$0xf]
  %v97 = vld [vmem:[%s1 + $0xf4] sm:$0xf]
  %v98 = vld [vmem:[%s1 + $0xf8] sm:$0xf]
  %v99 = vld [vmem:[%s1 + $0xfc] sm:$0xf]
  %v100 = vld [vmem:[%s1 + $0x100] sm:$0xf]
  %v101 = vld [vmem:[%s1 + $0x104] sm:$0xf]
  %v102 = vld [vmem:[%s1 + $0x108] sm:$0xf]
  %v103 = vld [vmem:[%s1 + $0x10c] sm:$0xf]
  %v104 = vld [vmem:[%s1 + $0x110] sm:$0xf]
  %v105 = vld [vmem:[%s1 + $0x114] sm:$0xf]
  %v106 = vld [vmem:[%s1 + $0x118] sm:$0xf]
  %v107 = vld [vmem:[%s1 + $0x11c] sm:$0xf]
  %v108 = vld [vmem:[%s2] sm:$0x1]
  %v110 = vlaneseq
  %v111 = vshrl.u32 %v110, 7
  %v112 = vsub.s32 0, %v111
  %v113 = vrot.slane %v108, %v112
  %v124 = vunpack.c.l.b16 %v27
  %v125 = vunpack.c.h.b16 %v27
  %v126 = vunpack.c.l.b16 %v28
  %v127 = vunpack.c.h.b16 %v28
  %v128 = vunpack.c.l.b16 %v29
  %v129 = vunpack.c.l.b16 %v30
  %v130 = vunpack.c.h.b16 %v30
  %v131 = vunpack.c.l.b16 %v31
  %v132 = vunpack.c.h.b16 %v31
  %v133 = vunpack.c.l.b16 %v32
  %v134 = vunpack.c.l.b16 %v33
  %v135 = vunpack.c.h.b16 %v33
  %v136 = vunpack.c.l.b16 %v34
  %v137 = vunpack.c.h.b16 %v34
  %v138 = vunpack.c.l.b16 %v35
  %v139 = vpack.c.b16 %v129, %v124
  %v140 = vpack.c.b16 %v130, %v125
  %v141 = vpack.c.b16 %v131, %v126
  %v142 = vpack.c.b16 %v132, %v127
  %v143 = vpack.c.b16 %v133, %v128
  %v144 = vpack.c.b16 %v134, %v134
  %v145 = vpack.c.b16 %v135, %v135
  %v146 = vpack.c.b16 %v136, %v136
  %v147 = vpack.c.b16 %v137, %v137
  %v148 = vpack.c.b16 %v138, %v138
  %v229 = vunpack.c.l.b16 %v36
  %v230 = vunpack.c.l.b16 %v37
  %v231 = vunpack.c.l.b16 %v38
  %v232 = vunpack.c.l.b16 %v39
  %v233 = vunpack.c.l.b16 %v40
  %v234 = vunpack.c.l.b16 %v41
  %v235 = vunpack.c.l.b16 %v42
  %v236 = vunpack.c.l.b16 %v43
  %v237 = vunpack.c.l.b16 %v44
  %v238 = vunpack.c.l.b16 %v45
  %v239 = vunpack.c.l.b16 %v46
  %v240 = vunpack.c.l.b16 %v47
  %v241 = vunpack.c.l.b16 %v48
  %v242 = vunpack.c.l.b16 %v49
  %v243 = vunpack.c.l.b16 %v50
  %v244 = vunpack.c.l.b16 %v51
  %v245 = vunpack.c.l.b16 %v52
  %v246 = vunpack.c.l.b16 %v53
  %v247 = vunpack.c.l.b16 %v54
  %v248 = vunpack.c.l.b16 %v55
  %v249 = vunpack.c.l.b16 %v56
  %v250 = vunpack.c.l.b16 %v57
  %v251 = vunpack.c.l.b16 %v58
  %v252 = vunpack.c.l.b16 %v59
  %v253 = vunpack.c.l.b16 %v60
  %v254 = vunpack.c.l.b16 %v61
  %v255 = vunpack.c.l.b16 %v62
  %v256 = vunpack.c.l.b16 %v63
  %v257 = vunpack.c.l.b16 %v64
  %v258 = vunpack.c.l.b16 %v65
  %v259 = vunpack.c.l.b16 %v66
  %v260 = vunpack.c.l.b16 %v67
  %v261 = vunpack.c.l.b16 %v68
  %v262 = vunpack.c.l.b16 %v69
  %v263 = vunpack.c.l.b16 %v70
  %v264 = vunpack.c.l.b16 %v71
  %v265 = vunpack.c.l.b16 %v72
  %v266 = vunpack.c.l.b16 %v73
  %v267 = vunpack.c.l.b16 %v74
  %v268 = vunpack.c.l.b16 %v75
  %v269 = vunpack.c.l.b16 %v76
  %v270 = vunpack.c.l.b16 %v77
  %v271 = vunpack.c.l.b16 %v78
  %v272 = vunpack.c.l.b16 %v79
  %v273 = vunpack.c.l.b16 %v80
  %v274 = vunpack.c.l.b16 %v81
  %v275 = vunpack.c.l.b16 %v82
  %v276 = vunpack.c.l.b16 %v83
  %v277 = vunpack.c.l.b16 %v84
  %v278 = vunpack.c.l.b16 %v85
  %v279 = vunpack.c.l.b16 %v86
  %v280 = vunpack.c.l.b16 %v87
  %v281 = vunpack.c.l.b16 %v88
  %v282 = vunpack.c.l.b16 %v89
  %v283 = vunpack.c.l.b16 %v90
  %v284 = vunpack.c.l.b16 %v91
  %v285 = vunpack.c.l.b16 %v92
  %v286 = vunpack.c.l.b16 %v93
  %v287 = vunpack.c.l.b16 %v94
  %v288 = vunpack.c.l.b16 %v95
  %v289 = vunpack.c.l.b16 %v96
  %v290 = vunpack.c.l.b16 %v97
  %v291 = vunpack.c.l.b16 %v98
  %v292 = vunpack.c.l.b16 %v99
  %v293 = vunpack.c.l.b16 %v100
  %v294 = vunpack.c.l.b16 %v101
  %v295 = vunpack.c.l.b16 %v102
  %v296 = vunpack.c.l.b16 %v103
  %v297 = vunpack.c.l.b16 %v104
  %v298 = vunpack.c.l.b16 %v105
  %v299 = vunpack.c.l.b16 %v106
  %v300 = vunpack.c.l.b16 %v107
  %v301 = vpack.c.b16 %v230, %v229
  %v302 = vpack.c.b16 %v232, %v231
  %v303 = vpack.c.b16 %v234, %v233
  %v304 = vpack.c.b16 %v236, %v235
  %v305 = vpack.c.b16 %v238, %v237
  %v306 = vpack.c.b16 %v240, %v239
  %v307 = vpack.c.b16 %v242, %v241
  %v308 = vpack.c.b16 %v244, %v243
  %v309 = vpack.c.b16 %v246, %v245
  %v310 = vpack.c.b16 %v248, %v247
  %v311 = vpack.c.b16 %v250, %v249
  %v312 = vpack.c.b16 %v252, %v251
  %v313 = vpack.c.b16 %v254, %v253
  %v314 = vpack.c.b16 %v256, %v255
  %v315 = vpack.c.b16 %v258, %v257
  %v316 = vpack.c.b16 %v260, %v259
  %v317 = vpack.c.b16 %v262, %v261
  %v318 = vpack.c.b16 %v264, %v263
  %v319 = vpack.c.b16 %v266, %v265
  %v320 = vpack.c.b16 %v268, %v267
  %v321 = vpack.c.b16 %v270, %v269
  %v322 = vpack.c.b16 %v272, %v271
  %v323 = vpack.c.b16 %v274, %v273
  %v324 = vpack.c.b16 %v276, %v275
  %v325 = vpack.c.b16 %v278, %v277
  %v326 = vpack.c.b16 %v280, %v279
  %v327 = vpack.c.b16 %v282, %v281
  %v328 = vpack.c.b16 %v284, %v283
  %v329 = vpack.c.b16 %v286, %v285
  %v330 = vpack.c.b16 %v288, %v287
  %v331 = vpack.c.b16 %v290, %v289
  %v332 = vpack.c.b16 %v292, %v291
  %v333 = vpack.c.b16 %v294, %v293
  %v334 = vpack.c.b16 %v296, %v295
  %v335 = vpack.c.b16 %v298, %v297
  %v336 = vpack.c.b16 %v300, %v299
  %vm373 = vcmask 523264
  %v375 = vsel %vm373, %v143, 0
  %v378 = vsel %vm373, %v148, 0
  %380 = vmatprep.subr.bf16.mxu0 0
  %381 = vmatpush1.bf16.msra.mxu0 %v301
  %382 = vmatprep.subr.bf16.mxu0 0
  %383 = vmatpush1.bf16.msra.mxu0 %v302
  %384 = vmatprep.subr.bf16.mxu0 0
  %385 = vmatpush1.bf16.msra.mxu0 %v303
  %386 = vmatprep.subr.bf16.mxu0 0
  %387 = vmatpush1.bf16.msra.mxu0 %v304
  %388 = vmatprep.subr.bf16.mxu0 0
  %389 = vmatpush1.bf16.msra.mxu0 %v305
  %390 = vmatprep.subr.bf16.mxu0 0
  %391 = vmatpush1.bf16.msra.mxu0 %v306
  %392 = vmatprep.subr.bf16.mxu0 0
  %393 = vmatpush1.bf16.msra.mxu0 %v307
  %394 = vmatprep.subr.bf16.mxu0 0
  %395 = vmatpush1.bf16.msra.mxu0 %v308
  %396 = vmatprep.subr.bf16.mxu0 0
  %397 = vmatpush1.bf16.msra.mxu0 %v309
  %398 = vmatprep.subr.bf16.mxu0 0
  %399 = vmatpush1.bf16.msra.mxu0 %v310
  %400 = vmatprep.subr.bf16.mxu0 0
  %401 = vmatpush1.bf16.msra.mxu0 %v311
  %402 = vmatprep.subr.bf16.mxu0 0
  %403 = vmatpush1.bf16.msra.mxu0 %v312
  %404 = vmatprep.subr.bf16.mxu0 0
  %405 = vmatpush1.bf16.msra.mxu0 %v313
  %406 = vmatprep.subr.bf16.mxu0 0
  %407 = vmatpush1.bf16.msra.mxu0 %v314
  %408 = vmatprep.subr.bf16.mxu0 0
  %409 = vmatpush1.bf16.msra.mxu0 %v315
  %410 = vmatprep.subr.bf16.mxu0 0
  %411 = vmatpush1.bf16.msra.mxu0 %v316
  %412 = vmatprep.mubr.bf16.mxu0 %v140
  %413 = vmatmul.mubr.bf16.gmra.mrb[0].mxu0 %v139
  %v414 = vpop.f32.mrb[0].mxu0
  %v415 = vadd.f32 %v113, %v414
  %v416 = vpop.f32.mrb[0].mxu0
  %v417 = vpop.f32.mrb[0].mxu0
  %v418 = vadd.f32 %v113, %v417
  %v419 = vpop.f32.mrb[0].mxu0
  %420 = vmatprep.mubr.bf16.mxu0 %v145
  %421 = vmatmul.mubr.bf16.gmra.mrb[0].mxu0 %v144
  %v422 = vpop.f32.mrb[0].mxu0
  %v423 = vadd.f32 %v113, %v422
  %v424 = vpop.f32.mrb[0].mxu0
  %v425 = vpop.f32.mrb[0].mxu0
  %v426 = vpop.f32.mrb[0].mxu0
  %427 = vdwg.mxu0
  %428 = vmatprep.subr.bf16.mxu0 0
  %429 = vmatpush1.bf16.msra.mxu0 %v317
  %430 = vmatprep.subr.bf16.mxu0 0
  %431 = vmatpush1.bf16.msra.mxu0 %v318
  %432 = vmatprep.subr.bf16.mxu0 0
  %433 = vmatpush1.bf16.msra.mxu0 %v319
  %434 = vmatprep.subr.bf16.mxu0 0
  %435 = vmatpush1.bf16.msra.mxu0 %v320
  %436 = vmatprep.subr.bf16.mxu0 0
  %437 = vmatpush1.bf16.msra.mxu0 %v321
  %438 = vmatprep.subr.bf16.mxu0 0
  %439 = vmatpush1.bf16.msra.mxu0 %v322
  %440 = vmatprep.subr.bf16.mxu0 0
  %441 = vmatpush1.bf16.msra.mxu0 %v323
  %442 = vmatprep.subr.bf16.mxu0 0
  %443 = vmatpush1.bf16.msra.mxu0 %v324
  %444 = vmatprep.subr.bf16.mxu0 0
  %445 = vmatpush1.bf16.msra.mxu0 %v325
  %446 = vmatprep.subr.bf16.mxu0 0
  %447 = vmatpush1.bf16.msra.mxu0 %v326
  %448 = vmatprep.subr.bf16.mxu0 0
  %449 = vmatpush1.bf16.msra.mxu0 %v327
  %450 = vmatprep.subr.bf16.mxu0 0
  %451 = vmatpush1.bf16.msra.mxu0 %v328
  %452 = vmatprep.subr.bf16.mxu0 0
  %453 = vmatpush1.bf16.msra.mxu0 %v329
  %454 = vmatprep.subr.bf16.mxu0 0
  %455 = vmatpush1.bf16.msra.mxu0 %v330
  %456 = vmatprep.subr.bf16.mxu0 0
  %457 = vmatpush1.bf16.msra.mxu0 %v331
  %458 = vmatprep.subr.bf16.mxu0 0
  %459 = vmatpush1.bf16.msra.mxu0 %v332
  %460 = vmatprep.mubr.bf16.mxu0 %v142
  %461 = vmatmul.mubr.bf16.gmra.mrb[0].mxu0 %v141
  %v462 = vpop.f32.mrb[0].mxu0
  %v463 = vadd.f32 %v415, %v462
  %v464 = vpop.f32.mrb[0].mxu0
  %v465 = vpop.f32.mrb[0].mxu0
  %v466 = vadd.f32 %v418, %v465
  %v467 = vpop.f32.mrb[0].mxu0
  %468 = vmatprep.mubr.bf16.mxu0 %v147
  %469 = vmatmul.mubr.bf16.gmra.mrb[0].mxu0 %v146
  %v470 = vpop.f32.mrb[0].mxu0
  %v471 = vadd.f32 %v423, %v470
  %v472 = vpop.f32.mrb[0].mxu0
  %v473 = vpop.f32.mrb[0].mxu0
  %v474 = vpop.f32.mrb[0].mxu0
  %475 = vdwg.mxu0
  %476 = vmatprep.subr.bf16.mxu0 0
  %477 = vmatpush1.bf16.msra.mxu0 %v333
  %478 = vmatprep.subr.bf16.mxu0 0
  %479 = vmatpush1.bf16.msra.mxu0 %v334
  %480 = vmatprep.subr.bf16.mxu0 0
  %481 = vmatpush1.bf16.msra.mxu0 %v335
  %482 = vmatprep.subr.bf16.mxu0 0
  %483 = vmatpush1.bf16.msra.mxu0 %v336
  %484 = vmatprep.subr.bf16.mxu0 0
  %485 = vmatpush1.bf16.msra.mxu0 0
  %486 = vmatprep.subr.bf16.mxu0 0
  %487 = vmatpush1.bf16.msra.mxu0 0
  %488 = vmatprep.subr.bf16.mxu0 0
  %489 = vmatpush1.bf16.msra.mxu0 0
  %490 = vmatprep.subr.bf16.mxu0 0
  %491 = vmatpush1.bf16.msra.mxu0 0
  %492 = vmatprep.subr.bf16.mxu0 0
  %493 = vmatpush1.bf16.msra.mxu0 0
  %494 = vmatprep.subr.bf16.mxu0 0
  %495 = vmatpush1.bf16.msra.mxu0 0
  %496 = vmatprep.subr.bf16.mxu0 0
  %497 = vmatpush1.bf16.msra.mxu0 0
  %498 = vmatprep.subr.bf16.mxu0 0
  %499 = vmatpush1.bf16.msra.mxu0 0
  %500 = vmatprep.subr.bf16.mxu0 0
  %501 = vmatpush1.bf16.msra.mxu0 0
  %502 = vmatprep.subr.bf16.mxu0 0
  %503 = vmatpush1.bf16.msra.mxu0 0
  %504 = vmatprep.subr.bf16.mxu0 0
  %505 = vmatpush1.bf16.msra.mxu0 0
  %506 = vmatprep.subr.bf16.mxu0 0
  %507 = vmatpush1.bf16.msra.mxu0 0
  %508 = vmatprep.mubr.bf16.mxu0 0
  %509 = vmatmul.mubr.bf16.gmra.mrb[0].mxu0 %v375
  %v510 = vpop.f32.mrb[0].mxu0
  %v511 = vadd.f32 %v463, %v510
  %v512 = vpop.f32.mrb[0].mxu0
  %v513 = vpop.f32.mrb[0].mxu0
  %v514 = vadd.f32 %v466, %v513
  %v515 = vpop.f32.mrb[0].mxu0
  %516 = vmatprep.mubr.bf16.mxu0 0
  %517 = vmatmul.mubr.bf16.gmra.mrb[0].mxu0 %v378
  %v518 = vpop.f32.mrb[0].mxu0
  %v519 = vadd.f32 %v471, %v518
  %v520 = vpop.f32.mrb[0].mxu0
  %v521 = vpop.f32.mrb[0].mxu0
  %v522 = vpop.f32.mrb[0].mxu0
  %523 = vdwg.mxu0
  %v524 = vmax.f32 %v511, 0.0
  %v525 = vmax.f32 %v514, 0.0
  %v526 = vmax.f32 %v519, 0.0
  %v527 = vld [vmem:[%s3] sm:$0xff]
  %v528 = vld [vmem:[%s3 + $0x8] sm:$0xff]
  %v529 = vld [vmem:[%s3 + $0x10] sm:$0xff]
  %531 = vset.pattern.permute.xlu0 0
  %532 = vperm.xlu0 %531, %v527
  %v533 = vpop.permute.xlu0 %532
  %536 = vset.pattern.permute.xlu0 0
  %537 = vperm.xlu0 %536, %v528
  %v538 = vpop.permute.xlu0 %537
  %541 = vset.pattern.permute.xlu0 0
  %542 = vperm.xlu0 %541, %v529
  %v543 = vpop.permute.xlu0 %542
  %v545 = vmul.f32 %v524, %v533
  %v546 = vmul.f32 %v525, %v538
  %v547 = vmul.f32 %v526, %v543
  %v548 = vpack.c.bf16 %v546, %v545
  %v549 = vld [vmem:[%s4] sm:$0xf]
  %v550 = vld [vmem:[%s4 + $0x4] sm:$0xf]
  %v551 = vld [vmem:[%s4 + $0x8] sm:$0xf]
  %v552 = vld [vmem:[%s4 + $0xc] sm:$0xf]
  %v553 = vld [vmem:[%s4 + $0x10] sm:$0xf]
  %v554 = vld [vmem:[%s4 + $0x14] sm:$0xf]
  %v555 = vld [vmem:[%s4 + $0x18] sm:$0xf]
  %v556 = vld [vmem:[%s4 + $0x1c] sm:$0xf]
  %v557 = vpack.c.bf16 %v547, %v547
  %s558 = scalar_lea.vmem %s4, 32
  %v559 = vld [vmem:[%s558] sm:$0xf]
  %v560 = vld [vmem:[%s558 + $0x4] sm:$0xf]
  %v561 = vld [vmem:[%s558 + $0x8] sm:$0xf]
  %v562 = vld [vmem:[%s558 + $0xc] sm:$0xf]
  %v563 = vld [vmem:[%s558 + $0x10] sm:$0xf]
  %v564 = vld [vmem:[%s558 + $0x14] sm:$0xf]
  %v565 = vld [vmem:[%s558 + $0x18] sm:$0xf]
  %v566 = vld [vmem:[%s558 + $0x1c] sm:$0xf]
  %vm567 = vsmask.f32 7424
  %v569 = vshrl.u32 %v548, 16
  %v571 = vshll.u32 %v548, 16
  %v573 = vrot.slane %v571, 1
  %v574 = vor.u32 %v569, %v573
  %v576 = vshll.u32 %v557, 16
  %v578 = vrot.slane %v576, 1
  %v579 = vsel %vm567, %v574, %v578
  %v588 = vunpack.c.l.b16 %v559
  %v589 = vunpack.c.l.b16 %v560
  %v590 = vunpack.c.l.b16 %v561
  %v591 = vunpack.c.l.b16 %v562
  %v592 = vunpack.c.l.b16 %v563
  %v593 = vunpack.c.l.b16 %v564
  %v594 = vunpack.c.l.b16 %v565
  %v595 = vunpack.c.l.b16 %v566
  %v596 = vpack.c.b16 %v589, %v588
  %v597 = vpack.c.b16 %v591, %v590
  %v598 = vpack.c.b16 %v593, %v592
  %v599 = vpack.c.b16 %v595, %v594
  %v605 = vsel %vm373, %v579, 0
  %607 = vmatprep.subr.bf16.mxu0 0
  %608 = vmatpush1.bf16.msra.mxu0 %v596
  %609 = vmatprep.subr.bf16.mxu0 0
  %610 = vmatpush1.bf16.msra.mxu0 %v597
  %611 = vmatprep.subr.bf16.mxu0 0
  %612 = vmatpush1.bf16.msra.mxu0 %v598
  %613 = vmatprep.subr.bf16.mxu0 0
  %614 = vmatpush1.bf16.msra.mxu0 %v599
  %615 = vmatprep.subr.bf16.mxu0 0
  %616 = vmatpush1.bf16.msra.mxu0 0
  %617 = vmatprep.subr.bf16.mxu0 0
  %618 = vmatpush1.bf16.msra.mxu0 0
  %619 = vmatprep.subr.bf16.mxu0 0
  %620 = vmatpush1.bf16.msra.mxu0 0
  %621 = vmatprep.subr.bf16.mxu0 0
  %622 = vmatpush1.bf16.msra.mxu0 0
  %623 = vmatprep.subr.bf16.mxu0 0
  %624 = vmatpush1.bf16.msra.mxu0 0
  %625 = vmatprep.subr.bf16.mxu0 0
  %626 = vmatpush1.bf16.msra.mxu0 0
  %627 = vmatprep.subr.bf16.mxu0 0
  %628 = vmatpush1.bf16.msra.mxu0 0
  %629 = vmatprep.subr.bf16.mxu0 0
  %630 = vmatpush1.bf16.msra.mxu0 0
  %631 = vmatprep.subr.bf16.mxu0 0
  %632 = vmatpush1.bf16.msra.mxu0 0
  %633 = vmatprep.subr.bf16.mxu0 0
  %634 = vmatpush1.bf16.msra.mxu0 0
  %635 = vmatprep.subr.bf16.mxu0 0
  %636 = vmatpush1.bf16.msra.mxu0 0
  %637 = vmatprep.subr.bf16.mxu0 0
  %638 = vmatpush1.bf16.msra.mxu0 0
  %639 = vmatprep.mubr.bf16.mxu0 0
  %640 = vmatmul.mubr.bf16.gmra.mrb[0].mxu0 %v605
  %v641 = vpop.f32.mrb[0].mxu0
  %v642 = vadd.f32 0.0, %v641
  %v643 = vpop.f32.mrb[0].mxu0
  %v644 = vpop.f32.mrb[0].mxu0
  %v645 = vadd.f32 0.0, %v644
  %v646 = vpop.f32.mrb[0].mxu0
  %647 = vdwg.mxu0
  %v656 = vunpack.c.l.b16 %v549
  %v657 = vunpack.c.l.b16 %v550
  %v658 = vunpack.c.l.b16 %v551
  %v659 = vunpack.c.l.b16 %v552
  %v660 = vunpack.c.l.b16 %v553
  %v661 = vunpack.c.l.b16 %v554
  %v662 = vunpack.c.l.b16 %v555
  %v663 = vunpack.c.l.b16 %v556
  %v664 = vpack.c.b16 %v657, %v656
  %v665 = vpack.c.b16 %v659, %v658
  %v666 = vpack.c.b16 %v661, %v660
  %v667 = vpack.c.b16 %v663, %v662
  %v672 = vsel %vm373, %v548, 0
  %674 = vmatprep.subr.bf16.mxu0 0
  %675 = vmatpush1.bf16.msra.mxu0 %v664
  %676 = vmatprep.subr.bf16.mxu0 0
  %677 = vmatpush1.bf16.msra.mxu0 %v665
  %678 = vmatprep.subr.bf16.mxu0 0
  %679 = vmatpush1.bf16.msra.mxu0 %v666
  %680 = vmatprep.subr.bf16.mxu0 0
  %681 = vmatpush1.bf16.msra.mxu0 %v667
  %682 = vmatprep.subr.bf16.mxu0 0
  %683 = vmatpush1.bf16.msra.mxu0 0
  %684 = vmatprep.subr.bf16.mxu0 0
  %685 = vmatpush1.bf16.msra.mxu0 0
  %686 = vmatprep.subr.bf16.mxu0 0
  %687 = vmatpush1.bf16.msra.mxu0 0
  %688 = vmatprep.subr.bf16.mxu0 0
  %689 = vmatpush1.bf16.msra.mxu0 0
  %690 = vmatprep.subr.bf16.mxu0 0
  %691 = vmatpush1.bf16.msra.mxu0 0
  %692 = vmatprep.subr.bf16.mxu0 0
  %693 = vmatpush1.bf16.msra.mxu0 0
  %694 = vmatprep.subr.bf16.mxu0 0
  %695 = vmatpush1.bf16.msra.mxu0 0
  %696 = vmatprep.subr.bf16.mxu0 0
  %697 = vmatpush1.bf16.msra.mxu0 0
  %698 = vmatprep.subr.bf16.mxu0 0
  %699 = vmatpush1.bf16.msra.mxu0 0
  %700 = vmatprep.subr.bf16.mxu0 0
  %701 = vmatpush1.bf16.msra.mxu0 0
  %702 = vmatprep.subr.bf16.mxu0 0
  %703 = vmatpush1.bf16.msra.mxu0 0
  %704 = vmatprep.subr.bf16.mxu0 0
  %705 = vmatpush1.bf16.msra.mxu0 0
  %706 = vmatprep.mubr.bf16.mxu0 0
  %707 = vmatmul.mubr.bf16.gmra.mrb[0].mxu0 %v672
  %v708 = vpop.f32.mrb[0].mxu0
  %v709 = vadd.f32 %v642, %v708
  %v710 = vpop.f32.mrb[0].mxu0
  %v711 = vpop.f32.mrb[0].mxu0
  %v712 = vadd.f32 %v645, %v711
  %v713 = vpop.f32.mrb[0].mxu0
  %714 = vdwg.mxu0
  %s715 = scalar_lea.vmem %s4, 64
  %v716 = vld [vmem:[%s715] sm:$0xf]
  %v717 = vld [vmem:[%s715 + $0x4] sm:$0xf]
  %v718 = vld [vmem:[%s715 + $0x8] sm:$0xf]
  %v719 = vld [vmem:[%s715 + $0xc] sm:$0xf]
  %v720 = vld [vmem:[%s715 + $0x10] sm:$0xf]
  %v721 = vld [vmem:[%s715 + $0x14] sm:$0xf]
  %v722 = vld [vmem:[%s715 + $0x18] sm:$0xf]
  %v723 = vld [vmem:[%s715 + $0x1c] sm:$0xf]
  %vm726 = vcmask 1046528
  %v727 = vrot.slane %v548, 1
  %v728 = vrot.slane %v557, 1
  %v729 = vsel %vm726, %v727, %v728
  %v738 = vunpack.c.l.b16 %v716
  %v739 = vunpack.c.l.b16 %v717
  %v740 = vunpack.c.l.b16 %v718
  %v741 = vunpack.c.l.b16 %v719
  %v742 = vunpack.c.l.b16 %v720
  %v743 = vunpack.c.l.b16 %v721
  %v744 = vunpack.c.l.b16 %v722
  %v745 = vunpack.c.l.b16 %v723
  %v746 = vpack.c.b16 %v739, %v738
  %v747 = vpack.c.b16 %v741, %v740
  %v748 = vpack.c.b16 %v743, %v742
  %v749 = vpack.c.b16 %v745, %v744
  %v755 = vsel %vm373, %v729, 0
  %757 = vmatprep.subr.bf16.mxu0 0
  %758 = vmatpush1.bf16.msra.mxu0 %v746
  %759 = vmatprep.subr.bf16.mxu0 0
  %760 = vmatpush1.bf16.msra.mxu0 %v747
  %761 = vmatprep.subr.bf16.mxu0 0
  %762 = vmatpush1.bf16.msra.mxu0 %v748
  %763 = vmatprep.subr.bf16.mxu0 0
  %764 = vmatpush1.bf16.msra.mxu0 %v749
  %765 = vmatprep.subr.bf16.mxu0 0
  %766 = vmatpush1.bf16.msra.mxu0 0
  %767 = vmatprep.subr.bf16.mxu0 0
  %768 = vmatpush1.bf16.msra.mxu0 0
  %769 = vmatprep.subr.bf16.mxu0 0
  %770 = vmatpush1.bf16.msra.mxu0 0
  %771 = vmatprep.subr.bf16.mxu0 0
  %772 = vmatpush1.bf16.msra.mxu0 0
  %773 = vmatprep.subr.bf16.mxu0 0
  %774 = vmatpush1.bf16.msra.mxu0 0
  %775 = vmatprep.subr.bf16.mxu0 0
  %776 = vmatpush1.bf16.msra.mxu0 0
  %777 = vmatprep.subr.bf16.mxu0 0
  %778 = vmatpush1.bf16.msra.mxu0 0
  %779 = vmatprep.subr.bf16.mxu0 0
  %780 = vmatpush1.bf16.msra.mxu0 0
  %781 = vmatprep.subr.bf16.mxu0 0
  %782 = vmatpush1.bf16.msra.mxu0 0
  %783 = vmatprep.subr.bf16.mxu0 0
  %784 = vmatpush1.bf16.msra.mxu0 0
  %785 = vmatprep.subr.bf16.mxu0 0
  %786 = vmatpush1.bf16.msra.mxu0 0
  %787 = vmatprep.subr.bf16.mxu0 0
  %788 = vmatpush1.bf16.msra.mxu0 0
  %789 = vmatprep.mubr.bf16.mxu0 0
  %790 = vmatmul.mubr.bf16.gmra.mrb[0].mxu0 %v755
  %v791 = vpop.f32.mrb[0].mxu0
  %v792 = vadd.f32 0.0, %v791
  %v793 = vpop.f32.mrb[0].mxu0
  %v794 = vpop.f32.mrb[0].mxu0
  %v795 = vadd.f32 0.0, %v794
  %v796 = vpop.f32.mrb[0].mxu0
  %797 = vdwg.mxu0
  %v798 = vadd.f32 %v709, %v792
  %v799 = vadd.f32 %v712, %v795
  %s800 = scalar_lea.vmem %s4, 96
  %v801 = vld [vmem:[%s800] sm:$0xf]
  %v802 = vld [vmem:[%s800 + $0x4] sm:$0xf]
  %v803 = vld [vmem:[%s800 + $0x8] sm:$0xf]
  %v804 = vld [vmem:[%s800 + $0xc] sm:$0xf]
  %v805 = vld [vmem:[%s800 + $0x10] sm:$0xf]
  %v806 = vld [vmem:[%s800 + $0x14] sm:$0xf]
  %v807 = vld [vmem:[%s800 + $0x18] sm:$0xf]
  %v808 = vld [vmem:[%s800 + $0x1c] sm:$0xf]
  %vm809 = vsmask.f32 6400
  %v810 = vrot.slane %v569, 1
  %v811 = vrot.slane %v571, 2
  %v812 = vor.u32 %v810, %v811
  %v813 = vshrl.u32 %v557, 16
  %v815 = vrot.slane %v813, 1
  %v816 = vrot.slane %v576, 2
  %v817 = vor.u32 %v815, %v816
  %v818 = vsel %vm809, %v812, %v817
  %v827 = vunpack.c.l.b16 %v801
  %v828 = vunpack.c.l.b16 %v802
  %v829 = vunpack.c.l.b16 %v803
  %v830 = vunpack.c.l.b16 %v804
  %v831 = vunpack.c.l.b16 %v805
  %v832 = vunpack.c.l.b16 %v806
  %v833 = vunpack.c.l.b16 %v807
  %v834 = vunpack.c.l.b16 %v808
  %v835 = vpack.c.b16 %v828, %v827
  %v836 = vpack.c.b16 %v830, %v829
  %v837 = vpack.c.b16 %v832, %v831
  %v838 = vpack.c.b16 %v834, %v833
  %v844 = vsel %vm373, %v818, 0
  %846 = vmatprep.subr.bf16.mxu0 0
  %847 = vmatpush1.bf16.msra.mxu0 %v835
  %848 = vmatprep.subr.bf16.mxu0 0
  %849 = vmatpush1.bf16.msra.mxu0 %v836
  %850 = vmatprep.subr.bf16.mxu0 0
  %851 = vmatpush1.bf16.msra.mxu0 %v837
  %852 = vmatprep.subr.bf16.mxu0 0
  %853 = vmatpush1.bf16.msra.mxu0 %v838
  %854 = vmatprep.subr.bf16.mxu0 0
  %855 = vmatpush1.bf16.msra.mxu0 0
  %856 = vmatprep.subr.bf16.mxu0 0
  %857 = vmatpush1.bf16.msra.mxu0 0
  %858 = vmatprep.subr.bf16.mxu0 0
  %859 = vmatpush1.bf16.msra.mxu0 0
  %860 = vmatprep.subr.bf16.mxu0 0
  %861 = vmatpush1.bf16.msra.mxu0 0
  %862 = vmatprep.subr.bf16.mxu0 0
  %863 = vmatpush1.bf16.msra.mxu0 0
  %864 = vmatprep.subr.bf16.mxu0 0
  %865 = vmatpush1.bf16.msra.mxu0 0
  %866 = vmatprep.subr.bf16.mxu0 0
  %867 = vmatpush1.bf16.msra.mxu0 0
  %868 = vmatprep.subr.bf16.mxu0 0
  %869 = vmatpush1.bf16.msra.mxu0 0
  %870 = vmatprep.subr.bf16.mxu0 0
  %871 = vmatpush1.bf16.msra.mxu0 0
  %872 = vmatprep.subr.bf16.mxu0 0
  %873 = vmatpush1.bf16.msra.mxu0 0
  %874 = vmatprep.subr.bf16.mxu0 0
  %875 = vmatpush1.bf16.msra.mxu0 0
  %876 = vmatprep.subr.bf16.mxu0 0
  %877 = vmatpush1.bf16.msra.mxu0 0
  %878 = vmatprep.mubr.bf16.mxu0 0
  %879 = vmatmul.mubr.bf16.gmra.mrb[0].mxu0 %v844
  %v880 = vpop.f32.mrb[0].mxu0
  %v881 = vadd.f32 0.0, %v880
  %v882 = vpop.f32.mrb[0].mxu0
  %v883 = vpop.f32.mrb[0].mxu0
  %v884 = vadd.f32 0.0, %v883
  %v885 = vpop.f32.mrb[0].mxu0
  %886 = vdwg.mxu0
  %v887 = vadd.f32 %v798, %v881
  %v888 = vadd.f32 %v799, %v884
  %s889 = scalar_lea.vmem %s4, 128
  %v890 = vld [vmem:[%s889] sm:$0xf]
  %v891 = vld [vmem:[%s889 + $0x4] sm:$0xf]
  %v892 = vld [vmem:[%s889 + $0x8] sm:$0xf]
  %v893 = vld [vmem:[%s889 + $0xc] sm:$0xf]
  %v894 = vld [vmem:[%s889 + $0x10] sm:$0xf]
  %v895 = vld [vmem:[%s889 + $0x14] sm:$0xf]
  %v896 = vld [vmem:[%s889 + $0x18] sm:$0xf]
  %v897 = vld [vmem:[%s889 + $0x1c] sm:$0xf]
  %vm898 = vcmask 1045504
  %v899 = vrot.slane %v548, 2
  %v900 = vrot.slane %v557, 2
  %v901 = vsel %vm898, %v899, %v900
  %v910 = vunpack.c.l.b16 %v890
  %v911 = vunpack.c.l.b16 %v891
  %v912 = vunpack.c.l.b16 %v892
  %v913 = vunpack.c.l.b16 %v893
  %v914 = vunpack.c.l.b16 %v894
  %v915 = vunpack.c.l.b16 %v895
  %v916 = vunpack.c.l.b16 %v896
  %v917 = vunpack.c.l.b16 %v897
  %v918 = vpack.c.b16 %v911, %v910
  %v919 = vpack.c.b16 %v913, %v912
  %v920 = vpack.c.b16 %v915, %v914
  %v921 = vpack.c.b16 %v917, %v916
  %v927 = vsel %vm373, %v901, 0
  %929 = vmatprep.subr.bf16.mxu0 0
  %930 = vmatpush1.bf16.msra.mxu0 %v918
  %931 = vmatprep.subr.bf16.mxu0 0
  %932 = vmatpush1.bf16.msra.mxu0 %v919
  %933 = vmatprep.subr.bf16.mxu0 0
  %934 = vmatpush1.bf16.msra.mxu0 %v920
  %935 = vmatprep.subr.bf16.mxu0 0
  %936 = vmatpush1.bf16.msra.mxu0 %v921
  %937 = vmatprep.subr.bf16.mxu0 0
  %938 = vmatpush1.bf16.msra.mxu0 0
  %939 = vmatprep.subr.bf16.mxu0 0
  %940 = vmatpush1.bf16.msra.mxu0 0
  %941 = vmatprep.subr.bf16.mxu0 0
  %942 = vmatpush1.bf16.msra.mxu0 0
  %943 = vmatprep.subr.bf16.mxu0 0
  %944 = vmatpush1.bf16.msra.mxu0 0
  %945 = vmatprep.subr.bf16.mxu0 0
  %946 = vmatpush1.bf16.msra.mxu0 0
  %947 = vmatprep.subr.bf16.mxu0 0
  %948 = vmatpush1.bf16.msra.mxu0 0
  %949 = vmatprep.subr.bf16.mxu0 0
  %950 = vmatpush1.bf16.msra.mxu0 0
  %951 = vmatprep.subr.bf16.mxu0 0
  %952 = vmatpush1.bf16.msra.mxu0 0
  %953 = vmatprep.subr.bf16.mxu0 0
  %954 = vmatpush1.bf16.msra.mxu0 0
  %955 = vmatprep.subr.bf16.mxu0 0
  %956 = vmatpush1.bf16.msra.mxu0 0
  %957 = vmatprep.subr.bf16.mxu0 0
  %958 = vmatpush1.bf16.msra.mxu0 0
  %959 = vmatprep.subr.bf16.mxu0 0
  %960 = vmatpush1.bf16.msra.mxu0 0
  %961 = vmatprep.mubr.bf16.mxu0 0
  %962 = vmatmul.mubr.bf16.gmra.mrb[0].mxu0 %v927
  %v963 = vpop.f32.mrb[0].mxu0
  %v964 = vadd.f32 0.0, %v963
  %v965 = vpop.f32.mrb[0].mxu0
  %v966 = vpop.f32.mrb[0].mxu0
  %v967 = vadd.f32 0.0, %v966
  %v968 = vpop.f32.mrb[0].mxu0
  %969 = vdwg.mxu0
  %v970 = vadd.f32 %v887, %v964
  %v971 = vadd.f32 %v888, %v967
  %s972 = scalar_lea.vmem %s4, 160
  %v973 = vld [vmem:[%s972] sm:$0xf]
  %v974 = vld [vmem:[%s972 + $0x4] sm:$0xf]
  %v975 = vld [vmem:[%s972 + $0x8] sm:$0xf]
  %v976 = vld [vmem:[%s972 + $0xc] sm:$0xf]
  %v977 = vld [vmem:[%s972 + $0x10] sm:$0xf]
  %v978 = vld [vmem:[%s972 + $0x14] sm:$0xf]
  %v979 = vld [vmem:[%s972 + $0x18] sm:$0xf]
  %v980 = vld [vmem:[%s972 + $0x1c] sm:$0xf]
  %vm981 = vsmask.f32 5376
  %v982 = vrot.slane %v569, 2
  %v983 = vrot.slane %v571, 3
  %v984 = vor.u32 %v982, %v983
  %v985 = vrot.slane %v813, 2
  %v986 = vrot.slane %v576, 3
  %v987 = vor.u32 %v985, %v986
  %v988 = vsel %vm981, %v984, %v987
  %v997 = vunpack.c.l.b16 %v973
  %v998 = vunpack.c.l.b16 %v974
  %v999 = vunpack.c.l.b16 %v975
  %v1000 = vunpack.c.l.b16 %v976
  %v1001 = vunpack.c.l.b16 %v977
  %v1002 = vunpack.c.l.b16 %v978
  %v1003 = vunpack.c.l.b16 %v979
  %v1004 = vunpack.c.l.b16 %v980
  %v1005 = vpack.c.b16 %v998, %v997
  %v1006 = vpack.c.b16 %v1000, %v999
  %v1007 = vpack.c.b16 %v1002, %v1001
  %v1008 = vpack.c.b16 %v1004, %v1003
  %v1014 = vsel %vm373, %v988, 0
  %1016 = vmatprep.subr.bf16.mxu0 0
  %1017 = vmatpush1.bf16.msra.mxu0 %v1005
  %1018 = vmatprep.subr.bf16.mxu0 0
  %1019 = vmatpush1.bf16.msra.mxu0 %v1006
  %1020 = vmatprep.subr.bf16.mxu0 0
  %1021 = vmatpush1.bf16.msra.mxu0 %v1007
  %1022 = vmatprep.subr.bf16.mxu0 0
  %1023 = vmatpush1.bf16.msra.mxu0 %v1008
  %1024 = vmatprep.subr.bf16.mxu0 0
  %1025 = vmatpush1.bf16.msra.mxu0 0
  %1026 = vmatprep.subr.bf16.mxu0 0
  %1027 = vmatpush1.bf16.msra.mxu0 0
  %1028 = vmatprep.subr.bf16.mxu0 0
  %1029 = vmatpush1.bf16.msra.mxu0 0
  %1030 = vmatprep.subr.bf16.mxu0 0
  %1031 = vmatpush1.bf16.msra.mxu0 0
  %1032 = vmatprep.subr.bf16.mxu0 0
  %1033 = vmatpush1.bf16.msra.mxu0 0
  %1034 = vmatprep.subr.bf16.mxu0 0
  %1035 = vmatpush1.bf16.msra.mxu0 0
  %1036 = vmatprep.subr.bf16.mxu0 0
  %1037 = vmatpush1.bf16.msra.mxu0 0
  %1038 = vmatprep.subr.bf16.mxu0 0
  %1039 = vmatpush1.bf16.msra.mxu0 0
  %1040 = vmatprep.subr.bf16.mxu0 0
  %1041 = vmatpush1.bf16.msra.mxu0 0
  %1042 = vmatprep.subr.bf16.mxu0 0
  %1043 = vmatpush1.bf16.msra.mxu0 0
  %1044 = vmatprep.subr.bf16.mxu0 0
  %1045 = vmatpush1.bf16.msra.mxu0 0
  %1046 = vmatprep.subr.bf16.mxu0 0
  %1047 = vmatpush1.bf16.msra.mxu0 0
  %1048 = vmatprep.mubr.bf16.mxu0 0
  %1049 = vmatmul.mubr.bf16.gmra.mrb[0].mxu0 %v1014
  %v1050 = vpop.f32.mrb[0].mxu0
  %v1051 = vadd.f32 0.0, %v1050
  %v1052 = vpop.f32.mrb[0].mxu0
  %v1053 = vpop.f32.mrb[0].mxu0
  %v1054 = vadd.f32 0.0, %v1053
  %v1055 = vpop.f32.mrb[0].mxu0
  %1056 = vdwg.mxu0
  %v1057 = vadd.f32 %v970, %v1051
  %v1058 = vadd.f32 %v971, %v1054
  %s1059 = scalar_lea.vmem %s4, 192
  %v1060 = vld [vmem:[%s1059] sm:$0xf]
  %v1061 = vld [vmem:[%s1059 + $0x4] sm:$0xf]
  %v1062 = vld [vmem:[%s1059 + $0x8] sm:$0xf]
  %v1063 = vld [vmem:[%s1059 + $0xc] sm:$0xf]
  %v1064 = vld [vmem:[%s1059 + $0x10] sm:$0xf]
  %v1065 = vld [vmem:[%s1059 + $0x14] sm:$0xf]
  %v1066 = vld [vmem:[%s1059 + $0x18] sm:$0xf]
  %v1067 = vld [vmem:[%s1059 + $0x1c] sm:$0xf]
  %vm1068 = vcmask 1044480
  %v1069 = vrot.slane %v548, 3
  %v1070 = vrot.slane %v557, 3
  %v1071 = vsel %vm1068, %v1069, %v1070
  %v1080 = vunpack.c.l.b16 %v1060
  %v1081 = vunpack.c.l.b16 %v1061
  %v1082 = vunpack.c.l.b16 %v1062
  %v1083 = vunpack.c.l.b16 %v1063
  %v1084 = vunpack.c.l.b16 %v1064
  %v1085 = vunpack.c.l.b16 %v1065
  %v1086 = vunpack.c.l.b16 %v1066
  %v1087 = vunpack.c.l.b16 %v1067
  %v1088 = vpack.c.b16 %v1081, %v1080
  %v1089 = vpack.c.b16 %v1083, %v1082
  %v1090 = vpack.c.b16 %v1085, %v1084
  %v1091 = vpack.c.b16 %v1087, %v1086
  %v1097 = vsel %vm373, %v1071, 0
  %1099 = vmatprep.subr.bf16.mxu0 0
  %1100 = vmatpush1.bf16.msra.mxu0 %v1088
  %1101 = vmatprep.subr.bf16.mxu0 0
  %1102 = vmatpush1.bf16.msra.mxu0 %v1089
  %1103 = vmatprep.subr.bf16.mxu0 0
  %1104 = vmatpush1.bf16.msra.mxu0 %v1090
  %1105 = vmatprep.subr.bf16.mxu0 0
  %1106 = vmatpush1.bf16.msra.mxu0 %v1091
  %1107 = vmatprep.subr.bf16.mxu0 0
  %1108 = vmatpush1.bf16.msra.mxu0 0
  %1109 = vmatprep.subr.bf16.mxu0 0
  %1110 = vmatpush1.bf16.msra.mxu0 0
  %1111 = vmatprep.subr.bf16.mxu0 0
  %1112 = vmatpush1.bf16.msra.mxu0 0
  %1113 = vmatprep.subr.bf16.mxu0 0
  %1114 = vmatpush1.bf16.msra.mxu0 0
  %1115 = vmatprep.subr.bf16.mxu0 0
  %1116 = vmatpush1.bf16.msra.mxu0 0
  %1117 = vmatprep.subr.bf16.mxu0 0
  %1118 = vmatpush1.bf16.msra.mxu0 0
  %1119 = vmatprep.subr.bf16.mxu0 0
  %1120 = vmatpush1.bf16.msra.mxu0 0
  %1121 = vmatprep.subr.bf16.mxu0 0
  %1122 = vmatpush1.bf16.msra.mxu0 0
  %1123 = vmatprep.subr.bf16.mxu0 0
  %1124 = vmatpush1.bf16.msra.mxu0 0
  %1125 = vmatprep.subr.bf16.mxu0 0
  %1126 = vmatpush1.bf16.msra.mxu0 0
  %1127 = vmatprep.subr.bf16.mxu0 0
  %1128 = vmatpush1.bf16.msra.mxu0 0
  %1129 = vmatprep.subr.bf16.mxu0 0
  %1130 = vmatpush1.bf16.msra.mxu0 0
  %1131 = vmatprep.mubr.bf16.mxu0 0
  %1132 = vmatmul.mubr.bf16.gmra.mrb[0].mxu0 %v1097
  %v1133 = vpop.f32.mrb[0].mxu0
  %v1134 = vadd.f32 0.0, %v1133
  %v1135 = vpop.f32.mrb[0].mxu0
  %v1136 = vpop.f32.mrb[0].mxu0
  %v1137 = vadd.f32 0.0, %v1136
  %v1138 = vpop.f32.mrb[0].mxu0
  %1139 = vdwg.mxu0
  %v1140 = vadd.f32 %v1057, %v1134
  %v1141 = vadd.f32 %v1058, %v1137
  %s1142 = scalar_lea.vmem %s4, 224
  %v1143 = vld [vmem:[%s1142] sm:$0xf]
  %v1144 = vld [vmem:[%s1142 + $0x4] sm:$0xf]
  %v1145 = vld [vmem:[%s1142 + $0x8] sm:$0xf]
  %v1146 = vld [vmem:[%s1142 + $0xc] sm:$0xf]
  %v1147 = vld [vmem:[%s1142 + $0x10] sm:$0xf]
  %v1148 = vld [vmem:[%s1142 + $0x14] sm:$0xf]
  %v1149 = vld [vmem:[%s1142 + $0x18] sm:$0xf]
  %v1150 = vld [vmem:[%s1142 + $0x1c] sm:$0xf]
  %vm1151 = vsmask.f32 4352
  %v1152 = vrot.slane %v569, 3
  %v1153 = vrot.slane %v571, 4
  %v1154 = vor.u32 %v1152, %v1153
  %v1155 = vrot.slane %v813, 3
  %v1156 = vrot.slane %v576, 4
  %v1157 = vor.u32 %v1155, %v1156
  %v1158 = vsel %vm1151, %v1154, %v1157
  %v1167 = vunpack.c.l.b16 %v1143
  %v1168 = vunpack.c.l.b16 %v1144
  %v1169 = vunpack.c.l.b16 %v1145
  %v1170 = vunpack.c.l.b16 %v1146
  %v1171 = vunpack.c.l.b16 %v1147
  %v1172 = vunpack.c.l.b16 %v1148
  %v1173 = vunpack.c.l.b16 %v1149
  %v1174 = vunpack.c.l.b16 %v1150
  %v1175 = vpack.c.b16 %v1168, %v1167
  %v1176 = vpack.c.b16 %v1170, %v1169
  %v1177 = vpack.c.b16 %v1172, %v1171
  %v1178 = vpack.c.b16 %v1174, %v1173
  %v1184 = vsel %vm373, %v1158, 0
  %1186 = vmatprep.subr.bf16.mxu0 0
  %1187 = vmatpush1.bf16.msra.mxu0 %v1175
  %1188 = vmatprep.subr.bf16.mxu0 0
  %1189 = vmatpush1.bf16.msra.mxu0 %v1176
  %1190 = vmatprep.subr.bf16.mxu0 0
  %1191 = vmatpush1.bf16.msra.mxu0 %v1177
  %1192 = vmatprep.subr.bf16.mxu0 0
  %1193 = vmatpush1.bf16.msra.mxu0 %v1178
  %1194 = vmatprep.subr.bf16.mxu0 0
  %1195 = vmatpush1.bf16.msra.mxu0 0
  %1196 = vmatprep.subr.bf16.mxu0 0
  %1197 = vmatpush1.bf16.msra.mxu0 0
  %1198 = vmatprep.subr.bf16.mxu0 0
  %1199 = vmatpush1.bf16.msra.mxu0 0
  %1200 = vmatprep.subr.bf16.mxu0 0
  %1201 = vmatpush1.bf16.msra.mxu0 0
  %1202 = vmatprep.subr.bf16.mxu0 0
  %1203 = vmatpush1.bf16.msra.mxu0 0
  %1204 = vmatprep.subr.bf16.mxu0 0
  %1205 = vmatpush1.bf16.msra.mxu0 0
  %1206 = vmatprep.subr.bf16.mxu0 0
  %1207 = vmatpush1.bf16.msra.mxu0 0
  %1208 = vmatprep.subr.bf16.mxu0 0
  %1209 = vmatpush1.bf16.msra.mxu0 0
  %1210 = vmatprep.subr.bf16.mxu0 0
  %1211 = vmatpush1.bf16.msra.mxu0 0
  %1212 = vmatprep.subr.bf16.mxu0 0
  %1213 = vmatpush1.bf16.msra.mxu0 0
  %1214 = vmatprep.subr.bf16.mxu0 0
  %1215 = vmatpush1.bf16.msra.mxu0 0
  %1216 = vmatprep.subr.bf16.mxu0 0
  %1217 = vmatpush1.bf16.msra.mxu0 0
  %1218 = vmatprep.mubr.bf16.mxu0 0
  %1219 = vmatmul.mubr.bf16.gmra.mrb[0].mxu0 %v1184
  %v1220 = vpop.f32.mrb[0].mxu0
  %v1221 = vadd.f32 0.0, %v1220
  %v1222 = vpop.f32.mrb[0].mxu0
  %v1223 = vpop.f32.mrb[0].mxu0
  %v1224 = vadd.f32 0.0, %v1223
  %v1225 = vpop.f32.mrb[0].mxu0
  %1226 = vdwg.mxu0
  %v1227 = vadd.f32 %v1140, %v1221
  %v1228 = vadd.f32 %v1141, %v1224
  %v1229 = vpack.c.bf16 %v547, %v546
  %s1230 = scalar_lea.vmem %s4, 256
  %v1231 = vld [vmem:[%s1230] sm:$0xf]
  %v1232 = vld [vmem:[%s1230 + $0x4] sm:$0xf]
  %v1233 = vld [vmem:[%s1230 + $0x8] sm:$0xf]
  %v1234 = vld [vmem:[%s1230 + $0xc] sm:$0xf]
  %v1235 = vld [vmem:[%s1230 + $0x10] sm:$0xf]
  %v1236 = vld [vmem:[%s1230 + $0x14] sm:$0xf]
  %v1237 = vld [vmem:[%s1230 + $0x18] sm:$0xf]
  %v1238 = vld [vmem:[%s1230 + $0x1c] sm:$0xf]
  %v1247 = vunpack.c.l.b16 %v1231
  %v1248 = vunpack.c.l.b16 %v1232
  %v1249 = vunpack.c.l.b16 %v1233
  %v1250 = vunpack.c.l.b16 %v1234
  %v1251 = vunpack.c.l.b16 %v1235
  %v1252 = vunpack.c.l.b16 %v1236
  %v1253 = vunpack.c.l.b16 %v1237
  %v1254 = vunpack.c.l.b16 %v1238
  %v1255 = vpack.c.b16 %v1248, %v1247
  %v1256 = vpack.c.b16 %v1250, %v1249
  %v1257 = vpack.c.b16 %v1252, %v1251
  %v1258 = vpack.c.b16 %v1254, %v1253
  %v1264 = vsel %vm373, %v1229, 0
  %1266 = vmatprep.subr.bf16.mxu0 0
  %1267 = vmatpush1.bf16.msra.mxu0 %v1255
  %1268 = vmatprep.subr.bf16.mxu0 0
  %1269 = vmatpush1.bf16.msra.mxu0 %v1256
  %1270 = vmatprep.subr.bf16.mxu0 0
  %1271 = vmatpush1.bf16.msra.mxu0 %v1257
  %1272 = vmatprep.subr.bf16.mxu0 0
  %1273 = vmatpush1.bf16.msra.mxu0 %v1258
  %1274 = vmatprep.subr.bf16.mxu0 0
  %1275 = vmatpush1.bf16.msra.mxu0 0
  %1276 = vmatprep.subr.bf16.mxu0 0
  %1277 = vmatpush1.bf16.msra.mxu0 0
  %1278 = vmatprep.subr.bf16.mxu0 0
  %1279 = vmatpush1.bf16.msra.mxu0 0
  %1280 = vmatprep.subr.bf16.mxu0 0
  %1281 = vmatpush1.bf16.msra.mxu0 0
  %1282 = vmatprep.subr.bf16.mxu0 0
  %1283 = vmatpush1.bf16.msra.mxu0 0
  %1284 = vmatprep.subr.bf16.mxu0 0
  %1285 = vmatpush1.bf16.msra.mxu0 0
  %1286 = vmatprep.subr.bf16.mxu0 0
  %1287 = vmatpush1.bf16.msra.mxu0 0
  %1288 = vmatprep.subr.bf16.mxu0 0
  %1289 = vmatpush1.bf16.msra.mxu0 0
  %1290 = vmatprep.subr.bf16.mxu0 0
  %1291 = vmatpush1.bf16.msra.mxu0 0
  %1292 = vmatprep.subr.bf16.mxu0 0
  %1293 = vmatpush1.bf16.msra.mxu0 0
  %1294 = vmatprep.subr.bf16.mxu0 0
  %1295 = vmatpush1.bf16.msra.mxu0 0
  %1296 = vmatprep.subr.bf16.mxu0 0
  %1297 = vmatpush1.bf16.msra.mxu0 0
  %1298 = vmatprep.mubr.bf16.mxu0 0
  %1299 = vmatmul.mubr.bf16.gmra.mrb[0].mxu0 %v1264
  %v1300 = vpop.f32.mrb[0].mxu0
  %v1301 = vadd.f32 0.0, %v1300
  %v1302 = vpop.f32.mrb[0].mxu0
  %v1303 = vpop.f32.mrb[0].mxu0
  %v1304 = vadd.f32 0.0, %v1303
  %v1305 = vpop.f32.mrb[0].mxu0
  %1306 = vdwg.mxu0
  %v1307 = vadd.f32 %v1227, %v1301
  %v1308 = vadd.f32 %v1228, %v1304
  %v1309 = vld [vmem:[%s5] sm:$0x1]
  %v1311 = vlaneseq
  %v1312 = vshrl.u32 %v1311, 7
  %v1313 = vsub.s32 0, %v1312
  %v1314 = vrot.slane %v1309, %v1313
  %v1316 = vadd.f32 %v1307, %v1314
  %v1317 = vadd.f32 %v1308, %v1314
  %v1318 = vld [vmem:[%s6] sm:$0xf]
  %v1319 = vld [vmem:[%s6 + $0x4] sm:$0xf]
  %v1320 = vunpack.c.l.bf16 %v1318
  %v1321 = vunpack.c.l.bf16 %v1319
  %v1322 = vadd.f32 %v1316, %v1320
  %v1323 = vadd.f32 %v1317, %v1321
  %v1324 = vmax.f32 %v1322, 0.0
  %v1325 = vmax.f32 %v1323, 0.0
  %v1326 = vpack.c.bf16 %v1325, %v1324
  %v1328 = vunpack.c.l.b16 %v1326
  %v1329 = vunpack.c.h.b16 %v1326
  %v1330 = vpack.c.b16 %v1328, %v1328
  %v1331 = vpack.c.b16 %v1329, %v1329
  %vm1334 = vcmask 519168
  %1335 = vst.msk [vmem:[%s7] sm:$0xf] %vm1334, %v1330
  %1336 = vst.msk [vmem:[%s7 + $0x4] sm:$0xf] %vm1334, %v1331
  // Predicated region
  $region30: #{resnet18_forward.18} parent=0 // pred_check
    _
  $region31: #{resnet18_forward.18} parent=0 // pred_check_branch
    %1338 = sbr.rel (0) target = $region33
  $region32: #{resnet18_forward.18} parent=0 // pred_region
    _
  $region33: #{resnet18_forward.18} parent=0 // pred_fallthru
    _
  // Predicated region
  $region34: #{resnet18_forward.18} parent=0 // pred_check
    _
  $region35: #{resnet18_forward.18} parent=0 // pred_check_branch
    %1340 = sbr.rel (0) target = $region37
  $region36: #{resnet18_forward.18} parent=0 // pred_region
    _
  $region37: #{resnet18_forward.18} parent=0 // pred_fallthru
    _

</llo_original>
